<compile_context>
chip_gen: v6e
topology: v6e:2x2x1
jax: 0.10.0
libtpu: 0.0.40
codegen_flags: <defaults>
</compile_context>

<pallas_src>
import functools

import numpy as np
import jax
import jax.numpy as jnp
from jax.experimental import pallas as pl
from jax.experimental.pallas import tpu as pltpu

HIGHEST = jax.lax.Precision.HIGHEST


def _mm(a, b):
    """2-D MXU matmul with f32 accumulation."""
    return jnp.dot(a, b, preferred_element_type=jnp.float32)


# --------------------------------------------------------------------------- #
# Fused kernels: whole DownSimpleNet forward for one single-channel image.
# --------------------------------------------------------------------------- #
def _tail(acc0, g1_ref, r2_ref, g2_ref, o_ref, *, kh1, kh2, h1):
    """Shared layers 1/2 (+ folded 1x1 chain) given the 7x7 output acc0 (H0, W0*F)."""
    # ---- layer 1: 5x5, F -> F, stride 1 (H-taps = static slices) --------------
    acc1 = _mm(acc0[0:h1, :], g1_ref[0])
    for kh in range(1, kh1):
        acc1 = acc1 + _mm(acc0[kh:kh + h1, :], g1_ref[kh])          # (H1, W1*F)

    # ---- layer 2: 3x3, F -> F, stride 2, with the 1x1-1x1-1x1 chain folded into
    # cout (F -> 1), so this directly produces the (H2, W2) output. --------------
    acc2 = _mm(_mm(r2_ref[0], acc1), g2_ref[0])
    for kh in range(1, kh2):
        acc2 = acc2 + _mm(_mm(r2_ref[kh], acc1), g2_ref[kh])        # (H2, W2)

    o_ref[...] = acc2.astype(o_ref.dtype)


def _kernel_stride1(x_ref, g0_ref, g1_ref, r2_ref, g2_ref, o_ref,
                    *, kh0, kh1, kh2, h0, h1):
    """conf.scale != 4: first 7x7 conv has stride 1 -> H-taps via static slices."""
    xv = x_ref[...]                                                  # (H, W)
    acc0 = _mm(xv[0:h0, :], g0_ref[0])
    for kh in range(1, kh0):
        acc0 = acc0 + _mm(xv[kh:kh + h0, :], g0_ref[kh])             # (H0, W0*F)
    _tail(acc0, g1_ref, r2_ref, g2_ref, o_ref, kh1=kh1, kh2=kh2, h1=h1)


def _kernel_stride2(x_ref, r0_ref, g0_ref, g1_ref, r2_ref, g2_ref, o_ref,
                    *, kh0, kh1, kh2, h0, h1):
    """conf.scale == 4: first 7x7 conv has stride 2 -> 0/1 row-select matmuls."""
    xv = x_ref[...]                                                  # (H, W)
    acc0 = _mm(_mm(r0_ref[0], xv), g0_ref[0])
    for kh in range(1, kh0):
        acc0 = acc0 + _mm(_mm(r0_ref[kh], xv), g0_ref[kh])           # (H0, W0*F)
    _tail(acc0, g1_ref, r2_ref, g2_ref, o_ref, kh1=kh1, kh2=kh2, h1=h1)


# --------------------------------------------------------------------------- #
# Host-side weight lowering (pure linear algebra, done once per shape).
# --------------------------------------------------------------------------- #
def _lower_conv_w(w, w_in, stride):
    """Fold kw taps + W-stride + channel mixing of an HWIO conv weight into per-kh
    dense matrices acting on fused (W*Cin,) activation rows.

    G[kh, w*Cin + c, j*Cout + o] = w[kh, w - stride*j, c, o]  (0 where out of band)
    """
    kh, kw, cin, cout = w.shape
    w_out = (w_in - kw) // stride + 1
    wi = jnp.arange(w_in)
    jo = jnp.arange(w_out)
    tap = wi[:, None] - stride * jo[None, :]                   # (w_in, w_out)
    valid = (tap >= 0) & (tap < kw)
    g = w[:, jnp.clip(tap, 0, kw - 1), :, :]                   # (kh, w_in, w_out, cin, cout)
    g = g * valid[None, :, :, None, None].astype(w.dtype)
    g = g.transpose(0, 1, 3, 2, 4)                             # (kh, w_in, cin, w_out, cout)
    return g.reshape(kh, w_in * cin, w_out * cout), w_out


def _row_select(kh, h_out, h_in, stride):
    """R[k, i, r] = 1.0 where r == stride*i + k."""
    i = jnp.arange(h_out)
    r = jnp.arange(h_in)
    k = jnp.arange(kh)
    sel = r[None, None, :] == (stride * i[None, :, None] + k[:, None, None])
    return sel.astype(jnp.float32)


def init_params(key, features=32):
    """Synthetic HWIO weights with the shapes implied by DownSimpleNet.__init__."""
    keys = jax.random.split(key, 6)

    def mk(k, kh, kw, cin, cout):
        fan_in = kh * kw * cin
        return (jax.random.normal(k, (kh, kw, cin, cout), jnp.float32)
                / np.sqrt(fan_in)).astype(jnp.float32)

    return {
        "w0": mk(keys[0], 7, 7, 1, features),          # first_layer (7x7)
        "w1": mk(keys[1], 5, 5, features, features),   # feature_block[0] (5x5)
        "w2": mk(keys[2], 3, 3, features, features),   # feature_block[1] (3x3, stride 2)
        "w3": mk(keys[3], 1, 1, features, features),   # feature_block[2] (1x1)
        "w4": mk(keys[4], 1, 1, features, features),   # feature_block[3] (1x1)
        "w5": mk(keys[5], 1, 1, features, 1),          # final_layer (1x1)
    }


# --------------------------------------------------------------------------- #
# Forward pass (matches DownSimpleNet.forward)
# --------------------------------------------------------------------------- #
def down_simple_net(x_nchw, params, scale=2):
    """x_nchw: (B, 3, H, W) float32 NCHW -> (B, 3, h, w)."""
    B, C, H, W = x_nchw.shape
    assert C == 3
    F = params["w1"].shape[2]
    s0 = 2 if scale == 4 else 1

    # VALID-conv geometry: 7x7/s0 -> 5x5 -> 3x3/s2 -> 1x1 x3
    H0, W0 = (H - 7) // s0 + 1, (W - 7) // s0 + 1
    H1, W1 = H0 - 4, W0 - 4
    H2, W2 = (H1 - 3) // 2 + 1, (W1 - 3) // 2 + 1

    # Fold the bias-free / activation-free 1x1 chain (F->F->F->1) into layer 2's cout.
    wfold = jnp.dot(jnp.dot(params["w3"][0, 0], params["w4"][0, 0], precision=HIGHEST),
                    params["w5"][0, 0], precision=HIGHEST)                  # (F, 1)
    w2f = jnp.einsum('hwio,op->hwip', params["w2"], wfold,
                     precision=HIGHEST)                                     # (3,3,F,1)

    # ---- lower the conv weights into matmul form (once per shape) --------------
    g0, _ = _lower_conv_w(params["w0"], W, s0)       # (7, W,    W0*F)
    g1, _ = _lower_conv_w(params["w1"], W0, 1)       # (5, W0*F, W1*F)
    g2, _ = _lower_conv_w(w2f, W1, 2)                # (3, W1*F, W2)
    r2 = _row_select(3, H2, H1, 2)                   # (3, H2, H1)

    # make_1ch: (B, 3, H, W) -> (3B, H, W) single-channel images (free reshape).
    x1 = x_nchw.reshape(B * 3, H, W)
    N = B * 3

    const3 = lambda n: (0, 0, 0)
    img_spec = pl.BlockSpec((None, H, W), lambda n: (n, 0, 0))
    out_spec = pl.BlockSpec((None, H2, W2), lambda n: (n, 0, 0))

    if s0 == 1:
        kernel = functools.partial(_kernel_stride1, kh0=7, kh1=5, kh2=3, h0=H0, h1=H1)
        operands = (x1, g0, g1, r2, g2)
        in_specs = [img_spec,
                    pl.BlockSpec(g0.shape, const3),
                    pl.BlockSpec(g1.shape, const3),
                    pl.BlockSpec(r2.shape, const3),
                    pl.BlockSpec(g2.shape, const3)]
    else:
        r0 = _row_select(7, H0, H, s0)               # (7, H0, H)
        kernel = functools.partial(_kernel_stride2, kh0=7, kh1=5, kh2=3, h0=H0, h1=H1)
        operands = (x1, r0, g0, g1, r2, g2)
        in_specs = [img_spec,
                    pl.BlockSpec(r0.shape, const3),
                    pl.BlockSpec(g0.shape, const3),
                    pl.BlockSpec(g1.shape, const3),
                    pl.BlockSpec(r2.shape, const3),
                    pl.BlockSpec(g2.shape, const3)]

    out = pl.pallas_call(
        kernel,
        out_shape=jax.ShapeDtypeStruct((N, H2, W2), x_nchw.dtype),
        grid=(N,),
        in_specs=in_specs,
        out_specs=out_spec,
        compiler_params=pltpu.CompilerParams(
            dimension_semantics=("parallel",),        # v7x: shard images over both TCs
            vmem_limit_bytes=64 * 1024 * 1024),
    )(*operands)

    # make_3ch: (3B, h, w) -> (B, 3, h, w) (free reshape).
    return out.reshape(B, 3, H2, W2)


def down_simple_net_ref(x_nchw, params, scale=2):
    """Pure-JAX reference (lax.conv, unfolded weights) to validate the kernel."""
    B, C, H, W = x_nchw.shape
    s0 = 2 if scale == 4 else 1
    strides = {"w0": s0, "w1": 1, "w2": 2, "w3": 1, "w4": 1, "w5": 1}
    x = x_nchw.reshape(B * 3, 1, H, W).transpose(0, 2, 3, 1)   # NHWC, Cin=1
    for name in ("w0", "w1", "w2", "w3", "w4", "w5"):
        s = strides[name]
        x = jax.lax.conv_general_dilated(
            x, params[name], window_strides=(s, s), padding="VALID",
            dimension_numbers=("NHWC", "HWIO", "NHWC"), precision=HIGHEST)
    x = x.transpose(0, 3, 1, 2)
    n, _, h, w = x.shape
    return x.reshape(n // 3, 3, h, w)


if __name__ == "__main__":
    key = jax.random.PRNGKey(0)
    kx, kp = jax.random.split(key)

    features = 32
    params = init_params(kp, features=features)

    # --- conf.scale != 4 (first conv stride 1) ---------------------------------
    B, H, W = 2, 24, 24
    x = jax.random.normal(kx, (B, 3, H, W), jnp.float32)
    fwd = jax.jit(functools.partial(down_simple_net, scale=2))
    out = jax.block_until_ready(fwd(x, params))
    ref = down_simple_net_ref(x, params, scale=2)
    # 24 -(7x7)-> 18 -(5x5)-> 14 -(3x3,s2)-> 6 -(1x1 x3)-> 6
    assert out.shape == ref.shape == (B, 3, 6, 6), (out.shape, ref.shape)
    np.testing.assert_allclose(np.asarray(out), np.asarray(ref), rtol=1e-3, atol=1e-3)

    # --- conf.scale == 4 (first conv stride 2) ----------------------------------
    B4, H4, W4 = 2, 26, 26
    x4 = jax.random.normal(jax.random.PRNGKey(1), (B4, 3, H4, W4), jnp.float32)
    fwd4 = jax.jit(functools.partial(down_simple_net, scale=4))
    out4 = jax.block_until_ready(fwd4(x4, params))
    ref4 = down_simple_net_ref(x4, params, scale=4)
    # 26 -(7x7,s2)-> 10 -(5x5)-> 6 -(3x3,s2)-> 2 -(1x1 x3)-> 2
    assert out4.shape == ref4.shape == (B4, 3, 2, 2), (out4.shape, ref4.shape)
    np.testing.assert_allclose(np.asarray(out4), np.asarray(ref4), rtol=1e-3, atol=1e-3)

    print("KERNEL_OK")
</pallas_src>

<mosaic_0001>
module attributes {stable_mosaic.version = 11 : i64} {
  func.func @_kernel_stride1(%arg0: i32, %arg1: memref<1x24x24xf32, #tpu.memory_space<vmem>>, %arg2: memref<7x24x576xf32, #tpu.memory_space<vmem>>, %arg3: memref<5x576x448xf32, #tpu.memory_space<vmem>>, %arg4: memref<3x6x14xf32, #tpu.memory_space<vmem>>, %arg5: memref<3x448x6xf32, #tpu.memory_space<vmem>>, %arg6: memref<1x6x6xf32, #tpu.memory_space<vmem>>) attributes {dimension_semantics = [#tpu.dimension_semantics<parallel>], iteration_bounds = array<i64: 6>, scalar_prefetch = 0 : i64, scratch_operands = 0 : i64, tpu.core_type = #tpu.core_type<tc>, window_params = [{transform_indices = @transform_0, window_bounds = array<i64: 1, 24, 24>}, {pipeline_mode = #tpu.pipeline_mode<synchronous>, transform_indices = @transform_1, window_bounds = array<i64: 7, 24, 576>}, {pipeline_mode = #tpu.pipeline_mode<synchronous>, transform_indices = @transform_2, window_bounds = array<i64: 5, 576, 448>}, {pipeline_mode = #tpu.pipeline_mode<synchronous>, transform_indices = @transform_3, window_bounds = array<i64: 3, 6, 14>}, {pipeline_mode = #tpu.pipeline_mode<synchronous>, transform_indices = @transform_4, window_bounds = array<i64: 3, 448, 6>}, {transform_indices = @transform_5, window_bounds = array<i64: 1, 6, 6>}]} {
    %c0 = arith.constant 0 : index
    %c0_0 = arith.constant 0 : index
    %c0_1 = arith.constant 0 : index
    %0 = vector.load %arg1[%c0, %c0_0, %c0_1] : memref<1x24x24xf32, #tpu.memory_space<vmem>>, vector<1x24x24xf32>
    %1 = vector.shape_cast %0 : vector<1x24x24xf32> to vector<24x24xf32>
    %2 = vector.extract_strided_slice %1 {offsets = [0, 0], sizes = [18, 24], strides = [1, 1]} : vector<24x24xf32> to vector<18x24xf32>
    %c0_2 = arith.constant 0 : index
    %c0_3 = arith.constant 0 : index
    %c0_4 = arith.constant 0 : index
    %3 = vector.load %arg2[%c0_2, %c0_3, %c0_4] : memref<7x24x576xf32, #tpu.memory_space<vmem>>, vector<1x24x576xf32>
    %4 = vector.shape_cast %3 : vector<1x24x576xf32> to vector<24x576xf32>
    %cst = arith.constant dense<0.000000e+00> : vector<18x576xf32>
    %5 = tpu.matmul %2, %4, %cst {dimension_numbers = #tpu.dot_dimension_numbers<[1], [0], [0], [1], [0, 0, 1, 1], [], []>} : vector<18x24xf32>, vector<24x576xf32>, vector<18x576xf32> -> vector<18x576xf32>
    %6 = vector.extract_strided_slice %1 {offsets = [1, 0], sizes = [18, 24], strides = [1, 1]} : vector<24x24xf32> to vector<18x24xf32>
    %c1 = arith.constant 1 : index
    %c0_5 = arith.constant 0 : index
    %c0_6 = arith.constant 0 : index
    %7 = vector.load %arg2[%c1, %c0_5, %c0_6] : memref<7x24x576xf32, #tpu.memory_space<vmem>>, vector<1x24x576xf32>
    %8 = vector.shape_cast %7 : vector<1x24x576xf32> to vector<24x576xf32>
    %cst_7 = arith.constant dense<0.000000e+00> : vector<18x576xf32>
    %9 = tpu.matmul %6, %8, %cst_7 {dimension_numbers = #tpu.dot_dimension_numbers<[1], [0], [0], [1], [0, 0, 1, 1], [], []>} : vector<18x24xf32>, vector<24x576xf32>, vector<18x576xf32> -> vector<18x576xf32>
    %10 = arith.addf %5, %9 : vector<18x576xf32>
    %11 = vector.extract_strided_slice %1 {offsets = [2, 0], sizes = [18, 24], strides = [1, 1]} : vector<24x24xf32> to vector<18x24xf32>
    %c2 = arith.constant 2 : index
    %c0_8 = arith.constant 0 : index
    %c0_9 = arith.constant 0 : index
    %12 = vector.load %arg2[%c2, %c0_8, %c0_9] : memref<7x24x576xf32, #tpu.memory_space<vmem>>, vector<1x24x576xf32>
    %13 = vector.shape_cast %12 : vector<1x24x576xf32> to vector<24x576xf32>
    %cst_10 = arith.constant dense<0.000000e+00> : vector<18x576xf32>
    %14 = tpu.matmul %11, %13, %cst_10 {dimension_numbers = #tpu.dot_dimension_numbers<[1], [0], [0], [1], [0, 0, 1, 1], [], []>} : vector<18x24xf32>, vector<24x576xf32>, vector<18x576xf32> -> vector<18x576xf32>
    %15 = arith.addf %10, %14 : vector<18x576xf32>
    %16 = vector.extract_strided_slice %1 {offsets = [3, 0], sizes = [18, 24], strides = [1, 1]} : vector<24x24xf32> to vector<18x24xf32>
    %c3 = arith.constant 3 : index
    %c0_11 = arith.constant 0 : index
    %c0_12 = arith.constant 0 : index
    %17 = vector.load %arg2[%c3, %c0_11, %c0_12] : memref<7x24x576xf32, #tpu.memory_space<vmem>>, vector<1x24x576xf32>
    %18 = vector.shape_cast %17 : vector<1x24x576xf32> to vector<24x576xf32>
    %cst_13 = arith.constant dense<0.000000e+00> : vector<18x576xf32>
    %19 = tpu.matmul %16, %18, %cst_13 {dimension_numbers = #tpu.dot_dimension_numbers<[1], [0], [0], [1], [0, 0, 1, 1], [], []>} : vector<18x24xf32>, vector<24x576xf32>, vector<18x576xf32> -> vector<18x576xf32>
    %20 = arith.addf %15, %19 : vector<18x576xf32>
    %21 = vector.extract_strided_slice %1 {offsets = [4, 0], sizes = [18, 24], strides = [1, 1]} : vector<24x24xf32> to vector<18x24xf32>
    %c4 = arith.constant 4 : index
    %c0_14 = arith.constant 0 : index
    %c0_15 = arith.constant 0 : index
    %22 = vector.load %arg2[%c4, %c0_14, %c0_15] : memref<7x24x576xf32, #tpu.memory_space<vmem>>, vector<1x24x576xf32>
    %23 = vector.shape_cast %22 : vector<1x24x576xf32> to vector<24x576xf32>
    %cst_16 = arith.constant dense<0.000000e+00> : vector<18x576xf32>
    %24 = tpu.matmul %21, %23, %cst_16 {dimension_numbers = #tpu.dot_dimension_numbers<[1], [0], [0], [1], [0, 0, 1, 1], [], []>} : vector<18x24xf32>, vector<24x576xf32>, vector<18x576xf32> -> vector<18x576xf32>
    %25 = arith.addf %20, %24 : vector<18x576xf32>
    %26 = vector.extract_strided_slice %1 {offsets = [5, 0], sizes = [18, 24], strides = [1, 1]} : vector<24x24xf32> to vector<18x24xf32>
    %c5 = arith.constant 5 : index
    %c0_17 = arith.constant 0 : index
    %c0_18 = arith.constant 0 : index
    %27 = vector.load %arg2[%c5, %c0_17, %c0_18] : memref<7x24x576xf32, #tpu.memory_space<vmem>>, vector<1x24x576xf32>
    %28 = vector.shape_cast %27 : vector<1x24x576xf32> to vector<24x576xf32>
    %cst_19 = arith.constant dense<0.000000e+00> : vector<18x576xf32>
    %29 = tpu.matmul %26, %28, %cst_19 {dimension_numbers = #tpu.dot_dimension_numbers<[1], [0], [0], [1], [0, 0, 1, 1], [], []>} : vector<18x24xf32>, vector<24x576xf32>, vector<18x576xf32> -> vector<18x576xf32>
    %30 = arith.addf %25, %29 : vector<18x576xf32>
    %31 = vector.extract_strided_slice %1 {offsets = [6, 0], sizes = [18, 24], strides = [1, 1]} : vector<24x24xf32> to vector<18x24xf32>
    %c6 = arith.constant 6 : index
    %c0_20 = arith.constant 0 : index
    %c0_21 = arith.constant 0 : index
    %32 = vector.load %arg2[%c6, %c0_20, %c0_21] : memref<7x24x576xf32, #tpu.memory_space<vmem>>, vector<1x24x576xf32>
    %33 = vector.shape_cast %32 : vector<1x24x576xf32> to vector<24x576xf32>
    %cst_22 = arith.constant dense<0.000000e+00> : vector<18x576xf32>
    %34 = tpu.matmul %31, %33, %cst_22 {dimension_numbers = #tpu.dot_dimension_numbers<[1], [0], [0], [1], [0, 0, 1, 1], [], []>} : vector<18x24xf32>, vector<24x576xf32>, vector<18x576xf32> -> vector<18x576xf32>
    %35 = arith.addf %30, %34 : vector<18x576xf32>
    %36 = vector.extract_strided_slice %35 {offsets = [0, 0], sizes = [14, 576], strides = [1, 1]} : vector<18x576xf32> to vector<14x576xf32>
    %c0_23 = arith.constant 0 : index
    %c0_24 = arith.constant 0 : index
    %c0_25 = arith.constant 0 : index
    %37 = vector.load %arg3[%c0_23, %c0_24, %c0_25] : memref<5x576x448xf32, #tpu.memory_space<vmem>>, vector<1x576x448xf32>
    %38 = vector.shape_cast %37 : vector<1x576x448xf32> to vector<576x448xf32>
    %cst_26 = arith.constant dense<0.000000e+00> : vector<14x448xf32>
    %39 = tpu.matmul %36, %38, %cst_26 {dimension_numbers = #tpu.dot_dimension_numbers<[1], [0], [0], [1], [0, 0, 1, 1], [], []>} : vector<14x576xf32>, vector<576x448xf32>, vector<14x448xf32> -> vector<14x448xf32>
    %40 = vector.extract_strided_slice %35 {offsets = [1, 0], sizes = [14, 576], strides = [1, 1]} : vector<18x576xf32> to vector<14x576xf32>
    %c1_27 = arith.constant 1 : index
    %c0_28 = arith.constant 0 : index
    %c0_29 = arith.constant 0 : index
    %41 = vector.load %arg3[%c1_27, %c0_28, %c0_29] : memref<5x576x448xf32, #tpu.memory_space<vmem>>, vector<1x576x448xf32>
    %42 = vector.shape_cast %41 : vector<1x576x448xf32> to vector<576x448xf32>
    %cst_30 = arith.constant dense<0.000000e+00> : vector<14x448xf32>
    %43 = tpu.matmul %40, %42, %cst_30 {dimension_numbers = #tpu.dot_dimension_numbers<[1], [0], [0], [1], [0, 0, 1, 1], [], []>} : vector<14x576xf32>, vector<576x448xf32>, vector<14x448xf32> -> vector<14x448xf32>
    %44 = arith.addf %39, %43 : vector<14x448xf32>
    %45 = vector.extract_strided_slice %35 {offsets = [2, 0], sizes = [14, 576], strides = [1, 1]} : vector<18x576xf32> to vector<14x576xf32>
    %c2_31 = arith.constant 2 : index
    %c0_32 = arith.constant 0 : index
    %c0_33 = arith.constant 0 : index
    %46 = vector.load %arg3[%c2_31, %c0_32, %c0_33] : memref<5x576x448xf32, #tpu.memory_space<vmem>>, vector<1x576x448xf32>
    %47 = vector.shape_cast %46 : vector<1x576x448xf32> to vector<576x448xf32>
    %cst_34 = arith.constant dense<0.000000e+00> : vector<14x448xf32>
    %48 = tpu.matmul %45, %47, %cst_34 {dimension_numbers = #tpu.dot_dimension_numbers<[1], [0], [0], [1], [0, 0, 1, 1], [], []>} : vector<14x576xf32>, vector<576x448xf32>, vector<14x448xf32> -> vector<14x448xf32>
    %49 = arith.addf %44, %48 : vector<14x448xf32>
    %50 = vector.extract_strided_slice %35 {offsets = [3, 0], sizes = [14, 576], strides = [1, 1]} : vector<18x576xf32> to vector<14x576xf32>
    %c3_35 = arith.constant 3 : index
    %c0_36 = arith.constant 0 : index
    %c0_37 = arith.constant 0 : index
    %51 = vector.load %arg3[%c3_35, %c0_36, %c0_37] : memref<5x576x448xf32, #tpu.memory_space<vmem>>, vector<1x576x448xf32>
    %52 = vector.shape_cast %51 : vector<1x576x448xf32> to vector<576x448xf32>
    %cst_38 = arith.constant dense<0.000000e+00> : vector<14x448xf32>
    %53 = tpu.matmul %50, %52, %cst_38 {dimension_numbers = #tpu.dot_dimension_numbers<[1], [0], [0], [1], [0, 0, 1, 1], [], []>} : vector<14x576xf32>, vector<576x448xf32>, vector<14x448xf32> -> vector<14x448xf32>
    %54 = arith.addf %49, %53 : vector<14x448xf32>
    %55 = vector.extract_strided_slice %35 {offsets = [4, 0], sizes = [14, 576], strides = [1, 1]} : vector<18x576xf32> to vector<14x576xf32>
    %c4_39 = arith.constant 4 : index
    %c0_40 = arith.constant 0 : index
    %c0_41 = arith.constant 0 : index
    %56 = vector.load %arg3[%c4_39, %c0_40, %c0_41] : memref<5x576x448xf32, #tpu.memory_space<vmem>>, vector<1x576x448xf32>
    %57 = vector.shape_cast %56 : vector<1x576x448xf32> to vector<576x448xf32>
    %cst_42 = arith.constant dense<0.000000e+00> : vector<14x448xf32>
    %58 = tpu.matmul %55, %57, %cst_42 {dimension_numbers = #tpu.dot_dimension_numbers<[1], [0], [0], [1], [0, 0, 1, 1], [], []>} : vector<14x576xf32>, vector<576x448xf32>, vector<14x448xf32> -> vector<14x448xf32>
    %59 = arith.addf %54, %58 : vector<14x448xf32>
    %c0_43 = arith.constant 0 : index
    %c0_44 = arith.constant 0 : index
    %c0_45 = arith.constant 0 : index
    %60 = vector.load %arg4[%c0_43, %c0_44, %c0_45] : memref<3x6x14xf32, #tpu.memory_space<vmem>>, vector<1x6x14xf32>
    %61 = vector.shape_cast %60 : vector<1x6x14xf32> to vector<6x14xf32>
    %cst_46 = arith.constant dense<0.000000e+00> : vector<6x448xf32>
    %62 = tpu.matmul %61, %59, %cst_46 {dimension_numbers = #tpu.dot_dimension_numbers<[1], [0], [0], [1], [0, 0, 1, 1], [], []>} : vector<6x14xf32>, vector<14x448xf32>, vector<6x448xf32> -> vector<6x448xf32>
    %c0_47 = arith.constant 0 : index
    %c0_48 = arith.constant 0 : index
    %c0_49 = arith.constant 0 : index
    %63 = vector.load %arg5[%c0_47, %c0_48, %c0_49] : memref<3x448x6xf32, #tpu.memory_space<vmem>>, vector<1x448x6xf32>
    %64 = vector.shape_cast %63 : vector<1x448x6xf32> to vector<448x6xf32>
    %cst_50 = arith.constant dense<0.000000e+00> : vector<6x6xf32>
    %65 = tpu.matmul %62, %64, %cst_50 {dimension_numbers = #tpu.dot_dimension_numbers<[1], [0], [0], [1], [0, 0, 1, 1], [], []>} : vector<6x448xf32>, vector<448x6xf32>, vector<6x6xf32> -> vector<6x6xf32>
    %c1_51 = arith.constant 1 : index
    %c0_52 = arith.constant 0 : index
    %c0_53 = arith.constant 0 : index
    %66 = vector.load %arg4[%c1_51, %c0_52, %c0_53] : memref<3x6x14xf32, #tpu.memory_space<vmem>>, vector<1x6x14xf32>
    %67 = vector.shape_cast %66 : vector<1x6x14xf32> to vector<6x14xf32>
    %cst_54 = arith.constant dense<0.000000e+00> : vector<6x448xf32>
    %68 = tpu.matmul %67, %59, %cst_54 {dimension_numbers = #tpu.dot_dimension_numbers<[1], [0], [0], [1], [0, 0, 1, 1], [], []>} : vector<6x14xf32>, vector<14x448xf32>, vector<6x448xf32> -> vector<6x448xf32>
    %c1_55 = arith.constant 1 : index
    %c0_56 = arith.constant 0 : index
    %c0_57 = arith.constant 0 : index
    %69 = vector.load %arg5[%c1_55, %c0_56, %c0_57] : memref<3x448x6xf32, #tpu.memory_space<vmem>>, vector<1x448x6xf32>
    %70 = vector.shape_cast %69 : vector<1x448x6xf32> to vector<448x6xf32>
    %cst_58 = arith.constant dense<0.000000e+00> : vector<6x6xf32>
    %71 = tpu.matmul %68, %70, %cst_58 {dimension_numbers = #tpu.dot_dimension_numbers<[1], [0], [0], [1], [0, 0, 1, 1], [], []>} : vector<6x448xf32>, vector<448x6xf32>, vector<6x6xf32> -> vector<6x6xf32>
    %72 = arith.addf %65, %71 : vector<6x6xf32>
    %c2_59 = arith.constant 2 : index
    %c0_60 = arith.constant 0 : index
    %c0_61 = arith.constant 0 : index
    %73 = vector.load %arg4[%c2_59, %c0_60, %c0_61] : memref<3x6x14xf32, #tpu.memory_space<vmem>>, vector<1x6x14xf32>
    %74 = vector.shape_cast %73 : vector<1x6x14xf32> to vector<6x14xf32>
    %cst_62 = arith.constant dense<0.000000e+00> : vector<6x448xf32>
    %75 = tpu.matmul %74, %59, %cst_62 {dimension_numbers = #tpu.dot_dimension_numbers<[1], [0], [0], [1], [0, 0, 1, 1], [], []>} : vector<6x14xf32>, vector<14x448xf32>, vector<6x448xf32> -> vector<6x448xf32>
    %c2_63 = arith.constant 2 : index
    %c0_64 = arith.constant 0 : index
    %c0_65 = arith.constant 0 : index
    %76 = vector.load %arg5[%c2_63, %c0_64, %c0_65] : memref<3x448x6xf32, #tpu.memory_space<vmem>>, vector<1x448x6xf32>
    %77 = vector.shape_cast %76 : vector<1x448x6xf32> to vector<448x6xf32>
    %cst_66 = arith.constant dense<0.000000e+00> : vector<6x6xf32>
    %78 = tpu.matmul %75, %77, %cst_66 {dimension_numbers = #tpu.dot_dimension_numbers<[1], [0], [0], [1], [0, 0, 1, 1], [], []>} : vector<6x448xf32>, vector<448x6xf32>, vector<6x6xf32> -> vector<6x6xf32>
    %79 = arith.addf %72, %78 : vector<6x6xf32>
    %c0_67 = arith.constant 0 : index
    %c0_68 = arith.constant 0 : index
    %c0_69 = arith.constant 0 : index
    %80 = vector.load %arg6[%c0_67, %c0_68, %c0_69] : memref<1x6x6xf32, #tpu.memory_space<vmem>>, vector<1x6x6xf32>
    %81 = vector.shape_cast %80 : vector<1x6x6xf32> to vector<6x6xf32>
    %82 = vector.shape_cast %79 : vector<6x6xf32> to vector<1x6x6xf32>
    tpu.vector_store %arg6[%c0_67, %c0_68, %c0_69], %82 {strides = array<i32>} : memref<1x6x6xf32, #tpu.memory_space<vmem>>, vector<1x6x6xf32>,
    return
  }
  func.func @transform_0(%arg0: i32) -> (i32, i32, i32) {
    %c0_i32 = arith.constant 0 : i32
    %c0_i32_0 = arith.constant 0 : i32
    %c0_i32_1 = arith.constant 0 : i32
    return %arg0, %c0_i32, %c0_i32_0 : i32, i32, i32
  }
  func.func @transform_1(%arg0: i32) -> (i32, i32, i32) {
    %c0_i32 = arith.constant 0 : i32
    %c0_i32_0 = arith.constant 0 : i32
    %c0_i32_1 = arith.constant 0 : i32
    %c0_i32_2 = arith.constant 0 : i32
    return %c0_i32, %c0_i32_0, %c0_i32_1 : i32, i32, i32
  }
  func.func @transform_2(%arg0: i32) -> (i32, i32, i32) {
    %c0_i32 = arith.constant 0 : i32
    %c0_i32_0 = arith.constant 0 : i32
    %c0_i32_1 = arith.constant 0 : i32
    %c0_i32_2 = arith.constant 0 : i32
    return %c0_i32, %c0_i32_0, %c0_i32_1 : i32, i32, i32
  }
  func.func @transform_3(%arg0: i32) -> (i32, i32, i32) {
    %c0_i32 = arith.constant 0 : i32
    %c0_i32_0 = arith.constant 0 : i32
    %c0_i32_1 = arith.constant 0 : i32
    %c0_i32_2 = arith.constant 0 : i32
    return %c0_i32, %c0_i32_0, %c0_i32_1 : i32, i32, i32
  }
  func.func @transform_4(%arg0: i32) -> (i32, i32, i32) {
    %c0_i32 = arith.constant 0 : i32
    %c0_i32_0 = arith.constant 0 : i32
    %c0_i32_1 = arith.constant 0 : i32
    %c0_i32_2 = arith.constant 0 : i32
    return %c0_i32, %c0_i32_0, %c0_i32_1 : i32, i32, i32
  }
  func.func @transform_5(%arg0: i32) -> (i32, i32, i32) {
    %c0_i32 = arith.constant 0 : i32
    %c0_i32_0 = arith.constant 0 : i32
    %c0_i32_1 = arith.constant 0 : i32
    return %arg0, %c0_i32, %c0_i32_0 : i32, i32, i32
  }
}

</mosaic_0001>

<llo_original>
// kernel: down_simple_net.1
$region0: #{down_simple_net.1}
  #allocation0 [shape = 'u32[]', space=smem, size = 0x4, offset = 0x4, fixed_abs, tag = 'smem constant byte address 0x4 - core index']
  #allocation1 [shape = 'u32[144,128]{1,0:T(1,128)}', space=vmem, size = 0x12000, scoped, tag = 'internal scratch']
  %s0 = inlined_call_operand.vmem [shape: f32[6,24,24], index: 0, kind: input, shape index: {}]
  %s1 = inlined_call_operand.vmem [shape: f32[7,24,576], index: 1, kind: input, shape index: {}]
  %s2 = inlined_call_operand.vmem [shape: f32[5,576,448], index: 2, kind: input, shape index: {}]
  %s3 = inlined_call_operand.vmem [shape: f32[3,6,14], index: 3, kind: input, shape index: {}]
  %s4 = inlined_call_operand.vmem [shape: f32[3,448,6], index: 4, kind: input, shape index: {}]
  %s5 = inlined_call_operand.vmem [shape: f32[6,6,6], index: 5, kind: output, shape index: {}]
  %s6 = sld [smem:[#allocation0]]
  $region53: #{down_simple_net.1} parent=0
    _
  %s8 = ssub.s32 1, %s6
  %s9 = scalar_select 0, %s8, %s6
  loop: start=0, step=1, limit=8
  $region2: #{down_simple_net.1} parent=0 // loop_pre_header
    _
  $region3: #{down_simple_net.1} parent=0 // loop_header
    %s11 = sphi 0, %s15
    %p12 = scmp.ge.s32.totalorder %s11, 8
    %s21 = sphi 0, %s23
    %s24 = sphi 0, %s21
    %s25 = sphi 0, %s24
    %s41 = sphi 0, %s25
    %s45 = sphi 0, %s45
    %s47 = sphi 0, %s45
    %s48 = sphi 0, %s47
    %s62 = sphi 0, %s48
    %s66 = sphi 0, %s66
    %s68 = sphi 0, %s66
    %s69 = sphi 0, %s68
    %s83 = sphi 0, %s69
    %s87 = sphi 0, %s87
    %s89 = sphi 0, %s87
    %s90 = sphi 0, %s89
    %s104 = sphi 0, %s90
    %s108 = sphi 0, %s108
    %s110 = sphi 0, %s108
    %s111 = sphi 0, %s110
    %s125 = sphi 0, %s111
    %s131 = sphi 0, %s133
    %s134 = sphi 0, %s131
    %s135 = sphi 0, %s134
    %s151 = sphi 0, %s135
  $region4: #{down_simple_net.1} parent=0 // loop_header_branch
    %14 = sbr.rel (%p12) target = $region8
  $region5: #{down_simple_net.1} parent=0 // loop_body
    %s16 = ssub.s32 %s11, 1
    %s17 = ssub.s32 %s11, 2
    %s18 = sadd.s32 %s11, 1
    %s19 = ssub.s32 %s11, %s18
    %p20 = scmp.eq.s32.totalorder %s19, 0
    %s22 = sadd.s32 %s21, 1
    %s23 = scalar_select %p20, %s21, %s22
    %p26 = pneg %p20
    %p27 = scmp.eq.s32.totalorder %s11, 5
    %p28 = por %p26, %p27
    %p29 = scmp.ne.s32.totalorder %s21, %s24
    %p30 = scmp.eq.s32.totalorder %s11, 0
    %p31 = por %p29, %p30
    %p32 = scmp.ne.s32.totalorder %s21, %s24
    %p33 = scmp.eq.s32.totalorder %s16, 5
    %p34 = por %p32, %p33
    %p35 = scmp.ne.s32.totalorder %s24, %s25
    %p36 = scmp.eq.s32.totalorder %s16, 0
    %p37 = por %p35, %p36
    %p38 = scmp.ne.s32.totalorder %s24, %s25
    %p39 = scmp.eq.s32.totalorder %s17, 5
    %p40 = por %p38, %p39
    %p42 = scmp.ne.s32.totalorder %s25, %s41
    %p43 = scmp.eq.s32.totalorder %s17, 0
    %p44 = por %p42, %p43
    %s46 = sadd.s32 %s45, 1
    %p49 = scmp.eq.s32.totalorder %s11, 5
    %p50 = scmp.ne.s32.totalorder %s45, %s47
    %p51 = scmp.eq.s32.totalorder %s11, 0
    %p52 = por %p50, %p51
    %p53 = scmp.ne.s32.totalorder %s45, %s47
    %p54 = scmp.eq.s32.totalorder %s16, 5
    %p55 = por %p53, %p54
    %p56 = scmp.ne.s32.totalorder %s47, %s48
    %p57 = scmp.eq.s32.totalorder %s16, 0
    %p58 = por %p56, %p57
    %p59 = scmp.ne.s32.totalorder %s47, %s48
    %p60 = scmp.eq.s32.totalorder %s17, 5
    %p61 = por %p59, %p60
    %p63 = scmp.ne.s32.totalorder %s48, %s62
    %p64 = scmp.eq.s32.totalorder %s17, 0
    %p65 = por %p63, %p64
    %s67 = sadd.s32 %s66, 1
    %p70 = scmp.eq.s32.totalorder %s11, 5
    %p71 = scmp.ne.s32.totalorder %s66, %s68
    %p72 = scmp.eq.s32.totalorder %s11, 0
    %p73 = por %p71, %p72
    %p74 = scmp.ne.s32.totalorder %s66, %s68
    %p75 = scmp.eq.s32.totalorder %s16, 5
    %p76 = por %p74, %p75
    %p77 = scmp.ne.s32.totalorder %s68, %s69
    %p78 = scmp.eq.s32.totalorder %s16, 0
    %p79 = por %p77, %p78
    %p80 = scmp.ne.s32.totalorder %s68, %s69
    %p81 = scmp.eq.s32.totalorder %s17, 5
    %p82 = por %p80, %p81
    %p84 = scmp.ne.s32.totalorder %s69, %s83
    %p85 = scmp.eq.s32.totalorder %s17, 0
    %p86 = por %p84, %p85
    %s88 = sadd.s32 %s87, 1
    %p91 = scmp.eq.s32.totalorder %s11, 5
    %p92 = scmp.ne.s32.totalorder %s87, %s89
    %p93 = scmp.eq.s32.totalorder %s11, 0
    %p94 = por %p92, %p93
    %p95 = scmp.ne.s32.totalorder %s87, %s89
    %p96 = scmp.eq.s32.totalorder %s16, 5
    %p97 = por %p95, %p96
    %p98 = scmp.ne.s32.totalorder %s89, %s90
    %p99 = scmp.eq.s32.totalorder %s16, 0
    %p100 = por %p98, %p99
    %p101 = scmp.ne.s32.totalorder %s89, %s90
    %p102 = scmp.eq.s32.totalorder %s17, 5
    %p103 = por %p101, %p102
    %p105 = scmp.ne.s32.totalorder %s90, %s104
    %p106 = scmp.eq.s32.totalorder %s17, 0
    %p107 = por %p105, %p106
    %s109 = sadd.s32 %s108, 1
    %p112 = scmp.eq.s32.totalorder %s11, 5
    %p113 = scmp.ne.s32.totalorder %s108, %s110
    %p114 = scmp.eq.s32.totalorder %s11, 0
    %p115 = por %p113, %p114
    %p116 = scmp.ne.s32.totalorder %s108, %s110
    %p117 = scmp.eq.s32.totalorder %s16, 5
    %p118 = por %p116, %p117
    %p119 = scmp.ne.s32.totalorder %s110, %s111
    %p120 = scmp.eq.s32.totalorder %s16, 0
    %p121 = por %p119, %p120
    %p122 = scmp.ne.s32.totalorder %s110, %s111
    %p123 = scmp.eq.s32.totalorder %s17, 5
    %p124 = por %p122, %p123
    %p126 = scmp.ne.s32.totalorder %s111, %s125
    %p127 = scmp.eq.s32.totalorder %s17, 0
    %p128 = por %p126, %p127
    %s129 = ssub.s32 %s11, %s18
    %p130 = scmp.eq.s32.totalorder %s129, 0
    %s132 = sadd.s32 %s131, 1
    %s133 = scalar_select %p130, %s131, %s132
    %p136 = pneg %p130
    %p137 = scmp.eq.s32.totalorder %s11, 5
    %p138 = por %p136, %p137
    %p139 = scmp.ne.s32.totalorder %s131, %s134
    %p140 = scmp.eq.s32.totalorder %s11, 0
    %p141 = por %p139, %p140
    %p142 = scmp.ne.s32.totalorder %s131, %s134
    %p143 = scmp.eq.s32.totalorder %s16, 5
    %p144 = por %p142, %p143
    %p145 = scmp.ne.s32.totalorder %s134, %s135
    %p146 = scmp.eq.s32.totalorder %s16, 0
    %p147 = por %p145, %p146
    %p148 = scmp.ne.s32.totalorder %s134, %s135
    %p149 = scmp.eq.s32.totalorder %s17, 5
    %p150 = por %p148, %p149
    %p152 = scmp.ne.s32.totalorder %s135, %s151
    %p153 = scmp.eq.s32.totalorder %s17, 0
    %p154 = por %p152, %p153
    %p155 = scmp.le.s32.totalorder 1, %s11
    %p156 = scmp.lt.s32.totalorder %s11, 7
    %p157 = pnand %p155, %p156
    %p158 = pneg %p157
    // Predicated region
    $region9: #{down_simple_net.1} parent=5 // pred_check
      _
    $region10: #{down_simple_net.1} parent=5 // pred_check_branch
      %160 = sbr.rel (%p157) target = $region12
    $region11: #{down_simple_net.1} parent=5 // pred_region
      %s161 = ssub.s32 %s11, 1
      // Predicated region
      $region13: #{down_simple_net.1} parent=11 // pred_check
        %p162 = pneg %p58
      $region14: #{down_simple_net.1} parent=11 // pred_check_branch
        %164 = sbr.rel (%p162) target = $region16
      $region15: #{down_simple_net.1} parent=11 // pred_region
        _
      $region16: #{down_simple_net.1} parent=11 // pred_fallthru
        _
      // Predicated region
      $region17: #{down_simple_net.1} parent=11 // pred_check
        %p165 = pneg %p79
      $region18: #{down_simple_net.1} parent=11 // pred_check_branch
        %167 = sbr.rel (%p165) target = $region20
      $region19: #{down_simple_net.1} parent=11 // pred_region
        _
      $region20: #{down_simple_net.1} parent=11 // pred_fallthru
        _
      // Predicated region
      $region21: #{down_simple_net.1} parent=11 // pred_check
        %p168 = pneg %p100
      $region22: #{down_simple_net.1} parent=11 // pred_check_branch
        %170 = sbr.rel (%p168) target = $region24
      $region23: #{down_simple_net.1} parent=11 // pred_region
        _
      $region24: #{down_simple_net.1} parent=11 // pred_fallthru
        _
      // Predicated region
      $region25: #{down_simple_net.1} parent=11 // pred_check
        %p171 = pneg %p121
      $region26: #{down_simple_net.1} parent=11 // pred_check_branch
        %173 = sbr.rel (%p171) target = $region28
      $region27: #{down_simple_net.1} parent=11 // pred_region
        _
      $region28: #{down_simple_net.1} parent=11 // pred_fallthru
        _
    $region12: #{down_simple_net.1} parent=5 // pred_fallthru
      _
    %p174 = scmp.lt.s32.totalorder %s11, 6
    // Predicated region
    $region29: #{down_simple_net.1} parent=5 // pred_check
      %p175 = pneg %p174
    $region30: #{down_simple_net.1} parent=5 // pred_check_branch
      %177 = sbr.rel (%p175) target = $region32
    $region31: #{down_simple_net.1} parent=5 // pred_region
      // Predicated region
      $region33: #{down_simple_net.1} parent=31 // pred_check
        %p178 = pneg %p31
      $region34: #{down_simple_net.1} parent=31 // pred_check_branch
        %180 = sbr.rel (%p178) target = $region36
      $region35: #{down_simple_net.1} parent=31 // pred_region
        %p181 = scmp.lt.s32.totalorder %s11, 5
        %s182 = scalar_select %p181, %s11, 5
        %s183 = smul.addr %s182, 3
        %s184 = smul.addr %s183, 8
        %s185 = scalar_lea.vmem %s0, %s184
      $region36: #{down_simple_net.1} parent=31 // pred_fallthru
        _
    $region32: #{down_simple_net.1} parent=5 // pred_fallthru
      _
    %p186 = scmp.le.s32.totalorder 1, %s11
    %p187 = scmp.lt.s32.totalorder %s11, 7
    %p188 = pnand %p186, %p187
    %p189 = pneg %p188
    // Predicated region
    $region37: #{down_simple_net.1} parent=5 // pred_check
      _
    $region38: #{down_simple_net.1} parent=5 // pred_check_branch
      %191 = sbr.rel (%p188) target = $region40
    $region39: #{down_simple_net.1} parent=5 // pred_region
      %s192 = ssub.s32 %s11, 1
      %p193 = scmp.lt.s32.totalorder %s16, 5
      %s194 = scalar_select %p193, %s16, 5
      %s195 = smul.addr %s194, 3
      %s196 = smul.addr %s195, 8
      %s197 = scalar_lea.vmem %s0, %s196
      %p198 = pneg %p37
      %p199 = pneg %p34
      %p200 = pneg %p58
      %p201 = pneg %p55
      %p202 = pneg %p79
      %p203 = pneg %p76
      %p204 = pneg %p100
      %p205 = pneg %p97
      %p206 = pneg %p121
      %p207 = pneg %p118
      %p208 = pneg %p147
      %p209 = pneg %p144
      %p210 = scmp.lt.s32.totalorder %s16, 5
      %s211 = scalar_select %p210, %s16, 5
      %s212 = smul.addr %s211, 8
      %s213 = scalar_lea.vmem %s5, %s212
      %p214 = scmp.lt.s32.totalorder %s16, 5
      %s215 = scalar_select %p214, %s16, 5
      %s216 = smul.addr %s215, 3
      %s217 = smul.addr %s216, 8
      %s218 = scalar_lea.vmem %s0, %s217
      %p219 = scmp.lt.s32.totalorder %s16, 5
      %s220 = scalar_select %p219, %s16, 5
      %s221 = smul.addr %s220, 8
      %s222 = scalar_lea.vmem %s5, %s221
      %v223 = vld [vmem:[%s218] sm:$0xff]
      %v224 = vld [vmem:[%s218 + $0x8] sm:$0xff]
      %v225 = vld [vmem:[%s218 + $0x10] sm:$0xff]
      %v226 = vld [vmem:[%s1] sm:$0xff]
      %v227 = vld [vmem:[%s1 + $0x8] sm:$0xff]
      %v228 = vld [vmem:[%s1 + $0x10] sm:$0xff]
      %v229 = vld [vmem:[%s1 + $0x18] sm:$0xff]
      %v230 = vld [vmem:[%s1 + $0x20] sm:$0xff]
      %v231 = vld [vmem:[%s1 + $0x28] sm:$0xff]
      %v232 = vld [vmem:[%s1 + $0x30] sm:$0xff]
      %v233 = vld [vmem:[%s1 + $0x38] sm:$0xff]
      %v234 = vld [vmem:[%s1 + $0x40] sm:$0xff]
      %v235 = vld [vmem:[%s1 + $0x48] sm:$0xff]
      %v236 = vld [vmem:[%s1 + $0x50] sm:$0xff]
      %v237 = vld [vmem:[%s1 + $0x58] sm:$0xff]
      %v238 = vld [vmem:[%s1 + $0x60] sm:$0xff]
      %v239 = vld [vmem:[%s1 + $0x68] sm:$0xff]
      %v240 = vld [vmem:[%s1 + $0x70] sm:$0xff]
      %s241 = scalar_lea.vmem %s1, 120
      %v242 = vld [vmem:[%s241] sm:$0xff]
      %v243 = vld [vmem:[%s241 + $0x8] sm:$0xff]
      %v244 = vld [vmem:[%s241 + $0x10] sm:$0xff]
      %v245 = vld [vmem:[%s241 + $0x18] sm:$0xff]
      %v246 = vld [vmem:[%s241 + $0x20] sm:$0xff]
      %v247 = vld [vmem:[%s241 + $0x28] sm:$0xff]
      %v248 = vld [vmem:[%s241 + $0x30] sm:$0xff]
      %v249 = vld [vmem:[%s241 + $0x38] sm:$0xff]
      %v250 = vld [vmem:[%s241 + $0x40] sm:$0xff]
      %v251 = vld [vmem:[%s241 + $0x48] sm:$0xff]
      %v252 = vld [vmem:[%s241 + $0x50] sm:$0xff]
      %v253 = vld [vmem:[%s241 + $0x58] sm:$0xff]
      %v254 = vld [vmem:[%s241 + $0x60] sm:$0xff]
      %v255 = vld [vmem:[%s241 + $0x68] sm:$0xff]
      %v256 = vld [vmem:[%s241 + $0x70] sm:$0xff]
      %vm260 = vcmask 1046528
      %v261 = vrot.slane %v223, 1
      %v262 = vrot.slane %v224, 1
      %v263 = vsel %vm260, %v261, %v262
      %v264 = vrot.slane %v225, 1
      %v265 = vsel %vm260, %v262, %v264
      %vm266 = vcmask 195584
      %v267 = vsel %vm266, %v263, 0
      %v269 = vsel %vm266, %v265, 0
      %v271 = vsel %vm266, %v264, 0
      %273 = vmatprep.subr.mxu0 0.0
      %274 = vmatpush1.msra.mxu0 0.0
      %275 = vmatprep.subr.mxu0 0.0
      %276 = vmatpush1.msra.mxu0 0.0
      %277 = vmatprep.subr.mxu0 0.0
      %278 = vmatpush1.msra.mxu0 0.0
      %279 = vmatprep.subr.mxu0 0.0
      %280 = vmatpush1.msra.mxu0 0.0
      %281 = vmatprep.subr.mxu0 0.0
      %282 = vmatpush1.msra.mxu0 0.0
      %283 = vmatprep.subr.mxu0 0.0
      %284 = vmatpush1.msra.mxu0 0.0
      %285 = vmatprep.subr.mxu0 0.0
      %286 = vmatpush1.msra.mxu0 0.0
      %287 = vmatprep.subr.mxu0 0.0
      %288 = vmatpush1.msra.mxu0 0.0
      %289 = vmatprep.subr.mxu0 0.0
      %290 = vmatpush1.msra.mxu0 0.0
      %291 = vmatprep.subr.mxu0 0.0
      %292 = vmatpush1.msra.mxu0 0.0
      %293 = vmatprep.subr.mxu0 0.0
      %294 = vmatpush1.msra.mxu0 0.0
      %295 = vmatprep.subr.mxu0 0.0
      %296 = vmatpush1.msra.mxu0 0.0
      %297 = vmatprep.subr.mxu0 0.0
      %298 = vmatpush1.msra.mxu0 0.0
      %299 = vmatprep.subr.mxu0 %v253
      %300 = vmatpush1.msra.mxu0 %v252
      %301 = vmatprep.subr.mxu0 %v248
      %302 = vmatpush1.msra.mxu0 %v247
      %303 = vmatprep.subr.mxu0 %v243
      %304 = vmatpush1.msra.mxu0 %v242
      %305 = vmatprep.subr.mxu0 0.0
      %306 = vmatpush2.msra.mxu0 0.0
      %307 = vmatprep.subr.mxu0 0.0
      %308 = vmatpush2.msra.mxu0 0.0
      %309 = vmatprep.subr.mxu0 0.0
      %310 = vmatpush2.msra.mxu0 0.0
      %311 = vmatprep.subr.mxu0 0.0
      %312 = vmatpush2.msra.mxu0 0.0
      %313 = vmatprep.subr.mxu0 0.0
      %314 = vmatpush2.msra.mxu0 0.0
      %315 = vmatprep.subr.mxu0 0.0
      %316 = vmatpush2.msra.mxu0 0.0
      %317 = vmatprep.subr.mxu0 0.0
      %318 = vmatpush2.msra.mxu0 0.0
      %319 = vmatprep.subr.mxu0 0.0
      %320 = vmatpush2.msra.mxu0 0.0
      %321 = vmatprep.subr.mxu0 0.0
      %322 = vmatpush2.msra.mxu0 0.0
      %323 = vmatprep.subr.mxu0 0.0
      %324 = vmatpush2.msra.mxu0 0.0
      %325 = vmatprep.subr.mxu0 0.0
      %326 = vmatpush2.msra.mxu0 0.0
      %327 = vmatprep.subr.mxu0 0.0
      %328 = vmatpush2.msra.mxu0 0.0
      %329 = vmatprep.subr.mxu0 0.0
      %330 = vmatpush2.msra.mxu0 0.0
      %331 = vmatprep.subr.mxu0 0.0
      %332 = vmatpush2.msra.mxu0 0.0
      %333 = vmatprep.subr.mxu0 0.0
      %334 = vmatpush2.msra.mxu0 0.0
      %335 = vmatprep.subr.mxu0 0.0
      %336 = vmatpush2.msra.mxu0 0.0
      %337 = vmatprep.mubr.f32.mxu0 0.0
      %338 = vmatmul.mubr.f32.gmra.mxu0 %v267
      %v339 = vpop.f32.mrf.mxu0
      %v340 = vadd.f32 0.0, %v339
      %v341 = vpop.f32.mrf.mxu0
      %v342 = vadd.f32 0.0, %v341
      %343 = vmatprep.mubr.f32.mxu0 0.0
      %344 = vmatmul.mubr.f32.gmra.mxu0 %v269
      %v345 = vpop.f32.mrf.mxu0
      %v346 = vadd.f32 0.0, %v345
      %v347 = vpop.f32.mrf.mxu0
      %v348 = vadd.f32 0.0, %v347
      %349 = vmatprep.mubr.f32.mxu0 0.0
      %350 = vmatmul.mubr.f32.gmra.mxu0 %v271
      %v351 = vpop.f32.mrf.mxu0
      %v352 = vadd.f32 0.0, %v351
      %v353 = vpop.f32.mrf.mxu0
      %v354 = vadd.f32 0.0, %v353
      %355 = vdwg.mxu0
      %356 = vmatprep.subr.mxu0 0.0
      %357 = vmatpush1.msra.mxu0 0.0
      %358 = vmatprep.subr.mxu0 0.0
      %359 = vmatpush1.msra.mxu0 0.0
      %360 = vmatprep.subr.mxu0 0.0
      %361 = vmatpush1.msra.mxu0 0.0
      %362 = vmatprep.subr.mxu0 0.0
      %363 = vmatpush1.msra.mxu0 0.0
      %364 = vmatprep.subr.mxu0 0.0
      %365 = vmatpush1.msra.mxu0 0.0
      %366 = vmatprep.subr.mxu0 0.0
      %367 = vmatpush1.msra.mxu0 0.0
      %368 = vmatprep.subr.mxu0 0.0
      %369 = vmatpush1.msra.mxu0 0.0
      %370 = vmatprep.subr.mxu0 0.0
      %371 = vmatpush1.msra.mxu0 0.0
      %372 = vmatprep.subr.mxu0 0.0
      %373 = vmatpush1.msra.mxu0 0.0
      %374 = vmatprep.subr.mxu0 0.0
      %375 = vmatpush1.msra.mxu0 0.0
      %376 = vmatprep.subr.mxu0 0.0
      %377 = vmatpush1.msra.mxu0 0.0
      %378 = vmatprep.subr.mxu0 0.0
      %379 = vmatpush1.msra.mxu0 0.0
      %380 = vmatprep.subr.mxu0 0.0
      %381 = vmatpush1.msra.mxu0 0.0
      %382 = vmatprep.subr.mxu0 %v255
      %383 = vmatpush1.msra.mxu0 %v254
      %384 = vmatprep.subr.mxu0 %v250
      %385 = vmatpush1.msra.mxu0 %v249
      %386 = vmatprep.subr.mxu0 %v245
      %387 = vmatpush1.msra.mxu0 %v244
      %388 = vmatprep.subr.mxu0 0.0
      %389 = vmatpush2.msra.mxu0 0.0
      %390 = vmatprep.subr.mxu0 0.0
      %391 = vmatpush2.msra.mxu0 0.0
      %392 = vmatprep.subr.mxu0 0.0
      %393 = vmatpush2.msra.mxu0 0.0
      %394 = vmatprep.subr.mxu0 0.0
      %395 = vmatpush2.msra.mxu0 0.0
      %396 = vmatprep.subr.mxu0 0.0
      %397 = vmatpush2.msra.mxu0 0.0
      %398 = vmatprep.subr.mxu0 0.0
      %399 = vmatpush2.msra.mxu0 0.0
      %400 = vmatprep.subr.mxu0 0.0
      %401 = vmatpush2.msra.mxu0 0.0
      %402 = vmatprep.subr.mxu0 0.0
      %403 = vmatpush2.msra.mxu0 0.0
      %404 = vmatprep.subr.mxu0 0.0
      %405 = vmatpush2.msra.mxu0 0.0
      %406 = vmatprep.subr.mxu0 0.0
      %407 = vmatpush2.msra.mxu0 0.0
      %408 = vmatprep.subr.mxu0 0.0
      %409 = vmatpush2.msra.mxu0 0.0
      %410 = vmatprep.subr.mxu0 0.0
      %411 = vmatpush2.msra.mxu0 0.0
      %412 = vmatprep.subr.mxu0 0.0
      %413 = vmatpush2.msra.mxu0 0.0
      %414 = vmatprep.subr.mxu0 0.0
      %415 = vmatpush2.msra.mxu0 0.0
      %416 = vmatprep.subr.mxu0 0.0
      %417 = vmatpush2.msra.mxu0 0.0
      %418 = vmatprep.subr.mxu0 0.0
      %419 = vmatpush2.msra.mxu0 0.0
      %420 = vmatprep.mubr.f32.mxu0 0.0
      %421 = vmatmul.mubr.f32.gmra.mxu0 %v267
      %v422 = vpop.f32.mrf.mxu0
      %v423 = vadd.f32 0.0, %v422
      %v424 = vpop.f32.mrf.mxu0
      %v425 = vadd.f32 0.0, %v424
      %426 = vmatprep.mubr.f32.mxu0 0.0
      %427 = vmatmul.mubr.f32.gmra.mxu0 %v269
      %v428 = vpop.f32.mrf.mxu0
      %v429 = vadd.f32 0.0, %v428
      %v430 = vpop.f32.mrf.mxu0
      %v431 = vadd.f32 0.0, %v430
      %432 = vmatprep.mubr.f32.mxu0 0.0
      %433 = vmatmul.mubr.f32.gmra.mxu0 %v271
      %v434 = vpop.f32.mrf.mxu0
      %v435 = vadd.f32 0.0, %v434
      %v436 = vpop.f32.mrf.mxu0
      %v437 = vadd.f32 0.0, %v436
      %438 = vdwg.mxu0
      %439 = vmatprep.subr.mxu0 0.0
      %440 = vmatpush1.msra.mxu0 0.0
      %441 = vmatprep.subr.mxu0 0.0
      %442 = vmatpush1.msra.mxu0 0.0
      %443 = vmatprep.subr.mxu0 0.0
      %444 = vmatpush1.msra.mxu0 0.0
      %445 = vmatprep.subr.mxu0 0.0
      %446 = vmatpush1.msra.mxu0 0.0
      %447 = vmatprep.subr.mxu0 0.0
      %448 = vmatpush1.msra.mxu0 0.0
      %449 = vmatprep.subr.mxu0 0.0
      %450 = vmatpush1.msra.mxu0 0.0
      %451 = vmatprep.subr.mxu0 0.0
      %452 = vmatpush1.msra.mxu0 0.0
      %453 = vmatprep.subr.mxu0 0.0
      %454 = vmatpush1.msra.mxu0 0.0
      %455 = vmatprep.subr.mxu0 0.0
      %456 = vmatpush1.msra.mxu0 0.0
      %457 = vmatprep.subr.mxu0 0.0
      %458 = vmatpush1.msra.mxu0 0.0
      %459 = vmatprep.subr.mxu0 0.0
      %460 = vmatpush1.msra.mxu0 0.0
      %461 = vmatprep.subr.mxu0 0.0
      %462 = vmatpush1.msra.mxu0 0.0
      %463 = vmatprep.subr.mxu0 0.0
      %464 = vmatpush1.msra.mxu0 0.0
      %465 = vmatprep.subr.mxu0 0.0
      %466 = vmatpush1.msra.mxu0 %v256
      %467 = vmatprep.subr.mxu0 0.0
      %468 = vmatpush1.msra.mxu0 %v251
      %469 = vmatprep.subr.mxu0 0.0
      %470 = vmatpush1.msra.mxu0 %v246
      %471 = vmatprep.subr.mxu0 0.0
      %472 = vmatpush2.msra.mxu0 0.0
      %473 = vmatprep.subr.mxu0 0.0
      %474 = vmatpush2.msra.mxu0 0.0
      %475 = vmatprep.subr.mxu0 0.0
      %476 = vmatpush2.msra.mxu0 0.0
      %477 = vmatprep.subr.mxu0 0.0
      %478 = vmatpush2.msra.mxu0 0.0
      %479 = vmatprep.subr.mxu0 0.0
      %480 = vmatpush2.msra.mxu0 0.0
      %481 = vmatprep.subr.mxu0 0.0
      %482 = vmatpush2.msra.mxu0 0.0
      %483 = vmatprep.subr.mxu0 0.0
      %484 = vmatpush2.msra.mxu0 0.0
      %485 = vmatprep.subr.mxu0 0.0
      %486 = vmatpush2.msra.mxu0 0.0
      %487 = vmatprep.subr.mxu0 0.0
      %488 = vmatpush2.msra.mxu0 0.0
      %489 = vmatprep.subr.mxu0 0.0
      %490 = vmatpush2.msra.mxu0 0.0
      %491 = vmatprep.subr.mxu0 0.0
      %492 = vmatpush2.msra.mxu0 0.0
      %493 = vmatprep.subr.mxu0 0.0
      %494 = vmatpush2.msra.mxu0 0.0
      %495 = vmatprep.subr.mxu0 0.0
      %496 = vmatpush2.msra.mxu0 0.0
      %497 = vmatprep.subr.mxu0 0.0
      %498 = vmatpush2.msra.mxu0 0.0
      %499 = vmatprep.subr.mxu0 0.0
      %500 = vmatpush2.msra.mxu0 0.0
      %501 = vmatprep.subr.mxu0 0.0
      %502 = vmatpush2.msra.mxu0 0.0
      %503 = vmatprep.mubr.f32.mxu0 0.0
      %504 = vmatmul.mubr.f32.gmra.mxu0 %v267
      %v505 = vpop.f32.mrf.mxu0
      %v506 = vadd.f32 0.0, %v505
      %v507 = vpop.f32.mrf.mxu0
      %508 = vmatprep.mubr.f32.mxu0 0.0
      %509 = vmatmul.mubr.f32.gmra.mxu0 %v269
      %v510 = vpop.f32.mrf.mxu0
      %v511 = vadd.f32 0.0, %v510
      %v512 = vpop.f32.mrf.mxu0
      %513 = vmatprep.mubr.f32.mxu0 0.0
      %514 = vmatmul.mubr.f32.gmra.mxu0 %v271
      %v515 = vpop.f32.mrf.mxu0
      %v516 = vadd.f32 0.0, %v515
      %v517 = vpop.f32.mrf.mxu0
      %518 = vdwg.mxu0
      %v519 = vsel %vm266, %v223, 0
      %v521 = vsel %vm266, %v224, 0
      %v523 = vsel %vm266, %v225, 0
      %525 = vmatprep.subr.mxu0 0.0
      %526 = vmatpush1.msra.mxu0 0.0
      %527 = vmatprep.subr.mxu0 0.0
      %528 = vmatpush1.msra.mxu0 0.0
      %529 = vmatprep.subr.mxu0 0.0
      %530 = vmatpush1.msra.mxu0 0.0
      %531 = vmatprep.subr.mxu0 0.0
      %532 = vmatpush1.msra.mxu0 0.0
      %533 = vmatprep.subr.mxu0 0.0
      %534 = vmatpush1.msra.mxu0 0.0
      %535 = vmatprep.subr.mxu0 0.0
      %536 = vmatpush1.msra.mxu0 0.0
      %537 = vmatprep.subr.mxu0 0.0
      %538 = vmatpush1.msra.mxu0 0.0
      %539 = vmatprep.subr.mxu0 0.0
      %540 = vmatpush1.msra.mxu0 0.0
      %541 = vmatprep.subr.mxu0 0.0
      %542 = vmatpush1.msra.mxu0 0.0
      %543 = vmatprep.subr.mxu0 0.0
      %544 = vmatpush1.msra.mxu0 0.0
      %545 = vmatprep.subr.mxu0 0.0
      %546 = vmatpush1.msra.mxu0 0.0
      %547 = vmatprep.subr.mxu0 0.0
      %548 = vmatpush1.msra.mxu0 0.0
      %549 = vmatprep.subr.mxu0 0.0
      %550 = vmatpush1.msra.mxu0 0.0
      %551 = vmatprep.subr.mxu0 %v237
      %552 = vmatpush1.msra.mxu0 %v236
      %553 = vmatprep.subr.mxu0 %v232
      %554 = vmatpush1.msra.mxu0 %v231
      %555 = vmatprep.subr.mxu0 %v227
      %556 = vmatpush1.msra.mxu0 %v226
      %557 = vmatprep.subr.mxu0 0.0
      %558 = vmatpush2.msra.mxu0 0.0
      %559 = vmatprep.subr.mxu0 0.0
      %560 = vmatpush2.msra.mxu0 0.0
      %561 = vmatprep.subr.mxu0 0.0
      %562 = vmatpush2.msra.mxu0 0.0
      %563 = vmatprep.subr.mxu0 0.0
      %564 = vmatpush2.msra.mxu0 0.0
      %565 = vmatprep.subr.mxu0 0.0
      %566 = vmatpush2.msra.mxu0 0.0
      %567 = vmatprep.subr.mxu0 0.0
      %568 = vmatpush2.msra.mxu0 0.0
      %569 = vmatprep.subr.mxu0 0.0
      %570 = vmatpush2.msra.mxu0 0.0
      %571 = vmatprep.subr.mxu0 0.0
      %572 = vmatpush2.msra.mxu0 0.0
      %573 = vmatprep.subr.mxu0 0.0
      %574 = vmatpush2.msra.mxu0 0.0
      %575 = vmatprep.subr.mxu0 0.0
      %576 = vmatpush2.msra.mxu0 0.0
      %577 = vmatprep.subr.mxu0 0.0
      %578 = vmatpush2.msra.mxu0 0.0
      %579 = vmatprep.subr.mxu0 0.0
      %580 = vmatpush2.msra.mxu0 0.0
      %581 = vmatprep.subr.mxu0 0.0
      %582 = vmatpush2.msra.mxu0 0.0
      %583 = vmatprep.subr.mxu0 0.0
      %584 = vmatpush2.msra.mxu0 0.0
      %585 = vmatprep.subr.mxu0 0.0
      %586 = vmatpush2.msra.mxu0 0.0
      %587 = vmatprep.subr.mxu0 0.0
      %588 = vmatpush2.msra.mxu0 0.0
      %589 = vmatprep.mubr.f32.mxu0 0.0
      %590 = vmatmul.mubr.f32.gmra.mxu0 %v519
      %v591 = vpop.f32.mrf.mxu0
      %v592 = vadd.f32 %v340, %v591
      %v593 = vpop.f32.mrf.mxu0
      %v594 = vadd.f32 %v342, %v593
      %595 = vmatprep.mubr.f32.mxu0 0.0
      %596 = vmatmul.mubr.f32.gmra.mxu0 %v521
      %v597 = vpop.f32.mrf.mxu0
      %v598 = vadd.f32 %v346, %v597
      %v599 = vpop.f32.mrf.mxu0
      %v600 = vadd.f32 %v348, %v599
      %601 = vmatprep.mubr.f32.mxu0 0.0
      %602 = vmatmul.mubr.f32.gmra.mxu0 %v523
      %v603 = vpop.f32.mrf.mxu0
      %v604 = vadd.f32 %v352, %v603
      %v605 = vpop.f32.mrf.mxu0
      %v606 = vadd.f32 %v354, %v605
      %607 = vdwg.mxu0
      %608 = vmatprep.subr.mxu0 0.0
      %609 = vmatpush1.msra.mxu0 0.0
      %610 = vmatprep.subr.mxu0 0.0
      %611 = vmatpush1.msra.mxu0 0.0
      %612 = vmatprep.subr.mxu0 0.0
      %613 = vmatpush1.msra.mxu0 0.0
      %614 = vmatprep.subr.mxu0 0.0
      %615 = vmatpush1.msra.mxu0 0.0
      %616 = vmatprep.subr.mxu0 0.0
      %617 = vmatpush1.msra.mxu0 0.0
      %618 = vmatprep.subr.mxu0 0.0
      %619 = vmatpush1.msra.mxu0 0.0
      %620 = vmatprep.subr.mxu0 0.0
      %621 = vmatpush1.msra.mxu0 0.0
      %622 = vmatprep.subr.mxu0 0.0
      %623 = vmatpush1.msra.mxu0 0.0
      %624 = vmatprep.subr.mxu0 0.0
      %625 = vmatpush1.msra.mxu0 0.0
      %626 = vmatprep.subr.mxu0 0.0
      %627 = vmatpush1.msra.mxu0 0.0
      %628 = vmatprep.subr.mxu0 0.0
      %629 = vmatpush1.msra.mxu0 0.0
      %630 = vmatprep.subr.mxu0 0.0
      %631 = vmatpush1.msra.mxu0 0.0
      %632 = vmatprep.subr.mxu0 0.0
      %633 = vmatpush1.msra.mxu0 0.0
      %634 = vmatprep.subr.mxu0 %v239
      %635 = vmatpush1.msra.mxu0 %v238
      %636 = vmatprep.subr.mxu0 %v234
      %637 = vmatpush1.msra.mxu0 %v233
      %638 = vmatprep.subr.mxu0 %v229
      %639 = vmatpush1.msra.mxu0 %v228
      %640 = vmatprep.subr.mxu0 0.0
      %641 = vmatpush2.msra.mxu0 0.0
      %642 = vmatprep.subr.mxu0 0.0
      %643 = vmatpush2.msra.mxu0 0.0
      %644 = vmatprep.subr.mxu0 0.0
      %645 = vmatpush2.msra.mxu0 0.0
      %646 = vmatprep.subr.mxu0 0.0
      %647 = vmatpush2.msra.mxu0 0.0
      %648 = vmatprep.subr.mxu0 0.0
      %649 = vmatpush2.msra.mxu0 0.0
      %650 = vmatprep.subr.mxu0 0.0
      %651 = vmatpush2.msra.mxu0 0.0
      %652 = vmatprep.subr.mxu0 0.0
      %653 = vmatpush2.msra.mxu0 0.0
      %654 = vmatprep.subr.mxu0 0.0
      %655 = vmatpush2.msra.mxu0 0.0
      %656 = vmatprep.subr.mxu0 0.0
      %657 = vmatpush2.msra.mxu0 0.0
      %658 = vmatprep.subr.mxu0 0.0
      %659 = vmatpush2.msra.mxu0 0.0
      %660 = vmatprep.subr.mxu0 0.0
      %661 = vmatpush2.msra.mxu0 0.0
      %662 = vmatprep.subr.mxu0 0.0
      %663 = vmatpush2.msra.mxu0 0.0
      %664 = vmatprep.subr.mxu0 0.0
      %665 = vmatpush2.msra.mxu0 0.0
      %666 = vmatprep.subr.mxu0 0.0
      %667 = vmatpush2.msra.mxu0 0.0
      %668 = vmatprep.subr.mxu0 0.0
      %669 = vmatpush2.msra.mxu0 0.0
      %670 = vmatprep.subr.mxu0 0.0
      %671 = vmatpush2.msra.mxu0 0.0
      %672 = vmatprep.mubr.f32.mxu0 0.0
      %673 = vmatmul.mubr.f32.gmra.mxu0 %v519
      %v674 = vpop.f32.mrf.mxu0
      %v675 = vadd.f32 %v423, %v674
      %v676 = vpop.f32.mrf.mxu0
      %v677 = vadd.f32 %v425, %v676
      %678 = vmatprep.mubr.f32.mxu0 0.0
      %679 = vmatmul.mubr.f32.gmra.mxu0 %v521
      %v680 = vpop.f32.mrf.mxu0
      %v681 = vadd.f32 %v429, %v680
      %v682 = vpop.f32.mrf.mxu0
      %v683 = vadd.f32 %v431, %v682
      %684 = vmatprep.mubr.f32.mxu0 0.0
      %685 = vmatmul.mubr.f32.gmra.mxu0 %v523
      %v686 = vpop.f32.mrf.mxu0
      %v687 = vadd.f32 %v435, %v686
      %v688 = vpop.f32.mrf.mxu0
      %v689 = vadd.f32 %v437, %v688
      %690 = vdwg.mxu0
      %691 = vmatprep.subr.mxu0 0.0
      %692 = vmatpush1.msra.mxu0 0.0
      %693 = vmatprep.subr.mxu0 0.0
      %694 = vmatpush1.msra.mxu0 0.0
      %695 = vmatprep.subr.mxu0 0.0
      %696 = vmatpush1.msra.mxu0 0.0
      %697 = vmatprep.subr.mxu0 0.0
      %698 = vmatpush1.msra.mxu0 0.0
      %699 = vmatprep.subr.mxu0 0.0
      %700 = vmatpush1.msra.mxu0 0.0
      %701 = vmatprep.subr.mxu0 0.0
      %702 = vmatpush1.msra.mxu0 0.0
      %703 = vmatprep.subr.mxu0 0.0
      %704 = vmatpush1.msra.mxu0 0.0
      %705 = vmatprep.subr.mxu0 0.0
      %706 = vmatpush1.msra.mxu0 0.0
      %707 = vmatprep.subr.mxu0 0.0
      %708 = vmatpush1.msra.mxu0 0.0
      %709 = vmatprep.subr.mxu0 0.0
      %710 = vmatpush1.msra.mxu0 0.0
      %711 = vmatprep.subr.mxu0 0.0
      %712 = vmatpush1.msra.mxu0 0.0
      %713 = vmatprep.subr.mxu0 0.0
      %714 = vmatpush1.msra.mxu0 0.0
      %715 = vmatprep.subr.mxu0 0.0
      %716 = vmatpush1.msra.mxu0 0.0
      %717 = vmatprep.subr.mxu0 0.0
      %718 = vmatpush1.msra.mxu0 %v240
      %719 = vmatprep.subr.mxu0 0.0
      %720 = vmatpush1.msra.mxu0 %v235
      %721 = vmatprep.subr.mxu0 0.0
      %722 = vmatpush1.msra.mxu0 %v230
      %723 = vmatprep.subr.mxu0 0.0
      %724 = vmatpush2.msra.mxu0 0.0
      %725 = vmatprep.subr.mxu0 0.0
      %726 = vmatpush2.msra.mxu0 0.0
      %727 = vmatprep.subr.mxu0 0.0
      %728 = vmatpush2.msra.mxu0 0.0
      %729 = vmatprep.subr.mxu0 0.0
      %730 = vmatpush2.msra.mxu0 0.0
      %731 = vmatprep.subr.mxu0 0.0
      %732 = vmatpush2.msra.mxu0 0.0
      %733 = vmatprep.subr.mxu0 0.0
      %734 = vmatpush2.msra.mxu0 0.0
      %735 = vmatprep.subr.mxu0 0.0
      %736 = vmatpush2.msra.mxu0 0.0
      %737 = vmatprep.subr.mxu0 0.0
      %738 = vmatpush2.msra.mxu0 0.0
      %739 = vmatprep.subr.mxu0 0.0
      %740 = vmatpush2.msra.mxu0 0.0
      %741 = vmatprep.subr.mxu0 0.0
      %742 = vmatpush2.msra.mxu0 0.0
      %743 = vmatprep.subr.mxu0 0.0
      %744 = vmatpush2.msra.mxu0 0.0
      %745 = vmatprep.subr.mxu0 0.0
      %746 = vmatpush2.msra.mxu0 0.0
      %747 = vmatprep.subr.mxu0 0.0
      %748 = vmatpush2.msra.mxu0 0.0
      %749 = vmatprep.subr.mxu0 0.0
      %750 = vmatpush2.msra.mxu0 0.0
      %751 = vmatprep.subr.mxu0 0.0
      %752 = vmatpush2.msra.mxu0 0.0
      %753 = vmatprep.subr.mxu0 0.0
      %754 = vmatpush2.msra.mxu0 0.0
      %755 = vmatprep.mubr.f32.mxu0 0.0
      %756 = vmatmul.mubr.f32.gmra.mxu0 %v519
      %v757 = vpop.f32.mrf.mxu0
      %v758 = vadd.f32 %v506, %v757
      %v759 = vpop.f32.mrf.mxu0
      %760 = vmatprep.mubr.f32.mxu0 0.0
      %761 = vmatmul.mubr.f32.gmra.mxu0 %v521
      %v762 = vpop.f32.mrf.mxu0
      %v763 = vadd.f32 %v511, %v762
      %v764 = vpop.f32.mrf.mxu0
      %765 = vmatprep.mubr.f32.mxu0 0.0
      %766 = vmatmul.mubr.f32.gmra.mxu0 %v523
      %v767 = vpop.f32.mrf.mxu0
      %v768 = vadd.f32 %v516, %v767
      %v769 = vpop.f32.mrf.mxu0
      %770 = vdwg.mxu0
      %s771 = scalar_lea.vmem %s1, 240
      %v772 = vld [vmem:[%s771] sm:$0xff]
      %v773 = vld [vmem:[%s771 + $0x8] sm:$0xff]
      %v774 = vld [vmem:[%s771 + $0x10] sm:$0xff]
      %v775 = vld [vmem:[%s771 + $0x18] sm:$0xff]
      %v776 = vld [vmem:[%s771 + $0x20] sm:$0xff]
      %v777 = vld [vmem:[%s771 + $0x28] sm:$0xff]
      %v778 = vld [vmem:[%s771 + $0x30] sm:$0xff]
      %v779 = vld [vmem:[%s771 + $0x38] sm:$0xff]
      %v780 = vld [vmem:[%s771 + $0x40] sm:$0xff]
      %v781 = vld [vmem:[%s771 + $0x48] sm:$0xff]
      %v782 = vld [vmem:[%s771 + $0x50] sm:$0xff]
      %v783 = vld [vmem:[%s771 + $0x58] sm:$0xff]
      %v784 = vld [vmem:[%s771 + $0x60] sm:$0xff]
      %v785 = vld [vmem:[%s771 + $0x68] sm:$0xff]
      %v786 = vld [vmem:[%s771 + $0x70] sm:$0xff]
      %vm787 = vcmask 1045504
      %v788 = vrot.slane %v223, 2
      %v789 = vrot.slane %v224, 2
      %v790 = vsel %vm787, %v788, %v789
      %v791 = vrot.slane %v225, 2
      %v792 = vsel %vm787, %v789, %v791
      %v793 = vsel %vm266, %v790, 0
      %v795 = vsel %vm266, %v792, 0
      %v797 = vsel %vm266, %v791, 0
      %799 = vmatprep.subr.mxu0 0.0
      %800 = vmatpush1.msra.mxu0 0.0
      %801 = vmatprep.subr.mxu0 0.0
      %802 = vmatpush1.msra.mxu0 0.0
      %803 = vmatprep.subr.mxu0 0.0
      %804 = vmatpush1.msra.mxu0 0.0
      %805 = vmatprep.subr.mxu0 0.0
      %806 = vmatpush1.msra.mxu0 0.0
      %807 = vmatprep.subr.mxu0 0.0
      %808 = vmatpush1.msra.mxu0 0.0
      %809 = vmatprep.subr.mxu0 0.0
      %810 = vmatpush1.msra.mxu0 0.0
      %811 = vmatprep.subr.mxu0 0.0
      %812 = vmatpush1.msra.mxu0 0.0
      %813 = vmatprep.subr.mxu0 0.0
      %814 = vmatpush1.msra.mxu0 0.0
      %815 = vmatprep.subr.mxu0 0.0
      %816 = vmatpush1.msra.mxu0 0.0
      %817 = vmatprep.subr.mxu0 0.0
      %818 = vmatpush1.msra.mxu0 0.0
      %819 = vmatprep.subr.mxu0 0.0
      %820 = vmatpush1.msra.mxu0 0.0
      %821 = vmatprep.subr.mxu0 0.0
      %822 = vmatpush1.msra.mxu0 0.0
      %823 = vmatprep.subr.mxu0 0.0
      %824 = vmatpush1.msra.mxu0 0.0
      %825 = vmatprep.subr.mxu0 %v783
      %826 = vmatpush1.msra.mxu0 %v782
      %827 = vmatprep.subr.mxu0 %v778
      %828 = vmatpush1.msra.mxu0 %v777
      %829 = vmatprep.subr.mxu0 %v773
      %830 = vmatpush1.msra.mxu0 %v772
      %831 = vmatprep.subr.mxu0 0.0
      %832 = vmatpush2.msra.mxu0 0.0
      %833 = vmatprep.subr.mxu0 0.0
      %834 = vmatpush2.msra.mxu0 0.0
      %835 = vmatprep.subr.mxu0 0.0
      %836 = vmatpush2.msra.mxu0 0.0
      %837 = vmatprep.subr.mxu0 0.0
      %838 = vmatpush2.msra.mxu0 0.0
      %839 = vmatprep.subr.mxu0 0.0
      %840 = vmatpush2.msra.mxu0 0.0
      %841 = vmatprep.subr.mxu0 0.0
      %842 = vmatpush2.msra.mxu0 0.0
      %843 = vmatprep.subr.mxu0 0.0
      %844 = vmatpush2.msra.mxu0 0.0
      %845 = vmatprep.subr.mxu0 0.0
      %846 = vmatpush2.msra.mxu0 0.0
      %847 = vmatprep.subr.mxu0 0.0
      %848 = vmatpush2.msra.mxu0 0.0
      %849 = vmatprep.subr.mxu0 0.0
      %850 = vmatpush2.msra.mxu0 0.0
      %851 = vmatprep.subr.mxu0 0.0
      %852 = vmatpush2.msra.mxu0 0.0
      %853 = vmatprep.subr.mxu0 0.0
      %854 = vmatpush2.msra.mxu0 0.0
      %855 = vmatprep.subr.mxu0 0.0
      %856 = vmatpush2.msra.mxu0 0.0
      %857 = vmatprep.subr.mxu0 0.0
      %858 = vmatpush2.msra.mxu0 0.0
      %859 = vmatprep.subr.mxu0 0.0
      %860 = vmatpush2.msra.mxu0 0.0
      %861 = vmatprep.subr.mxu0 0.0
      %862 = vmatpush2.msra.mxu0 0.0
      %863 = vmatprep.mubr.f32.mxu0 0.0
      %864 = vmatmul.mubr.f32.gmra.mxu0 %v793
      %v865 = vpop.f32.mrf.mxu0
      %v866 = vadd.f32 0.0, %v865
      %v867 = vpop.f32.mrf.mxu0
      %v868 = vadd.f32 0.0, %v867
      %869 = vmatprep.mubr.f32.mxu0 0.0
      %870 = vmatmul.mubr.f32.gmra.mxu0 %v795
      %v871 = vpop.f32.mrf.mxu0
      %v872 = vadd.f32 0.0, %v871
      %v873 = vpop.f32.mrf.mxu0
      %v874 = vadd.f32 0.0, %v873
      %875 = vmatprep.mubr.f32.mxu0 0.0
      %876 = vmatmul.mubr.f32.gmra.mxu0 %v797
      %v877 = vpop.f32.mrf.mxu0
      %v878 = vadd.f32 0.0, %v877
      %v879 = vpop.f32.mrf.mxu0
      %v880 = vadd.f32 0.0, %v879
      %881 = vdwg.mxu0
      %882 = vmatprep.subr.mxu0 0.0
      %883 = vmatpush1.msra.mxu0 0.0
      %884 = vmatprep.subr.mxu0 0.0
      %885 = vmatpush1.msra.mxu0 0.0
      %886 = vmatprep.subr.mxu0 0.0
      %887 = vmatpush1.msra.mxu0 0.0
      %888 = vmatprep.subr.mxu0 0.0
      %889 = vmatpush1.msra.mxu0 0.0
      %890 = vmatprep.subr.mxu0 0.0
      %891 = vmatpush1.msra.mxu0 0.0
      %892 = vmatprep.subr.mxu0 0.0
      %893 = vmatpush1.msra.mxu0 0.0
      %894 = vmatprep.subr.mxu0 0.0
      %895 = vmatpush1.msra.mxu0 0.0
      %896 = vmatprep.subr.mxu0 0.0
      %897 = vmatpush1.msra.mxu0 0.0
      %898 = vmatprep.subr.mxu0 0.0
      %899 = vmatpush1.msra.mxu0 0.0
      %900 = vmatprep.subr.mxu0 0.0
      %901 = vmatpush1.msra.mxu0 0.0
      %902 = vmatprep.subr.mxu0 0.0
      %903 = vmatpush1.msra.mxu0 0.0
      %904 = vmatprep.subr.mxu0 0.0
      %905 = vmatpush1.msra.mxu0 0.0
      %906 = vmatprep.subr.mxu0 0.0
      %907 = vmatpush1.msra.mxu0 0.0
      %908 = vmatprep.subr.mxu0 %v785
      %909 = vmatpush1.msra.mxu0 %v784
      %910 = vmatprep.subr.mxu0 %v780
      %911 = vmatpush1.msra.mxu0 %v779
      %912 = vmatprep.subr.mxu0 %v775
      %913 = vmatpush1.msra.mxu0 %v774
      %914 = vmatprep.subr.mxu0 0.0
      %915 = vmatpush2.msra.mxu0 0.0
      %916 = vmatprep.subr.mxu0 0.0
      %917 = vmatpush2.msra.mxu0 0.0
      %918 = vmatprep.subr.mxu0 0.0
      %919 = vmatpush2.msra.mxu0 0.0
      %920 = vmatprep.subr.mxu0 0.0
      %921 = vmatpush2.msra.mxu0 0.0
      %922 = vmatprep.subr.mxu0 0.0
      %923 = vmatpush2.msra.mxu0 0.0
      %924 = vmatprep.subr.mxu0 0.0
      %925 = vmatpush2.msra.mxu0 0.0
      %926 = vmatprep.subr.mxu0 0.0
      %927 = vmatpush2.msra.mxu0 0.0
      %928 = vmatprep.subr.mxu0 0.0
      %929 = vmatpush2.msra.mxu0 0.0
      %930 = vmatprep.subr.mxu0 0.0
      %931 = vmatpush2.msra.mxu0 0.0
      %932 = vmatprep.subr.mxu0 0.0
      %933 = vmatpush2.msra.mxu0 0.0
      %934 = vmatprep.subr.mxu0 0.0
      %935 = vmatpush2.msra.mxu0 0.0
      %936 = vmatprep.subr.mxu0 0.0
      %937 = vmatpush2.msra.mxu0 0.0
      %938 = vmatprep.subr.mxu0 0.0
      %939 = vmatpush2.msra.mxu0 0.0
      %940 = vmatprep.subr.mxu0 0.0
      %941 = vmatpush2.msra.mxu0 0.0
      %942 = vmatprep.subr.mxu0 0.0
      %943 = vmatpush2.msra.mxu0 0.0
      %944 = vmatprep.subr.mxu0 0.0
      %945 = vmatpush2.msra.mxu0 0.0
      %946 = vmatprep.mubr.f32.mxu0 0.0
      %947 = vmatmul.mubr.f32.gmra.mxu0 %v793
      %v948 = vpop.f32.mrf.mxu0
      %v949 = vadd.f32 0.0, %v948
      %v950 = vpop.f32.mrf.mxu0
      %v951 = vadd.f32 0.0, %v950
      %952 = vmatprep.mubr.f32.mxu0 0.0
      %953 = vmatmul.mubr.f32.gmra.mxu0 %v795
      %v954 = vpop.f32.mrf.mxu0
      %v955 = vadd.f32 0.0, %v954
      %v956 = vpop.f32.mrf.mxu0
      %v957 = vadd.f32 0.0, %v956
      %958 = vmatprep.mubr.f32.mxu0 0.0
      %959 = vmatmul.mubr.f32.gmra.mxu0 %v797
      %v960 = vpop.f32.mrf.mxu0
      %v961 = vadd.f32 0.0, %v960
      %v962 = vpop.f32.mrf.mxu0
      %v963 = vadd.f32 0.0, %v962
      %964 = vdwg.mxu0
      %965 = vmatprep.subr.mxu0 0.0
      %966 = vmatpush1.msra.mxu0 0.0
      %967 = vmatprep.subr.mxu0 0.0
      %968 = vmatpush1.msra.mxu0 0.0
      %969 = vmatprep.subr.mxu0 0.0
      %970 = vmatpush1.msra.mxu0 0.0
      %971 = vmatprep.subr.mxu0 0.0
      %972 = vmatpush1.msra.mxu0 0.0
      %973 = vmatprep.subr.mxu0 0.0
      %974 = vmatpush1.msra.mxu0 0.0
      %975 = vmatprep.subr.mxu0 0.0
      %976 = vmatpush1.msra.mxu0 0.0
      %977 = vmatprep.subr.mxu0 0.0
      %978 = vmatpush1.msra.mxu0 0.0
      %979 = vmatprep.subr.mxu0 0.0
      %980 = vmatpush1.msra.mxu0 0.0
      %981 = vmatprep.subr.mxu0 0.0
      %982 = vmatpush1.msra.mxu0 0.0
      %983 = vmatprep.subr.mxu0 0.0
      %984 = vmatpush1.msra.mxu0 0.0
      %985 = vmatprep.subr.mxu0 0.0
      %986 = vmatpush1.msra.mxu0 0.0
      %987 = vmatprep.subr.mxu0 0.0
      %988 = vmatpush1.msra.mxu0 0.0
      %989 = vmatprep.subr.mxu0 0.0
      %990 = vmatpush1.msra.mxu0 0.0
      %991 = vmatprep.subr.mxu0 0.0
      %992 = vmatpush1.msra.mxu0 %v786
      %993 = vmatprep.subr.mxu0 0.0
      %994 = vmatpush1.msra.mxu0 %v781
      %995 = vmatprep.subr.mxu0 0.0
      %996 = vmatpush1.msra.mxu0 %v776
      %997 = vmatprep.subr.mxu0 0.0
      %998 = vmatpush2.msra.mxu0 0.0
      %999 = vmatprep.subr.mxu0 0.0
      %1000 = vmatpush2.msra.mxu0 0.0
      %1001 = vmatprep.subr.mxu0 0.0
      %1002 = vmatpush2.msra.mxu0 0.0
      %1003 = vmatprep.subr.mxu0 0.0
      %1004 = vmatpush2.msra.mxu0 0.0
      %1005 = vmatprep.subr.mxu0 0.0
      %1006 = vmatpush2.msra.mxu0 0.0
      %1007 = vmatprep.subr.mxu0 0.0
      %1008 = vmatpush2.msra.mxu0 0.0
      %1009 = vmatprep.subr.mxu0 0.0
      %1010 = vmatpush2.msra.mxu0 0.0
      %1011 = vmatprep.subr.mxu0 0.0
      %1012 = vmatpush2.msra.mxu0 0.0
      %1013 = vmatprep.subr.mxu0 0.0
      %1014 = vmatpush2.msra.mxu0 0.0
      %1015 = vmatprep.subr.mxu0 0.0
      %1016 = vmatpush2.msra.mxu0 0.0
      %1017 = vmatprep.subr.mxu0 0.0
      %1018 = vmatpush2.msra.mxu0 0.0
      %1019 = vmatprep.subr.mxu0 0.0
      %1020 = vmatpush2.msra.mxu0 0.0
      %1021 = vmatprep.subr.mxu0 0.0
      %1022 = vmatpush2.msra.mxu0 0.0
      %1023 = vmatprep.subr.mxu0 0.0
      %1024 = vmatpush2.msra.mxu0 0.0
      %1025 = vmatprep.subr.mxu0 0.0
      %1026 = vmatpush2.msra.mxu0 0.0
      %1027 = vmatprep.subr.mxu0 0.0
      %1028 = vmatpush2.msra.mxu0 0.0
      %1029 = vmatprep.mubr.f32.mxu0 0.0
      %1030 = vmatmul.mubr.f32.gmra.mxu0 %v793
      %v1031 = vpop.f32.mrf.mxu0
      %v1032 = vadd.f32 0.0, %v1031
      %v1033 = vpop.f32.mrf.mxu0
      %1034 = vmatprep.mubr.f32.mxu0 0.0
      %1035 = vmatmul.mubr.f32.gmra.mxu0 %v795
      %v1036 = vpop.f32.mrf.mxu0
      %v1037 = vadd.f32 0.0, %v1036
      %v1038 = vpop.f32.mrf.mxu0
      %1039 = vmatprep.mubr.f32.mxu0 0.0
      %1040 = vmatmul.mubr.f32.gmra.mxu0 %v797
      %v1041 = vpop.f32.mrf.mxu0
      %v1042 = vadd.f32 0.0, %v1041
      %v1043 = vpop.f32.mrf.mxu0
      %1044 = vdwg.mxu0
      %v1045 = vadd.f32 %v592, %v866
      %v1046 = vadd.f32 %v594, %v868
      %v1047 = vadd.f32 %v675, %v949
      %v1048 = vadd.f32 %v677, %v951
      %v1049 = vadd.f32 %v758, %v1032
      %v1050 = vadd.f32 %v598, %v872
      %v1051 = vadd.f32 %v600, %v874
      %v1052 = vadd.f32 %v681, %v955
      %v1053 = vadd.f32 %v683, %v957
      %v1054 = vadd.f32 %v763, %v1037
      %v1055 = vadd.f32 %v604, %v878
      %v1056 = vadd.f32 %v606, %v880
      %v1057 = vadd.f32 %v687, %v961
      %v1058 = vadd.f32 %v689, %v963
      %v1059 = vadd.f32 %v768, %v1042
      %s1060 = scalar_lea.vmem %s1, 360
      %v1061 = vld [vmem:[%s1060] sm:$0xff]
      %v1062 = vld [vmem:[%s1060 + $0x8] sm:$0xff]
      %v1063 = vld [vmem:[%s1060 + $0x10] sm:$0xff]
      %v1064 = vld [vmem:[%s1060 + $0x18] sm:$0xff]
      %v1065 = vld [vmem:[%s1060 + $0x20] sm:$0xff]
      %v1066 = vld [vmem:[%s1060 + $0x28] sm:$0xff]
      %v1067 = vld [vmem:[%s1060 + $0x30] sm:$0xff]
      %v1068 = vld [vmem:[%s1060 + $0x38] sm:$0xff]
      %v1069 = vld [vmem:[%s1060 + $0x40] sm:$0xff]
      %v1070 = vld [vmem:[%s1060 + $0x48] sm:$0xff]
      %v1071 = vld [vmem:[%s1060 + $0x50] sm:$0xff]
      %v1072 = vld [vmem:[%s1060 + $0x58] sm:$0xff]
      %v1073 = vld [vmem:[%s1060 + $0x60] sm:$0xff]
      %v1074 = vld [vmem:[%s1060 + $0x68] sm:$0xff]
      %v1075 = vld [vmem:[%s1060 + $0x70] sm:$0xff]
      %vm1076 = vcmask 1044480
      %v1077 = vrot.slane %v223, 3
      %v1078 = vrot.slane %v224, 3
      %v1079 = vsel %vm1076, %v1077, %v1078
      %v1080 = vrot.slane %v225, 3
      %v1081 = vsel %vm1076, %v1078, %v1080
      %v1082 = vsel %vm266, %v1079, 0
      %v1084 = vsel %vm266, %v1081, 0
      %v1086 = vsel %vm266, %v1080, 0
      %1088 = vmatprep.subr.mxu0 0.0
      %1089 = vmatpush1.msra.mxu0 0.0
      %1090 = vmatprep.subr.mxu0 0.0
      %1091 = vmatpush1.msra.mxu0 0.0
      %1092 = vmatprep.subr.mxu0 0.0
      %1093 = vmatpush1.msra.mxu0 0.0
      %1094 = vmatprep.subr.mxu0 0.0
      %1095 = vmatpush1.msra.mxu0 0.0
      %1096 = vmatprep.subr.mxu0 0.0
      %1097 = vmatpush1.msra.mxu0 0.0
      %1098 = vmatprep.subr.mxu0 0.0
      %1099 = vmatpush1.msra.mxu0 0.0
      %1100 = vmatprep.subr.mxu0 0.0
      %1101 = vmatpush1.msra.mxu0 0.0
      %1102 = vmatprep.subr.mxu0 0.0
      %1103 = vmatpush1.msra.mxu0 0.0
      %1104 = vmatprep.subr.mxu0 0.0
      %1105 = vmatpush1.msra.mxu0 0.0
      %1106 = vmatprep.subr.mxu0 0.0
      %1107 = vmatpush1.msra.mxu0 0.0
      %1108 = vmatprep.subr.mxu0 0.0
      %1109 = vmatpush1.msra.mxu0 0.0
      %1110 = vmatprep.subr.mxu0 0.0
      %1111 = vmatpush1.msra.mxu0 0.0
      %1112 = vmatprep.subr.mxu0 0.0
      %1113 = vmatpush1.msra.mxu0 0.0
      %1114 = vmatprep.subr.mxu0 %v1072
      %1115 = vmatpush1.msra.mxu0 %v1071
      %1116 = vmatprep.subr.mxu0 %v1067
      %1117 = vmatpush1.msra.mxu0 %v1066
      %1118 = vmatprep.subr.mxu0 %v1062
      %1119 = vmatpush1.msra.mxu0 %v1061
      %1120 = vmatprep.subr.mxu0 0.0
      %1121 = vmatpush2.msra.mxu0 0.0
      %1122 = vmatprep.subr.mxu0 0.0
      %1123 = vmatpush2.msra.mxu0 0.0
      %1124 = vmatprep.subr.mxu0 0.0
      %1125 = vmatpush2.msra.mxu0 0.0
      %1126 = vmatprep.subr.mxu0 0.0
      %1127 = vmatpush2.msra.mxu0 0.0
      %1128 = vmatprep.subr.mxu0 0.0
      %1129 = vmatpush2.msra.mxu0 0.0
      %1130 = vmatprep.subr.mxu0 0.0
      %1131 = vmatpush2.msra.mxu0 0.0
      %1132 = vmatprep.subr.mxu0 0.0
      %1133 = vmatpush2.msra.mxu0 0.0
      %1134 = vmatprep.subr.mxu0 0.0
      %1135 = vmatpush2.msra.mxu0 0.0
      %1136 = vmatprep.subr.mxu0 0.0
      %1137 = vmatpush2.msra.mxu0 0.0
      %1138 = vmatprep.subr.mxu0 0.0
      %1139 = vmatpush2.msra.mxu0 0.0
      %1140 = vmatprep.subr.mxu0 0.0
      %1141 = vmatpush2.msra.mxu0 0.0
      %1142 = vmatprep.subr.mxu0 0.0
      %1143 = vmatpush2.msra.mxu0 0.0
      %1144 = vmatprep.subr.mxu0 0.0
      %1145 = vmatpush2.msra.mxu0 0.0
      %1146 = vmatprep.subr.mxu0 0.0
      %1147 = vmatpush2.msra.mxu0 0.0
      %1148 = vmatprep.subr.mxu0 0.0
      %1149 = vmatpush2.msra.mxu0 0.0
      %1150 = vmatprep.subr.mxu0 0.0
      %1151 = vmatpush2.msra.mxu0 0.0
      %1152 = vmatprep.mubr.f32.mxu0 0.0
      %1153 = vmatmul.mubr.f32.gmra.mxu0 %v1082
      %v1154 = vpop.f32.mrf.mxu0
      %v1155 = vadd.f32 0.0, %v1154
      %v1156 = vpop.f32.mrf.mxu0
      %v1157 = vadd.f32 0.0, %v1156
      %1158 = vmatprep.mubr.f32.mxu0 0.0
      %1159 = vmatmul.mubr.f32.gmra.mxu0 %v1084
      %v1160 = vpop.f32.mrf.mxu0
      %v1161 = vadd.f32 0.0, %v1160
      %v1162 = vpop.f32.mrf.mxu0
      %v1163 = vadd.f32 0.0, %v1162
      %1164 = vmatprep.mubr.f32.mxu0 0.0
      %1165 = vmatmul.mubr.f32.gmra.mxu0 %v1086
      %v1166 = vpop.f32.mrf.mxu0
      %v1167 = vadd.f32 0.0, %v1166
      %v1168 = vpop.f32.mrf.mxu0
      %v1169 = vadd.f32 0.0, %v1168
      %1170 = vdwg.mxu0
      %1171 = vmatprep.subr.mxu0 0.0
      %1172 = vmatpush1.msra.mxu0 0.0
      %1173 = vmatprep.subr.mxu0 0.0
      %1174 = vmatpush1.msra.mxu0 0.0
      %1175 = vmatprep.subr.mxu0 0.0
      %1176 = vmatpush1.msra.mxu0 0.0
      %1177 = vmatprep.subr.mxu0 0.0
      %1178 = vmatpush1.msra.mxu0 0.0
      %1179 = vmatprep.subr.mxu0 0.0
      %1180 = vmatpush1.msra.mxu0 0.0
      %1181 = vmatprep.subr.mxu0 0.0
      %1182 = vmatpush1.msra.mxu0 0.0
      %1183 = vmatprep.subr.mxu0 0.0
      %1184 = vmatpush1.msra.mxu0 0.0
      %1185 = vmatprep.subr.mxu0 0.0
      %1186 = vmatpush1.msra.mxu0 0.0
      %1187 = vmatprep.subr.mxu0 0.0
      %1188 = vmatpush1.msra.mxu0 0.0
      %1189 = vmatprep.subr.mxu0 0.0
      %1190 = vmatpush1.msra.mxu0 0.0
      %1191 = vmatprep.subr.mxu0 0.0
      %1192 = vmatpush1.msra.mxu0 0.0
      %1193 = vmatprep.subr.mxu0 0.0
      %1194 = vmatpush1.msra.mxu0 0.0
      %1195 = vmatprep.subr.mxu0 0.0
      %1196 = vmatpush1.msra.mxu0 0.0
      %1197 = vmatprep.subr.mxu0 %v1074
      %1198 = vmatpush1.msra.mxu0 %v1073
      %1199 = vmatprep.subr.mxu0 %v1069
      %1200 = vmatpush1.msra.mxu0 %v1068
      %1201 = vmatprep.subr.mxu0 %v1064
      %1202 = vmatpush1.msra.mxu0 %v1063
      %1203 = vmatprep.subr.mxu0 0.0
      %1204 = vmatpush2.msra.mxu0 0.0
      %1205 = vmatprep.subr.mxu0 0.0
      %1206 = vmatpush2.msra.mxu0 0.0
      %1207 = vmatprep.subr.mxu0 0.0
      %1208 = vmatpush2.msra.mxu0 0.0
      %1209 = vmatprep.subr.mxu0 0.0
      %1210 = vmatpush2.msra.mxu0 0.0
      %1211 = vmatprep.subr.mxu0 0.0
      %1212 = vmatpush2.msra.mxu0 0.0
      %1213 = vmatprep.subr.mxu0 0.0
      %1214 = vmatpush2.msra.mxu0 0.0
      %1215 = vmatprep.subr.mxu0 0.0
      %1216 = vmatpush2.msra.mxu0 0.0
      %1217 = vmatprep.subr.mxu0 0.0
      %1218 = vmatpush2.msra.mxu0 0.0
      %1219 = vmatprep.subr.mxu0 0.0
      %1220 = vmatpush2.msra.mxu0 0.0
      %1221 = vmatprep.subr.mxu0 0.0
      %1222 = vmatpush2.msra.mxu0 0.0
      %1223 = vmatprep.subr.mxu0 0.0
      %1224 = vmatpush2.msra.mxu0 0.0
      %1225 = vmatprep.subr.mxu0 0.0
      %1226 = vmatpush2.msra.mxu0 0.0
      %1227 = vmatprep.subr.mxu0 0.0
      %1228 = vmatpush2.msra.mxu0 0.0
      %1229 = vmatprep.subr.mxu0 0.0
      %1230 = vmatpush2.msra.mxu0 0.0
      %1231 = vmatprep.subr.mxu0 0.0
      %1232 = vmatpush2.msra.mxu0 0.0
      %1233 = vmatprep.subr.mxu0 0.0
      %1234 = vmatpush2.msra.mxu0 0.0
      %1235 = vmatprep.mubr.f32.mxu0 0.0
      %1236 = vmatmul.mubr.f32.gmra.mxu0 %v1082
      %v1237 = vpop.f32.mrf.mxu0
      %v1238 = vadd.f32 0.0, %v1237
      %v1239 = vpop.f32.mrf.mxu0
      %v1240 = vadd.f32 0.0, %v1239
      %1241 = vmatprep.mubr.f32.mxu0 0.0
      %1242 = vmatmul.mubr.f32.gmra.mxu0 %v1084
      %v1243 = vpop.f32.mrf.mxu0
      %v1244 = vadd.f32 0.0, %v1243
      %v1245 = vpop.f32.mrf.mxu0
      %v1246 = vadd.f32 0.0, %v1245
      %1247 = vmatprep.mubr.f32.mxu0 0.0
      %1248 = vmatmul.mubr.f32.gmra.mxu0 %v1086
      %v1249 = vpop.f32.mrf.mxu0
      %v1250 = vadd.f32 0.0, %v1249
      %v1251 = vpop.f32.mrf.mxu0
      %v1252 = vadd.f32 0.0, %v1251
      %1253 = vdwg.mxu0
      %1254 = vmatprep.subr.mxu0 0.0
      %1255 = vmatpush1.msra.mxu0 0.0
      %1256 = vmatprep.subr.mxu0 0.0
      %1257 = vmatpush1.msra.mxu0 0.0
      %1258 = vmatprep.subr.mxu0 0.0
      %1259 = vmatpush1.msra.mxu0 0.0
      %1260 = vmatprep.subr.mxu0 0.0
      %1261 = vmatpush1.msra.mxu0 0.0
      %1262 = vmatprep.subr.mxu0 0.0
      %1263 = vmatpush1.msra.mxu0 0.0
      %1264 = vmatprep.subr.mxu0 0.0
      %1265 = vmatpush1.msra.mxu0 0.0
      %1266 = vmatprep.subr.mxu0 0.0
      %1267 = vmatpush1.msra.mxu0 0.0
      %1268 = vmatprep.subr.mxu0 0.0
      %1269 = vmatpush1.msra.mxu0 0.0
      %1270 = vmatprep.subr.mxu0 0.0
      %1271 = vmatpush1.msra.mxu0 0.0
      %1272 = vmatprep.subr.mxu0 0.0
      %1273 = vmatpush1.msra.mxu0 0.0
      %1274 = vmatprep.subr.mxu0 0.0
      %1275 = vmatpush1.msra.mxu0 0.0
      %1276 = vmatprep.subr.mxu0 0.0
      %1277 = vmatpush1.msra.mxu0 0.0
      %1278 = vmatprep.subr.mxu0 0.0
      %1279 = vmatpush1.msra.mxu0 0.0
      %1280 = vmatprep.subr.mxu0 0.0
      %1281 = vmatpush1.msra.mxu0 %v1075
      %1282 = vmatprep.subr.mxu0 0.0
      %1283 = vmatpush1.msra.mxu0 %v1070
      %1284 = vmatprep.subr.mxu0 0.0
      %1285 = vmatpush1.msra.mxu0 %v1065
      %1286 = vmatprep.subr.mxu0 0.0
      %1287 = vmatpush2.msra.mxu0 0.0
      %1288 = vmatprep.subr.mxu0 0.0
      %1289 = vmatpush2.msra.mxu0 0.0
      %1290 = vmatprep.subr.mxu0 0.0
      %1291 = vmatpush2.msra.mxu0 0.0
      %1292 = vmatprep.subr.mxu0 0.0
      %1293 = vmatpush2.msra.mxu0 0.0
      %1294 = vmatprep.subr.mxu0 0.0
      %1295 = vmatpush2.msra.mxu0 0.0
      %1296 = vmatprep.subr.mxu0 0.0
      %1297 = vmatpush2.msra.mxu0 0.0
      %1298 = vmatprep.subr.mxu0 0.0
      %1299 = vmatpush2.msra.mxu0 0.0
      %1300 = vmatprep.subr.mxu0 0.0
      %1301 = vmatpush2.msra.mxu0 0.0
      %1302 = vmatprep.subr.mxu0 0.0
      %1303 = vmatpush2.msra.mxu0 0.0
      %1304 = vmatprep.subr.mxu0 0.0
      %1305 = vmatpush2.msra.mxu0 0.0
      %1306 = vmatprep.subr.mxu0 0.0
      %1307 = vmatpush2.msra.mxu0 0.0
      %1308 = vmatprep.subr.mxu0 0.0
      %1309 = vmatpush2.msra.mxu0 0.0
      %1310 = vmatprep.subr.mxu0 0.0
      %1311 = vmatpush2.msra.mxu0 0.0
      %1312 = vmatprep.subr.mxu0 0.0
      %1313 = vmatpush2.msra.mxu0 0.0
      %1314 = vmatprep.subr.mxu0 0.0
      %1315 = vmatpush2.msra.mxu0 0.0
      %1316 = vmatprep.subr.mxu0 0.0
      %1317 = vmatpush2.msra.mxu0 0.0
      %1318 = vmatprep.mubr.f32.mxu0 0.0
      %1319 = vmatmul.mubr.f32.gmra.mxu0 %v1082
      %v1320 = vpop.f32.mrf.mxu0
      %v1321 = vadd.f32 0.0, %v1320
      %v1322 = vpop.f32.mrf.mxu0
      %1323 = vmatprep.mubr.f32.mxu0 0.0
      %1324 = vmatmul.mubr.f32.gmra.mxu0 %v1084
      %v1325 = vpop.f32.mrf.mxu0
      %v1326 = vadd.f32 0.0, %v1325
      %v1327 = vpop.f32.mrf.mxu0
      %1328 = vmatprep.mubr.f32.mxu0 0.0
      %1329 = vmatmul.mubr.f32.gmra.mxu0 %v1086
      %v1330 = vpop.f32.mrf.mxu0
      %v1331 = vadd.f32 0.0, %v1330
      %v1332 = vpop.f32.mrf.mxu0
      %1333 = vdwg.mxu0
      %v1334 = vadd.f32 %v1045, %v1155
      %v1335 = vadd.f32 %v1046, %v1157
      %v1336 = vadd.f32 %v1047, %v1238
      %v1337 = vadd.f32 %v1048, %v1240
      %v1338 = vadd.f32 %v1049, %v1321
      %v1339 = vadd.f32 %v1050, %v1161
      %v1340 = vadd.f32 %v1051, %v1163
      %v1341 = vadd.f32 %v1052, %v1244
      %v1342 = vadd.f32 %v1053, %v1246
      %v1343 = vadd.f32 %v1054, %v1326
      %v1344 = vadd.f32 %v1055, %v1167
      %v1345 = vadd.f32 %v1056, %v1169
      %v1346 = vadd.f32 %v1057, %v1250
      %v1347 = vadd.f32 %v1058, %v1252
      %v1348 = vadd.f32 %v1059, %v1331
      %s1349 = scalar_lea.vmem %s1, 480
      %v1350 = vld [vmem:[%s1349] sm:$0xff]
      %v1351 = vld [vmem:[%s1349 + $0x8] sm:$0xff]
      %v1352 = vld [vmem:[%s1349 + $0x10] sm:$0xff]
      %v1353 = vld [vmem:[%s1349 + $0x18] sm:$0xff]
      %v1354 = vld [vmem:[%s1349 + $0x20] sm:$0xff]
      %v1355 = vld [vmem:[%s1349 + $0x28] sm:$0xff]
      %v1356 = vld [vmem:[%s1349 + $0x30] sm:$0xff]
      %v1357 = vld [vmem:[%s1349 + $0x38] sm:$0xff]
      %v1358 = vld [vmem:[%s1349 + $0x40] sm:$0xff]
      %v1359 = vld [vmem:[%s1349 + $0x48] sm:$0xff]
      %v1360 = vld [vmem:[%s1349 + $0x50] sm:$0xff]
      %v1361 = vld [vmem:[%s1349 + $0x58] sm:$0xff]
      %v1362 = vld [vmem:[%s1349 + $0x60] sm:$0xff]
      %v1363 = vld [vmem:[%s1349 + $0x68] sm:$0xff]
      %v1364 = vld [vmem:[%s1349 + $0x70] sm:$0xff]
      %vm1365 = vcmask 1043456
      %v1366 = vrot.slane %v223, 4
      %v1367 = vrot.slane %v224, 4
      %v1368 = vsel %vm1365, %v1366, %v1367
      %v1369 = vrot.slane %v225, 4
      %v1370 = vsel %vm1365, %v1367, %v1369
      %v1371 = vsel %vm266, %v1368, 0
      %v1373 = vsel %vm266, %v1370, 0
      %v1375 = vsel %vm266, %v1369, 0
      %1377 = vmatprep.subr.mxu0 0.0
      %1378 = vmatpush1.msra.mxu0 0.0
      %1379 = vmatprep.subr.mxu0 0.0
      %1380 = vmatpush1.msra.mxu0 0.0
      %1381 = vmatprep.subr.mxu0 0.0
      %1382 = vmatpush1.msra.mxu0 0.0
      %1383 = vmatprep.subr.mxu0 0.0
      %1384 = vmatpush1.msra.mxu0 0.0
      %1385 = vmatprep.subr.mxu0 0.0
      %1386 = vmatpush1.msra.mxu0 0.0
      %1387 = vmatprep.subr.mxu0 0.0
      %1388 = vmatpush1.msra.mxu0 0.0
      %1389 = vmatprep.subr.mxu0 0.0
      %1390 = vmatpush1.msra.mxu0 0.0
      %1391 = vmatprep.subr.mxu0 0.0
      %1392 = vmatpush1.msra.mxu0 0.0
      %1393 = vmatprep.subr.mxu0 0.0
      %1394 = vmatpush1.msra.mxu0 0.0
      %1395 = vmatprep.subr.mxu0 0.0
      %1396 = vmatpush1.msra.mxu0 0.0
      %1397 = vmatprep.subr.mxu0 0.0
      %1398 = vmatpush1.msra.mxu0 0.0
      %1399 = vmatprep.subr.mxu0 0.0
      %1400 = vmatpush1.msra.mxu0 0.0
      %1401 = vmatprep.subr.mxu0 0.0
      %1402 = vmatpush1.msra.mxu0 0.0
      %1403 = vmatprep.subr.mxu0 %v1361
      %1404 = vmatpush1.msra.mxu0 %v1360
      %1405 = vmatprep.subr.mxu0 %v1356
      %1406 = vmatpush1.msra.mxu0 %v1355
      %1407 = vmatprep.subr.mxu0 %v1351
      %1408 = vmatpush1.msra.mxu0 %v1350
      %1409 = vmatprep.subr.mxu0 0.0
      %1410 = vmatpush2.msra.mxu0 0.0
      %1411 = vmatprep.subr.mxu0 0.0
      %1412 = vmatpush2.msra.mxu0 0.0
      %1413 = vmatprep.subr.mxu0 0.0
      %1414 = vmatpush2.msra.mxu0 0.0
      %1415 = vmatprep.subr.mxu0 0.0
      %1416 = vmatpush2.msra.mxu0 0.0
      %1417 = vmatprep.subr.mxu0 0.0
      %1418 = vmatpush2.msra.mxu0 0.0
      %1419 = vmatprep.subr.mxu0 0.0
      %1420 = vmatpush2.msra.mxu0 0.0
      %1421 = vmatprep.subr.mxu0 0.0
      %1422 = vmatpush2.msra.mxu0 0.0
      %1423 = vmatprep.subr.mxu0 0.0
      %1424 = vmatpush2.msra.mxu0 0.0
      %1425 = vmatprep.subr.mxu0 0.0
      %1426 = vmatpush2.msra.mxu0 0.0
      %1427 = vmatprep.subr.mxu0 0.0
      %1428 = vmatpush2.msra.mxu0 0.0
      %1429 = vmatprep.subr.mxu0 0.0
      %1430 = vmatpush2.msra.mxu0 0.0
      %1431 = vmatprep.subr.mxu0 0.0
      %1432 = vmatpush2.msra.mxu0 0.0
      %1433 = vmatprep.subr.mxu0 0.0
      %1434 = vmatpush2.msra.mxu0 0.0
      %1435 = vmatprep.subr.mxu0 0.0
      %1436 = vmatpush2.msra.mxu0 0.0
      %1437 = vmatprep.subr.mxu0 0.0
      %1438 = vmatpush2.msra.mxu0 0.0
      %1439 = vmatprep.subr.mxu0 0.0
      %1440 = vmatpush2.msra.mxu0 0.0
      %1441 = vmatprep.mubr.f32.mxu0 0.0
      %1442 = vmatmul.mubr.f32.gmra.mxu0 %v1371
      %v1443 = vpop.f32.mrf.mxu0
      %v1444 = vadd.f32 0.0, %v1443
      %v1445 = vpop.f32.mrf.mxu0
      %v1446 = vadd.f32 0.0, %v1445
      %1447 = vmatprep.mubr.f32.mxu0 0.0
      %1448 = vmatmul.mubr.f32.gmra.mxu0 %v1373
      %v1449 = vpop.f32.mrf.mxu0
      %v1450 = vadd.f32 0.0, %v1449
      %v1451 = vpop.f32.mrf.mxu0
      %v1452 = vadd.f32 0.0, %v1451
      %1453 = vmatprep.mubr.f32.mxu0 0.0
      %1454 = vmatmul.mubr.f32.gmra.mxu0 %v1375
      %v1455 = vpop.f32.mrf.mxu0
      %v1456 = vadd.f32 0.0, %v1455
      %v1457 = vpop.f32.mrf.mxu0
      %v1458 = vadd.f32 0.0, %v1457
      %1459 = vdwg.mxu0
      %1460 = vmatprep.subr.mxu0 0.0
      %1461 = vmatpush1.msra.mxu0 0.0
      %1462 = vmatprep.subr.mxu0 0.0
      %1463 = vmatpush1.msra.mxu0 0.0
      %1464 = vmatprep.subr.mxu0 0.0
      %1465 = vmatpush1.msra.mxu0 0.0
      %1466 = vmatprep.subr.mxu0 0.0
      %1467 = vmatpush1.msra.mxu0 0.0
      %1468 = vmatprep.subr.mxu0 0.0
      %1469 = vmatpush1.msra.mxu0 0.0
      %1470 = vmatprep.subr.mxu0 0.0
      %1471 = vmatpush1.msra.mxu0 0.0
      %1472 = vmatprep.subr.mxu0 0.0
      %1473 = vmatpush1.msra.mxu0 0.0
      %1474 = vmatprep.subr.mxu0 0.0
      %1475 = vmatpush1.msra.mxu0 0.0
      %1476 = vmatprep.subr.mxu0 0.0
      %1477 = vmatpush1.msra.mxu0 0.0
      %1478 = vmatprep.subr.mxu0 0.0
      %1479 = vmatpush1.msra.mxu0 0.0
      %1480 = vmatprep.subr.mxu0 0.0
      %1481 = vmatpush1.msra.mxu0 0.0
      %1482 = vmatprep.subr.mxu0 0.0
      %1483 = vmatpush1.msra.mxu0 0.0
      %1484 = vmatprep.subr.mxu0 0.0
      %1485 = vmatpush1.msra.mxu0 0.0
      %1486 = vmatprep.subr.mxu0 %v1363
      %1487 = vmatpush1.msra.mxu0 %v1362
      %1488 = vmatprep.subr.mxu0 %v1358
      %1489 = vmatpush1.msra.mxu0 %v1357
      %1490 = vmatprep.subr.mxu0 %v1353
      %1491 = vmatpush1.msra.mxu0 %v1352
      %1492 = vmatprep.subr.mxu0 0.0
      %1493 = vmatpush2.msra.mxu0 0.0
      %1494 = vmatprep.subr.mxu0 0.0
      %1495 = vmatpush2.msra.mxu0 0.0
      %1496 = vmatprep.subr.mxu0 0.0
      %1497 = vmatpush2.msra.mxu0 0.0
      %1498 = vmatprep.subr.mxu0 0.0
      %1499 = vmatpush2.msra.mxu0 0.0
      %1500 = vmatprep.subr.mxu0 0.0
      %1501 = vmatpush2.msra.mxu0 0.0
      %1502 = vmatprep.subr.mxu0 0.0
      %1503 = vmatpush2.msra.mxu0 0.0
      %1504 = vmatprep.subr.mxu0 0.0
      %1505 = vmatpush2.msra.mxu0 0.0
      %1506 = vmatprep.subr.mxu0 0.0
      %1507 = vmatpush2.msra.mxu0 0.0
      %1508 = vmatprep.subr.mxu0 0.0
      %1509 = vmatpush2.msra.mxu0 0.0
      %1510 = vmatprep.subr.mxu0 0.0
      %1511 = vmatpush2.msra.mxu0 0.0
      %1512 = vmatprep.subr.mxu0 0.0
      %1513 = vmatpush2.msra.mxu0 0.0
      %1514 = vmatprep.subr.mxu0 0.0
      %1515 = vmatpush2.msra.mxu0 0.0
      %1516 = vmatprep.subr.mxu0 0.0
      %1517 = vmatpush2.msra.mxu0 0.0
      %1518 = vmatprep.subr.mxu0 0.0
      %1519 = vmatpush2.msra.mxu0 0.0
      %1520 = vmatprep.subr.mxu0 0.0
      %1521 = vmatpush2.msra.mxu0 0.0
      %1522 = vmatprep.subr.mxu0 0.0
      %1523 = vmatpush2.msra.mxu0 0.0
      %1524 = vmatprep.mubr.f32.mxu0 0.0
      %1525 = vmatmul.mubr.f32.gmra.mxu0 %v1371
      %v1526 = vpop.f32.mrf.mxu0
      %v1527 = vadd.f32 0.0, %v1526
      %v1528 = vpop.f32.mrf.mxu0
      %v1529 = vadd.f32 0.0, %v1528
      %1530 = vmatprep.mubr.f32.mxu0 0.0
      %1531 = vmatmul.mubr.f32.gmra.mxu0 %v1373
      %v1532 = vpop.f32.mrf.mxu0
      %v1533 = vadd.f32 0.0, %v1532
      %v1534 = vpop.f32.mrf.mxu0
      %v1535 = vadd.f32 0.0, %v1534
      %1536 = vmatprep.mubr.f32.mxu0 0.0
      %1537 = vmatmul.mubr.f32.gmra.mxu0 %v1375
      %v1538 = vpop.f32.mrf.mxu0
      %v1539 = vadd.f32 0.0, %v1538
      %v1540 = vpop.f32.mrf.mxu0
      %v1541 = vadd.f32 0.0, %v1540
      %1542 = vdwg.mxu0
      %1543 = vmatprep.subr.mxu0 0.0
      %1544 = vmatpush1.msra.mxu0 0.0
      %1545 = vmatprep.subr.mxu0 0.0
      %1546 = vmatpush1.msra.mxu0 0.0
      %1547 = vmatprep.subr.mxu0 0.0
      %1548 = vmatpush1.msra.mxu0 0.0
      %1549 = vmatprep.subr.mxu0 0.0
      %1550 = vmatpush1.msra.mxu0 0.0
      %1551 = vmatprep.subr.mxu0 0.0
      %1552 = vmatpush1.msra.mxu0 0.0
      %1553 = vmatprep.subr.mxu0 0.0
      %1554 = vmatpush1.msra.mxu0 0.0
      %1555 = vmatprep.subr.mxu0 0.0
      %1556 = vmatpush1.msra.mxu0 0.0
      %1557 = vmatprep.subr.mxu0 0.0
      %1558 = vmatpush1.msra.mxu0 0.0
      %1559 = vmatprep.subr.mxu0 0.0
      %1560 = vmatpush1.msra.mxu0 0.0
      %1561 = vmatprep.subr.mxu0 0.0
      %1562 = vmatpush1.msra.mxu0 0.0
      %1563 = vmatprep.subr.mxu0 0.0
      %1564 = vmatpush1.msra.mxu0 0.0
      %1565 = vmatprep.subr.mxu0 0.0
      %1566 = vmatpush1.msra.mxu0 0.0
      %1567 = vmatprep.subr.mxu0 0.0
      %1568 = vmatpush1.msra.mxu0 0.0
      %1569 = vmatprep.subr.mxu0 0.0
      %1570 = vmatpush1.msra.mxu0 %v1364
      %1571 = vmatprep.subr.mxu0 0.0
      %1572 = vmatpush1.msra.mxu0 %v1359
      %1573 = vmatprep.subr.mxu0 0.0
      %1574 = vmatpush1.msra.mxu0 %v1354
      %1575 = vmatprep.subr.mxu0 0.0
      %1576 = vmatpush2.msra.mxu0 0.0
      %1577 = vmatprep.subr.mxu0 0.0
      %1578 = vmatpush2.msra.mxu0 0.0
      %1579 = vmatprep.subr.mxu0 0.0
      %1580 = vmatpush2.msra.mxu0 0.0
      %1581 = vmatprep.subr.mxu0 0.0
      %1582 = vmatpush2.msra.mxu0 0.0
      %1583 = vmatprep.subr.mxu0 0.0
      %1584 = vmatpush2.msra.mxu0 0.0
      %1585 = vmatprep.subr.mxu0 0.0
      %1586 = vmatpush2.msra.mxu0 0.0
      %1587 = vmatprep.subr.mxu0 0.0
      %1588 = vmatpush2.msra.mxu0 0.0
      %1589 = vmatprep.subr.mxu0 0.0
      %1590 = vmatpush2.msra.mxu0 0.0
      %1591 = vmatprep.subr.mxu0 0.0
      %1592 = vmatpush2.msra.mxu0 0.0
      %1593 = vmatprep.subr.mxu0 0.0
      %1594 = vmatpush2.msra.mxu0 0.0
      %1595 = vmatprep.subr.mxu0 0.0
      %1596 = vmatpush2.msra.mxu0 0.0
      %1597 = vmatprep.subr.mxu0 0.0
      %1598 = vmatpush2.msra.mxu0 0.0
      %1599 = vmatprep.subr.mxu0 0.0
      %1600 = vmatpush2.msra.mxu0 0.0
      %1601 = vmatprep.subr.mxu0 0.0
      %1602 = vmatpush2.msra.mxu0 0.0
      %1603 = vmatprep.subr.mxu0 0.0
      %1604 = vmatpush2.msra.mxu0 0.0
      %1605 = vmatprep.subr.mxu0 0.0
      %1606 = vmatpush2.msra.mxu0 0.0
      %1607 = vmatprep.mubr.f32.mxu0 0.0
      %1608 = vmatmul.mubr.f32.gmra.mxu0 %v1371
      %v1609 = vpop.f32.mrf.mxu0
      %v1610 = vadd.f32 0.0, %v1609
      %v1611 = vpop.f32.mrf.mxu0
      %1612 = vmatprep.mubr.f32.mxu0 0.0
      %1613 = vmatmul.mubr.f32.gmra.mxu0 %v1373
      %v1614 = vpop.f32.mrf.mxu0
      %v1615 = vadd.f32 0.0, %v1614
      %v1616 = vpop.f32.mrf.mxu0
      %1617 = vmatprep.mubr.f32.mxu0 0.0
      %1618 = vmatmul.mubr.f32.gmra.mxu0 %v1375
      %v1619 = vpop.f32.mrf.mxu0
      %v1620 = vadd.f32 0.0, %v1619
      %v1621 = vpop.f32.mrf.mxu0
      %1622 = vdwg.mxu0
      %v1623 = vadd.f32 %v1334, %v1444
      %v1624 = vadd.f32 %v1335, %v1446
      %v1625 = vadd.f32 %v1336, %v1527
      %v1626 = vadd.f32 %v1337, %v1529
      %v1627 = vadd.f32 %v1338, %v1610
      %v1628 = vadd.f32 %v1339, %v1450
      %v1629 = vadd.f32 %v1340, %v1452
      %v1630 = vadd.f32 %v1341, %v1533
      %v1631 = vadd.f32 %v1342, %v1535
      %v1632 = vadd.f32 %v1343, %v1615
      %v1633 = vadd.f32 %v1344, %v1456
      %v1634 = vadd.f32 %v1345, %v1458
      %v1635 = vadd.f32 %v1346, %v1539
      %v1636 = vadd.f32 %v1347, %v1541
      %v1637 = vadd.f32 %v1348, %v1620
      %s1638 = scalar_lea.vmem %s1, 600
      %v1639 = vld [vmem:[%s1638] sm:$0xff]
      %v1640 = vld [vmem:[%s1638 + $0x8] sm:$0xff]
      %v1641 = vld [vmem:[%s1638 + $0x10] sm:$0xff]
      %v1642 = vld [vmem:[%s1638 + $0x18] sm:$0xff]
      %v1643 = vld [vmem:[%s1638 + $0x20] sm:$0xff]
      %v1644 = vld [vmem:[%s1638 + $0x28] sm:$0xff]
      %v1645 = vld [vmem:[%s1638 + $0x30] sm:$0xff]
      %v1646 = vld [vmem:[%s1638 + $0x38] sm:$0xff]
      %v1647 = vld [vmem:[%s1638 + $0x40] sm:$0xff]
      %v1648 = vld [vmem:[%s1638 + $0x48] sm:$0xff]
      %v1649 = vld [vmem:[%s1638 + $0x50] sm:$0xff]
      %v1650 = vld [vmem:[%s1638 + $0x58] sm:$0xff]
      %v1651 = vld [vmem:[%s1638 + $0x60] sm:$0xff]
      %v1652 = vld [vmem:[%s1638 + $0x68] sm:$0xff]
      %v1653 = vld [vmem:[%s1638 + $0x70] sm:$0xff]
      %vm1654 = vcmask 1042432
      %v1655 = vrot.slane %v223, 5
      %v1656 = vrot.slane %v224, 5
      %v1657 = vsel %vm1654, %v1655, %v1656
      %v1658 = vrot.slane %v225, 5
      %v1659 = vsel %vm1654, %v1656, %v1658
      %v1660 = vsel %vm266, %v1657, 0
      %v1662 = vsel %vm266, %v1659, 0
      %v1664 = vsel %vm266, %v1658, 0
      %1666 = vmatprep.subr.mxu0 0.0
      %1667 = vmatpush1.msra.mxu0 0.0
      %1668 = vmatprep.subr.mxu0 0.0
      %1669 = vmatpush1.msra.mxu0 0.0
      %1670 = vmatprep.subr.mxu0 0.0
      %1671 = vmatpush1.msra.mxu0 0.0
      %1672 = vmatprep.subr.mxu0 0.0
      %1673 = vmatpush1.msra.mxu0 0.0
      %1674 = vmatprep.subr.mxu0 0.0
      %1675 = vmatpush1.msra.mxu0 0.0
      %1676 = vmatprep.subr.mxu0 0.0
      %1677 = vmatpush1.msra.mxu0 0.0
      %1678 = vmatprep.subr.mxu0 0.0
      %1679 = vmatpush1.msra.mxu0 0.0
      %1680 = vmatprep.subr.mxu0 0.0
      %1681 = vmatpush1.msra.mxu0 0.0
      %1682 = vmatprep.subr.mxu0 0.0
      %1683 = vmatpush1.msra.mxu0 0.0
      %1684 = vmatprep.subr.mxu0 0.0
      %1685 = vmatpush1.msra.mxu0 0.0
      %1686 = vmatprep.subr.mxu0 0.0
      %1687 = vmatpush1.msra.mxu0 0.0
      %1688 = vmatprep.subr.mxu0 0.0
      %1689 = vmatpush1.msra.mxu0 0.0
      %1690 = vmatprep.subr.mxu0 0.0
      %1691 = vmatpush1.msra.mxu0 0.0
      %1692 = vmatprep.subr.mxu0 %v1650
      %1693 = vmatpush1.msra.mxu0 %v1649
      %1694 = vmatprep.subr.mxu0 %v1645
      %1695 = vmatpush1.msra.mxu0 %v1644
      %1696 = vmatprep.subr.mxu0 %v1640
      %1697 = vmatpush1.msra.mxu0 %v1639
      %1698 = vmatprep.subr.mxu0 0.0
      %1699 = vmatpush2.msra.mxu0 0.0
      %1700 = vmatprep.subr.mxu0 0.0
      %1701 = vmatpush2.msra.mxu0 0.0
      %1702 = vmatprep.subr.mxu0 0.0
      %1703 = vmatpush2.msra.mxu0 0.0
      %1704 = vmatprep.subr.mxu0 0.0
      %1705 = vmatpush2.msra.mxu0 0.0
      %1706 = vmatprep.subr.mxu0 0.0
      %1707 = vmatpush2.msra.mxu0 0.0
      %1708 = vmatprep.subr.mxu0 0.0
      %1709 = vmatpush2.msra.mxu0 0.0
      %1710 = vmatprep.subr.mxu0 0.0
      %1711 = vmatpush2.msra.mxu0 0.0
      %1712 = vmatprep.subr.mxu0 0.0
      %1713 = vmatpush2.msra.mxu0 0.0
      %1714 = vmatprep.subr.mxu0 0.0
      %1715 = vmatpush2.msra.mxu0 0.0
      %1716 = vmatprep.subr.mxu0 0.0
      %1717 = vmatpush2.msra.mxu0 0.0
      %1718 = vmatprep.subr.mxu0 0.0
      %1719 = vmatpush2.msra.mxu0 0.0
      %1720 = vmatprep.subr.mxu0 0.0
      %1721 = vmatpush2.msra.mxu0 0.0
      %1722 = vmatprep.subr.mxu0 0.0
      %1723 = vmatpush2.msra.mxu0 0.0
      %1724 = vmatprep.subr.mxu0 0.0
      %1725 = vmatpush2.msra.mxu0 0.0
      %1726 = vmatprep.subr.mxu0 0.0
      %1727 = vmatpush2.msra.mxu0 0.0
      %1728 = vmatprep.subr.mxu0 0.0
      %1729 = vmatpush2.msra.mxu0 0.0
      %1730 = vmatprep.mubr.f32.mxu0 0.0
      %1731 = vmatmul.mubr.f32.gmra.mxu0 %v1660
      %v1732 = vpop.f32.mrf.mxu0
      %v1733 = vadd.f32 0.0, %v1732
      %v1734 = vpop.f32.mrf.mxu0
      %v1735 = vadd.f32 0.0, %v1734
      %1736 = vmatprep.mubr.f32.mxu0 0.0
      %1737 = vmatmul.mubr.f32.gmra.mxu0 %v1662
      %v1738 = vpop.f32.mrf.mxu0
      %v1739 = vadd.f32 0.0, %v1738
      %v1740 = vpop.f32.mrf.mxu0
      %v1741 = vadd.f32 0.0, %v1740
      %1742 = vmatprep.mubr.f32.mxu0 0.0
      %1743 = vmatmul.mubr.f32.gmra.mxu0 %v1664
      %v1744 = vpop.f32.mrf.mxu0
      %v1745 = vadd.f32 0.0, %v1744
      %v1746 = vpop.f32.mrf.mxu0
      %v1747 = vadd.f32 0.0, %v1746
      %1748 = vdwg.mxu0
      %1749 = vmatprep.subr.mxu0 0.0
      %1750 = vmatpush1.msra.mxu0 0.0
      %1751 = vmatprep.subr.mxu0 0.0
      %1752 = vmatpush1.msra.mxu0 0.0
      %1753 = vmatprep.subr.mxu0 0.0
      %1754 = vmatpush1.msra.mxu0 0.0
      %1755 = vmatprep.subr.mxu0 0.0
      %1756 = vmatpush1.msra.mxu0 0.0
      %1757 = vmatprep.subr.mxu0 0.0
      %1758 = vmatpush1.msra.mxu0 0.0
      %1759 = vmatprep.subr.mxu0 0.0
      %1760 = vmatpush1.msra.mxu0 0.0
      %1761 = vmatprep.subr.mxu0 0.0
      %1762 = vmatpush1.msra.mxu0 0.0
      %1763 = vmatprep.subr.mxu0 0.0
      %1764 = vmatpush1.msra.mxu0 0.0
      %1765 = vmatprep.subr.mxu0 0.0
      %1766 = vmatpush1.msra.mxu0 0.0
      %1767 = vmatprep.subr.mxu0 0.0
      %1768 = vmatpush1.msra.mxu0 0.0
      %1769 = vmatprep.subr.mxu0 0.0
      %1770 = vmatpush1.msra.mxu0 0.0
      %1771 = vmatprep.subr.mxu0 0.0
      %1772 = vmatpush1.msra.mxu0 0.0
      %1773 = vmatprep.subr.mxu0 0.0
      %1774 = vmatpush1.msra.mxu0 0.0
      %1775 = vmatprep.subr.mxu0 %v1652
      %1776 = vmatpush1.msra.mxu0 %v1651
      %1777 = vmatprep.subr.mxu0 %v1647
      %1778 = vmatpush1.msra.mxu0 %v1646
      %1779 = vmatprep.subr.mxu0 %v1642
      %1780 = vmatpush1.msra.mxu0 %v1641
      %1781 = vmatprep.subr.mxu0 0.0
      %1782 = vmatpush2.msra.mxu0 0.0
      %1783 = vmatprep.subr.mxu0 0.0
      %1784 = vmatpush2.msra.mxu0 0.0
      %1785 = vmatprep.subr.mxu0 0.0
      %1786 = vmatpush2.msra.mxu0 0.0
      %1787 = vmatprep.subr.mxu0 0.0
      %1788 = vmatpush2.msra.mxu0 0.0
      %1789 = vmatprep.subr.mxu0 0.0
      %1790 = vmatpush2.msra.mxu0 0.0
      %1791 = vmatprep.subr.mxu0 0.0
      %1792 = vmatpush2.msra.mxu0 0.0
      %1793 = vmatprep.subr.mxu0 0.0
      %1794 = vmatpush2.msra.mxu0 0.0
      %1795 = vmatprep.subr.mxu0 0.0
      %1796 = vmatpush2.msra.mxu0 0.0
      %1797 = vmatprep.subr.mxu0 0.0
      %1798 = vmatpush2.msra.mxu0 0.0
      %1799 = vmatprep.subr.mxu0 0.0
      %1800 = vmatpush2.msra.mxu0 0.0
      %1801 = vmatprep.subr.mxu0 0.0
      %1802 = vmatpush2.msra.mxu0 0.0
      %1803 = vmatprep.subr.mxu0 0.0
      %1804 = vmatpush2.msra.mxu0 0.0
      %1805 = vmatprep.subr.mxu0 0.0
      %1806 = vmatpush2.msra.mxu0 0.0
      %1807 = vmatprep.subr.mxu0 0.0
      %1808 = vmatpush2.msra.mxu0 0.0
      %1809 = vmatprep.subr.mxu0 0.0
      %1810 = vmatpush2.msra.mxu0 0.0
      %1811 = vmatprep.subr.mxu0 0.0
      %1812 = vmatpush2.msra.mxu0 0.0
      %1813 = vmatprep.mubr.f32.mxu0 0.0
      %1814 = vmatmul.mubr.f32.gmra.mxu0 %v1660
      %v1815 = vpop.f32.mrf.mxu0
      %v1816 = vadd.f32 0.0, %v1815
      %v1817 = vpop.f32.mrf.mxu0
      %v1818 = vadd.f32 0.0, %v1817
      %1819 = vmatprep.mubr.f32.mxu0 0.0
      %1820 = vmatmul.mubr.f32.gmra.mxu0 %v1662
      %v1821 = vpop.f32.mrf.mxu0
      %v1822 = vadd.f32 0.0, %v1821
      %v1823 = vpop.f32.mrf.mxu0
      %v1824 = vadd.f32 0.0, %v1823
      %1825 = vmatprep.mubr.f32.mxu0 0.0
      %1826 = vmatmul.mubr.f32.gmra.mxu0 %v1664
      %v1827 = vpop.f32.mrf.mxu0
      %v1828 = vadd.f32 0.0, %v1827
      %v1829 = vpop.f32.mrf.mxu0
      %v1830 = vadd.f32 0.0, %v1829
      %1831 = vdwg.mxu0
      %1832 = vmatprep.subr.mxu0 0.0
      %1833 = vmatpush1.msra.mxu0 0.0
      %1834 = vmatprep.subr.mxu0 0.0
      %1835 = vmatpush1.msra.mxu0 0.0
      %1836 = vmatprep.subr.mxu0 0.0
      %1837 = vmatpush1.msra.mxu0 0.0
      %1838 = vmatprep.subr.mxu0 0.0
      %1839 = vmatpush1.msra.mxu0 0.0
      %1840 = vmatprep.subr.mxu0 0.0
      %1841 = vmatpush1.msra.mxu0 0.0
      %1842 = vmatprep.subr.mxu0 0.0
      %1843 = vmatpush1.msra.mxu0 0.0
      %1844 = vmatprep.subr.mxu0 0.0
      %1845 = vmatpush1.msra.mxu0 0.0
      %1846 = vmatprep.subr.mxu0 0.0
      %1847 = vmatpush1.msra.mxu0 0.0
      %1848 = vmatprep.subr.mxu0 0.0
      %1849 = vmatpush1.msra.mxu0 0.0
      %1850 = vmatprep.subr.mxu0 0.0
      %1851 = vmatpush1.msra.mxu0 0.0
      %1852 = vmatprep.subr.mxu0 0.0
      %1853 = vmatpush1.msra.mxu0 0.0
      %1854 = vmatprep.subr.mxu0 0.0
      %1855 = vmatpush1.msra.mxu0 0.0
      %1856 = vmatprep.subr.mxu0 0.0
      %1857 = vmatpush1.msra.mxu0 0.0
      %1858 = vmatprep.subr.mxu0 0.0
      %1859 = vmatpush1.msra.mxu0 %v1653
      %1860 = vmatprep.subr.mxu0 0.0
      %1861 = vmatpush1.msra.mxu0 %v1648
      %1862 = vmatprep.subr.mxu0 0.0
      %1863 = vmatpush1.msra.mxu0 %v1643
      %1864 = vmatprep.subr.mxu0 0.0
      %1865 = vmatpush2.msra.mxu0 0.0
      %1866 = vmatprep.subr.mxu0 0.0
      %1867 = vmatpush2.msra.mxu0 0.0
      %1868 = vmatprep.subr.mxu0 0.0
      %1869 = vmatpush2.msra.mxu0 0.0
      %1870 = vmatprep.subr.mxu0 0.0
      %1871 = vmatpush2.msra.mxu0 0.0
      %1872 = vmatprep.subr.mxu0 0.0
      %1873 = vmatpush2.msra.mxu0 0.0
      %1874 = vmatprep.subr.mxu0 0.0
      %1875 = vmatpush2.msra.mxu0 0.0
      %1876 = vmatprep.subr.mxu0 0.0
      %1877 = vmatpush2.msra.mxu0 0.0
      %1878 = vmatprep.subr.mxu0 0.0
      %1879 = vmatpush2.msra.mxu0 0.0
      %1880 = vmatprep.subr.mxu0 0.0
      %1881 = vmatpush2.msra.mxu0 0.0
      %1882 = vmatprep.subr.mxu0 0.0
      %1883 = vmatpush2.msra.mxu0 0.0
      %1884 = vmatprep.subr.mxu0 0.0
      %1885 = vmatpush2.msra.mxu0 0.0
      %1886 = vmatprep.subr.mxu0 0.0
      %1887 = vmatpush2.msra.mxu0 0.0
      %1888 = vmatprep.subr.mxu0 0.0
      %1889 = vmatpush2.msra.mxu0 0.0
      %1890 = vmatprep.subr.mxu0 0.0
      %1891 = vmatpush2.msra.mxu0 0.0
      %1892 = vmatprep.subr.mxu0 0.0
      %1893 = vmatpush2.msra.mxu0 0.0
      %1894 = vmatprep.subr.mxu0 0.0
      %1895 = vmatpush2.msra.mxu0 0.0
      %1896 = vmatprep.mubr.f32.mxu0 0.0
      %1897 = vmatmul.mubr.f32.gmra.mxu0 %v1660
      %v1898 = vpop.f32.mrf.mxu0
      %v1899 = vadd.f32 0.0, %v1898
      %v1900 = vpop.f32.mrf.mxu0
      %1901 = vmatprep.mubr.f32.mxu0 0.0
      %1902 = vmatmul.mubr.f32.gmra.mxu0 %v1662
      %v1903 = vpop.f32.mrf.mxu0
      %v1904 = vadd.f32 0.0, %v1903
      %v1905 = vpop.f32.mrf.mxu0
      %1906 = vmatprep.mubr.f32.mxu0 0.0
      %1907 = vmatmul.mubr.f32.gmra.mxu0 %v1664
      %v1908 = vpop.f32.mrf.mxu0
      %v1909 = vadd.f32 0.0, %v1908
      %v1910 = vpop.f32.mrf.mxu0
      %1911 = vdwg.mxu0
      %v1912 = vadd.f32 %v1623, %v1733
      %v1913 = vadd.f32 %v1624, %v1735
      %v1914 = vadd.f32 %v1625, %v1816
      %v1915 = vadd.f32 %v1626, %v1818
      %v1916 = vadd.f32 %v1627, %v1899
      %v1917 = vadd.f32 %v1628, %v1739
      %v1918 = vadd.f32 %v1629, %v1741
      %v1919 = vadd.f32 %v1630, %v1822
      %v1920 = vadd.f32 %v1631, %v1824
      %v1921 = vadd.f32 %v1632, %v1904
      %v1922 = vadd.f32 %v1633, %v1745
      %v1923 = vadd.f32 %v1634, %v1747
      %v1924 = vadd.f32 %v1635, %v1828
      %v1925 = vadd.f32 %v1636, %v1830
      %v1926 = vadd.f32 %v1637, %v1909
      %s1927 = scalar_lea.vmem %s1, 720
      %v1928 = vld [vmem:[%s1927] sm:$0xff]
      %v1929 = vld [vmem:[%s1927 + $0x8] sm:$0xff]
      %v1930 = vld [vmem:[%s1927 + $0x10] sm:$0xff]
      %v1931 = vld [vmem:[%s1927 + $0x18] sm:$0xff]
      %v1932 = vld [vmem:[%s1927 + $0x20] sm:$0xff]
      %v1933 = vld [vmem:[%s1927 + $0x28] sm:$0xff]
      %v1934 = vld [vmem:[%s1927 + $0x30] sm:$0xff]
      %v1935 = vld [vmem:[%s1927 + $0x38] sm:$0xff]
      %v1936 = vld [vmem:[%s1927 + $0x40] sm:$0xff]
      %v1937 = vld [vmem:[%s1927 + $0x48] sm:$0xff]
      %v1938 = vld [vmem:[%s1927 + $0x50] sm:$0xff]
      %v1939 = vld [vmem:[%s1927 + $0x58] sm:$0xff]
      %v1940 = vld [vmem:[%s1927 + $0x60] sm:$0xff]
      %v1941 = vld [vmem:[%s1927 + $0x68] sm:$0xff]
      %v1942 = vld [vmem:[%s1927 + $0x70] sm:$0xff]
      %vm1943 = vcmask 1041408
      %v1944 = vrot.slane %v223, 6
      %v1945 = vrot.slane %v224, 6
      %v1946 = vsel %vm1943, %v1944, %v1945
      %v1947 = vrot.slane %v225, 6
      %v1948 = vsel %vm1943, %v1945, %v1947
      %v1949 = vsel %vm266, %v1946, 0
      %v1951 = vsel %vm266, %v1948, 0
      %v1953 = vsel %vm266, %v1947, 0
      %1955 = vmatprep.subr.mxu0 0.0
      %1956 = vmatpush1.msra.mxu0 0.0
      %1957 = vmatprep.subr.mxu0 0.0
      %1958 = vmatpush1.msra.mxu0 0.0
      %1959 = vmatprep.subr.mxu0 0.0
      %1960 = vmatpush1.msra.mxu0 0.0
      %1961 = vmatprep.subr.mxu0 0.0
      %1962 = vmatpush1.msra.mxu0 0.0
      %1963 = vmatprep.subr.mxu0 0.0
      %1964 = vmatpush1.msra.mxu0 0.0
      %1965 = vmatprep.subr.mxu0 0.0
      %1966 = vmatpush1.msra.mxu0 0.0
      %1967 = vmatprep.subr.mxu0 0.0
      %1968 = vmatpush1.msra.mxu0 0.0
      %1969 = vmatprep.subr.mxu0 0.0
      %1970 = vmatpush1.msra.mxu0 0.0
      %1971 = vmatprep.subr.mxu0 0.0
      %1972 = vmatpush1.msra.mxu0 0.0
      %1973 = vmatprep.subr.mxu0 0.0
      %1974 = vmatpush1.msra.mxu0 0.0
      %1975 = vmatprep.subr.mxu0 0.0
      %1976 = vmatpush1.msra.mxu0 0.0
      %1977 = vmatprep.subr.mxu0 0.0
      %1978 = vmatpush1.msra.mxu0 0.0
      %1979 = vmatprep.subr.mxu0 0.0
      %1980 = vmatpush1.msra.mxu0 0.0
      %1981 = vmatprep.subr.mxu0 %v1939
      %1982 = vmatpush1.msra.mxu0 %v1938
      %1983 = vmatprep.subr.mxu0 %v1934
      %1984 = vmatpush1.msra.mxu0 %v1933
      %1985 = vmatprep.subr.mxu0 %v1929
      %1986 = vmatpush1.msra.mxu0 %v1928
      %1987 = vmatprep.subr.mxu0 0.0
      %1988 = vmatpush2.msra.mxu0 0.0
      %1989 = vmatprep.subr.mxu0 0.0
      %1990 = vmatpush2.msra.mxu0 0.0
      %1991 = vmatprep.subr.mxu0 0.0
      %1992 = vmatpush2.msra.mxu0 0.0
      %1993 = vmatprep.subr.mxu0 0.0
      %1994 = vmatpush2.msra.mxu0 0.0
      %1995 = vmatprep.subr.mxu0 0.0
      %1996 = vmatpush2.msra.mxu0 0.0
      %1997 = vmatprep.subr.mxu0 0.0
      %1998 = vmatpush2.msra.mxu0 0.0
      %1999 = vmatprep.subr.mxu0 0.0
      %2000 = vmatpush2.msra.mxu0 0.0
      %2001 = vmatprep.subr.mxu0 0.0
      %2002 = vmatpush2.msra.mxu0 0.0
      %2003 = vmatprep.subr.mxu0 0.0
      %2004 = vmatpush2.msra.mxu0 0.0
      %2005 = vmatprep.subr.mxu0 0.0
      %2006 = vmatpush2.msra.mxu0 0.0
      %2007 = vmatprep.subr.mxu0 0.0
      %2008 = vmatpush2.msra.mxu0 0.0
      %2009 = vmatprep.subr.mxu0 0.0
      %2010 = vmatpush2.msra.mxu0 0.0
      %2011 = vmatprep.subr.mxu0 0.0
      %2012 = vmatpush2.msra.mxu0 0.0
      %2013 = vmatprep.subr.mxu0 0.0
      %2014 = vmatpush2.msra.mxu0 0.0
      %2015 = vmatprep.subr.mxu0 0.0
      %2016 = vmatpush2.msra.mxu0 0.0
      %2017 = vmatprep.subr.mxu0 0.0
      %2018 = vmatpush2.msra.mxu0 0.0
      %2019 = vmatprep.mubr.f32.mxu0 0.0
      %2020 = vmatmul.mubr.f32.gmra.mxu0 %v1949
      %v2021 = vpop.f32.mrf.mxu0
      %v2022 = vadd.f32 0.0, %v2021
      %v2023 = vpop.f32.mrf.mxu0
      %v2024 = vadd.f32 0.0, %v2023
      %2025 = vmatprep.mubr.f32.mxu0 0.0
      %2026 = vmatmul.mubr.f32.gmra.mxu0 %v1951
      %v2027 = vpop.f32.mrf.mxu0
      %v2028 = vadd.f32 0.0, %v2027
      %v2029 = vpop.f32.mrf.mxu0
      %v2030 = vadd.f32 0.0, %v2029
      %2031 = vmatprep.mubr.f32.mxu0 0.0
      %2032 = vmatmul.mubr.f32.gmra.mxu0 %v1953
      %v2033 = vpop.f32.mrf.mxu0
      %v2034 = vadd.f32 0.0, %v2033
      %v2035 = vpop.f32.mrf.mxu0
      %v2036 = vadd.f32 0.0, %v2035
      %2037 = vdwg.mxu0
      %2038 = vmatprep.subr.mxu0 0.0
      %2039 = vmatpush1.msra.mxu0 0.0
      %2040 = vmatprep.subr.mxu0 0.0
      %2041 = vmatpush1.msra.mxu0 0.0
      %2042 = vmatprep.subr.mxu0 0.0
      %2043 = vmatpush1.msra.mxu0 0.0
      %2044 = vmatprep.subr.mxu0 0.0
      %2045 = vmatpush1.msra.mxu0 0.0
      %2046 = vmatprep.subr.mxu0 0.0
      %2047 = vmatpush1.msra.mxu0 0.0
      %2048 = vmatprep.subr.mxu0 0.0
      %2049 = vmatpush1.msra.mxu0 0.0
      %2050 = vmatprep.subr.mxu0 0.0
      %2051 = vmatpush1.msra.mxu0 0.0
      %2052 = vmatprep.subr.mxu0 0.0
      %2053 = vmatpush1.msra.mxu0 0.0
      %2054 = vmatprep.subr.mxu0 0.0
      %2055 = vmatpush1.msra.mxu0 0.0
      %2056 = vmatprep.subr.mxu0 0.0
      %2057 = vmatpush1.msra.mxu0 0.0
      %2058 = vmatprep.subr.mxu0 0.0
      %2059 = vmatpush1.msra.mxu0 0.0
      %2060 = vmatprep.subr.mxu0 0.0
      %2061 = vmatpush1.msra.mxu0 0.0
      %2062 = vmatprep.subr.mxu0 0.0
      %2063 = vmatpush1.msra.mxu0 0.0
      %2064 = vmatprep.subr.mxu0 %v1941
      %2065 = vmatpush1.msra.mxu0 %v1940
      %2066 = vmatprep.subr.mxu0 %v1936
      %2067 = vmatpush1.msra.mxu0 %v1935
      %2068 = vmatprep.subr.mxu0 %v1931
      %2069 = vmatpush1.msra.mxu0 %v1930
      %2070 = vmatprep.subr.mxu0 0.0
      %2071 = vmatpush2.msra.mxu0 0.0
      %2072 = vmatprep.subr.mxu0 0.0
      %2073 = vmatpush2.msra.mxu0 0.0
      %2074 = vmatprep.subr.mxu0 0.0
      %2075 = vmatpush2.msra.mxu0 0.0
      %2076 = vmatprep.subr.mxu0 0.0
      %2077 = vmatpush2.msra.mxu0 0.0
      %2078 = vmatprep.subr.mxu0 0.0
      %2079 = vmatpush2.msra.mxu0 0.0
      %2080 = vmatprep.subr.mxu0 0.0
      %2081 = vmatpush2.msra.mxu0 0.0
      %2082 = vmatprep.subr.mxu0 0.0
      %2083 = vmatpush2.msra.mxu0 0.0
      %2084 = vmatprep.subr.mxu0 0.0
      %2085 = vmatpush2.msra.mxu0 0.0
      %2086 = vmatprep.subr.mxu0 0.0
      %2087 = vmatpush2.msra.mxu0 0.0
      %2088 = vmatprep.subr.mxu0 0.0
      %2089 = vmatpush2.msra.mxu0 0.0
      %2090 = vmatprep.subr.mxu0 0.0
      %2091 = vmatpush2.msra.mxu0 0.0
      %2092 = vmatprep.subr.mxu0 0.0
      %2093 = vmatpush2.msra.mxu0 0.0
      %2094 = vmatprep.subr.mxu0 0.0
      %2095 = vmatpush2.msra.mxu0 0.0
      %2096 = vmatprep.subr.mxu0 0.0
      %2097 = vmatpush2.msra.mxu0 0.0
      %2098 = vmatprep.subr.mxu0 0.0
      %2099 = vmatpush2.msra.mxu0 0.0
      %2100 = vmatprep.subr.mxu0 0.0
      %2101 = vmatpush2.msra.mxu0 0.0
      %2102 = vmatprep.mubr.f32.mxu0 0.0
      %2103 = vmatmul.mubr.f32.gmra.mxu0 %v1949
      %v2104 = vpop.f32.mrf.mxu0
      %v2105 = vadd.f32 0.0, %v2104
      %v2106 = vpop.f32.mrf.mxu0
      %v2107 = vadd.f32 0.0, %v2106
      %2108 = vmatprep.mubr.f32.mxu0 0.0
      %2109 = vmatmul.mubr.f32.gmra.mxu0 %v1951
      %v2110 = vpop.f32.mrf.mxu0
      %v2111 = vadd.f32 0.0, %v2110
      %v2112 = vpop.f32.mrf.mxu0
      %v2113 = vadd.f32 0.0, %v2112
      %2114 = vmatprep.mubr.f32.mxu0 0.0
      %2115 = vmatmul.mubr.f32.gmra.mxu0 %v1953
      %v2116 = vpop.f32.mrf.mxu0
      %v2117 = vadd.f32 0.0, %v2116
      %v2118 = vpop.f32.mrf.mxu0
      %v2119 = vadd.f32 0.0, %v2118
      %2120 = vdwg.mxu0
      %2121 = vmatprep.subr.mxu0 0.0
      %2122 = vmatpush1.msra.mxu0 0.0
      %2123 = vmatprep.subr.mxu0 0.0
      %2124 = vmatpush1.msra.mxu0 0.0
      %2125 = vmatprep.subr.mxu0 0.0
      %2126 = vmatpush1.msra.mxu0 0.0
      %2127 = vmatprep.subr.mxu0 0.0
      %2128 = vmatpush1.msra.mxu0 0.0
      %2129 = vmatprep.subr.mxu0 0.0
      %2130 = vmatpush1.msra.mxu0 0.0
      %2131 = vmatprep.subr.mxu0 0.0
      %2132 = vmatpush1.msra.mxu0 0.0
      %2133 = vmatprep.subr.mxu0 0.0
      %2134 = vmatpush1.msra.mxu0 0.0
      %2135 = vmatprep.subr.mxu0 0.0
      %2136 = vmatpush1.msra.mxu0 0.0
      %2137 = vmatprep.subr.mxu0 0.0
      %2138 = vmatpush1.msra.mxu0 0.0
      %2139 = vmatprep.subr.mxu0 0.0
      %2140 = vmatpush1.msra.mxu0 0.0
      %2141 = vmatprep.subr.mxu0 0.0
      %2142 = vmatpush1.msra.mxu0 0.0
      %2143 = vmatprep.subr.mxu0 0.0
      %2144 = vmatpush1.msra.mxu0 0.0
      %2145 = vmatprep.subr.mxu0 0.0
      %2146 = vmatpush1.msra.mxu0 0.0
      %2147 = vmatprep.subr.mxu0 0.0
      %2148 = vmatpush1.msra.mxu0 %v1942
      %2149 = vmatprep.subr.mxu0 0.0
      %2150 = vmatpush1.msra.mxu0 %v1937
      %2151 = vmatprep.subr.mxu0 0.0
      %2152 = vmatpush1.msra.mxu0 %v1932
      %2153 = vmatprep.subr.mxu0 0.0
      %2154 = vmatpush2.msra.mxu0 0.0
      %2155 = vmatprep.subr.mxu0 0.0
      %2156 = vmatpush2.msra.mxu0 0.0
      %2157 = vmatprep.subr.mxu0 0.0
      %2158 = vmatpush2.msra.mxu0 0.0
      %2159 = vmatprep.subr.mxu0 0.0
      %2160 = vmatpush2.msra.mxu0 0.0
      %2161 = vmatprep.subr.mxu0 0.0
      %2162 = vmatpush2.msra.mxu0 0.0
      %2163 = vmatprep.subr.mxu0 0.0
      %2164 = vmatpush2.msra.mxu0 0.0
      %2165 = vmatprep.subr.mxu0 0.0
      %2166 = vmatpush2.msra.mxu0 0.0
      %2167 = vmatprep.subr.mxu0 0.0
      %2168 = vmatpush2.msra.mxu0 0.0
      %2169 = vmatprep.subr.mxu0 0.0
      %2170 = vmatpush2.msra.mxu0 0.0
      %2171 = vmatprep.subr.mxu0 0.0
      %2172 = vmatpush2.msra.mxu0 0.0
      %2173 = vmatprep.subr.mxu0 0.0
      %2174 = vmatpush2.msra.mxu0 0.0
      %2175 = vmatprep.subr.mxu0 0.0
      %2176 = vmatpush2.msra.mxu0 0.0
      %2177 = vmatprep.subr.mxu0 0.0
      %2178 = vmatpush2.msra.mxu0 0.0
      %2179 = vmatprep.subr.mxu0 0.0
      %2180 = vmatpush2.msra.mxu0 0.0
      %2181 = vmatprep.subr.mxu0 0.0
      %2182 = vmatpush2.msra.mxu0 0.0
      %2183 = vmatprep.subr.mxu0 0.0
      %2184 = vmatpush2.msra.mxu0 0.0
      %2185 = vmatprep.mubr.f32.mxu0 0.0
      %2186 = vmatmul.mubr.f32.gmra.mxu0 %v1949
      %v2187 = vpop.f32.mrf.mxu0
      %v2188 = vadd.f32 0.0, %v2187
      %v2189 = vpop.f32.mrf.mxu0
      %2190 = vmatprep.mubr.f32.mxu0 0.0
      %2191 = vmatmul.mubr.f32.gmra.mxu0 %v1951
      %v2192 = vpop.f32.mrf.mxu0
      %v2193 = vadd.f32 0.0, %v2192
      %v2194 = vpop.f32.mrf.mxu0
      %2195 = vmatprep.mubr.f32.mxu0 0.0
      %2196 = vmatmul.mubr.f32.gmra.mxu0 %v1953
      %v2197 = vpop.f32.mrf.mxu0
      %v2198 = vadd.f32 0.0, %v2197
      %v2199 = vpop.f32.mrf.mxu0
      %2200 = vdwg.mxu0
      %v2201 = vadd.f32 %v1912, %v2022
      %v2202 = vadd.f32 %v1913, %v2024
      %v2203 = vadd.f32 %v1914, %v2105
      %v2204 = vadd.f32 %v1915, %v2107
      %v2205 = vadd.f32 %v1916, %v2188
      %v2206 = vadd.f32 %v1917, %v2028
      %v2207 = vadd.f32 %v1918, %v2030
      %v2208 = vadd.f32 %v1919, %v2111
      %v2209 = vadd.f32 %v1920, %v2113
      %v2210 = vadd.f32 %v1921, %v2193
      %v2211 = vadd.f32 %v1922, %v2034
      %v2212 = vadd.f32 %v1923, %v2036
      %v2213 = vadd.f32 %v1924, %v2117
      %v2214 = vadd.f32 %v1925, %v2119
      %v2215 = vadd.f32 %v1926, %v2198
      %v2216 = vld [vmem:[%s2] sm:$0xff]
      %v2217 = vld [vmem:[%s2 + $0x8] sm:$0xff]
      %v2218 = vld [vmem:[%s2 + $0x10] sm:$0xff]
      %v2219 = vld [vmem:[%s2 + $0x18] sm:$0xff]
      %v2220 = vld [vmem:[%s2 + $0x20] sm:$0xff]
      %v2221 = vld [vmem:[%s2 + $0x28] sm:$0xff]
      %v2222 = vld [vmem:[%s2 + $0x30] sm:$0xff]
      %v2223 = vld [vmem:[%s2 + $0x38] sm:$0xff]
      %v2224 = vld [vmem:[%s2 + $0x40] sm:$0xff]
      %v2225 = vld [vmem:[%s2 + $0x48] sm:$0xff]
      %v2226 = vld [vmem:[%s2 + $0x50] sm:$0xff]
      %v2227 = vld [vmem:[%s2 + $0x58] sm:$0xff]
      %v2228 = vld [vmem:[%s2 + $0x60] sm:$0xff]
      %v2229 = vld [vmem:[%s2 + $0x68] sm:$0xff]
      %v2230 = vld [vmem:[%s2 + $0x70] sm:$0xff]
      %v2231 = vld [vmem:[%s2 + $0x78] sm:$0xff]
      %v2232 = vld [vmem:[%s2 + $0x80] sm:$0xff]
      %v2233 = vld [vmem:[%s2 + $0x88] sm:$0xff]
      %v2234 = vld [vmem:[%s2 + $0x90] sm:$0xff]
      %v2235 = vld [vmem:[%s2 + $0x98] sm:$0xff]
      %v2236 = vld [vmem:[%s2 + $0xa0] sm:$0xff]
      %v2237 = vld [vmem:[%s2 + $0xa8] sm:$0xff]
      %v2238 = vld [vmem:[%s2 + $0xb0] sm:$0xff]
      %v2239 = vld [vmem:[%s2 + $0xb8] sm:$0xff]
      %v2240 = vld [vmem:[%s2 + $0xc0] sm:$0xff]
      %v2241 = vld [vmem:[%s2 + $0xc8] sm:$0xff]
      %v2242 = vld [vmem:[%s2 + $0xd0] sm:$0xff]
      %v2243 = vld [vmem:[%s2 + $0xd8] sm:$0xff]
      %v2244 = vld [vmem:[%s2 + $0xe0] sm:$0xff]
      %v2245 = vld [vmem:[%s2 + $0xe8] sm:$0xff]
      %v2246 = vld [vmem:[%s2 + $0xf0] sm:$0xff]
      %v2247 = vld [vmem:[%s2 + $0xf8] sm:$0xff]
      %v2248 = vld [vmem:[%s2 + $0x100] sm:$0xff]
      %v2249 = vld [vmem:[%s2 + $0x108] sm:$0xff]
      %v2250 = vld [vmem:[%s2 + $0x110] sm:$0xff]
      %v2251 = vld [vmem:[%s2 + $0x118] sm:$0xff]
      %v2252 = vld [vmem:[%s2 + $0x120] sm:$0xff]
      %v2253 = vld [vmem:[%s2 + $0x128] sm:$0xff]
      %v2254 = vld [vmem:[%s2 + $0x130] sm:$0xff]
      %v2255 = vld [vmem:[%s2 + $0x138] sm:$0xff]
      %v2256 = vld [vmem:[%s2 + $0x140] sm:$0xff]
      %v2257 = vld [vmem:[%s2 + $0x148] sm:$0xff]
      %v2258 = vld [vmem:[%s2 + $0x150] sm:$0xff]
      %v2259 = vld [vmem:[%s2 + $0x158] sm:$0xff]
      %v2260 = vld [vmem:[%s2 + $0x160] sm:$0xff]
      %v2261 = vld [vmem:[%s2 + $0x168] sm:$0xff]
      %v2262 = vld [vmem:[%s2 + $0x170] sm:$0xff]
      %v2263 = vld [vmem:[%s2 + $0x178] sm:$0xff]
      %v2264 = vld [vmem:[%s2 + $0x180] sm:$0xff]
      %v2265 = vld [vmem:[%s2 + $0x188] sm:$0xff]
      %v2266 = vld [vmem:[%s2 + $0x190] sm:$0xff]
      %v2267 = vld [vmem:[%s2 + $0x198] sm:$0xff]
      %v2268 = vld [vmem:[%s2 + $0x1a0] sm:$0xff]
      %v2269 = vld [vmem:[%s2 + $0x1a8] sm:$0xff]
      %v2270 = vld [vmem:[%s2 + $0x1b0] sm:$0xff]
      %v2271 = vld [vmem:[%s2 + $0x1b8] sm:$0xff]
      %v2272 = vld [vmem:[%s2 + $0x1c0] sm:$0xff]
      %v2273 = vld [vmem:[%s2 + $0x1c8] sm:$0xff]
      %v2274 = vld [vmem:[%s2 + $0x1d0] sm:$0xff]
      %v2275 = vld [vmem:[%s2 + $0x1d8] sm:$0xff]
      %v2276 = vld [vmem:[%s2 + $0x1e0] sm:$0xff]
      %v2277 = vld [vmem:[%s2 + $0x1e8] sm:$0xff]
      %v2278 = vld [vmem:[%s2 + $0x1f0] sm:$0xff]
      %v2279 = vld [vmem:[%s2 + $0x1f8] sm:$0xff]
      %v2280 = vld [vmem:[%s2 + $0x200] sm:$0xff]
      %v2281 = vld [vmem:[%s2 + $0x208] sm:$0xff]
      %v2282 = vld [vmem:[%s2 + $0x210] sm:$0xff]
      %v2283 = vld [vmem:[%s2 + $0x218] sm:$0xff]
      %v2284 = vld [vmem:[%s2 + $0x220] sm:$0xff]
      %v2285 = vld [vmem:[%s2 + $0x228] sm:$0xff]
      %v2286 = vld [vmem:[%s2 + $0x230] sm:$0xff]
      %v2287 = vld [vmem:[%s2 + $0x238] sm:$0xff]
      %v2288 = vld [vmem:[%s2 + $0x240] sm:$0xff]
      %v2289 = vld [vmem:[%s2 + $0x248] sm:$0xff]
      %v2290 = vld [vmem:[%s2 + $0x250] sm:$0xff]
      %v2291 = vld [vmem:[%s2 + $0x258] sm:$0xff]
      %v2292 = vld [vmem:[%s2 + $0x260] sm:$0xff]
      %v2293 = vld [vmem:[%s2 + $0x268] sm:$0xff]
      %v2294 = vld [vmem:[%s2 + $0x270] sm:$0xff]
      %v2295 = vld [vmem:[%s2 + $0x278] sm:$0xff]
      %v2296 = vld [vmem:[%s2 + $0x280] sm:$0xff]
      %v2297 = vld [vmem:[%s2 + $0x288] sm:$0xff]
      %v2298 = vld [vmem:[%s2 + $0x290] sm:$0xff]
      %v2299 = vld [vmem:[%s2 + $0x298] sm:$0xff]
      %v2300 = vld [vmem:[%s2 + $0x2a0] sm:$0xff]
      %v2301 = vld [vmem:[%s2 + $0x2a8] sm:$0xff]
      %v2302 = vld [vmem:[%s2 + $0x2b0] sm:$0xff]
      %v2303 = vld [vmem:[%s2 + $0x2b8] sm:$0xff]
      %v2304 = vld [vmem:[%s2 + $0x2c0] sm:$0xff]
      %v2305 = vld [vmem:[%s2 + $0x2c8] sm:$0xff]
      %v2306 = vld [vmem:[%s2 + $0x2d0] sm:$0xff]
      %v2307 = vld [vmem:[%s2 + $0x2d8] sm:$0xff]
      %v2308 = vld [vmem:[%s2 + $0x2e0] sm:$0xff]
      %v2309 = vld [vmem:[%s2 + $0x2e8] sm:$0xff]
      %v2310 = vld [vmem:[%s2 + $0x2f0] sm:$0xff]
      %v2311 = vld [vmem:[%s2 + $0x2f8] sm:$0xff]
      %v2312 = vld [vmem:[%s2 + $0x300] sm:$0xff]
      %v2313 = vld [vmem:[%s2 + $0x308] sm:$0xff]
      %v2314 = vld [vmem:[%s2 + $0x310] sm:$0xff]
      %v2315 = vld [vmem:[%s2 + $0x318] sm:$0xff]
      %v2316 = vld [vmem:[%s2 + $0x320] sm:$0xff]
      %v2317 = vld [vmem:[%s2 + $0x328] sm:$0xff]
      %v2318 = vld [vmem:[%s2 + $0x330] sm:$0xff]
      %v2319 = vld [vmem:[%s2 + $0x338] sm:$0xff]
      %v2320 = vld [vmem:[%s2 + $0x340] sm:$0xff]
      %v2321 = vld [vmem:[%s2 + $0x348] sm:$0xff]
      %v2322 = vld [vmem:[%s2 + $0x350] sm:$0xff]
      %v2323 = vld [vmem:[%s2 + $0x358] sm:$0xff]
      %v2324 = vld [vmem:[%s2 + $0x360] sm:$0xff]
      %v2325 = vld [vmem:[%s2 + $0x368] sm:$0xff]
      %v2326 = vld [vmem:[%s2 + $0x370] sm:$0xff]
      %v2327 = vld [vmem:[%s2 + $0x378] sm:$0xff]
      %v2328 = vld [vmem:[%s2 + $0x380] sm:$0xff]
      %v2329 = vld [vmem:[%s2 + $0x388] sm:$0xff]
      %v2330 = vld [vmem:[%s2 + $0x390] sm:$0xff]
      %v2331 = vld [vmem:[%s2 + $0x398] sm:$0xff]
      %v2332 = vld [vmem:[%s2 + $0x3a0] sm:$0xff]
      %v2333 = vld [vmem:[%s2 + $0x3a8] sm:$0xff]
      %v2334 = vld [vmem:[%s2 + $0x3b0] sm:$0xff]
      %v2335 = vld [vmem:[%s2 + $0x3b8] sm:$0xff]
      %v2336 = vld [vmem:[%s2 + $0x3c0] sm:$0xff]
      %v2337 = vld [vmem:[%s2 + $0x3c8] sm:$0xff]
      %v2338 = vld [vmem:[%s2 + $0x3d0] sm:$0xff]
      %v2339 = vld [vmem:[%s2 + $0x3d8] sm:$0xff]
      %v2340 = vld [vmem:[%s2 + $0x3e0] sm:$0xff]
      %v2341 = vld [vmem:[%s2 + $0x3e8] sm:$0xff]
      %v2342 = vld [vmem:[%s2 + $0x3f0] sm:$0xff]
      %v2343 = vld [vmem:[%s2 + $0x3f8] sm:$0xff]
      %v2344 = vld [vmem:[%s2 + $0x400] sm:$0xff]
      %v2345 = vld [vmem:[%s2 + $0x408] sm:$0xff]
      %v2346 = vld [vmem:[%s2 + $0x410] sm:$0xff]
      %v2347 = vld [vmem:[%s2 + $0x418] sm:$0xff]
      %v2348 = vld [vmem:[%s2 + $0x420] sm:$0xff]
      %v2349 = vld [vmem:[%s2 + $0x428] sm:$0xff]
      %v2350 = vld [vmem:[%s2 + $0x430] sm:$0xff]
      %v2351 = vld [vmem:[%s2 + $0x438] sm:$0xff]
      %v2352 = vld [vmem:[%s2 + $0x440] sm:$0xff]
      %v2353 = vld [vmem:[%s2 + $0x448] sm:$0xff]
      %v2354 = vld [vmem:[%s2 + $0x450] sm:$0xff]
      %v2355 = vld [vmem:[%s2 + $0x458] sm:$0xff]
      %v2356 = vld [vmem:[%s2 + $0x460] sm:$0xff]
      %v2357 = vld [vmem:[%s2 + $0x468] sm:$0xff]
      %v2358 = vld [vmem:[%s2 + $0x470] sm:$0xff]
      %v2359 = vld [vmem:[%s2 + $0x478] sm:$0xff]
      %v2360 = vld [vmem:[%s2 + $0x480] sm:$0xff]
      %v2361 = vld [vmem:[%s2 + $0x488] sm:$0xff]
      %v2362 = vld [vmem:[%s2 + $0x490] sm:$0xff]
      %v2363 = vld [vmem:[%s2 + $0x498] sm:$0xff]
      %v2364 = vld [vmem:[%s2 + $0x4a0] sm:$0xff]
      %v2365 = vld [vmem:[%s2 + $0x4a8] sm:$0xff]
      %v2366 = vld [vmem:[%s2 + $0x4b0] sm:$0xff]
      %v2367 = vld [vmem:[%s2 + $0x4b8] sm:$0xff]
      %v2368 = vld [vmem:[%s2 + $0x4c0] sm:$0xff]
      %v2369 = vld [vmem:[%s2 + $0x4c8] sm:$0xff]
      %v2370 = vld [vmem:[%s2 + $0x4d0] sm:$0xff]
      %v2371 = vld [vmem:[%s2 + $0x4d8] sm:$0xff]
      %v2372 = vld [vmem:[%s2 + $0x4e0] sm:$0xff]
      %v2373 = vld [vmem:[%s2 + $0x4e8] sm:$0xff]
      %v2374 = vld [vmem:[%s2 + $0x4f0] sm:$0xff]
      %v2375 = vld [vmem:[%s2 + $0x4f8] sm:$0xff]
      %v2376 = vld [vmem:[%s2 + $0x500] sm:$0xff]
      %v2377 = vld [vmem:[%s2 + $0x508] sm:$0xff]
      %v2378 = vld [vmem:[%s2 + $0x510] sm:$0xff]
      %v2379 = vld [vmem:[%s2 + $0x518] sm:$0xff]
      %v2380 = vld [vmem:[%s2 + $0x520] sm:$0xff]
      %v2381 = vld [vmem:[%s2 + $0x528] sm:$0xff]
      %v2382 = vld [vmem:[%s2 + $0x530] sm:$0xff]
      %v2383 = vld [vmem:[%s2 + $0x538] sm:$0xff]
      %v2384 = vld [vmem:[%s2 + $0x540] sm:$0xff]
      %v2385 = vld [vmem:[%s2 + $0x548] sm:$0xff]
      %v2386 = vld [vmem:[%s2 + $0x550] sm:$0xff]
      %v2387 = vld [vmem:[%s2 + $0x558] sm:$0xff]
      %v2388 = vld [vmem:[%s2 + $0x560] sm:$0xff]
      %v2389 = vld [vmem:[%s2 + $0x568] sm:$0xff]
      %v2390 = vld [vmem:[%s2 + $0x570] sm:$0xff]
      %v2391 = vld [vmem:[%s2 + $0x578] sm:$0xff]
      %v2392 = vld [vmem:[%s2 + $0x580] sm:$0xff]
      %v2393 = vld [vmem:[%s2 + $0x588] sm:$0xff]
      %v2394 = vld [vmem:[%s2 + $0x590] sm:$0xff]
      %v2395 = vld [vmem:[%s2 + $0x598] sm:$0xff]
      %v2396 = vld [vmem:[%s2 + $0x5a0] sm:$0xff]
      %v2397 = vld [vmem:[%s2 + $0x5a8] sm:$0xff]
      %v2398 = vld [vmem:[%s2 + $0x5b0] sm:$0xff]
      %v2399 = vld [vmem:[%s2 + $0x5b8] sm:$0xff]
      %v2400 = vld [vmem:[%s2 + $0x5c0] sm:$0xff]
      %v2401 = vld [vmem:[%s2 + $0x5c8] sm:$0xff]
      %v2402 = vld [vmem:[%s2 + $0x5d0] sm:$0xff]
      %v2403 = vld [vmem:[%s2 + $0x5d8] sm:$0xff]
      %v2404 = vld [vmem:[%s2 + $0x5e0] sm:$0xff]
      %v2405 = vld [vmem:[%s2 + $0x5e8] sm:$0xff]
      %v2406 = vld [vmem:[%s2 + $0x5f0] sm:$0xff]
      %v2407 = vld [vmem:[%s2 + $0x5f8] sm:$0xff]
      %v2408 = vld [vmem:[%s2 + $0x600] sm:$0xff]
      %v2409 = vld [vmem:[%s2 + $0x608] sm:$0xff]
      %v2410 = vld [vmem:[%s2 + $0x610] sm:$0xff]
      %v2411 = vld [vmem:[%s2 + $0x618] sm:$0xff]
      %v2412 = vld [vmem:[%s2 + $0x620] sm:$0xff]
      %v2413 = vld [vmem:[%s2 + $0x628] sm:$0xff]
      %v2414 = vld [vmem:[%s2 + $0x630] sm:$0xff]
      %v2415 = vld [vmem:[%s2 + $0x638] sm:$0xff]
      %v2416 = vld [vmem:[%s2 + $0x640] sm:$0xff]
      %v2417 = vld [vmem:[%s2 + $0x648] sm:$0xff]
      %v2418 = vld [vmem:[%s2 + $0x650] sm:$0xff]
      %v2419 = vld [vmem:[%s2 + $0x658] sm:$0xff]
      %v2420 = vld [vmem:[%s2 + $0x660] sm:$0xff]
      %v2421 = vld [vmem:[%s2 + $0x668] sm:$0xff]
      %v2422 = vld [vmem:[%s2 + $0x670] sm:$0xff]
      %v2423 = vld [vmem:[%s2 + $0x678] sm:$0xff]
      %v2424 = vld [vmem:[%s2 + $0x680] sm:$0xff]
      %v2425 = vld [vmem:[%s2 + $0x688] sm:$0xff]
      %v2426 = vld [vmem:[%s2 + $0x690] sm:$0xff]
      %v2427 = vld [vmem:[%s2 + $0x698] sm:$0xff]
      %v2428 = vld [vmem:[%s2 + $0x6a0] sm:$0xff]
      %v2429 = vld [vmem:[%s2 + $0x6a8] sm:$0xff]
      %v2430 = vld [vmem:[%s2 + $0x6b0] sm:$0xff]
      %v2431 = vld [vmem:[%s2 + $0x6b8] sm:$0xff]
      %v2432 = vld [vmem:[%s2 + $0x6c0] sm:$0xff]
      %v2433 = vld [vmem:[%s2 + $0x6c8] sm:$0xff]
      %v2434 = vld [vmem:[%s2 + $0x6d0] sm:$0xff]
      %v2435 = vld [vmem:[%s2 + $0x6d8] sm:$0xff]
      %v2436 = vld [vmem:[%s2 + $0x6e0] sm:$0xff]
      %v2437 = vld [vmem:[%s2 + $0x6e8] sm:$0xff]
      %v2438 = vld [vmem:[%s2 + $0x6f0] sm:$0xff]
      %v2439 = vld [vmem:[%s2 + $0x6f8] sm:$0xff]
      %v2440 = vld [vmem:[%s2 + $0x700] sm:$0xff]
      %v2441 = vld [vmem:[%s2 + $0x708] sm:$0xff]
      %v2442 = vld [vmem:[%s2 + $0x710] sm:$0xff]
      %v2443 = vld [vmem:[%s2 + $0x718] sm:$0xff]
      %v2444 = vld [vmem:[%s2 + $0x720] sm:$0xff]
      %v2445 = vld [vmem:[%s2 + $0x728] sm:$0xff]
      %v2446 = vld [vmem:[%s2 + $0x730] sm:$0xff]
      %v2447 = vld [vmem:[%s2 + $0x738] sm:$0xff]
      %v2448 = vld [vmem:[%s2 + $0x740] sm:$0xff]
      %v2449 = vld [vmem:[%s2 + $0x748] sm:$0xff]
      %v2450 = vld [vmem:[%s2 + $0x750] sm:$0xff]
      %v2451 = vld [vmem:[%s2 + $0x758] sm:$0xff]
      %v2452 = vld [vmem:[%s2 + $0x760] sm:$0xff]
      %v2453 = vld [vmem:[%s2 + $0x768] sm:$0xff]
      %v2454 = vld [vmem:[%s2 + $0x770] sm:$0xff]
      %v2455 = vld [vmem:[%s2 + $0x778] sm:$0xff]
      %v2456 = vld [vmem:[%s2 + $0x780] sm:$0xff]
      %v2457 = vld [vmem:[%s2 + $0x788] sm:$0xff]
      %v2458 = vld [vmem:[%s2 + $0x790] sm:$0xff]
      %v2459 = vld [vmem:[%s2 + $0x798] sm:$0xff]
      %v2460 = vld [vmem:[%s2 + $0x7a0] sm:$0xff]
      %v2461 = vld [vmem:[%s2 + $0x7a8] sm:$0xff]
      %v2462 = vld [vmem:[%s2 + $0x7b0] sm:$0xff]
      %v2463 = vld [vmem:[%s2 + $0x7b8] sm:$0xff]
      %v2464 = vld [vmem:[%s2 + $0x7c0] sm:$0xff]
      %v2465 = vld [vmem:[%s2 + $0x7c8] sm:$0xff]
      %v2466 = vld [vmem:[%s2 + $0x7d0] sm:$0xff]
      %v2467 = vld [vmem:[%s2 + $0x7d8] sm:$0xff]
      %v2468 = vld [vmem:[%s2 + $0x7e0] sm:$0xff]
      %v2469 = vld [vmem:[%s2 + $0x7e8] sm:$0xff]
      %v2470 = vld [vmem:[%s2 + $0x7f0] sm:$0xff]
      %v2471 = vld [vmem:[%s2 + $0x7f8] sm:$0xff]
      %v2472 = vld [vmem:[%s2 + $0x800] sm:$0xff]
      %v2473 = vld [vmem:[%s2 + $0x808] sm:$0xff]
      %v2474 = vld [vmem:[%s2 + $0x810] sm:$0xff]
      %v2475 = vld [vmem:[%s2 + $0x818] sm:$0xff]
      %v2476 = vld [vmem:[%s2 + $0x820] sm:$0xff]
      %v2477 = vld [vmem:[%s2 + $0x828] sm:$0xff]
      %v2478 = vld [vmem:[%s2 + $0x830] sm:$0xff]
      %v2479 = vld [vmem:[%s2 + $0x838] sm:$0xff]
      %v2480 = vld [vmem:[%s2 + $0x840] sm:$0xff]
      %v2481 = vld [vmem:[%s2 + $0x848] sm:$0xff]
      %v2482 = vld [vmem:[%s2 + $0x850] sm:$0xff]
      %v2483 = vld [vmem:[%s2 + $0x858] sm:$0xff]
      %v2484 = vld [vmem:[%s2 + $0x860] sm:$0xff]
      %v2485 = vld [vmem:[%s2 + $0x868] sm:$0xff]
      %v2486 = vld [vmem:[%s2 + $0x870] sm:$0xff]
      %v2487 = vld [vmem:[%s2 + $0x878] sm:$0xff]
      %v2488 = vld [vmem:[%s2 + $0x880] sm:$0xff]
      %v2489 = vld [vmem:[%s2 + $0x888] sm:$0xff]
      %v2490 = vld [vmem:[%s2 + $0x890] sm:$0xff]
      %v2491 = vld [vmem:[%s2 + $0x898] sm:$0xff]
      %v2492 = vld [vmem:[%s2 + $0x8a0] sm:$0xff]
      %v2493 = vld [vmem:[%s2 + $0x8a8] sm:$0xff]
      %v2494 = vld [vmem:[%s2 + $0x8b0] sm:$0xff]
      %v2495 = vld [vmem:[%s2 + $0x8b8] sm:$0xff]
      %v2496 = vld [vmem:[%s2 + $0x8c0] sm:$0xff]
      %v2497 = vld [vmem:[%s2 + $0x8c8] sm:$0xff]
      %v2498 = vld [vmem:[%s2 + $0x8d0] sm:$0xff]
      %v2499 = vld [vmem:[%s2 + $0x8d8] sm:$0xff]
      %v2500 = vld [vmem:[%s2 + $0x8e0] sm:$0xff]
      %v2501 = vld [vmem:[%s2 + $0x8e8] sm:$0xff]
      %v2502 = vld [vmem:[%s2 + $0x8f0] sm:$0xff]
      %v2503 = vld [vmem:[%s2 + $0x8f8] sm:$0xff]
      %s2504 = scalar_lea.vmem %s2, 2304
      %v2505 = vld [vmem:[%s2504] sm:$0xff]
      %v2506 = vld [vmem:[%s2504 + $0x8] sm:$0xff]
      %v2507 = vld [vmem:[%s2504 + $0x10] sm:$0xff]
      %v2508 = vld [vmem:[%s2504 + $0x18] sm:$0xff]
      %v2509 = vld [vmem:[%s2504 + $0x20] sm:$0xff]
      %v2510 = vld [vmem:[%s2504 + $0x28] sm:$0xff]
      %v2511 = vld [vmem:[%s2504 + $0x30] sm:$0xff]
      %v2512 = vld [vmem:[%s2504 + $0x38] sm:$0xff]
      %v2513 = vld [vmem:[%s2504 + $0x40] sm:$0xff]
      %v2514 = vld [vmem:[%s2504 + $0x48] sm:$0xff]
      %v2515 = vld [vmem:[%s2504 + $0x50] sm:$0xff]
      %v2516 = vld [vmem:[%s2504 + $0x58] sm:$0xff]
      %v2517 = vld [vmem:[%s2504 + $0x60] sm:$0xff]
      %v2518 = vld [vmem:[%s2504 + $0x68] sm:$0xff]
      %v2519 = vld [vmem:[%s2504 + $0x70] sm:$0xff]
      %v2520 = vld [vmem:[%s2504 + $0x78] sm:$0xff]
      %v2521 = vld [vmem:[%s2504 + $0x80] sm:$0xff]
      %v2522 = vld [vmem:[%s2504 + $0x88] sm:$0xff]
      %v2523 = vld [vmem:[%s2504 + $0x90] sm:$0xff]
      %v2524 = vld [vmem:[%s2504 + $0x98] sm:$0xff]
      %v2525 = vld [vmem:[%s2504 + $0xa0] sm:$0xff]
      %v2526 = vld [vmem:[%s2504 + $0xa8] sm:$0xff]
      %v2527 = vld [vmem:[%s2504 + $0xb0] sm:$0xff]
      %v2528 = vld [vmem:[%s2504 + $0xb8] sm:$0xff]
      %v2529 = vld [vmem:[%s2504 + $0xc0] sm:$0xff]
      %v2530 = vld [vmem:[%s2504 + $0xc8] sm:$0xff]
      %v2531 = vld [vmem:[%s2504 + $0xd0] sm:$0xff]
      %v2532 = vld [vmem:[%s2504 + $0xd8] sm:$0xff]
      %v2533 = vld [vmem:[%s2504 + $0xe0] sm:$0xff]
      %v2534 = vld [vmem:[%s2504 + $0xe8] sm:$0xff]
      %v2535 = vld [vmem:[%s2504 + $0xf0] sm:$0xff]
      %v2536 = vld [vmem:[%s2504 + $0xf8] sm:$0xff]
      %v2537 = vld [vmem:[%s2504 + $0x100] sm:$0xff]
      %v2538 = vld [vmem:[%s2504 + $0x108] sm:$0xff]
      %v2539 = vld [vmem:[%s2504 + $0x110] sm:$0xff]
      %v2540 = vld [vmem:[%s2504 + $0x118] sm:$0xff]
      %v2541 = vld [vmem:[%s2504 + $0x120] sm:$0xff]
      %v2542 = vld [vmem:[%s2504 + $0x128] sm:$0xff]
      %v2543 = vld [vmem:[%s2504 + $0x130] sm:$0xff]
      %v2544 = vld [vmem:[%s2504 + $0x138] sm:$0xff]
      %v2545 = vld [vmem:[%s2504 + $0x140] sm:$0xff]
      %v2546 = vld [vmem:[%s2504 + $0x148] sm:$0xff]
      %v2547 = vld [vmem:[%s2504 + $0x150] sm:$0xff]
      %v2548 = vld [vmem:[%s2504 + $0x158] sm:$0xff]
      %v2549 = vld [vmem:[%s2504 + $0x160] sm:$0xff]
      %v2550 = vld [vmem:[%s2504 + $0x168] sm:$0xff]
      %v2551 = vld [vmem:[%s2504 + $0x170] sm:$0xff]
      %v2552 = vld [vmem:[%s2504 + $0x178] sm:$0xff]
      %v2553 = vld [vmem:[%s2504 + $0x180] sm:$0xff]
      %v2554 = vld [vmem:[%s2504 + $0x188] sm:$0xff]
      %v2555 = vld [vmem:[%s2504 + $0x190] sm:$0xff]
      %v2556 = vld [vmem:[%s2504 + $0x198] sm:$0xff]
      %v2557 = vld [vmem:[%s2504 + $0x1a0] sm:$0xff]
      %v2558 = vld [vmem:[%s2504 + $0x1a8] sm:$0xff]
      %v2559 = vld [vmem:[%s2504 + $0x1b0] sm:$0xff]
      %v2560 = vld [vmem:[%s2504 + $0x1b8] sm:$0xff]
      %v2561 = vld [vmem:[%s2504 + $0x1c0] sm:$0xff]
      %v2562 = vld [vmem:[%s2504 + $0x1c8] sm:$0xff]
      %v2563 = vld [vmem:[%s2504 + $0x1d0] sm:$0xff]
      %v2564 = vld [vmem:[%s2504 + $0x1d8] sm:$0xff]
      %v2565 = vld [vmem:[%s2504 + $0x1e0] sm:$0xff]
      %v2566 = vld [vmem:[%s2504 + $0x1e8] sm:$0xff]
      %v2567 = vld [vmem:[%s2504 + $0x1f0] sm:$0xff]
      %v2568 = vld [vmem:[%s2504 + $0x1f8] sm:$0xff]
      %v2569 = vld [vmem:[%s2504 + $0x200] sm:$0xff]
      %v2570 = vld [vmem:[%s2504 + $0x208] sm:$0xff]
      %v2571 = vld [vmem:[%s2504 + $0x210] sm:$0xff]
      %v2572 = vld [vmem:[%s2504 + $0x218] sm:$0xff]
      %v2573 = vld [vmem:[%s2504 + $0x220] sm:$0xff]
      %v2574 = vld [vmem:[%s2504 + $0x228] sm:$0xff]
      %v2575 = vld [vmem:[%s2504 + $0x230] sm:$0xff]
      %v2576 = vld [vmem:[%s2504 + $0x238] sm:$0xff]
      %v2577 = vld [vmem:[%s2504 + $0x240] sm:$0xff]
      %v2578 = vld [vmem:[%s2504 + $0x248] sm:$0xff]
      %v2579 = vld [vmem:[%s2504 + $0x250] sm:$0xff]
      %v2580 = vld [vmem:[%s2504 + $0x258] sm:$0xff]
      %v2581 = vld [vmem:[%s2504 + $0x260] sm:$0xff]
      %v2582 = vld [vmem:[%s2504 + $0x268] sm:$0xff]
      %v2583 = vld [vmem:[%s2504 + $0x270] sm:$0xff]
      %v2584 = vld [vmem:[%s2504 + $0x278] sm:$0xff]
      %v2585 = vld [vmem:[%s2504 + $0x280] sm:$0xff]
      %v2586 = vld [vmem:[%s2504 + $0x288] sm:$0xff]
      %v2587 = vld [vmem:[%s2504 + $0x290] sm:$0xff]
      %v2588 = vld [vmem:[%s2504 + $0x298] sm:$0xff]
      %v2589 = vld [vmem:[%s2504 + $0x2a0] sm:$0xff]
      %v2590 = vld [vmem:[%s2504 + $0x2a8] sm:$0xff]
      %v2591 = vld [vmem:[%s2504 + $0x2b0] sm:$0xff]
      %v2592 = vld [vmem:[%s2504 + $0x2b8] sm:$0xff]
      %v2593 = vld [vmem:[%s2504 + $0x2c0] sm:$0xff]
      %v2594 = vld [vmem:[%s2504 + $0x2c8] sm:$0xff]
      %v2595 = vld [vmem:[%s2504 + $0x2d0] sm:$0xff]
      %v2596 = vld [vmem:[%s2504 + $0x2d8] sm:$0xff]
      %v2597 = vld [vmem:[%s2504 + $0x2e0] sm:$0xff]
      %v2598 = vld [vmem:[%s2504 + $0x2e8] sm:$0xff]
      %v2599 = vld [vmem:[%s2504 + $0x2f0] sm:$0xff]
      %v2600 = vld [vmem:[%s2504 + $0x2f8] sm:$0xff]
      %v2601 = vld [vmem:[%s2504 + $0x300] sm:$0xff]
      %v2602 = vld [vmem:[%s2504 + $0x308] sm:$0xff]
      %v2603 = vld [vmem:[%s2504 + $0x310] sm:$0xff]
      %v2604 = vld [vmem:[%s2504 + $0x318] sm:$0xff]
      %v2605 = vld [vmem:[%s2504 + $0x320] sm:$0xff]
      %v2606 = vld [vmem:[%s2504 + $0x328] sm:$0xff]
      %v2607 = vld [vmem:[%s2504 + $0x330] sm:$0xff]
      %v2608 = vld [vmem:[%s2504 + $0x338] sm:$0xff]
      %v2609 = vld [vmem:[%s2504 + $0x340] sm:$0xff]
      %v2610 = vld [vmem:[%s2504 + $0x348] sm:$0xff]
      %v2611 = vld [vmem:[%s2504 + $0x350] sm:$0xff]
      %v2612 = vld [vmem:[%s2504 + $0x358] sm:$0xff]
      %v2613 = vld [vmem:[%s2504 + $0x360] sm:$0xff]
      %v2614 = vld [vmem:[%s2504 + $0x368] sm:$0xff]
      %v2615 = vld [vmem:[%s2504 + $0x370] sm:$0xff]
      %v2616 = vld [vmem:[%s2504 + $0x378] sm:$0xff]
      %v2617 = vld [vmem:[%s2504 + $0x380] sm:$0xff]
      %v2618 = vld [vmem:[%s2504 + $0x388] sm:$0xff]
      %v2619 = vld [vmem:[%s2504 + $0x390] sm:$0xff]
      %v2620 = vld [vmem:[%s2504 + $0x398] sm:$0xff]
      %v2621 = vld [vmem:[%s2504 + $0x3a0] sm:$0xff]
      %v2622 = vld [vmem:[%s2504 + $0x3a8] sm:$0xff]
      %v2623 = vld [vmem:[%s2504 + $0x3b0] sm:$0xff]
      %v2624 = vld [vmem:[%s2504 + $0x3b8] sm:$0xff]
      %v2625 = vld [vmem:[%s2504 + $0x3c0] sm:$0xff]
      %v2626 = vld [vmem:[%s2504 + $0x3c8] sm:$0xff]
      %v2627 = vld [vmem:[%s2504 + $0x3d0] sm:$0xff]
      %v2628 = vld [vmem:[%s2504 + $0x3d8] sm:$0xff]
      %v2629 = vld [vmem:[%s2504 + $0x3e0] sm:$0xff]
      %v2630 = vld [vmem:[%s2504 + $0x3e8] sm:$0xff]
      %v2631 = vld [vmem:[%s2504 + $0x3f0] sm:$0xff]
      %v2632 = vld [vmem:[%s2504 + $0x3f8] sm:$0xff]
      %v2633 = vld [vmem:[%s2504 + $0x400] sm:$0xff]
      %v2634 = vld [vmem:[%s2504 + $0x408] sm:$0xff]
      %v2635 = vld [vmem:[%s2504 + $0x410] sm:$0xff]
      %v2636 = vld [vmem:[%s2504 + $0x418] sm:$0xff]
      %v2637 = vld [vmem:[%s2504 + $0x420] sm:$0xff]
      %v2638 = vld [vmem:[%s2504 + $0x428] sm:$0xff]
      %v2639 = vld [vmem:[%s2504 + $0x430] sm:$0xff]
      %v2640 = vld [vmem:[%s2504 + $0x438] sm:$0xff]
      %v2641 = vld [vmem:[%s2504 + $0x440] sm:$0xff]
      %v2642 = vld [vmem:[%s2504 + $0x448] sm:$0xff]
      %v2643 = vld [vmem:[%s2504 + $0x450] sm:$0xff]
      %v2644 = vld [vmem:[%s2504 + $0x458] sm:$0xff]
      %v2645 = vld [vmem:[%s2504 + $0x460] sm:$0xff]
      %v2646 = vld [vmem:[%s2504 + $0x468] sm:$0xff]
      %v2647 = vld [vmem:[%s2504 + $0x470] sm:$0xff]
      %v2648 = vld [vmem:[%s2504 + $0x478] sm:$0xff]
      %v2649 = vld [vmem:[%s2504 + $0x480] sm:$0xff]
      %v2650 = vld [vmem:[%s2504 + $0x488] sm:$0xff]
      %v2651 = vld [vmem:[%s2504 + $0x490] sm:$0xff]
      %v2652 = vld [vmem:[%s2504 + $0x498] sm:$0xff]
      %v2653 = vld [vmem:[%s2504 + $0x4a0] sm:$0xff]
      %v2654 = vld [vmem:[%s2504 + $0x4a8] sm:$0xff]
      %v2655 = vld [vmem:[%s2504 + $0x4b0] sm:$0xff]
      %v2656 = vld [vmem:[%s2504 + $0x4b8] sm:$0xff]
      %v2657 = vld [vmem:[%s2504 + $0x4c0] sm:$0xff]
      %v2658 = vld [vmem:[%s2504 + $0x4c8] sm:$0xff]
      %v2659 = vld [vmem:[%s2504 + $0x4d0] sm:$0xff]
      %v2660 = vld [vmem:[%s2504 + $0x4d8] sm:$0xff]
      %v2661 = vld [vmem:[%s2504 + $0x4e0] sm:$0xff]
      %v2662 = vld [vmem:[%s2504 + $0x4e8] sm:$0xff]
      %v2663 = vld [vmem:[%s2504 + $0x4f0] sm:$0xff]
      %v2664 = vld [vmem:[%s2504 + $0x4f8] sm:$0xff]
      %v2665 = vld [vmem:[%s2504 + $0x500] sm:$0xff]
      %v2666 = vld [vmem:[%s2504 + $0x508] sm:$0xff]
      %v2667 = vld [vmem:[%s2504 + $0x510] sm:$0xff]
      %v2668 = vld [vmem:[%s2504 + $0x518] sm:$0xff]
      %v2669 = vld [vmem:[%s2504 + $0x520] sm:$0xff]
      %v2670 = vld [vmem:[%s2504 + $0x528] sm:$0xff]
      %v2671 = vld [vmem:[%s2504 + $0x530] sm:$0xff]
      %v2672 = vld [vmem:[%s2504 + $0x538] sm:$0xff]
      %v2673 = vld [vmem:[%s2504 + $0x540] sm:$0xff]
      %v2674 = vld [vmem:[%s2504 + $0x548] sm:$0xff]
      %v2675 = vld [vmem:[%s2504 + $0x550] sm:$0xff]
      %v2676 = vld [vmem:[%s2504 + $0x558] sm:$0xff]
      %v2677 = vld [vmem:[%s2504 + $0x560] sm:$0xff]
      %v2678 = vld [vmem:[%s2504 + $0x568] sm:$0xff]
      %v2679 = vld [vmem:[%s2504 + $0x570] sm:$0xff]
      %v2680 = vld [vmem:[%s2504 + $0x578] sm:$0xff]
      %v2681 = vld [vmem:[%s2504 + $0x580] sm:$0xff]
      %v2682 = vld [vmem:[%s2504 + $0x588] sm:$0xff]
      %v2683 = vld [vmem:[%s2504 + $0x590] sm:$0xff]
      %v2684 = vld [vmem:[%s2504 + $0x598] sm:$0xff]
      %v2685 = vld [vmem:[%s2504 + $0x5a0] sm:$0xff]
      %v2686 = vld [vmem:[%s2504 + $0x5a8] sm:$0xff]
      %v2687 = vld [vmem:[%s2504 + $0x5b0] sm:$0xff]
      %v2688 = vld [vmem:[%s2504 + $0x5b8] sm:$0xff]
      %v2689 = vld [vmem:[%s2504 + $0x5c0] sm:$0xff]
      %v2690 = vld [vmem:[%s2504 + $0x5c8] sm:$0xff]
      %v2691 = vld [vmem:[%s2504 + $0x5d0] sm:$0xff]
      %v2692 = vld [vmem:[%s2504 + $0x5d8] sm:$0xff]
      %v2693 = vld [vmem:[%s2504 + $0x5e0] sm:$0xff]
      %v2694 = vld [vmem:[%s2504 + $0x5e8] sm:$0xff]
      %v2695 = vld [vmem:[%s2504 + $0x5f0] sm:$0xff]
      %v2696 = vld [vmem:[%s2504 + $0x5f8] sm:$0xff]
      %v2697 = vld [vmem:[%s2504 + $0x600] sm:$0xff]
      %v2698 = vld [vmem:[%s2504 + $0x608] sm:$0xff]
      %v2699 = vld [vmem:[%s2504 + $0x610] sm:$0xff]
      %v2700 = vld [vmem:[%s2504 + $0x618] sm:$0xff]
      %v2701 = vld [vmem:[%s2504 + $0x620] sm:$0xff]
      %v2702 = vld [vmem:[%s2504 + $0x628] sm:$0xff]
      %v2703 = vld [vmem:[%s2504 + $0x630] sm:$0xff]
      %v2704 = vld [vmem:[%s2504 + $0x638] sm:$0xff]
      %v2705 = vld [vmem:[%s2504 + $0x640] sm:$0xff]
      %v2706 = vld [vmem:[%s2504 + $0x648] sm:$0xff]
      %v2707 = vld [vmem:[%s2504 + $0x650] sm:$0xff]
      %v2708 = vld [vmem:[%s2504 + $0x658] sm:$0xff]
      %v2709 = vld [vmem:[%s2504 + $0x660] sm:$0xff]
      %v2710 = vld [vmem:[%s2504 + $0x668] sm:$0xff]
      %v2711 = vld [vmem:[%s2504 + $0x670] sm:$0xff]
      %v2712 = vld [vmem:[%s2504 + $0x678] sm:$0xff]
      %v2713 = vld [vmem:[%s2504 + $0x680] sm:$0xff]
      %v2714 = vld [vmem:[%s2504 + $0x688] sm:$0xff]
      %v2715 = vld [vmem:[%s2504 + $0x690] sm:$0xff]
      %v2716 = vld [vmem:[%s2504 + $0x698] sm:$0xff]
      %v2717 = vld [vmem:[%s2504 + $0x6a0] sm:$0xff]
      %v2718 = vld [vmem:[%s2504 + $0x6a8] sm:$0xff]
      %v2719 = vld [vmem:[%s2504 + $0x6b0] sm:$0xff]
      %v2720 = vld [vmem:[%s2504 + $0x6b8] sm:$0xff]
      %v2721 = vld [vmem:[%s2504 + $0x6c0] sm:$0xff]
      %v2722 = vld [vmem:[%s2504 + $0x6c8] sm:$0xff]
      %v2723 = vld [vmem:[%s2504 + $0x6d0] sm:$0xff]
      %v2724 = vld [vmem:[%s2504 + $0x6d8] sm:$0xff]
      %v2725 = vld [vmem:[%s2504 + $0x6e0] sm:$0xff]
      %v2726 = vld [vmem:[%s2504 + $0x6e8] sm:$0xff]
      %v2727 = vld [vmem:[%s2504 + $0x6f0] sm:$0xff]
      %v2728 = vld [vmem:[%s2504 + $0x6f8] sm:$0xff]
      %v2729 = vld [vmem:[%s2504 + $0x700] sm:$0xff]
      %v2730 = vld [vmem:[%s2504 + $0x708] sm:$0xff]
      %v2731 = vld [vmem:[%s2504 + $0x710] sm:$0xff]
      %v2732 = vld [vmem:[%s2504 + $0x718] sm:$0xff]
      %v2733 = vld [vmem:[%s2504 + $0x720] sm:$0xff]
      %v2734 = vld [vmem:[%s2504 + $0x728] sm:$0xff]
      %v2735 = vld [vmem:[%s2504 + $0x730] sm:$0xff]
      %v2736 = vld [vmem:[%s2504 + $0x738] sm:$0xff]
      %v2737 = vld [vmem:[%s2504 + $0x740] sm:$0xff]
      %v2738 = vld [vmem:[%s2504 + $0x748] sm:$0xff]
      %v2739 = vld [vmem:[%s2504 + $0x750] sm:$0xff]
      %v2740 = vld [vmem:[%s2504 + $0x758] sm:$0xff]
      %v2741 = vld [vmem:[%s2504 + $0x760] sm:$0xff]
      %v2742 = vld [vmem:[%s2504 + $0x768] sm:$0xff]
      %v2743 = vld [vmem:[%s2504 + $0x770] sm:$0xff]
      %v2744 = vld [vmem:[%s2504 + $0x778] sm:$0xff]
      %v2745 = vld [vmem:[%s2504 + $0x780] sm:$0xff]
      %v2746 = vld [vmem:[%s2504 + $0x788] sm:$0xff]
      %v2747 = vld [vmem:[%s2504 + $0x790] sm:$0xff]
      %v2748 = vld [vmem:[%s2504 + $0x798] sm:$0xff]
      %v2749 = vld [vmem:[%s2504 + $0x7a0] sm:$0xff]
      %v2750 = vld [vmem:[%s2504 + $0x7a8] sm:$0xff]
      %v2751 = vld [vmem:[%s2504 + $0x7b0] sm:$0xff]
      %v2752 = vld [vmem:[%s2504 + $0x7b8] sm:$0xff]
      %v2753 = vld [vmem:[%s2504 + $0x7c0] sm:$0xff]
      %v2754 = vld [vmem:[%s2504 + $0x7c8] sm:$0xff]
      %v2755 = vld [vmem:[%s2504 + $0x7d0] sm:$0xff]
      %v2756 = vld [vmem:[%s2504 + $0x7d8] sm:$0xff]
      %v2757 = vld [vmem:[%s2504 + $0x7e0] sm:$0xff]
      %v2758 = vld [vmem:[%s2504 + $0x7e8] sm:$0xff]
      %v2759 = vld [vmem:[%s2504 + $0x7f0] sm:$0xff]
      %v2760 = vld [vmem:[%s2504 + $0x7f8] sm:$0xff]
      %v2761 = vld [vmem:[%s2504 + $0x800] sm:$0xff]
      %v2762 = vld [vmem:[%s2504 + $0x808] sm:$0xff]
      %v2763 = vld [vmem:[%s2504 + $0x810] sm:$0xff]
      %v2764 = vld [vmem:[%s2504 + $0x818] sm:$0xff]
      %v2765 = vld [vmem:[%s2504 + $0x820] sm:$0xff]
      %v2766 = vld [vmem:[%s2504 + $0x828] sm:$0xff]
      %v2767 = vld [vmem:[%s2504 + $0x830] sm:$0xff]
      %v2768 = vld [vmem:[%s2504 + $0x838] sm:$0xff]
      %v2769 = vld [vmem:[%s2504 + $0x840] sm:$0xff]
      %v2770 = vld [vmem:[%s2504 + $0x848] sm:$0xff]
      %v2771 = vld [vmem:[%s2504 + $0x850] sm:$0xff]
      %v2772 = vld [vmem:[%s2504 + $0x858] sm:$0xff]
      %v2773 = vld [vmem:[%s2504 + $0x860] sm:$0xff]
      %v2774 = vld [vmem:[%s2504 + $0x868] sm:$0xff]
      %v2775 = vld [vmem:[%s2504 + $0x870] sm:$0xff]
      %v2776 = vld [vmem:[%s2504 + $0x878] sm:$0xff]
      %v2777 = vld [vmem:[%s2504 + $0x880] sm:$0xff]
      %v2778 = vld [vmem:[%s2504 + $0x888] sm:$0xff]
      %v2779 = vld [vmem:[%s2504 + $0x890] sm:$0xff]
      %v2780 = vld [vmem:[%s2504 + $0x898] sm:$0xff]
      %v2781 = vld [vmem:[%s2504 + $0x8a0] sm:$0xff]
      %v2782 = vld [vmem:[%s2504 + $0x8a8] sm:$0xff]
      %v2783 = vld [vmem:[%s2504 + $0x8b0] sm:$0xff]
      %v2784 = vld [vmem:[%s2504 + $0x8b8] sm:$0xff]
      %v2785 = vld [vmem:[%s2504 + $0x8c0] sm:$0xff]
      %v2786 = vld [vmem:[%s2504 + $0x8c8] sm:$0xff]
      %v2787 = vld [vmem:[%s2504 + $0x8d0] sm:$0xff]
      %v2788 = vld [vmem:[%s2504 + $0x8d8] sm:$0xff]
      %v2789 = vld [vmem:[%s2504 + $0x8e0] sm:$0xff]
      %v2790 = vld [vmem:[%s2504 + $0x8e8] sm:$0xff]
      %v2791 = vld [vmem:[%s2504 + $0x8f0] sm:$0xff]
      %v2792 = vld [vmem:[%s2504 + $0x8f8] sm:$0xff]
      %v2803 = vrot.slane %v2201, 1
      %v2804 = vrot.slane %v2206, 1
      %v2805 = vsel %vm260, %v2803, %v2804
      %v2806 = vrot.slane %v2202, 1
      %v2807 = vrot.slane %v2207, 1
      %v2808 = vsel %vm260, %v2806, %v2807
      %v2809 = vrot.slane %v2203, 1
      %v2810 = vrot.slane %v2208, 1
      %v2811 = vsel %vm260, %v2809, %v2810
      %v2812 = vrot.slane %v2204, 1
      %v2813 = vrot.slane %v2209, 1
      %v2814 = vsel %vm260, %v2812, %v2813
      %v2815 = vrot.slane %v2205, 1
      %v2816 = vrot.slane %v2210, 1
      %v2817 = vsel %vm260, %v2815, %v2816
      %vm2826 = vcmask 523264
      %v2827 = vsel %vm2826, %v2817, 0
      %v2829 = vsel %vm2826, %v2816, 0
      %2831 = vmatprep.subr.mxu0 %v2566
      %2832 = vmatpush1.msra.mxu0 %v2565
      %2833 = vmatprep.subr.mxu0 %v2562
      %2834 = vmatpush1.msra.mxu0 %v2561
      %2835 = vmatprep.subr.mxu0 %v2558
      %2836 = vmatpush1.msra.mxu0 %v2557
      %2837 = vmatprep.subr.mxu0 %v2554
      %2838 = vmatpush1.msra.mxu0 %v2553
      %2839 = vmatprep.subr.mxu0 %v2550
      %2840 = vmatpush1.msra.mxu0 %v2549
      %2841 = vmatprep.subr.mxu0 %v2546
      %2842 = vmatpush1.msra.mxu0 %v2545
      %2843 = vmatprep.subr.mxu0 %v2542
      %2844 = vmatpush1.msra.mxu0 %v2541
      %2845 = vmatprep.subr.mxu0 %v2538
      %2846 = vmatpush1.msra.mxu0 %v2537
      %2847 = vmatprep.subr.mxu0 %v2534
      %2848 = vmatpush1.msra.mxu0 %v2533
      %2849 = vmatprep.subr.mxu0 %v2530
      %2850 = vmatpush1.msra.mxu0 %v2529
      %2851 = vmatprep.subr.mxu0 %v2526
      %2852 = vmatpush1.msra.mxu0 %v2525
      %2853 = vmatprep.subr.mxu0 %v2522
      %2854 = vmatpush1.msra.mxu0 %v2521
      %2855 = vmatprep.subr.mxu0 %v2518
      %2856 = vmatpush1.msra.mxu0 %v2517
      %2857 = vmatprep.subr.mxu0 %v2514
      %2858 = vmatpush1.msra.mxu0 %v2513
      %2859 = vmatprep.subr.mxu0 %v2510
      %2860 = vmatpush1.msra.mxu0 %v2509
      %2861 = vmatprep.subr.mxu0 %v2506
      %2862 = vmatpush1.msra.mxu0 %v2505
      %2863 = vmatprep.subr.mxu0 %v2630
      %2864 = vmatpush2.msra.mxu0 %v2629
      %2865 = vmatprep.subr.mxu0 %v2626
      %2866 = vmatpush2.msra.mxu0 %v2625
      %2867 = vmatprep.subr.mxu0 %v2622
      %2868 = vmatpush2.msra.mxu0 %v2621
      %2869 = vmatprep.subr.mxu0 %v2618
      %2870 = vmatpush2.msra.mxu0 %v2617
      %2871 = vmatprep.subr.mxu0 %v2614
      %2872 = vmatpush2.msra.mxu0 %v2613
      %2873 = vmatprep.subr.mxu0 %v2610
      %2874 = vmatpush2.msra.mxu0 %v2609
      %2875 = vmatprep.subr.mxu0 %v2606
      %2876 = vmatpush2.msra.mxu0 %v2605
      %2877 = vmatprep.subr.mxu0 %v2602
      %2878 = vmatpush2.msra.mxu0 %v2601
      %2879 = vmatprep.subr.mxu0 %v2598
      %2880 = vmatpush2.msra.mxu0 %v2597
      %2881 = vmatprep.subr.mxu0 %v2594
      %2882 = vmatpush2.msra.mxu0 %v2593
      %2883 = vmatprep.subr.mxu0 %v2590
      %2884 = vmatpush2.msra.mxu0 %v2589
      %2885 = vmatprep.subr.mxu0 %v2586
      %2886 = vmatpush2.msra.mxu0 %v2585
      %2887 = vmatprep.subr.mxu0 %v2582
      %2888 = vmatpush2.msra.mxu0 %v2581
      %2889 = vmatprep.subr.mxu0 %v2578
      %2890 = vmatpush2.msra.mxu0 %v2577
      %2891 = vmatprep.subr.mxu0 %v2574
      %2892 = vmatpush2.msra.mxu0 %v2573
      %2893 = vmatprep.subr.mxu0 %v2570
      %2894 = vmatpush2.msra.mxu0 %v2569
      %2895 = vmatprep.mubr.f32.mxu0 %v2808
      %2896 = vmatmul.mubr.f32.gmra.mxu0 %v2805
      %v2897 = vpop.f32.mrf.mxu0
      %v2898 = vadd.f32 0.0, %v2897
      %v2899 = vpop.f32.mrf.mxu0
      %v2900 = vadd.f32 0.0, %v2899
      %2901 = vmatprep.mubr.f32.mxu0 %v2807
      %2902 = vmatmul.mubr.f32.gmra.mxu0 %v2804
      %v2903 = vpop.f32.mrf.mxu0
      %v2904 = vadd.f32 0.0, %v2903
      %v2905 = vpop.f32.mrf.mxu0
      %v2906 = vadd.f32 0.0, %v2905
      %2907 = vdwg.mxu0
      %2908 = vmatprep.subr.mxu0 %v2694
      %2909 = vmatpush1.msra.mxu0 %v2693
      %2910 = vmatprep.subr.mxu0 %v2690
      %2911 = vmatpush1.msra.mxu0 %v2689
      %2912 = vmatprep.subr.mxu0 %v2686
      %2913 = vmatpush1.msra.mxu0 %v2685
      %2914 = vmatprep.subr.mxu0 %v2682
      %2915 = vmatpush1.msra.mxu0 %v2681
      %2916 = vmatprep.subr.mxu0 %v2678
      %2917 = vmatpush1.msra.mxu0 %v2677
      %2918 = vmatprep.subr.mxu0 %v2674
      %2919 = vmatpush1.msra.mxu0 %v2673
      %2920 = vmatprep.subr.mxu0 %v2670
      %2921 = vmatpush1.msra.mxu0 %v2669
      %2922 = vmatprep.subr.mxu0 %v2666
      %2923 = vmatpush1.msra.mxu0 %v2665
      %2924 = vmatprep.subr.mxu0 %v2662
      %2925 = vmatpush1.msra.mxu0 %v2661
      %2926 = vmatprep.subr.mxu0 %v2658
      %2927 = vmatpush1.msra.mxu0 %v2657
      %2928 = vmatprep.subr.mxu0 %v2654
      %2929 = vmatpush1.msra.mxu0 %v2653
      %2930 = vmatprep.subr.mxu0 %v2650
      %2931 = vmatpush1.msra.mxu0 %v2649
      %2932 = vmatprep.subr.mxu0 %v2646
      %2933 = vmatpush1.msra.mxu0 %v2645
      %2934 = vmatprep.subr.mxu0 %v2642
      %2935 = vmatpush1.msra.mxu0 %v2641
      %2936 = vmatprep.subr.mxu0 %v2638
      %2937 = vmatpush1.msra.mxu0 %v2637
      %2938 = vmatprep.subr.mxu0 %v2634
      %2939 = vmatpush1.msra.mxu0 %v2633
      %2940 = vmatprep.subr.mxu0 %v2758
      %2941 = vmatpush2.msra.mxu0 %v2757
      %2942 = vmatprep.subr.mxu0 %v2754
      %2943 = vmatpush2.msra.mxu0 %v2753
      %2944 = vmatprep.subr.mxu0 %v2750
      %2945 = vmatpush2.msra.mxu0 %v2749
      %2946 = vmatprep.subr.mxu0 %v2746
      %2947 = vmatpush2.msra.mxu0 %v2745
      %2948 = vmatprep.subr.mxu0 %v2742
      %2949 = vmatpush2.msra.mxu0 %v2741
      %2950 = vmatprep.subr.mxu0 %v2738
      %2951 = vmatpush2.msra.mxu0 %v2737
      %2952 = vmatprep.subr.mxu0 %v2734
      %2953 = vmatpush2.msra.mxu0 %v2733
      %2954 = vmatprep.subr.mxu0 %v2730
      %2955 = vmatpush2.msra.mxu0 %v2729
      %2956 = vmatprep.subr.mxu0 %v2726
      %2957 = vmatpush2.msra.mxu0 %v2725
      %2958 = vmatprep.subr.mxu0 %v2722
      %2959 = vmatpush2.msra.mxu0 %v2721
      %2960 = vmatprep.subr.mxu0 %v2718
      %2961 = vmatpush2.msra.mxu0 %v2717
      %2962 = vmatprep.subr.mxu0 %v2714
      %2963 = vmatpush2.msra.mxu0 %v2713
      %2964 = vmatprep.subr.mxu0 %v2710
      %2965 = vmatpush2.msra.mxu0 %v2709
      %2966 = vmatprep.subr.mxu0 %v2706
      %2967 = vmatpush2.msra.mxu0 %v2705
      %2968 = vmatprep.subr.mxu0 %v2702
      %2969 = vmatpush2.msra.mxu0 %v2701
      %2970 = vmatprep.subr.mxu0 %v2698
      %2971 = vmatpush2.msra.mxu0 %v2697
      %2972 = vmatprep.mubr.f32.mxu0 %v2814
      %2973 = vmatmul.mubr.f32.gmra.mxu0 %v2811
      %v2974 = vpop.f32.mrf.mxu0
      %v2975 = vadd.f32 %v2898, %v2974
      %v2976 = vpop.f32.mrf.mxu0
      %v2977 = vadd.f32 %v2900, %v2976
      %2978 = vmatprep.mubr.f32.mxu0 %v2813
      %2979 = vmatmul.mubr.f32.gmra.mxu0 %v2810
      %v2980 = vpop.f32.mrf.mxu0
      %v2981 = vadd.f32 %v2904, %v2980
      %v2982 = vpop.f32.mrf.mxu0
      %v2983 = vadd.f32 %v2906, %v2982
      %2984 = vdwg.mxu0
      %2985 = vmatprep.subr.mxu0 0.0
      %2986 = vmatpush1.msra.mxu0 0.0
      %2987 = vmatprep.subr.mxu0 0.0
      %2988 = vmatpush1.msra.mxu0 0.0
      %2989 = vmatprep.subr.mxu0 0.0
      %2990 = vmatpush1.msra.mxu0 0.0
      %2991 = vmatprep.subr.mxu0 0.0
      %2992 = vmatpush1.msra.mxu0 0.0
      %2993 = vmatprep.subr.mxu0 0.0
      %2994 = vmatpush1.msra.mxu0 0.0
      %2995 = vmatprep.subr.mxu0 0.0
      %2996 = vmatpush1.msra.mxu0 0.0
      %2997 = vmatprep.subr.mxu0 0.0
      %2998 = vmatpush1.msra.mxu0 0.0
      %2999 = vmatprep.subr.mxu0 0.0
      %3000 = vmatpush1.msra.mxu0 0.0
      %3001 = vmatprep.subr.mxu0 %v2790
      %3002 = vmatpush1.msra.mxu0 %v2789
      %3003 = vmatprep.subr.mxu0 %v2786
      %3004 = vmatpush1.msra.mxu0 %v2785
      %3005 = vmatprep.subr.mxu0 %v2782
      %3006 = vmatpush1.msra.mxu0 %v2781
      %3007 = vmatprep.subr.mxu0 %v2778
      %3008 = vmatpush1.msra.mxu0 %v2777
      %3009 = vmatprep.subr.mxu0 %v2774
      %3010 = vmatpush1.msra.mxu0 %v2773
      %3011 = vmatprep.subr.mxu0 %v2770
      %3012 = vmatpush1.msra.mxu0 %v2769
      %3013 = vmatprep.subr.mxu0 %v2766
      %3014 = vmatpush1.msra.mxu0 %v2765
      %3015 = vmatprep.subr.mxu0 %v2762
      %3016 = vmatpush1.msra.mxu0 %v2761
      %3017 = vmatprep.subr.mxu0 0.0
      %3018 = vmatpush2.msra.mxu0 0.0
      %3019 = vmatprep.subr.mxu0 0.0
      %3020 = vmatpush2.msra.mxu0 0.0
      %3021 = vmatprep.subr.mxu0 0.0
      %3022 = vmatpush2.msra.mxu0 0.0
      %3023 = vmatprep.subr.mxu0 0.0
      %3024 = vmatpush2.msra.mxu0 0.0
      %3025 = vmatprep.subr.mxu0 0.0
      %3026 = vmatpush2.msra.mxu0 0.0
      %3027 = vmatprep.subr.mxu0 0.0
      %3028 = vmatpush2.msra.mxu0 0.0
      %3029 = vmatprep.subr.mxu0 0.0
      %3030 = vmatpush2.msra.mxu0 0.0
      %3031 = vmatprep.subr.mxu0 0.0
      %3032 = vmatpush2.msra.mxu0 0.0
      %3033 = vmatprep.subr.mxu0 0.0
      %3034 = vmatpush2.msra.mxu0 0.0
      %3035 = vmatprep.subr.mxu0 0.0
      %3036 = vmatpush2.msra.mxu0 0.0
      %3037 = vmatprep.subr.mxu0 0.0
      %3038 = vmatpush2.msra.mxu0 0.0
      %3039 = vmatprep.subr.mxu0 0.0
      %3040 = vmatpush2.msra.mxu0 0.0
      %3041 = vmatprep.subr.mxu0 0.0
      %3042 = vmatpush2.msra.mxu0 0.0
      %3043 = vmatprep.subr.mxu0 0.0
      %3044 = vmatpush2.msra.mxu0 0.0
      %3045 = vmatprep.subr.mxu0 0.0
      %3046 = vmatpush2.msra.mxu0 0.0
      %3047 = vmatprep.subr.mxu0 0.0
      %3048 = vmatpush2.msra.mxu0 0.0
      %3049 = vmatprep.mubr.f32.mxu0 0.0
      %3050 = vmatmul.mubr.f32.gmra.mxu0 %v2827
      %v3051 = vpop.f32.mrf.mxu0
      %v3052 = vadd.f32 %v2975, %v3051
      %v3053 = vpop.f32.mrf.mxu0
      %v3054 = vadd.f32 %v2977, %v3053
      %3055 = vmatprep.mubr.f32.mxu0 0.0
      %3056 = vmatmul.mubr.f32.gmra.mxu0 %v2829
      %v3057 = vpop.f32.mrf.mxu0
      %v3058 = vadd.f32 %v2981, %v3057
      %v3059 = vpop.f32.mrf.mxu0
      %v3060 = vadd.f32 %v2983, %v3059
      %3061 = vdwg.mxu0
      %3062 = vmatprep.subr.mxu0 %v2568
      %3063 = vmatpush1.msra.mxu0 %v2567
      %3064 = vmatprep.subr.mxu0 %v2564
      %3065 = vmatpush1.msra.mxu0 %v2563
      %3066 = vmatprep.subr.mxu0 %v2560
      %3067 = vmatpush1.msra.mxu0 %v2559
      %3068 = vmatprep.subr.mxu0 %v2556
      %3069 = vmatpush1.msra.mxu0 %v2555
      %3070 = vmatprep.subr.mxu0 %v2552
      %3071 = vmatpush1.msra.mxu0 %v2551
      %3072 = vmatprep.subr.mxu0 %v2548
      %3073 = vmatpush1.msra.mxu0 %v2547
      %3074 = vmatprep.subr.mxu0 %v2544
      %3075 = vmatpush1.msra.mxu0 %v2543
      %3076 = vmatprep.subr.mxu0 %v2540
      %3077 = vmatpush1.msra.mxu0 %v2539
      %3078 = vmatprep.subr.mxu0 %v2536
      %3079 = vmatpush1.msra.mxu0 %v2535
      %3080 = vmatprep.subr.mxu0 %v2532
      %3081 = vmatpush1.msra.mxu0 %v2531
      %3082 = vmatprep.subr.mxu0 %v2528
      %3083 = vmatpush1.msra.mxu0 %v2527
      %3084 = vmatprep.subr.mxu0 %v2524
      %3085 = vmatpush1.msra.mxu0 %v2523
      %3086 = vmatprep.subr.mxu0 %v2520
      %3087 = vmatpush1.msra.mxu0 %v2519
      %3088 = vmatprep.subr.mxu0 %v2516
      %3089 = vmatpush1.msra.mxu0 %v2515
      %3090 = vmatprep.subr.mxu0 %v2512
      %3091 = vmatpush1.msra.mxu0 %v2511
      %3092 = vmatprep.subr.mxu0 %v2508
      %3093 = vmatpush1.msra.mxu0 %v2507
      %3094 = vmatprep.subr.mxu0 %v2632
      %3095 = vmatpush2.msra.mxu0 %v2631
      %3096 = vmatprep.subr.mxu0 %v2628
      %3097 = vmatpush2.msra.mxu0 %v2627
      %3098 = vmatprep.subr.mxu0 %v2624
      %3099 = vmatpush2.msra.mxu0 %v2623
      %3100 = vmatprep.subr.mxu0 %v2620
      %3101 = vmatpush2.msra.mxu0 %v2619
      %3102 = vmatprep.subr.mxu0 %v2616
      %3103 = vmatpush2.msra.mxu0 %v2615
      %3104 = vmatprep.subr.mxu0 %v2612
      %3105 = vmatpush2.msra.mxu0 %v2611
      %3106 = vmatprep.subr.mxu0 %v2608
      %3107 = vmatpush2.msra.mxu0 %v2607
      %3108 = vmatprep.subr.mxu0 %v2604
      %3109 = vmatpush2.msra.mxu0 %v2603
      %3110 = vmatprep.subr.mxu0 %v2600
      %3111 = vmatpush2.msra.mxu0 %v2599
      %3112 = vmatprep.subr.mxu0 %v2596
      %3113 = vmatpush2.msra.mxu0 %v2595
      %3114 = vmatprep.subr.mxu0 %v2592
      %3115 = vmatpush2.msra.mxu0 %v2591
      %3116 = vmatprep.subr.mxu0 %v2588
      %3117 = vmatpush2.msra.mxu0 %v2587
      %3118 = vmatprep.subr.mxu0 %v2584
      %3119 = vmatpush2.msra.mxu0 %v2583
      %3120 = vmatprep.subr.mxu0 %v2580
      %3121 = vmatpush2.msra.mxu0 %v2579
      %3122 = vmatprep.subr.mxu0 %v2576
      %3123 = vmatpush2.msra.mxu0 %v2575
      %3124 = vmatprep.subr.mxu0 %v2572
      %3125 = vmatpush2.msra.mxu0 %v2571
      %3126 = vmatprep.mubr.f32.mxu0 %v2808
      %3127 = vmatmul.mubr.f32.gmra.mxu0 %v2805
      %v3128 = vpop.f32.mrf.mxu0
      %v3129 = vadd.f32 0.0, %v3128
      %v3130 = vpop.f32.mrf.mxu0
      %v3131 = vadd.f32 0.0, %v3130
      %3132 = vmatprep.mubr.f32.mxu0 %v2807
      %3133 = vmatmul.mubr.f32.gmra.mxu0 %v2804
      %v3134 = vpop.f32.mrf.mxu0
      %v3135 = vadd.f32 0.0, %v3134
      %v3136 = vpop.f32.mrf.mxu0
      %v3137 = vadd.f32 0.0, %v3136
      %3138 = vdwg.mxu0
      %3139 = vmatprep.subr.mxu0 %v2696
      %3140 = vmatpush1.msra.mxu0 %v2695
      %3141 = vmatprep.subr.mxu0 %v2692
      %3142 = vmatpush1.msra.mxu0 %v2691
      %3143 = vmatprep.subr.mxu0 %v2688
      %3144 = vmatpush1.msra.mxu0 %v2687
      %3145 = vmatprep.subr.mxu0 %v2684
      %3146 = vmatpush1.msra.mxu0 %v2683
      %3147 = vmatprep.subr.mxu0 %v2680
      %3148 = vmatpush1.msra.mxu0 %v2679
      %3149 = vmatprep.subr.mxu0 %v2676
      %3150 = vmatpush1.msra.mxu0 %v2675
      %3151 = vmatprep.subr.mxu0 %v2672
      %3152 = vmatpush1.msra.mxu0 %v2671
      %3153 = vmatprep.subr.mxu0 %v2668
      %3154 = vmatpush1.msra.mxu0 %v2667
      %3155 = vmatprep.subr.mxu0 %v2664
      %3156 = vmatpush1.msra.mxu0 %v2663
      %3157 = vmatprep.subr.mxu0 %v2660
      %3158 = vmatpush1.msra.mxu0 %v2659
      %3159 = vmatprep.subr.mxu0 %v2656
      %3160 = vmatpush1.msra.mxu0 %v2655
      %3161 = vmatprep.subr.mxu0 %v2652
      %3162 = vmatpush1.msra.mxu0 %v2651
      %3163 = vmatprep.subr.mxu0 %v2648
      %3164 = vmatpush1.msra.mxu0 %v2647
      %3165 = vmatprep.subr.mxu0 %v2644
      %3166 = vmatpush1.msra.mxu0 %v2643
      %3167 = vmatprep.subr.mxu0 %v2640
      %3168 = vmatpush1.msra.mxu0 %v2639
      %3169 = vmatprep.subr.mxu0 %v2636
      %3170 = vmatpush1.msra.mxu0 %v2635
      %3171 = vmatprep.subr.mxu0 %v2760
      %3172 = vmatpush2.msra.mxu0 %v2759
      %3173 = vmatprep.subr.mxu0 %v2756
      %3174 = vmatpush2.msra.mxu0 %v2755
      %3175 = vmatprep.subr.mxu0 %v2752
      %3176 = vmatpush2.msra.mxu0 %v2751
      %3177 = vmatprep.subr.mxu0 %v2748
      %3178 = vmatpush2.msra.mxu0 %v2747
      %3179 = vmatprep.subr.mxu0 %v2744
      %3180 = vmatpush2.msra.mxu0 %v2743
      %3181 = vmatprep.subr.mxu0 %v2740
      %3182 = vmatpush2.msra.mxu0 %v2739
      %3183 = vmatprep.subr.mxu0 %v2736
      %3184 = vmatpush2.msra.mxu0 %v2735
      %3185 = vmatprep.subr.mxu0 %v2732
      %3186 = vmatpush2.msra.mxu0 %v2731
      %3187 = vmatprep.subr.mxu0 %v2728
      %3188 = vmatpush2.msra.mxu0 %v2727
      %3189 = vmatprep.subr.mxu0 %v2724
      %3190 = vmatpush2.msra.mxu0 %v2723
      %3191 = vmatprep.subr.mxu0 %v2720
      %3192 = vmatpush2.msra.mxu0 %v2719
      %3193 = vmatprep.subr.mxu0 %v2716
      %3194 = vmatpush2.msra.mxu0 %v2715
      %3195 = vmatprep.subr.mxu0 %v2712
      %3196 = vmatpush2.msra.mxu0 %v2711
      %3197 = vmatprep.subr.mxu0 %v2708
      %3198 = vmatpush2.msra.mxu0 %v2707
      %3199 = vmatprep.subr.mxu0 %v2704
      %3200 = vmatpush2.msra.mxu0 %v2703
      %3201 = vmatprep.subr.mxu0 %v2700
      %3202 = vmatpush2.msra.mxu0 %v2699
      %3203 = vmatprep.mubr.f32.mxu0 %v2814
      %3204 = vmatmul.mubr.f32.gmra.mxu0 %v2811
      %v3205 = vpop.f32.mrf.mxu0
      %v3206 = vadd.f32 %v3129, %v3205
      %v3207 = vpop.f32.mrf.mxu0
      %v3208 = vadd.f32 %v3131, %v3207
      %3209 = vmatprep.mubr.f32.mxu0 %v2813
      %3210 = vmatmul.mubr.f32.gmra.mxu0 %v2810
      %v3211 = vpop.f32.mrf.mxu0
      %v3212 = vadd.f32 %v3135, %v3211
      %v3213 = vpop.f32.mrf.mxu0
      %v3214 = vadd.f32 %v3137, %v3213
      %3215 = vdwg.mxu0
      %3216 = vmatprep.subr.mxu0 0.0
      %3217 = vmatpush1.msra.mxu0 0.0
      %3218 = vmatprep.subr.mxu0 0.0
      %3219 = vmatpush1.msra.mxu0 0.0
      %3220 = vmatprep.subr.mxu0 0.0
      %3221 = vmatpush1.msra.mxu0 0.0
      %3222 = vmatprep.subr.mxu0 0.0
      %3223 = vmatpush1.msra.mxu0 0.0
      %3224 = vmatprep.subr.mxu0 0.0
      %3225 = vmatpush1.msra.mxu0 0.0
      %3226 = vmatprep.subr.mxu0 0.0
      %3227 = vmatpush1.msra.mxu0 0.0
      %3228 = vmatprep.subr.mxu0 0.0
      %3229 = vmatpush1.msra.mxu0 0.0
      %3230 = vmatprep.subr.mxu0 0.0
      %3231 = vmatpush1.msra.mxu0 0.0
      %3232 = vmatprep.subr.mxu0 %v2792
      %3233 = vmatpush1.msra.mxu0 %v2791
      %3234 = vmatprep.subr.mxu0 %v2788
      %3235 = vmatpush1.msra.mxu0 %v2787
      %3236 = vmatprep.subr.mxu0 %v2784
      %3237 = vmatpush1.msra.mxu0 %v2783
      %3238 = vmatprep.subr.mxu0 %v2780
      %3239 = vmatpush1.msra.mxu0 %v2779
      %3240 = vmatprep.subr.mxu0 %v2776
      %3241 = vmatpush1.msra.mxu0 %v2775
      %3242 = vmatprep.subr.mxu0 %v2772
      %3243 = vmatpush1.msra.mxu0 %v2771
      %3244 = vmatprep.subr.mxu0 %v2768
      %3245 = vmatpush1.msra.mxu0 %v2767
      %3246 = vmatprep.subr.mxu0 %v2764
      %3247 = vmatpush1.msra.mxu0 %v2763
      %3248 = vmatprep.subr.mxu0 0.0
      %3249 = vmatpush2.msra.mxu0 0.0
      %3250 = vmatprep.subr.mxu0 0.0
      %3251 = vmatpush2.msra.mxu0 0.0
      %3252 = vmatprep.subr.mxu0 0.0
      %3253 = vmatpush2.msra.mxu0 0.0
      %3254 = vmatprep.subr.mxu0 0.0
      %3255 = vmatpush2.msra.mxu0 0.0
      %3256 = vmatprep.subr.mxu0 0.0
      %3257 = vmatpush2.msra.mxu0 0.0
      %3258 = vmatprep.subr.mxu0 0.0
      %3259 = vmatpush2.msra.mxu0 0.0
      %3260 = vmatprep.subr.mxu0 0.0
      %3261 = vmatpush2.msra.mxu0 0.0
      %3262 = vmatprep.subr.mxu0 0.0
      %3263 = vmatpush2.msra.mxu0 0.0
      %3264 = vmatprep.subr.mxu0 0.0
      %3265 = vmatpush2.msra.mxu0 0.0
      %3266 = vmatprep.subr.mxu0 0.0
      %3267 = vmatpush2.msra.mxu0 0.0
      %3268 = vmatprep.subr.mxu0 0.0
      %3269 = vmatpush2.msra.mxu0 0.0
      %3270 = vmatprep.subr.mxu0 0.0
      %3271 = vmatpush2.msra.mxu0 0.0
      %3272 = vmatprep.subr.mxu0 0.0
      %3273 = vmatpush2.msra.mxu0 0.0
      %3274 = vmatprep.subr.mxu0 0.0
      %3275 = vmatpush2.msra.mxu0 0.0
      %3276 = vmatprep.subr.mxu0 0.0
      %3277 = vmatpush2.msra.mxu0 0.0
      %3278 = vmatprep.subr.mxu0 0.0
      %3279 = vmatpush2.msra.mxu0 0.0
      %3280 = vmatprep.mubr.f32.mxu0 0.0
      %3281 = vmatmul.mubr.f32.gmra.mxu0 %v2827
      %v3282 = vpop.f32.mrf.mxu0
      %v3283 = vadd.f32 %v3206, %v3282
      %v3284 = vpop.f32.mrf.mxu0
      %v3285 = vadd.f32 %v3208, %v3284
      %3286 = vmatprep.mubr.f32.mxu0 0.0
      %3287 = vmatmul.mubr.f32.gmra.mxu0 %v2829
      %v3288 = vpop.f32.mrf.mxu0
      %v3289 = vadd.f32 %v3212, %v3288
      %v3290 = vpop.f32.mrf.mxu0
      %v3291 = vadd.f32 %v3214, %v3290
      %3292 = vdwg.mxu0
      %v3293 = vsel %vm2826, %v2205, 0
      %v3295 = vsel %vm2826, %v2210, 0
      %3297 = vmatprep.subr.mxu0 %v2277
      %3298 = vmatpush1.msra.mxu0 %v2276
      %3299 = vmatprep.subr.mxu0 %v2273
      %3300 = vmatpush1.msra.mxu0 %v2272
      %3301 = vmatprep.subr.mxu0 %v2269
      %3302 = vmatpush1.msra.mxu0 %v2268
      %3303 = vmatprep.subr.mxu0 %v2265
      %3304 = vmatpush1.msra.mxu0 %v2264
      %3305 = vmatprep.subr.mxu0 %v2261
      %3306 = vmatpush1.msra.mxu0 %v2260
      %3307 = vmatprep.subr.mxu0 %v2257
      %3308 = vmatpush1.msra.mxu0 %v2256
      %3309 = vmatprep.subr.mxu0 %v2253
      %3310 = vmatpush1.msra.mxu0 %v2252
      %3311 = vmatprep.subr.mxu0 %v2249
      %3312 = vmatpush1.msra.mxu0 %v2248
      %3313 = vmatprep.subr.mxu0 %v2245
      %3314 = vmatpush1.msra.mxu0 %v2244
      %3315 = vmatprep.subr.mxu0 %v2241
      %3316 = vmatpush1.msra.mxu0 %v2240
      %3317 = vmatprep.subr.mxu0 %v2237
      %3318 = vmatpush1.msra.mxu0 %v2236
      %3319 = vmatprep.subr.mxu0 %v2233
      %3320 = vmatpush1.msra.mxu0 %v2232
      %3321 = vmatprep.subr.mxu0 %v2229
      %3322 = vmatpush1.msra.mxu0 %v2228
      %3323 = vmatprep.subr.mxu0 %v2225
      %3324 = vmatpush1.msra.mxu0 %v2224
      %3325 = vmatprep.subr.mxu0 %v2221
      %3326 = vmatpush1.msra.mxu0 %v2220
      %3327 = vmatprep.subr.mxu0 %v2217
      %3328 = vmatpush1.msra.mxu0 %v2216
      %3329 = vmatprep.subr.mxu0 %v2341
      %3330 = vmatpush2.msra.mxu0 %v2340
      %3331 = vmatprep.subr.mxu0 %v2337
      %3332 = vmatpush2.msra.mxu0 %v2336
      %3333 = vmatprep.subr.mxu0 %v2333
      %3334 = vmatpush2.msra.mxu0 %v2332
      %3335 = vmatprep.subr.mxu0 %v2329
      %3336 = vmatpush2.msra.mxu0 %v2328
      %3337 = vmatprep.subr.mxu0 %v2325
      %3338 = vmatpush2.msra.mxu0 %v2324
      %3339 = vmatprep.subr.mxu0 %v2321
      %3340 = vmatpush2.msra.mxu0 %v2320
      %3341 = vmatprep.subr.mxu0 %v2317
      %3342 = vmatpush2.msra.mxu0 %v2316
      %3343 = vmatprep.subr.mxu0 %v2313
      %3344 = vmatpush2.msra.mxu0 %v2312
      %3345 = vmatprep.subr.mxu0 %v2309
      %3346 = vmatpush2.msra.mxu0 %v2308
      %3347 = vmatprep.subr.mxu0 %v2305
      %3348 = vmatpush2.msra.mxu0 %v2304
      %3349 = vmatprep.subr.mxu0 %v2301
      %3350 = vmatpush2.msra.mxu0 %v2300
      %3351 = vmatprep.subr.mxu0 %v2297
      %3352 = vmatpush2.msra.mxu0 %v2296
      %3353 = vmatprep.subr.mxu0 %v2293
      %3354 = vmatpush2.msra.mxu0 %v2292
      %3355 = vmatprep.subr.mxu0 %v2289
      %3356 = vmatpush2.msra.mxu0 %v2288
      %3357 = vmatprep.subr.mxu0 %v2285
      %3358 = vmatpush2.msra.mxu0 %v2284
      %3359 = vmatprep.subr.mxu0 %v2281
      %3360 = vmatpush2.msra.mxu0 %v2280
      %3361 = vmatprep.mubr.f32.mxu0 %v2202
      %3362 = vmatmul.mubr.f32.gmra.mxu0 %v2201
      %v3363 = vpop.f32.mrf.mxu0
      %v3364 = vadd.f32 %v3052, %v3363
      %v3365 = vpop.f32.mrf.mxu0
      %v3366 = vadd.f32 %v3054, %v3365
      %3367 = vmatprep.mubr.f32.mxu0 %v2207
      %3368 = vmatmul.mubr.f32.gmra.mxu0 %v2206
      %v3369 = vpop.f32.mrf.mxu0
      %v3370 = vadd.f32 %v3058, %v3369
      %v3371 = vpop.f32.mrf.mxu0
      %v3372 = vadd.f32 %v3060, %v3371
      %3373 = vdwg.mxu0
      %3374 = vmatprep.subr.mxu0 %v2405
      %3375 = vmatpush1.msra.mxu0 %v2404
      %3376 = vmatprep.subr.mxu0 %v2401
      %3377 = vmatpush1.msra.mxu0 %v2400
      %3378 = vmatprep.subr.mxu0 %v2397
      %3379 = vmatpush1.msra.mxu0 %v2396
      %3380 = vmatprep.subr.mxu0 %v2393
      %3381 = vmatpush1.msra.mxu0 %v2392
      %3382 = vmatprep.subr.mxu0 %v2389
      %3383 = vmatpush1.msra.mxu0 %v2388
      %3384 = vmatprep.subr.mxu0 %v2385
      %3385 = vmatpush1.msra.mxu0 %v2384
      %3386 = vmatprep.subr.mxu0 %v2381
      %3387 = vmatpush1.msra.mxu0 %v2380
      %3388 = vmatprep.subr.mxu0 %v2377
      %3389 = vmatpush1.msra.mxu0 %v2376
      %3390 = vmatprep.subr.mxu0 %v2373
      %3391 = vmatpush1.msra.mxu0 %v2372
      %3392 = vmatprep.subr.mxu0 %v2369
      %3393 = vmatpush1.msra.mxu0 %v2368
      %3394 = vmatprep.subr.mxu0 %v2365
      %3395 = vmatpush1.msra.mxu0 %v2364
      %3396 = vmatprep.subr.mxu0 %v2361
      %3397 = vmatpush1.msra.mxu0 %v2360
      %3398 = vmatprep.subr.mxu0 %v2357
      %3399 = vmatpush1.msra.mxu0 %v2356
      %3400 = vmatprep.subr.mxu0 %v2353
      %3401 = vmatpush1.msra.mxu0 %v2352
      %3402 = vmatprep.subr.mxu0 %v2349
      %3403 = vmatpush1.msra.mxu0 %v2348
      %3404 = vmatprep.subr.mxu0 %v2345
      %3405 = vmatpush1.msra.mxu0 %v2344
      %3406 = vmatprep.subr.mxu0 %v2469
      %3407 = vmatpush2.msra.mxu0 %v2468
      %3408 = vmatprep.subr.mxu0 %v2465
      %3409 = vmatpush2.msra.mxu0 %v2464
      %3410 = vmatprep.subr.mxu0 %v2461
      %3411 = vmatpush2.msra.mxu0 %v2460
      %3412 = vmatprep.subr.mxu0 %v2457
      %3413 = vmatpush2.msra.mxu0 %v2456
      %3414 = vmatprep.subr.mxu0 %v2453
      %3415 = vmatpush2.msra.mxu0 %v2452
      %3416 = vmatprep.subr.mxu0 %v2449
      %3417 = vmatpush2.msra.mxu0 %v2448
      %3418 = vmatprep.subr.mxu0 %v2445
      %3419 = vmatpush2.msra.mxu0 %v2444
      %3420 = vmatprep.subr.mxu0 %v2441
      %3421 = vmatpush2.msra.mxu0 %v2440
      %3422 = vmatprep.subr.mxu0 %v2437
      %3423 = vmatpush2.msra.mxu0 %v2436
      %3424 = vmatprep.subr.mxu0 %v2433
      %3425 = vmatpush2.msra.mxu0 %v2432
      %3426 = vmatprep.subr.mxu0 %v2429
      %3427 = vmatpush2.msra.mxu0 %v2428
      %3428 = vmatprep.subr.mxu0 %v2425
      %3429 = vmatpush2.msra.mxu0 %v2424
      %3430 = vmatprep.subr.mxu0 %v2421
      %3431 = vmatpush2.msra.mxu0 %v2420
      %3432 = vmatprep.subr.mxu0 %v2417
      %3433 = vmatpush2.msra.mxu0 %v2416
      %3434 = vmatprep.subr.mxu0 %v2413
      %3435 = vmatpush2.msra.mxu0 %v2412
      %3436 = vmatprep.subr.mxu0 %v2409
      %3437 = vmatpush2.msra.mxu0 %v2408
      %3438 = vmatprep.mubr.f32.mxu0 %v2204
      %3439 = vmatmul.mubr.f32.gmra.mxu0 %v2203
      %v3440 = vpop.f32.mrf.mxu0
      %v3441 = vadd.f32 %v3364, %v3440
      %v3442 = vpop.f32.mrf.mxu0
      %v3443 = vadd.f32 %v3366, %v3442
      %3444 = vmatprep.mubr.f32.mxu0 %v2209
      %3445 = vmatmul.mubr.f32.gmra.mxu0 %v2208
      %v3446 = vpop.f32.mrf.mxu0
      %v3447 = vadd.f32 %v3370, %v3446
      %v3448 = vpop.f32.mrf.mxu0
      %v3449 = vadd.f32 %v3372, %v3448
      %3450 = vdwg.mxu0
      %3451 = vmatprep.subr.mxu0 0.0
      %3452 = vmatpush1.msra.mxu0 0.0
      %3453 = vmatprep.subr.mxu0 0.0
      %3454 = vmatpush1.msra.mxu0 0.0
      %3455 = vmatprep.subr.mxu0 0.0
      %3456 = vmatpush1.msra.mxu0 0.0
      %3457 = vmatprep.subr.mxu0 0.0
      %3458 = vmatpush1.msra.mxu0 0.0
      %3459 = vmatprep.subr.mxu0 0.0
      %3460 = vmatpush1.msra.mxu0 0.0
      %3461 = vmatprep.subr.mxu0 0.0
      %3462 = vmatpush1.msra.mxu0 0.0
      %3463 = vmatprep.subr.mxu0 0.0
      %3464 = vmatpush1.msra.mxu0 0.0
      %3465 = vmatprep.subr.mxu0 0.0
      %3466 = vmatpush1.msra.mxu0 0.0
      %3467 = vmatprep.subr.mxu0 %v2501
      %3468 = vmatpush1.msra.mxu0 %v2500
      %3469 = vmatprep.subr.mxu0 %v2497
      %3470 = vmatpush1.msra.mxu0 %v2496
      %3471 = vmatprep.subr.mxu0 %v2493
      %3472 = vmatpush1.msra.mxu0 %v2492
      %3473 = vmatprep.subr.mxu0 %v2489
      %3474 = vmatpush1.msra.mxu0 %v2488
      %3475 = vmatprep.subr.mxu0 %v2485
      %3476 = vmatpush1.msra.mxu0 %v2484
      %3477 = vmatprep.subr.mxu0 %v2481
      %3478 = vmatpush1.msra.mxu0 %v2480
      %3479 = vmatprep.subr.mxu0 %v2477
      %3480 = vmatpush1.msra.mxu0 %v2476
      %3481 = vmatprep.subr.mxu0 %v2473
      %3482 = vmatpush1.msra.mxu0 %v2472
      %3483 = vmatprep.subr.mxu0 0.0
      %3484 = vmatpush2.msra.mxu0 0.0
      %3485 = vmatprep.subr.mxu0 0.0
      %3486 = vmatpush2.msra.mxu0 0.0
      %3487 = vmatprep.subr.mxu0 0.0
      %3488 = vmatpush2.msra.mxu0 0.0
      %3489 = vmatprep.subr.mxu0 0.0
      %3490 = vmatpush2.msra.mxu0 0.0
      %3491 = vmatprep.subr.mxu0 0.0
      %3492 = vmatpush2.msra.mxu0 0.0
      %3493 = vmatprep.subr.mxu0 0.0
      %3494 = vmatpush2.msra.mxu0 0.0
      %3495 = vmatprep.subr.mxu0 0.0
      %3496 = vmatpush2.msra.mxu0 0.0
      %3497 = vmatprep.subr.mxu0 0.0
      %3498 = vmatpush2.msra.mxu0 0.0
      %3499 = vmatprep.subr.mxu0 0.0
      %3500 = vmatpush2.msra.mxu0 0.0
      %3501 = vmatprep.subr.mxu0 0.0
      %3502 = vmatpush2.msra.mxu0 0.0
      %3503 = vmatprep.subr.mxu0 0.0
      %3504 = vmatpush2.msra.mxu0 0.0
      %3505 = vmatprep.subr.mxu0 0.0
      %3506 = vmatpush2.msra.mxu0 0.0
      %3507 = vmatprep.subr.mxu0 0.0
      %3508 = vmatpush2.msra.mxu0 0.0
      %3509 = vmatprep.subr.mxu0 0.0
      %3510 = vmatpush2.msra.mxu0 0.0
      %3511 = vmatprep.subr.mxu0 0.0
      %3512 = vmatpush2.msra.mxu0 0.0
      %3513 = vmatprep.subr.mxu0 0.0
      %3514 = vmatpush2.msra.mxu0 0.0
      %3515 = vmatprep.mubr.f32.mxu0 0.0
      %3516 = vmatmul.mubr.f32.gmra.mxu0 %v3293
      %v3517 = vpop.f32.mrf.mxu0
      %v3518 = vadd.f32 %v3441, %v3517
      %v3519 = vpop.f32.mrf.mxu0
      %v3520 = vadd.f32 %v3443, %v3519
      %3521 = vmatprep.mubr.f32.mxu0 0.0
      %3522 = vmatmul.mubr.f32.gmra.mxu0 %v3295
      %v3523 = vpop.f32.mrf.mxu0
      %v3524 = vadd.f32 %v3447, %v3523
      %v3525 = vpop.f32.mrf.mxu0
      %v3526 = vadd.f32 %v3449, %v3525
      %3527 = vdwg.mxu0
      %3528 = vmatprep.subr.mxu0 %v2279
      %3529 = vmatpush1.msra.mxu0 %v2278
      %3530 = vmatprep.subr.mxu0 %v2275
      %3531 = vmatpush1.msra.mxu0 %v2274
      %3532 = vmatprep.subr.mxu0 %v2271
      %3533 = vmatpush1.msra.mxu0 %v2270
      %3534 = vmatprep.subr.mxu0 %v2267
      %3535 = vmatpush1.msra.mxu0 %v2266
      %3536 = vmatprep.subr.mxu0 %v2263
      %3537 = vmatpush1.msra.mxu0 %v2262
      %3538 = vmatprep.subr.mxu0 %v2259
      %3539 = vmatpush1.msra.mxu0 %v2258
      %3540 = vmatprep.subr.mxu0 %v2255
      %3541 = vmatpush1.msra.mxu0 %v2254
      %3542 = vmatprep.subr.mxu0 %v2251
      %3543 = vmatpush1.msra.mxu0 %v2250
      %3544 = vmatprep.subr.mxu0 %v2247
      %3545 = vmatpush1.msra.mxu0 %v2246
      %3546 = vmatprep.subr.mxu0 %v2243
      %3547 = vmatpush1.msra.mxu0 %v2242
      %3548 = vmatprep.subr.mxu0 %v2239
      %3549 = vmatpush1.msra.mxu0 %v2238
      %3550 = vmatprep.subr.mxu0 %v2235
      %3551 = vmatpush1.msra.mxu0 %v2234
      %3552 = vmatprep.subr.mxu0 %v2231
      %3553 = vmatpush1.msra.mxu0 %v2230
      %3554 = vmatprep.subr.mxu0 %v2227
      %3555 = vmatpush1.msra.mxu0 %v2226
      %3556 = vmatprep.subr.mxu0 %v2223
      %3557 = vmatpush1.msra.mxu0 %v2222
      %3558 = vmatprep.subr.mxu0 %v2219
      %3559 = vmatpush1.msra.mxu0 %v2218
      %3560 = vmatprep.subr.mxu0 %v2343
      %3561 = vmatpush2.msra.mxu0 %v2342
      %3562 = vmatprep.subr.mxu0 %v2339
      %3563 = vmatpush2.msra.mxu0 %v2338
      %3564 = vmatprep.subr.mxu0 %v2335
      %3565 = vmatpush2.msra.mxu0 %v2334
      %3566 = vmatprep.subr.mxu0 %v2331
      %3567 = vmatpush2.msra.mxu0 %v2330
      %3568 = vmatprep.subr.mxu0 %v2327
      %3569 = vmatpush2.msra.mxu0 %v2326
      %3570 = vmatprep.subr.mxu0 %v2323
      %3571 = vmatpush2.msra.mxu0 %v2322
      %3572 = vmatprep.subr.mxu0 %v2319
      %3573 = vmatpush2.msra.mxu0 %v2318
      %3574 = vmatprep.subr.mxu0 %v2315
      %3575 = vmatpush2.msra.mxu0 %v2314
      %3576 = vmatprep.subr.mxu0 %v2311
      %3577 = vmatpush2.msra.mxu0 %v2310
      %3578 = vmatprep.subr.mxu0 %v2307
      %3579 = vmatpush2.msra.mxu0 %v2306
      %3580 = vmatprep.subr.mxu0 %v2303
      %3581 = vmatpush2.msra.mxu0 %v2302
      %3582 = vmatprep.subr.mxu0 %v2299
      %3583 = vmatpush2.msra.mxu0 %v2298
      %3584 = vmatprep.subr.mxu0 %v2295
      %3585 = vmatpush2.msra.mxu0 %v2294
      %3586 = vmatprep.subr.mxu0 %v2291
      %3587 = vmatpush2.msra.mxu0 %v2290
      %3588 = vmatprep.subr.mxu0 %v2287
      %3589 = vmatpush2.msra.mxu0 %v2286
      %3590 = vmatprep.subr.mxu0 %v2283
      %3591 = vmatpush2.msra.mxu0 %v2282
      %3592 = vmatprep.mubr.f32.mxu0 %v2202
      %3593 = vmatmul.mubr.f32.gmra.mxu0 %v2201
      %v3594 = vpop.f32.mrf.mxu0
      %v3595 = vadd.f32 %v3283, %v3594
      %v3596 = vpop.f32.mrf.mxu0
      %v3597 = vadd.f32 %v3285, %v3596
      %3598 = vmatprep.mubr.f32.mxu0 %v2207
      %3599 = vmatmul.mubr.f32.gmra.mxu0 %v2206
      %v3600 = vpop.f32.mrf.mxu0
      %v3601 = vadd.f32 %v3289, %v3600
      %v3602 = vpop.f32.mrf.mxu0
      %v3603 = vadd.f32 %v3291, %v3602
      %3604 = vdwg.mxu0
      %3605 = vmatprep.subr.mxu0 %v2407
      %3606 = vmatpush1.msra.mxu0 %v2406
      %3607 = vmatprep.subr.mxu0 %v2403
      %3608 = vmatpush1.msra.mxu0 %v2402
      %3609 = vmatprep.subr.mxu0 %v2399
      %3610 = vmatpush1.msra.mxu0 %v2398
      %3611 = vmatprep.subr.mxu0 %v2395
      %3612 = vmatpush1.msra.mxu0 %v2394
      %3613 = vmatprep.subr.mxu0 %v2391
      %3614 = vmatpush1.msra.mxu0 %v2390
      %3615 = vmatprep.subr.mxu0 %v2387
      %3616 = vmatpush1.msra.mxu0 %v2386
      %3617 = vmatprep.subr.mxu0 %v2383
      %3618 = vmatpush1.msra.mxu0 %v2382
      %3619 = vmatprep.subr.mxu0 %v2379
      %3620 = vmatpush1.msra.mxu0 %v2378
      %3621 = vmatprep.subr.mxu0 %v2375
      %3622 = vmatpush1.msra.mxu0 %v2374
      %3623 = vmatprep.subr.mxu0 %v2371
      %3624 = vmatpush1.msra.mxu0 %v2370
      %3625 = vmatprep.subr.mxu0 %v2367
      %3626 = vmatpush1.msra.mxu0 %v2366
      %3627 = vmatprep.subr.mxu0 %v2363
      %3628 = vmatpush1.msra.mxu0 %v2362
      %3629 = vmatprep.subr.mxu0 %v2359
      %3630 = vmatpush1.msra.mxu0 %v2358
      %3631 = vmatprep.subr.mxu0 %v2355
      %3632 = vmatpush1.msra.mxu0 %v2354
      %3633 = vmatprep.subr.mxu0 %v2351
      %3634 = vmatpush1.msra.mxu0 %v2350
      %3635 = vmatprep.subr.mxu0 %v2347
      %3636 = vmatpush1.msra.mxu0 %v2346
      %3637 = vmatprep.subr.mxu0 %v2471
      %3638 = vmatpush2.msra.mxu0 %v2470
      %3639 = vmatprep.subr.mxu0 %v2467
      %3640 = vmatpush2.msra.mxu0 %v2466
      %3641 = vmatprep.subr.mxu0 %v2463
      %3642 = vmatpush2.msra.mxu0 %v2462
      %3643 = vmatprep.subr.mxu0 %v2459
      %3644 = vmatpush2.msra.mxu0 %v2458
      %3645 = vmatprep.subr.mxu0 %v2455
      %3646 = vmatpush2.msra.mxu0 %v2454
      %3647 = vmatprep.subr.mxu0 %v2451
      %3648 = vmatpush2.msra.mxu0 %v2450
      %3649 = vmatprep.subr.mxu0 %v2447
      %3650 = vmatpush2.msra.mxu0 %v2446
      %3651 = vmatprep.subr.mxu0 %v2443
      %3652 = vmatpush2.msra.mxu0 %v2442
      %3653 = vmatprep.subr.mxu0 %v2439
      %3654 = vmatpush2.msra.mxu0 %v2438
      %3655 = vmatprep.subr.mxu0 %v2435
      %3656 = vmatpush2.msra.mxu0 %v2434
      %3657 = vmatprep.subr.mxu0 %v2431
      %3658 = vmatpush2.msra.mxu0 %v2430
      %3659 = vmatprep.subr.mxu0 %v2427
      %3660 = vmatpush2.msra.mxu0 %v2426
      %3661 = vmatprep.subr.mxu0 %v2423
      %3662 = vmatpush2.msra.mxu0 %v2422
      %3663 = vmatprep.subr.mxu0 %v2419
      %3664 = vmatpush2.msra.mxu0 %v2418
      %3665 = vmatprep.subr.mxu0 %v2415
      %3666 = vmatpush2.msra.mxu0 %v2414
      %3667 = vmatprep.subr.mxu0 %v2411
      %3668 = vmatpush2.msra.mxu0 %v2410
      %3669 = vmatprep.mubr.f32.mxu0 %v2204
      %3670 = vmatmul.mubr.f32.gmra.mxu0 %v2203
      %v3671 = vpop.f32.mrf.mxu0
      %v3672 = vadd.f32 %v3595, %v3671
      %v3673 = vpop.f32.mrf.mxu0
      %v3674 = vadd.f32 %v3597, %v3673
      %3675 = vmatprep.mubr.f32.mxu0 %v2209
      %3676 = vmatmul.mubr.f32.gmra.mxu0 %v2208
      %v3677 = vpop.f32.mrf.mxu0
      %v3678 = vadd.f32 %v3601, %v3677
      %v3679 = vpop.f32.mrf.mxu0
      %v3680 = vadd.f32 %v3603, %v3679
      %3681 = vdwg.mxu0
      %3682 = vmatprep.subr.mxu0 0.0
      %3683 = vmatpush1.msra.mxu0 0.0
      %3684 = vmatprep.subr.mxu0 0.0
      %3685 = vmatpush1.msra.mxu0 0.0
      %3686 = vmatprep.subr.mxu0 0.0
      %3687 = vmatpush1.msra.mxu0 0.0
      %3688 = vmatprep.subr.mxu0 0.0
      %3689 = vmatpush1.msra.mxu0 0.0
      %3690 = vmatprep.subr.mxu0 0.0
      %3691 = vmatpush1.msra.mxu0 0.0
      %3692 = vmatprep.subr.mxu0 0.0
      %3693 = vmatpush1.msra.mxu0 0.0
      %3694 = vmatprep.subr.mxu0 0.0
      %3695 = vmatpush1.msra.mxu0 0.0
      %3696 = vmatprep.subr.mxu0 0.0
      %3697 = vmatpush1.msra.mxu0 0.0
      %3698 = vmatprep.subr.mxu0 %v2503
      %3699 = vmatpush1.msra.mxu0 %v2502
      %3700 = vmatprep.subr.mxu0 %v2499
      %3701 = vmatpush1.msra.mxu0 %v2498
      %3702 = vmatprep.subr.mxu0 %v2495
      %3703 = vmatpush1.msra.mxu0 %v2494
      %3704 = vmatprep.subr.mxu0 %v2491
      %3705 = vmatpush1.msra.mxu0 %v2490
      %3706 = vmatprep.subr.mxu0 %v2487
      %3707 = vmatpush1.msra.mxu0 %v2486
      %3708 = vmatprep.subr.mxu0 %v2483
      %3709 = vmatpush1.msra.mxu0 %v2482
      %3710 = vmatprep.subr.mxu0 %v2479
      %3711 = vmatpush1.msra.mxu0 %v2478
      %3712 = vmatprep.subr.mxu0 %v2475
      %3713 = vmatpush1.msra.mxu0 %v2474
      %3714 = vmatprep.subr.mxu0 0.0
      %3715 = vmatpush2.msra.mxu0 0.0
      %3716 = vmatprep.subr.mxu0 0.0
      %3717 = vmatpush2.msra.mxu0 0.0
      %3718 = vmatprep.subr.mxu0 0.0
      %3719 = vmatpush2.msra.mxu0 0.0
      %3720 = vmatprep.subr.mxu0 0.0
      %3721 = vmatpush2.msra.mxu0 0.0
      %3722 = vmatprep.subr.mxu0 0.0
      %3723 = vmatpush2.msra.mxu0 0.0
      %3724 = vmatprep.subr.mxu0 0.0
      %3725 = vmatpush2.msra.mxu0 0.0
      %3726 = vmatprep.subr.mxu0 0.0
      %3727 = vmatpush2.msra.mxu0 0.0
      %3728 = vmatprep.subr.mxu0 0.0
      %3729 = vmatpush2.msra.mxu0 0.0
      %3730 = vmatprep.subr.mxu0 0.0
      %3731 = vmatpush2.msra.mxu0 0.0
      %3732 = vmatprep.subr.mxu0 0.0
      %3733 = vmatpush2.msra.mxu0 0.0
      %3734 = vmatprep.subr.mxu0 0.0
      %3735 = vmatpush2.msra.mxu0 0.0
      %3736 = vmatprep.subr.mxu0 0.0
      %3737 = vmatpush2.msra.mxu0 0.0
      %3738 = vmatprep.subr.mxu0 0.0
      %3739 = vmatpush2.msra.mxu0 0.0
      %3740 = vmatprep.subr.mxu0 0.0
      %3741 = vmatpush2.msra.mxu0 0.0
      %3742 = vmatprep.subr.mxu0 0.0
      %3743 = vmatpush2.msra.mxu0 0.0
      %3744 = vmatprep.subr.mxu0 0.0
      %3745 = vmatpush2.msra.mxu0 0.0
      %3746 = vmatprep.mubr.f32.mxu0 0.0
      %3747 = vmatmul.mubr.f32.gmra.mxu0 %v3293
      %v3748 = vpop.f32.mrf.mxu0
      %v3749 = vadd.f32 %v3672, %v3748
      %v3750 = vpop.f32.mrf.mxu0
      %v3751 = vadd.f32 %v3674, %v3750
      %3752 = vmatprep.mubr.f32.mxu0 0.0
      %3753 = vmatmul.mubr.f32.gmra.mxu0 %v3295
      %v3754 = vpop.f32.mrf.mxu0
      %v3755 = vadd.f32 %v3678, %v3754
      %v3756 = vpop.f32.mrf.mxu0
      %v3757 = vadd.f32 %v3680, %v3756
      %3758 = vdwg.mxu0
      %s3759 = scalar_lea.vmem %s2, 4608
      %v3760 = vld [vmem:[%s3759] sm:$0xff]
      %v3761 = vld [vmem:[%s3759 + $0x8] sm:$0xff]
      %v3762 = vld [vmem:[%s3759 + $0x10] sm:$0xff]
      %v3763 = vld [vmem:[%s3759 + $0x18] sm:$0xff]
      %v3764 = vld [vmem:[%s3759 + $0x20] sm:$0xff]
      %v3765 = vld [vmem:[%s3759 + $0x28] sm:$0xff]
      %v3766 = vld [vmem:[%s3759 + $0x30] sm:$0xff]
      %v3767 = vld [vmem:[%s3759 + $0x38] sm:$0xff]
      %v3768 = vld [vmem:[%s3759 + $0x40] sm:$0xff]
      %v3769 = vld [vmem:[%s3759 + $0x48] sm:$0xff]
      %v3770 = vld [vmem:[%s3759 + $0x50] sm:$0xff]
      %v3771 = vld [vmem:[%s3759 + $0x58] sm:$0xff]
      %v3772 = vld [vmem:[%s3759 + $0x60] sm:$0xff]
      %v3773 = vld [vmem:[%s3759 + $0x68] sm:$0xff]
      %v3774 = vld [vmem:[%s3759 + $0x70] sm:$0xff]
      %v3775 = vld [vmem:[%s3759 + $0x78] sm:$0xff]
      %v3776 = vld [vmem:[%s3759 + $0x80] sm:$0xff]
      %v3777 = vld [vmem:[%s3759 + $0x88] sm:$0xff]
      %v3778 = vld [vmem:[%s3759 + $0x90] sm:$0xff]
      %v3779 = vld [vmem:[%s3759 + $0x98] sm:$0xff]
      %v3780 = vld [vmem:[%s3759 + $0xa0] sm:$0xff]
      %v3781 = vld [vmem:[%s3759 + $0xa8] sm:$0xff]
      %v3782 = vld [vmem:[%s3759 + $0xb0] sm:$0xff]
      %v3783 = vld [vmem:[%s3759 + $0xb8] sm:$0xff]
      %v3784 = vld [vmem:[%s3759 + $0xc0] sm:$0xff]
      %v3785 = vld [vmem:[%s3759 + $0xc8] sm:$0xff]
      %v3786 = vld [vmem:[%s3759 + $0xd0] sm:$0xff]
      %v3787 = vld [vmem:[%s3759 + $0xd8] sm:$0xff]
      %v3788 = vld [vmem:[%s3759 + $0xe0] sm:$0xff]
      %v3789 = vld [vmem:[%s3759 + $0xe8] sm:$0xff]
      %v3790 = vld [vmem:[%s3759 + $0xf0] sm:$0xff]
      %v3791 = vld [vmem:[%s3759 + $0xf8] sm:$0xff]
      %v3792 = vld [vmem:[%s3759 + $0x100] sm:$0xff]
      %v3793 = vld [vmem:[%s3759 + $0x108] sm:$0xff]
      %v3794 = vld [vmem:[%s3759 + $0x110] sm:$0xff]
      %v3795 = vld [vmem:[%s3759 + $0x118] sm:$0xff]
      %v3796 = vld [vmem:[%s3759 + $0x120] sm:$0xff]
      %v3797 = vld [vmem:[%s3759 + $0x128] sm:$0xff]
      %v3798 = vld [vmem:[%s3759 + $0x130] sm:$0xff]
      %v3799 = vld [vmem:[%s3759 + $0x138] sm:$0xff]
      %v3800 = vld [vmem:[%s3759 + $0x140] sm:$0xff]
      %v3801 = vld [vmem:[%s3759 + $0x148] sm:$0xff]
      %v3802 = vld [vmem:[%s3759 + $0x150] sm:$0xff]
      %v3803 = vld [vmem:[%s3759 + $0x158] sm:$0xff]
      %v3804 = vld [vmem:[%s3759 + $0x160] sm:$0xff]
      %v3805 = vld [vmem:[%s3759 + $0x168] sm:$0xff]
      %v3806 = vld [vmem:[%s3759 + $0x170] sm:$0xff]
      %v3807 = vld [vmem:[%s3759 + $0x178] sm:$0xff]
      %v3808 = vld [vmem:[%s3759 + $0x180] sm:$0xff]
      %v3809 = vld [vmem:[%s3759 + $0x188] sm:$0xff]
      %v3810 = vld [vmem:[%s3759 + $0x190] sm:$0xff]
      %v3811 = vld [vmem:[%s3759 + $0x198] sm:$0xff]
      %v3812 = vld [vmem:[%s3759 + $0x1a0] sm:$0xff]
      %v3813 = vld [vmem:[%s3759 + $0x1a8] sm:$0xff]
      %v3814 = vld [vmem:[%s3759 + $0x1b0] sm:$0xff]
      %v3815 = vld [vmem:[%s3759 + $0x1b8] sm:$0xff]
      %v3816 = vld [vmem:[%s3759 + $0x1c0] sm:$0xff]
      %v3817 = vld [vmem:[%s3759 + $0x1c8] sm:$0xff]
      %v3818 = vld [vmem:[%s3759 + $0x1d0] sm:$0xff]
      %v3819 = vld [vmem:[%s3759 + $0x1d8] sm:$0xff]
      %v3820 = vld [vmem:[%s3759 + $0x1e0] sm:$0xff]
      %v3821 = vld [vmem:[%s3759 + $0x1e8] sm:$0xff]
      %v3822 = vld [vmem:[%s3759 + $0x1f0] sm:$0xff]
      %v3823 = vld [vmem:[%s3759 + $0x1f8] sm:$0xff]
      %v3824 = vld [vmem:[%s3759 + $0x200] sm:$0xff]
      %v3825 = vld [vmem:[%s3759 + $0x208] sm:$0xff]
      %v3826 = vld [vmem:[%s3759 + $0x210] sm:$0xff]
      %v3827 = vld [vmem:[%s3759 + $0x218] sm:$0xff]
      %v3828 = vld [vmem:[%s3759 + $0x220] sm:$0xff]
      %v3829 = vld [vmem:[%s3759 + $0x228] sm:$0xff]
      %v3830 = vld [vmem:[%s3759 + $0x230] sm:$0xff]
      %v3831 = vld [vmem:[%s3759 + $0x238] sm:$0xff]
      %v3832 = vld [vmem:[%s3759 + $0x240] sm:$0xff]
      %v3833 = vld [vmem:[%s3759 + $0x248] sm:$0xff]
      %v3834 = vld [vmem:[%s3759 + $0x250] sm:$0xff]
      %v3835 = vld [vmem:[%s3759 + $0x258] sm:$0xff]
      %v3836 = vld [vmem:[%s3759 + $0x260] sm:$0xff]
      %v3837 = vld [vmem:[%s3759 + $0x268] sm:$0xff]
      %v3838 = vld [vmem:[%s3759 + $0x270] sm:$0xff]
      %v3839 = vld [vmem:[%s3759 + $0x278] sm:$0xff]
      %v3840 = vld [vmem:[%s3759 + $0x280] sm:$0xff]
      %v3841 = vld [vmem:[%s3759 + $0x288] sm:$0xff]
      %v3842 = vld [vmem:[%s3759 + $0x290] sm:$0xff]
      %v3843 = vld [vmem:[%s3759 + $0x298] sm:$0xff]
      %v3844 = vld [vmem:[%s3759 + $0x2a0] sm:$0xff]
      %v3845 = vld [vmem:[%s3759 + $0x2a8] sm:$0xff]
      %v3846 = vld [vmem:[%s3759 + $0x2b0] sm:$0xff]
      %v3847 = vld [vmem:[%s3759 + $0x2b8] sm:$0xff]
      %v3848 = vld [vmem:[%s3759 + $0x2c0] sm:$0xff]
      %v3849 = vld [vmem:[%s3759 + $0x2c8] sm:$0xff]
      %v3850 = vld [vmem:[%s3759 + $0x2d0] sm:$0xff]
      %v3851 = vld [vmem:[%s3759 + $0x2d8] sm:$0xff]
      %v3852 = vld [vmem:[%s3759 + $0x2e0] sm:$0xff]
      %v3853 = vld [vmem:[%s3759 + $0x2e8] sm:$0xff]
      %v3854 = vld [vmem:[%s3759 + $0x2f0] sm:$0xff]
      %v3855 = vld [vmem:[%s3759 + $0x2f8] sm:$0xff]
      %v3856 = vld [vmem:[%s3759 + $0x300] sm:$0xff]
      %v3857 = vld [vmem:[%s3759 + $0x308] sm:$0xff]
      %v3858 = vld [vmem:[%s3759 + $0x310] sm:$0xff]
      %v3859 = vld [vmem:[%s3759 + $0x318] sm:$0xff]
      %v3860 = vld [vmem:[%s3759 + $0x320] sm:$0xff]
      %v3861 = vld [vmem:[%s3759 + $0x328] sm:$0xff]
      %v3862 = vld [vmem:[%s3759 + $0x330] sm:$0xff]
      %v3863 = vld [vmem:[%s3759 + $0x338] sm:$0xff]
      %v3864 = vld [vmem:[%s3759 + $0x340] sm:$0xff]
      %v3865 = vld [vmem:[%s3759 + $0x348] sm:$0xff]
      %v3866 = vld [vmem:[%s3759 + $0x350] sm:$0xff]
      %v3867 = vld [vmem:[%s3759 + $0x358] sm:$0xff]
      %v3868 = vld [vmem:[%s3759 + $0x360] sm:$0xff]
      %v3869 = vld [vmem:[%s3759 + $0x368] sm:$0xff]
      %v3870 = vld [vmem:[%s3759 + $0x370] sm:$0xff]
      %v3871 = vld [vmem:[%s3759 + $0x378] sm:$0xff]
      %v3872 = vld [vmem:[%s3759 + $0x380] sm:$0xff]
      %v3873 = vld [vmem:[%s3759 + $0x388] sm:$0xff]
      %v3874 = vld [vmem:[%s3759 + $0x390] sm:$0xff]
      %v3875 = vld [vmem:[%s3759 + $0x398] sm:$0xff]
      %v3876 = vld [vmem:[%s3759 + $0x3a0] sm:$0xff]
      %v3877 = vld [vmem:[%s3759 + $0x3a8] sm:$0xff]
      %v3878 = vld [vmem:[%s3759 + $0x3b0] sm:$0xff]
      %v3879 = vld [vmem:[%s3759 + $0x3b8] sm:$0xff]
      %v3880 = vld [vmem:[%s3759 + $0x3c0] sm:$0xff]
      %v3881 = vld [vmem:[%s3759 + $0x3c8] sm:$0xff]
      %v3882 = vld [vmem:[%s3759 + $0x3d0] sm:$0xff]
      %v3883 = vld [vmem:[%s3759 + $0x3d8] sm:$0xff]
      %v3884 = vld [vmem:[%s3759 + $0x3e0] sm:$0xff]
      %v3885 = vld [vmem:[%s3759 + $0x3e8] sm:$0xff]
      %v3886 = vld [vmem:[%s3759 + $0x3f0] sm:$0xff]
      %v3887 = vld [vmem:[%s3759 + $0x3f8] sm:$0xff]
      %v3888 = vld [vmem:[%s3759 + $0x400] sm:$0xff]
      %v3889 = vld [vmem:[%s3759 + $0x408] sm:$0xff]
      %v3890 = vld [vmem:[%s3759 + $0x410] sm:$0xff]
      %v3891 = vld [vmem:[%s3759 + $0x418] sm:$0xff]
      %v3892 = vld [vmem:[%s3759 + $0x420] sm:$0xff]
      %v3893 = vld [vmem:[%s3759 + $0x428] sm:$0xff]
      %v3894 = vld [vmem:[%s3759 + $0x430] sm:$0xff]
      %v3895 = vld [vmem:[%s3759 + $0x438] sm:$0xff]
      %v3896 = vld [vmem:[%s3759 + $0x440] sm:$0xff]
      %v3897 = vld [vmem:[%s3759 + $0x448] sm:$0xff]
      %v3898 = vld [vmem:[%s3759 + $0x450] sm:$0xff]
      %v3899 = vld [vmem:[%s3759 + $0x458] sm:$0xff]
      %v3900 = vld [vmem:[%s3759 + $0x460] sm:$0xff]
      %v3901 = vld [vmem:[%s3759 + $0x468] sm:$0xff]
      %v3902 = vld [vmem:[%s3759 + $0x470] sm:$0xff]
      %v3903 = vld [vmem:[%s3759 + $0x478] sm:$0xff]
      %v3904 = vld [vmem:[%s3759 + $0x480] sm:$0xff]
      %v3905 = vld [vmem:[%s3759 + $0x488] sm:$0xff]
      %v3906 = vld [vmem:[%s3759 + $0x490] sm:$0xff]
      %v3907 = vld [vmem:[%s3759 + $0x498] sm:$0xff]
      %v3908 = vld [vmem:[%s3759 + $0x4a0] sm:$0xff]
      %v3909 = vld [vmem:[%s3759 + $0x4a8] sm:$0xff]
      %v3910 = vld [vmem:[%s3759 + $0x4b0] sm:$0xff]
      %v3911 = vld [vmem:[%s3759 + $0x4b8] sm:$0xff]
      %v3912 = vld [vmem:[%s3759 + $0x4c0] sm:$0xff]
      %v3913 = vld [vmem:[%s3759 + $0x4c8] sm:$0xff]
      %v3914 = vld [vmem:[%s3759 + $0x4d0] sm:$0xff]
      %v3915 = vld [vmem:[%s3759 + $0x4d8] sm:$0xff]
      %v3916 = vld [vmem:[%s3759 + $0x4e0] sm:$0xff]
      %v3917 = vld [vmem:[%s3759 + $0x4e8] sm:$0xff]
      %v3918 = vld [vmem:[%s3759 + $0x4f0] sm:$0xff]
      %v3919 = vld [vmem:[%s3759 + $0x4f8] sm:$0xff]
      %v3920 = vld [vmem:[%s3759 + $0x500] sm:$0xff]
      %v3921 = vld [vmem:[%s3759 + $0x508] sm:$0xff]
      %v3922 = vld [vmem:[%s3759 + $0x510] sm:$0xff]
      %v3923 = vld [vmem:[%s3759 + $0x518] sm:$0xff]
      %v3924 = vld [vmem:[%s3759 + $0x520] sm:$0xff]
      %v3925 = vld [vmem:[%s3759 + $0x528] sm:$0xff]
      %v3926 = vld [vmem:[%s3759 + $0x530] sm:$0xff]
      %v3927 = vld [vmem:[%s3759 + $0x538] sm:$0xff]
      %v3928 = vld [vmem:[%s3759 + $0x540] sm:$0xff]
      %v3929 = vld [vmem:[%s3759 + $0x548] sm:$0xff]
      %v3930 = vld [vmem:[%s3759 + $0x550] sm:$0xff]
      %v3931 = vld [vmem:[%s3759 + $0x558] sm:$0xff]
      %v3932 = vld [vmem:[%s3759 + $0x560] sm:$0xff]
      %v3933 = vld [vmem:[%s3759 + $0x568] sm:$0xff]
      %v3934 = vld [vmem:[%s3759 + $0x570] sm:$0xff]
      %v3935 = vld [vmem:[%s3759 + $0x578] sm:$0xff]
      %v3936 = vld [vmem:[%s3759 + $0x580] sm:$0xff]
      %v3937 = vld [vmem:[%s3759 + $0x588] sm:$0xff]
      %v3938 = vld [vmem:[%s3759 + $0x590] sm:$0xff]
      %v3939 = vld [vmem:[%s3759 + $0x598] sm:$0xff]
      %v3940 = vld [vmem:[%s3759 + $0x5a0] sm:$0xff]
      %v3941 = vld [vmem:[%s3759 + $0x5a8] sm:$0xff]
      %v3942 = vld [vmem:[%s3759 + $0x5b0] sm:$0xff]
      %v3943 = vld [vmem:[%s3759 + $0x5b8] sm:$0xff]
      %v3944 = vld [vmem:[%s3759 + $0x5c0] sm:$0xff]
      %v3945 = vld [vmem:[%s3759 + $0x5c8] sm:$0xff]
      %v3946 = vld [vmem:[%s3759 + $0x5d0] sm:$0xff]
      %v3947 = vld [vmem:[%s3759 + $0x5d8] sm:$0xff]
      %v3948 = vld [vmem:[%s3759 + $0x5e0] sm:$0xff]
      %v3949 = vld [vmem:[%s3759 + $0x5e8] sm:$0xff]
      %v3950 = vld [vmem:[%s3759 + $0x5f0] sm:$0xff]
      %v3951 = vld [vmem:[%s3759 + $0x5f8] sm:$0xff]
      %v3952 = vld [vmem:[%s3759 + $0x600] sm:$0xff]
      %v3953 = vld [vmem:[%s3759 + $0x608] sm:$0xff]
      %v3954 = vld [vmem:[%s3759 + $0x610] sm:$0xff]
      %v3955 = vld [vmem:[%s3759 + $0x618] sm:$0xff]
      %v3956 = vld [vmem:[%s3759 + $0x620] sm:$0xff]
      %v3957 = vld [vmem:[%s3759 + $0x628] sm:$0xff]
      %v3958 = vld [vmem:[%s3759 + $0x630] sm:$0xff]
      %v3959 = vld [vmem:[%s3759 + $0x638] sm:$0xff]
      %v3960 = vld [vmem:[%s3759 + $0x640] sm:$0xff]
      %v3961 = vld [vmem:[%s3759 + $0x648] sm:$0xff]
      %v3962 = vld [vmem:[%s3759 + $0x650] sm:$0xff]
      %v3963 = vld [vmem:[%s3759 + $0x658] sm:$0xff]
      %v3964 = vld [vmem:[%s3759 + $0x660] sm:$0xff]
      %v3965 = vld [vmem:[%s3759 + $0x668] sm:$0xff]
      %v3966 = vld [vmem:[%s3759 + $0x670] sm:$0xff]
      %v3967 = vld [vmem:[%s3759 + $0x678] sm:$0xff]
      %v3968 = vld [vmem:[%s3759 + $0x680] sm:$0xff]
      %v3969 = vld [vmem:[%s3759 + $0x688] sm:$0xff]
      %v3970 = vld [vmem:[%s3759 + $0x690] sm:$0xff]
      %v3971 = vld [vmem:[%s3759 + $0x698] sm:$0xff]
      %v3972 = vld [vmem:[%s3759 + $0x6a0] sm:$0xff]
      %v3973 = vld [vmem:[%s3759 + $0x6a8] sm:$0xff]
      %v3974 = vld [vmem:[%s3759 + $0x6b0] sm:$0xff]
      %v3975 = vld [vmem:[%s3759 + $0x6b8] sm:$0xff]
      %v3976 = vld [vmem:[%s3759 + $0x6c0] sm:$0xff]
      %v3977 = vld [vmem:[%s3759 + $0x6c8] sm:$0xff]
      %v3978 = vld [vmem:[%s3759 + $0x6d0] sm:$0xff]
      %v3979 = vld [vmem:[%s3759 + $0x6d8] sm:$0xff]
      %v3980 = vld [vmem:[%s3759 + $0x6e0] sm:$0xff]
      %v3981 = vld [vmem:[%s3759 + $0x6e8] sm:$0xff]
      %v3982 = vld [vmem:[%s3759 + $0x6f0] sm:$0xff]
      %v3983 = vld [vmem:[%s3759 + $0x6f8] sm:$0xff]
      %v3984 = vld [vmem:[%s3759 + $0x700] sm:$0xff]
      %v3985 = vld [vmem:[%s3759 + $0x708] sm:$0xff]
      %v3986 = vld [vmem:[%s3759 + $0x710] sm:$0xff]
      %v3987 = vld [vmem:[%s3759 + $0x718] sm:$0xff]
      %v3988 = vld [vmem:[%s3759 + $0x720] sm:$0xff]
      %v3989 = vld [vmem:[%s3759 + $0x728] sm:$0xff]
      %v3990 = vld [vmem:[%s3759 + $0x730] sm:$0xff]
      %v3991 = vld [vmem:[%s3759 + $0x738] sm:$0xff]
      %v3992 = vld [vmem:[%s3759 + $0x740] sm:$0xff]
      %v3993 = vld [vmem:[%s3759 + $0x748] sm:$0xff]
      %v3994 = vld [vmem:[%s3759 + $0x750] sm:$0xff]
      %v3995 = vld [vmem:[%s3759 + $0x758] sm:$0xff]
      %v3996 = vld [vmem:[%s3759 + $0x760] sm:$0xff]
      %v3997 = vld [vmem:[%s3759 + $0x768] sm:$0xff]
      %v3998 = vld [vmem:[%s3759 + $0x770] sm:$0xff]
      %v3999 = vld [vmem:[%s3759 + $0x778] sm:$0xff]
      %v4000 = vld [vmem:[%s3759 + $0x780] sm:$0xff]
      %v4001 = vld [vmem:[%s3759 + $0x788] sm:$0xff]
      %v4002 = vld [vmem:[%s3759 + $0x790] sm:$0xff]
      %v4003 = vld [vmem:[%s3759 + $0x798] sm:$0xff]
      %v4004 = vld [vmem:[%s3759 + $0x7a0] sm:$0xff]
      %v4005 = vld [vmem:[%s3759 + $0x7a8] sm:$0xff]
      %v4006 = vld [vmem:[%s3759 + $0x7b0] sm:$0xff]
      %v4007 = vld [vmem:[%s3759 + $0x7b8] sm:$0xff]
      %v4008 = vld [vmem:[%s3759 + $0x7c0] sm:$0xff]
      %v4009 = vld [vmem:[%s3759 + $0x7c8] sm:$0xff]
      %v4010 = vld [vmem:[%s3759 + $0x7d0] sm:$0xff]
      %v4011 = vld [vmem:[%s3759 + $0x7d8] sm:$0xff]
      %v4012 = vld [vmem:[%s3759 + $0x7e0] sm:$0xff]
      %v4013 = vld [vmem:[%s3759 + $0x7e8] sm:$0xff]
      %v4014 = vld [vmem:[%s3759 + $0x7f0] sm:$0xff]
      %v4015 = vld [vmem:[%s3759 + $0x7f8] sm:$0xff]
      %v4016 = vld [vmem:[%s3759 + $0x800] sm:$0xff]
      %v4017 = vld [vmem:[%s3759 + $0x808] sm:$0xff]
      %v4018 = vld [vmem:[%s3759 + $0x810] sm:$0xff]
      %v4019 = vld [vmem:[%s3759 + $0x818] sm:$0xff]
      %v4020 = vld [vmem:[%s3759 + $0x820] sm:$0xff]
      %v4021 = vld [vmem:[%s3759 + $0x828] sm:$0xff]
      %v4022 = vld [vmem:[%s3759 + $0x830] sm:$0xff]
      %v4023 = vld [vmem:[%s3759 + $0x838] sm:$0xff]
      %v4024 = vld [vmem:[%s3759 + $0x840] sm:$0xff]
      %v4025 = vld [vmem:[%s3759 + $0x848] sm:$0xff]
      %v4026 = vld [vmem:[%s3759 + $0x850] sm:$0xff]
      %v4027 = vld [vmem:[%s3759 + $0x858] sm:$0xff]
      %v4028 = vld [vmem:[%s3759 + $0x860] sm:$0xff]
      %v4029 = vld [vmem:[%s3759 + $0x868] sm:$0xff]
      %v4030 = vld [vmem:[%s3759 + $0x870] sm:$0xff]
      %v4031 = vld [vmem:[%s3759 + $0x878] sm:$0xff]
      %v4032 = vld [vmem:[%s3759 + $0x880] sm:$0xff]
      %v4033 = vld [vmem:[%s3759 + $0x888] sm:$0xff]
      %v4034 = vld [vmem:[%s3759 + $0x890] sm:$0xff]
      %v4035 = vld [vmem:[%s3759 + $0x898] sm:$0xff]
      %v4036 = vld [vmem:[%s3759 + $0x8a0] sm:$0xff]
      %v4037 = vld [vmem:[%s3759 + $0x8a8] sm:$0xff]
      %v4038 = vld [vmem:[%s3759 + $0x8b0] sm:$0xff]
      %v4039 = vld [vmem:[%s3759 + $0x8b8] sm:$0xff]
      %v4040 = vld [vmem:[%s3759 + $0x8c0] sm:$0xff]
      %v4041 = vld [vmem:[%s3759 + $0x8c8] sm:$0xff]
      %v4042 = vld [vmem:[%s3759 + $0x8d0] sm:$0xff]
      %v4043 = vld [vmem:[%s3759 + $0x8d8] sm:$0xff]
      %v4044 = vld [vmem:[%s3759 + $0x8e0] sm:$0xff]
      %v4045 = vld [vmem:[%s3759 + $0x8e8] sm:$0xff]
      %v4046 = vld [vmem:[%s3759 + $0x8f0] sm:$0xff]
      %v4047 = vld [vmem:[%s3759 + $0x8f8] sm:$0xff]
      %v4048 = vrot.slane %v2201, 2
      %v4049 = vrot.slane %v2206, 2
      %v4050 = vsel %vm787, %v4048, %v4049
      %v4051 = vrot.slane %v2202, 2
      %v4052 = vrot.slane %v2207, 2
      %v4053 = vsel %vm787, %v4051, %v4052
      %v4054 = vrot.slane %v2203, 2
      %v4055 = vrot.slane %v2208, 2
      %v4056 = vsel %vm787, %v4054, %v4055
      %v4057 = vrot.slane %v2204, 2
      %v4058 = vrot.slane %v2209, 2
      %v4059 = vsel %vm787, %v4057, %v4058
      %v4060 = vrot.slane %v2205, 2
      %v4061 = vrot.slane %v2210, 2
      %v4062 = vsel %vm787, %v4060, %v4061
      %v4071 = vsel %vm2826, %v4062, 0
      %v4073 = vsel %vm2826, %v4061, 0
      %4075 = vmatprep.subr.mxu0 %v3821
      %4076 = vmatpush1.msra.mxu0 %v3820
      %4077 = vmatprep.subr.mxu0 %v3817
      %4078 = vmatpush1.msra.mxu0 %v3816
      %4079 = vmatprep.subr.mxu0 %v3813
      %4080 = vmatpush1.msra.mxu0 %v3812
      %4081 = vmatprep.subr.mxu0 %v3809
      %4082 = vmatpush1.msra.mxu0 %v3808
      %4083 = vmatprep.subr.mxu0 %v3805
      %4084 = vmatpush1.msra.mxu0 %v3804
      %4085 = vmatprep.subr.mxu0 %v3801
      %4086 = vmatpush1.msra.mxu0 %v3800
      %4087 = vmatprep.subr.mxu0 %v3797
      %4088 = vmatpush1.msra.mxu0 %v3796
      %4089 = vmatprep.subr.mxu0 %v3793
      %4090 = vmatpush1.msra.mxu0 %v3792
      %4091 = vmatprep.subr.mxu0 %v3789
      %4092 = vmatpush1.msra.mxu0 %v3788
      %4093 = vmatprep.subr.mxu0 %v3785
      %4094 = vmatpush1.msra.mxu0 %v3784
      %4095 = vmatprep.subr.mxu0 %v3781
      %4096 = vmatpush1.msra.mxu0 %v3780
      %4097 = vmatprep.subr.mxu0 %v3777
      %4098 = vmatpush1.msra.mxu0 %v3776
      %4099 = vmatprep.subr.mxu0 %v3773
      %4100 = vmatpush1.msra.mxu0 %v3772
      %4101 = vmatprep.subr.mxu0 %v3769
      %4102 = vmatpush1.msra.mxu0 %v3768
      %4103 = vmatprep.subr.mxu0 %v3765
      %4104 = vmatpush1.msra.mxu0 %v3764
      %4105 = vmatprep.subr.mxu0 %v3761
      %4106 = vmatpush1.msra.mxu0 %v3760
      %4107 = vmatprep.subr.mxu0 %v3885
      %4108 = vmatpush2.msra.mxu0 %v3884
      %4109 = vmatprep.subr.mxu0 %v3881
      %4110 = vmatpush2.msra.mxu0 %v3880
      %4111 = vmatprep.subr.mxu0 %v3877
      %4112 = vmatpush2.msra.mxu0 %v3876
      %4113 = vmatprep.subr.mxu0 %v3873
      %4114 = vmatpush2.msra.mxu0 %v3872
      %4115 = vmatprep.subr.mxu0 %v3869
      %4116 = vmatpush2.msra.mxu0 %v3868
      %4117 = vmatprep.subr.mxu0 %v3865
      %4118 = vmatpush2.msra.mxu0 %v3864
      %4119 = vmatprep.subr.mxu0 %v3861
      %4120 = vmatpush2.msra.mxu0 %v3860
      %4121 = vmatprep.subr.mxu0 %v3857
      %4122 = vmatpush2.msra.mxu0 %v3856
      %4123 = vmatprep.subr.mxu0 %v3853
      %4124 = vmatpush2.msra.mxu0 %v3852
      %4125 = vmatprep.subr.mxu0 %v3849
      %4126 = vmatpush2.msra.mxu0 %v3848
      %4127 = vmatprep.subr.mxu0 %v3845
      %4128 = vmatpush2.msra.mxu0 %v3844
      %4129 = vmatprep.subr.mxu0 %v3841
      %4130 = vmatpush2.msra.mxu0 %v3840
      %4131 = vmatprep.subr.mxu0 %v3837
      %4132 = vmatpush2.msra.mxu0 %v3836
      %4133 = vmatprep.subr.mxu0 %v3833
      %4134 = vmatpush2.msra.mxu0 %v3832
      %4135 = vmatprep.subr.mxu0 %v3829
      %4136 = vmatpush2.msra.mxu0 %v3828
      %4137 = vmatprep.subr.mxu0 %v3825
      %4138 = vmatpush2.msra.mxu0 %v3824
      %4139 = vmatprep.mubr.f32.mxu0 %v4053
      %4140 = vmatmul.mubr.f32.gmra.mxu0 %v4050
      %v4141 = vpop.f32.mrf.mxu0
      %v4142 = vadd.f32 0.0, %v4141
      %v4143 = vpop.f32.mrf.mxu0
      %v4144 = vadd.f32 0.0, %v4143
      %4145 = vmatprep.mubr.f32.mxu0 %v4052
      %4146 = vmatmul.mubr.f32.gmra.mxu0 %v4049
      %v4147 = vpop.f32.mrf.mxu0
      %v4148 = vadd.f32 0.0, %v4147
      %v4149 = vpop.f32.mrf.mxu0
      %v4150 = vadd.f32 0.0, %v4149
      %4151 = vdwg.mxu0
      %4152 = vmatprep.subr.mxu0 %v3949
      %4153 = vmatpush1.msra.mxu0 %v3948
      %4154 = vmatprep.subr.mxu0 %v3945
      %4155 = vmatpush1.msra.mxu0 %v3944
      %4156 = vmatprep.subr.mxu0 %v3941
      %4157 = vmatpush1.msra.mxu0 %v3940
      %4158 = vmatprep.subr.mxu0 %v3937
      %4159 = vmatpush1.msra.mxu0 %v3936
      %4160 = vmatprep.subr.mxu0 %v3933
      %4161 = vmatpush1.msra.mxu0 %v3932
      %4162 = vmatprep.subr.mxu0 %v3929
      %4163 = vmatpush1.msra.mxu0 %v3928
      %4164 = vmatprep.subr.mxu0 %v3925
      %4165 = vmatpush1.msra.mxu0 %v3924
      %4166 = vmatprep.subr.mxu0 %v3921
      %4167 = vmatpush1.msra.mxu0 %v3920
      %4168 = vmatprep.subr.mxu0 %v3917
      %4169 = vmatpush1.msra.mxu0 %v3916
      %4170 = vmatprep.subr.mxu0 %v3913
      %4171 = vmatpush1.msra.mxu0 %v3912
      %4172 = vmatprep.subr.mxu0 %v3909
      %4173 = vmatpush1.msra.mxu0 %v3908
      %4174 = vmatprep.subr.mxu0 %v3905
      %4175 = vmatpush1.msra.mxu0 %v3904
      %4176 = vmatprep.subr.mxu0 %v3901
      %4177 = vmatpush1.msra.mxu0 %v3900
      %4178 = vmatprep.subr.mxu0 %v3897
      %4179 = vmatpush1.msra.mxu0 %v3896
      %4180 = vmatprep.subr.mxu0 %v3893
      %4181 = vmatpush1.msra.mxu0 %v3892
      %4182 = vmatprep.subr.mxu0 %v3889
      %4183 = vmatpush1.msra.mxu0 %v3888
      %4184 = vmatprep.subr.mxu0 %v4013
      %4185 = vmatpush2.msra.mxu0 %v4012
      %4186 = vmatprep.subr.mxu0 %v4009
      %4187 = vmatpush2.msra.mxu0 %v4008
      %4188 = vmatprep.subr.mxu0 %v4005
      %4189 = vmatpush2.msra.mxu0 %v4004
      %4190 = vmatprep.subr.mxu0 %v4001
      %4191 = vmatpush2.msra.mxu0 %v4000
      %4192 = vmatprep.subr.mxu0 %v3997
      %4193 = vmatpush2.msra.mxu0 %v3996
      %4194 = vmatprep.subr.mxu0 %v3993
      %4195 = vmatpush2.msra.mxu0 %v3992
      %4196 = vmatprep.subr.mxu0 %v3989
      %4197 = vmatpush2.msra.mxu0 %v3988
      %4198 = vmatprep.subr.mxu0 %v3985
      %4199 = vmatpush2.msra.mxu0 %v3984
      %4200 = vmatprep.subr.mxu0 %v3981
      %4201 = vmatpush2.msra.mxu0 %v3980
      %4202 = vmatprep.subr.mxu0 %v3977
      %4203 = vmatpush2.msra.mxu0 %v3976
      %4204 = vmatprep.subr.mxu0 %v3973
      %4205 = vmatpush2.msra.mxu0 %v3972
      %4206 = vmatprep.subr.mxu0 %v3969
      %4207 = vmatpush2.msra.mxu0 %v3968
      %4208 = vmatprep.subr.mxu0 %v3965
      %4209 = vmatpush2.msra.mxu0 %v3964
      %4210 = vmatprep.subr.mxu0 %v3961
      %4211 = vmatpush2.msra.mxu0 %v3960
      %4212 = vmatprep.subr.mxu0 %v3957
      %4213 = vmatpush2.msra.mxu0 %v3956
      %4214 = vmatprep.subr.mxu0 %v3953
      %4215 = vmatpush2.msra.mxu0 %v3952
      %4216 = vmatprep.mubr.f32.mxu0 %v4059
      %4217 = vmatmul.mubr.f32.gmra.mxu0 %v4056
      %v4218 = vpop.f32.mrf.mxu0
      %v4219 = vadd.f32 %v4142, %v4218
      %v4220 = vpop.f32.mrf.mxu0
      %v4221 = vadd.f32 %v4144, %v4220
      %4222 = vmatprep.mubr.f32.mxu0 %v4058
      %4223 = vmatmul.mubr.f32.gmra.mxu0 %v4055
      %v4224 = vpop.f32.mrf.mxu0
      %v4225 = vadd.f32 %v4148, %v4224
      %v4226 = vpop.f32.mrf.mxu0
      %v4227 = vadd.f32 %v4150, %v4226
      %4228 = vdwg.mxu0
      %4229 = vmatprep.subr.mxu0 0.0
      %4230 = vmatpush1.msra.mxu0 0.0
      %4231 = vmatprep.subr.mxu0 0.0
      %4232 = vmatpush1.msra.mxu0 0.0
      %4233 = vmatprep.subr.mxu0 0.0
      %4234 = vmatpush1.msra.mxu0 0.0
      %4235 = vmatprep.subr.mxu0 0.0
      %4236 = vmatpush1.msra.mxu0 0.0
      %4237 = vmatprep.subr.mxu0 0.0
      %4238 = vmatpush1.msra.mxu0 0.0
      %4239 = vmatprep.subr.mxu0 0.0
      %4240 = vmatpush1.msra.mxu0 0.0
      %4241 = vmatprep.subr.mxu0 0.0
      %4242 = vmatpush1.msra.mxu0 0.0
      %4243 = vmatprep.subr.mxu0 0.0
      %4244 = vmatpush1.msra.mxu0 0.0
      %4245 = vmatprep.subr.mxu0 %v4045
      %4246 = vmatpush1.msra.mxu0 %v4044
      %4247 = vmatprep.subr.mxu0 %v4041
      %4248 = vmatpush1.msra.mxu0 %v4040
      %4249 = vmatprep.subr.mxu0 %v4037
      %4250 = vmatpush1.msra.mxu0 %v4036
      %4251 = vmatprep.subr.mxu0 %v4033
      %4252 = vmatpush1.msra.mxu0 %v4032
      %4253 = vmatprep.subr.mxu0 %v4029
      %4254 = vmatpush1.msra.mxu0 %v4028
      %4255 = vmatprep.subr.mxu0 %v4025
      %4256 = vmatpush1.msra.mxu0 %v4024
      %4257 = vmatprep.subr.mxu0 %v4021
      %4258 = vmatpush1.msra.mxu0 %v4020
      %4259 = vmatprep.subr.mxu0 %v4017
      %4260 = vmatpush1.msra.mxu0 %v4016
      %4261 = vmatprep.subr.mxu0 0.0
      %4262 = vmatpush2.msra.mxu0 0.0
      %4263 = vmatprep.subr.mxu0 0.0
      %4264 = vmatpush2.msra.mxu0 0.0
      %4265 = vmatprep.subr.mxu0 0.0
      %4266 = vmatpush2.msra.mxu0 0.0
      %4267 = vmatprep.subr.mxu0 0.0
      %4268 = vmatpush2.msra.mxu0 0.0
      %4269 = vmatprep.subr.mxu0 0.0
      %4270 = vmatpush2.msra.mxu0 0.0
      %4271 = vmatprep.subr.mxu0 0.0
      %4272 = vmatpush2.msra.mxu0 0.0
      %4273 = vmatprep.subr.mxu0 0.0
      %4274 = vmatpush2.msra.mxu0 0.0
      %4275 = vmatprep.subr.mxu0 0.0
      %4276 = vmatpush2.msra.mxu0 0.0
      %4277 = vmatprep.subr.mxu0 0.0
      %4278 = vmatpush2.msra.mxu0 0.0
      %4279 = vmatprep.subr.mxu0 0.0
      %4280 = vmatpush2.msra.mxu0 0.0
      %4281 = vmatprep.subr.mxu0 0.0
      %4282 = vmatpush2.msra.mxu0 0.0
      %4283 = vmatprep.subr.mxu0 0.0
      %4284 = vmatpush2.msra.mxu0 0.0
      %4285 = vmatprep.subr.mxu0 0.0
      %4286 = vmatpush2.msra.mxu0 0.0
      %4287 = vmatprep.subr.mxu0 0.0
      %4288 = vmatpush2.msra.mxu0 0.0
      %4289 = vmatprep.subr.mxu0 0.0
      %4290 = vmatpush2.msra.mxu0 0.0
      %4291 = vmatprep.subr.mxu0 0.0
      %4292 = vmatpush2.msra.mxu0 0.0
      %4293 = vmatprep.mubr.f32.mxu0 0.0
      %4294 = vmatmul.mubr.f32.gmra.mxu0 %v4071
      %v4295 = vpop.f32.mrf.mxu0
      %v4296 = vadd.f32 %v4219, %v4295
      %v4297 = vpop.f32.mrf.mxu0
      %v4298 = vadd.f32 %v4221, %v4297
      %4299 = vmatprep.mubr.f32.mxu0 0.0
      %4300 = vmatmul.mubr.f32.gmra.mxu0 %v4073
      %v4301 = vpop.f32.mrf.mxu0
      %v4302 = vadd.f32 %v4225, %v4301
      %v4303 = vpop.f32.mrf.mxu0
      %v4304 = vadd.f32 %v4227, %v4303
      %4305 = vdwg.mxu0
      %4306 = vmatprep.subr.mxu0 %v3823
      %4307 = vmatpush1.msra.mxu0 %v3822
      %4308 = vmatprep.subr.mxu0 %v3819
      %4309 = vmatpush1.msra.mxu0 %v3818
      %4310 = vmatprep.subr.mxu0 %v3815
      %4311 = vmatpush1.msra.mxu0 %v3814
      %4312 = vmatprep.subr.mxu0 %v3811
      %4313 = vmatpush1.msra.mxu0 %v3810
      %4314 = vmatprep.subr.mxu0 %v3807
      %4315 = vmatpush1.msra.mxu0 %v3806
      %4316 = vmatprep.subr.mxu0 %v3803
      %4317 = vmatpush1.msra.mxu0 %v3802
      %4318 = vmatprep.subr.mxu0 %v3799
      %4319 = vmatpush1.msra.mxu0 %v3798
      %4320 = vmatprep.subr.mxu0 %v3795
      %4321 = vmatpush1.msra.mxu0 %v3794
      %4322 = vmatprep.subr.mxu0 %v3791
      %4323 = vmatpush1.msra.mxu0 %v3790
      %4324 = vmatprep.subr.mxu0 %v3787
      %4325 = vmatpush1.msra.mxu0 %v3786
      %4326 = vmatprep.subr.mxu0 %v3783
      %4327 = vmatpush1.msra.mxu0 %v3782
      %4328 = vmatprep.subr.mxu0 %v3779
      %4329 = vmatpush1.msra.mxu0 %v3778
      %4330 = vmatprep.subr.mxu0 %v3775
      %4331 = vmatpush1.msra.mxu0 %v3774
      %4332 = vmatprep.subr.mxu0 %v3771
      %4333 = vmatpush1.msra.mxu0 %v3770
      %4334 = vmatprep.subr.mxu0 %v3767
      %4335 = vmatpush1.msra.mxu0 %v3766
      %4336 = vmatprep.subr.mxu0 %v3763
      %4337 = vmatpush1.msra.mxu0 %v3762
      %4338 = vmatprep.subr.mxu0 %v3887
      %4339 = vmatpush2.msra.mxu0 %v3886
      %4340 = vmatprep.subr.mxu0 %v3883
      %4341 = vmatpush2.msra.mxu0 %v3882
      %4342 = vmatprep.subr.mxu0 %v3879
      %4343 = vmatpush2.msra.mxu0 %v3878
      %4344 = vmatprep.subr.mxu0 %v3875
      %4345 = vmatpush2.msra.mxu0 %v3874
      %4346 = vmatprep.subr.mxu0 %v3871
      %4347 = vmatpush2.msra.mxu0 %v3870
      %4348 = vmatprep.subr.mxu0 %v3867
      %4349 = vmatpush2.msra.mxu0 %v3866
      %4350 = vmatprep.subr.mxu0 %v3863
      %4351 = vmatpush2.msra.mxu0 %v3862
      %4352 = vmatprep.subr.mxu0 %v3859
      %4353 = vmatpush2.msra.mxu0 %v3858
      %4354 = vmatprep.subr.mxu0 %v3855
      %4355 = vmatpush2.msra.mxu0 %v3854
      %4356 = vmatprep.subr.mxu0 %v3851
      %4357 = vmatpush2.msra.mxu0 %v3850
      %4358 = vmatprep.subr.mxu0 %v3847
      %4359 = vmatpush2.msra.mxu0 %v3846
      %4360 = vmatprep.subr.mxu0 %v3843
      %4361 = vmatpush2.msra.mxu0 %v3842
      %4362 = vmatprep.subr.mxu0 %v3839
      %4363 = vmatpush2.msra.mxu0 %v3838
      %4364 = vmatprep.subr.mxu0 %v3835
      %4365 = vmatpush2.msra.mxu0 %v3834
      %4366 = vmatprep.subr.mxu0 %v3831
      %4367 = vmatpush2.msra.mxu0 %v3830
      %4368 = vmatprep.subr.mxu0 %v3827
      %4369 = vmatpush2.msra.mxu0 %v3826
      %4370 = vmatprep.mubr.f32.mxu0 %v4053
      %4371 = vmatmul.mubr.f32.gmra.mxu0 %v4050
      %v4372 = vpop.f32.mrf.mxu0
      %v4373 = vadd.f32 0.0, %v4372
      %v4374 = vpop.f32.mrf.mxu0
      %v4375 = vadd.f32 0.0, %v4374
      %4376 = vmatprep.mubr.f32.mxu0 %v4052
      %4377 = vmatmul.mubr.f32.gmra.mxu0 %v4049
      %v4378 = vpop.f32.mrf.mxu0
      %v4379 = vadd.f32 0.0, %v4378
      %v4380 = vpop.f32.mrf.mxu0
      %v4381 = vadd.f32 0.0, %v4380
      %4382 = vdwg.mxu0
      %4383 = vmatprep.subr.mxu0 %v3951
      %4384 = vmatpush1.msra.mxu0 %v3950
      %4385 = vmatprep.subr.mxu0 %v3947
      %4386 = vmatpush1.msra.mxu0 %v3946
      %4387 = vmatprep.subr.mxu0 %v3943
      %4388 = vmatpush1.msra.mxu0 %v3942
      %4389 = vmatprep.subr.mxu0 %v3939
      %4390 = vmatpush1.msra.mxu0 %v3938
      %4391 = vmatprep.subr.mxu0 %v3935
      %4392 = vmatpush1.msra.mxu0 %v3934
      %4393 = vmatprep.subr.mxu0 %v3931
      %4394 = vmatpush1.msra.mxu0 %v3930
      %4395 = vmatprep.subr.mxu0 %v3927
      %4396 = vmatpush1.msra.mxu0 %v3926
      %4397 = vmatprep.subr.mxu0 %v3923
      %4398 = vmatpush1.msra.mxu0 %v3922
      %4399 = vmatprep.subr.mxu0 %v3919
      %4400 = vmatpush1.msra.mxu0 %v3918
      %4401 = vmatprep.subr.mxu0 %v3915
      %4402 = vmatpush1.msra.mxu0 %v3914
      %4403 = vmatprep.subr.mxu0 %v3911
      %4404 = vmatpush1.msra.mxu0 %v3910
      %4405 = vmatprep.subr.mxu0 %v3907
      %4406 = vmatpush1.msra.mxu0 %v3906
      %4407 = vmatprep.subr.mxu0 %v3903
      %4408 = vmatpush1.msra.mxu0 %v3902
      %4409 = vmatprep.subr.mxu0 %v3899
      %4410 = vmatpush1.msra.mxu0 %v3898
      %4411 = vmatprep.subr.mxu0 %v3895
      %4412 = vmatpush1.msra.mxu0 %v3894
      %4413 = vmatprep.subr.mxu0 %v3891
      %4414 = vmatpush1.msra.mxu0 %v3890
      %4415 = vmatprep.subr.mxu0 %v4015
      %4416 = vmatpush2.msra.mxu0 %v4014
      %4417 = vmatprep.subr.mxu0 %v4011
      %4418 = vmatpush2.msra.mxu0 %v4010
      %4419 = vmatprep.subr.mxu0 %v4007
      %4420 = vmatpush2.msra.mxu0 %v4006
      %4421 = vmatprep.subr.mxu0 %v4003
      %4422 = vmatpush2.msra.mxu0 %v4002
      %4423 = vmatprep.subr.mxu0 %v3999
      %4424 = vmatpush2.msra.mxu0 %v3998
      %4425 = vmatprep.subr.mxu0 %v3995
      %4426 = vmatpush2.msra.mxu0 %v3994
      %4427 = vmatprep.subr.mxu0 %v3991
      %4428 = vmatpush2.msra.mxu0 %v3990
      %4429 = vmatprep.subr.mxu0 %v3987
      %4430 = vmatpush2.msra.mxu0 %v3986
      %4431 = vmatprep.subr.mxu0 %v3983
      %4432 = vmatpush2.msra.mxu0 %v3982
      %4433 = vmatprep.subr.mxu0 %v3979
      %4434 = vmatpush2.msra.mxu0 %v3978
      %4435 = vmatprep.subr.mxu0 %v3975
      %4436 = vmatpush2.msra.mxu0 %v3974
      %4437 = vmatprep.subr.mxu0 %v3971
      %4438 = vmatpush2.msra.mxu0 %v3970
      %4439 = vmatprep.subr.mxu0 %v3967
      %4440 = vmatpush2.msra.mxu0 %v3966
      %4441 = vmatprep.subr.mxu0 %v3963
      %4442 = vmatpush2.msra.mxu0 %v3962
      %4443 = vmatprep.subr.mxu0 %v3959
      %4444 = vmatpush2.msra.mxu0 %v3958
      %4445 = vmatprep.subr.mxu0 %v3955
      %4446 = vmatpush2.msra.mxu0 %v3954
      %4447 = vmatprep.mubr.f32.mxu0 %v4059
      %4448 = vmatmul.mubr.f32.gmra.mxu0 %v4056
      %v4449 = vpop.f32.mrf.mxu0
      %v4450 = vadd.f32 %v4373, %v4449
      %v4451 = vpop.f32.mrf.mxu0
      %v4452 = vadd.f32 %v4375, %v4451
      %4453 = vmatprep.mubr.f32.mxu0 %v4058
      %4454 = vmatmul.mubr.f32.gmra.mxu0 %v4055
      %v4455 = vpop.f32.mrf.mxu0
      %v4456 = vadd.f32 %v4379, %v4455
      %v4457 = vpop.f32.mrf.mxu0
      %v4458 = vadd.f32 %v4381, %v4457
      %4459 = vdwg.mxu0
      %4460 = vmatprep.subr.mxu0 0.0
      %4461 = vmatpush1.msra.mxu0 0.0
      %4462 = vmatprep.subr.mxu0 0.0
      %4463 = vmatpush1.msra.mxu0 0.0
      %4464 = vmatprep.subr.mxu0 0.0
      %4465 = vmatpush1.msra.mxu0 0.0
      %4466 = vmatprep.subr.mxu0 0.0
      %4467 = vmatpush1.msra.mxu0 0.0
      %4468 = vmatprep.subr.mxu0 0.0
      %4469 = vmatpush1.msra.mxu0 0.0
      %4470 = vmatprep.subr.mxu0 0.0
      %4471 = vmatpush1.msra.mxu0 0.0
      %4472 = vmatprep.subr.mxu0 0.0
      %4473 = vmatpush1.msra.mxu0 0.0
      %4474 = vmatprep.subr.mxu0 0.0
      %4475 = vmatpush1.msra.mxu0 0.0
      %4476 = vmatprep.subr.mxu0 %v4047
      %4477 = vmatpush1.msra.mxu0 %v4046
      %4478 = vmatprep.subr.mxu0 %v4043
      %4479 = vmatpush1.msra.mxu0 %v4042
      %4480 = vmatprep.subr.mxu0 %v4039
      %4481 = vmatpush1.msra.mxu0 %v4038
      %4482 = vmatprep.subr.mxu0 %v4035
      %4483 = vmatpush1.msra.mxu0 %v4034
      %4484 = vmatprep.subr.mxu0 %v4031
      %4485 = vmatpush1.msra.mxu0 %v4030
      %4486 = vmatprep.subr.mxu0 %v4027
      %4487 = vmatpush1.msra.mxu0 %v4026
      %4488 = vmatprep.subr.mxu0 %v4023
      %4489 = vmatpush1.msra.mxu0 %v4022
      %4490 = vmatprep.subr.mxu0 %v4019
      %4491 = vmatpush1.msra.mxu0 %v4018
      %4492 = vmatprep.subr.mxu0 0.0
      %4493 = vmatpush2.msra.mxu0 0.0
      %4494 = vmatprep.subr.mxu0 0.0
      %4495 = vmatpush2.msra.mxu0 0.0
      %4496 = vmatprep.subr.mxu0 0.0
      %4497 = vmatpush2.msra.mxu0 0.0
      %4498 = vmatprep.subr.mxu0 0.0
      %4499 = vmatpush2.msra.mxu0 0.0
      %4500 = vmatprep.subr.mxu0 0.0
      %4501 = vmatpush2.msra.mxu0 0.0
      %4502 = vmatprep.subr.mxu0 0.0
      %4503 = vmatpush2.msra.mxu0 0.0
      %4504 = vmatprep.subr.mxu0 0.0
      %4505 = vmatpush2.msra.mxu0 0.0
      %4506 = vmatprep.subr.mxu0 0.0
      %4507 = vmatpush2.msra.mxu0 0.0
      %4508 = vmatprep.subr.mxu0 0.0
      %4509 = vmatpush2.msra.mxu0 0.0
      %4510 = vmatprep.subr.mxu0 0.0
      %4511 = vmatpush2.msra.mxu0 0.0
      %4512 = vmatprep.subr.mxu0 0.0
      %4513 = vmatpush2.msra.mxu0 0.0
      %4514 = vmatprep.subr.mxu0 0.0
      %4515 = vmatpush2.msra.mxu0 0.0
      %4516 = vmatprep.subr.mxu0 0.0
      %4517 = vmatpush2.msra.mxu0 0.0
      %4518 = vmatprep.subr.mxu0 0.0
      %4519 = vmatpush2.msra.mxu0 0.0
      %4520 = vmatprep.subr.mxu0 0.0
      %4521 = vmatpush2.msra.mxu0 0.0
      %4522 = vmatprep.subr.mxu0 0.0
      %4523 = vmatpush2.msra.mxu0 0.0
      %4524 = vmatprep.mubr.f32.mxu0 0.0
      %4525 = vmatmul.mubr.f32.gmra.mxu0 %v4071
      %v4526 = vpop.f32.mrf.mxu0
      %v4527 = vadd.f32 %v4450, %v4526
      %v4528 = vpop.f32.mrf.mxu0
      %v4529 = vadd.f32 %v4452, %v4528
      %4530 = vmatprep.mubr.f32.mxu0 0.0
      %4531 = vmatmul.mubr.f32.gmra.mxu0 %v4073
      %v4532 = vpop.f32.mrf.mxu0
      %v4533 = vadd.f32 %v4456, %v4532
      %v4534 = vpop.f32.mrf.mxu0
      %v4535 = vadd.f32 %v4458, %v4534
      %4536 = vdwg.mxu0
      %v4537 = vadd.f32 %v3518, %v4296
      %v4538 = vadd.f32 %v3520, %v4298
      %v4539 = vadd.f32 %v3749, %v4527
      %v4540 = vadd.f32 %v3751, %v4529
      %v4541 = vadd.f32 %v3524, %v4302
      %v4542 = vadd.f32 %v3526, %v4304
      %v4543 = vadd.f32 %v3755, %v4533
      %v4544 = vadd.f32 %v3757, %v4535
      %s4545 = scalar_lea.vmem %s2, 6912
      %v4546 = vld [vmem:[%s4545] sm:$0xff]
      %v4547 = vld [vmem:[%s4545 + $0x8] sm:$0xff]
      %v4548 = vld [vmem:[%s4545 + $0x10] sm:$0xff]
      %v4549 = vld [vmem:[%s4545 + $0x18] sm:$0xff]
      %v4550 = vld [vmem:[%s4545 + $0x20] sm:$0xff]
      %v4551 = vld [vmem:[%s4545 + $0x28] sm:$0xff]
      %v4552 = vld [vmem:[%s4545 + $0x30] sm:$0xff]
      %v4553 = vld [vmem:[%s4545 + $0x38] sm:$0xff]
      %v4554 = vld [vmem:[%s4545 + $0x40] sm:$0xff]
      %v4555 = vld [vmem:[%s4545 + $0x48] sm:$0xff]
      %v4556 = vld [vmem:[%s4545 + $0x50] sm:$0xff]
      %v4557 = vld [vmem:[%s4545 + $0x58] sm:$0xff]
      %v4558 = vld [vmem:[%s4545 + $0x60] sm:$0xff]
      %v4559 = vld [vmem:[%s4545 + $0x68] sm:$0xff]
      %v4560 = vld [vmem:[%s4545 + $0x70] sm:$0xff]
      %v4561 = vld [vmem:[%s4545 + $0x78] sm:$0xff]
      %v4562 = vld [vmem:[%s4545 + $0x80] sm:$0xff]
      %v4563 = vld [vmem:[%s4545 + $0x88] sm:$0xff]
      %v4564 = vld [vmem:[%s4545 + $0x90] sm:$0xff]
      %v4565 = vld [vmem:[%s4545 + $0x98] sm:$0xff]
      %v4566 = vld [vmem:[%s4545 + $0xa0] sm:$0xff]
      %v4567 = vld [vmem:[%s4545 + $0xa8] sm:$0xff]
      %v4568 = vld [vmem:[%s4545 + $0xb0] sm:$0xff]
      %v4569 = vld [vmem:[%s4545 + $0xb8] sm:$0xff]
      %v4570 = vld [vmem:[%s4545 + $0xc0] sm:$0xff]
      %v4571 = vld [vmem:[%s4545 + $0xc8] sm:$0xff]
      %v4572 = vld [vmem:[%s4545 + $0xd0] sm:$0xff]
      %v4573 = vld [vmem:[%s4545 + $0xd8] sm:$0xff]
      %v4574 = vld [vmem:[%s4545 + $0xe0] sm:$0xff]
      %v4575 = vld [vmem:[%s4545 + $0xe8] sm:$0xff]
      %v4576 = vld [vmem:[%s4545 + $0xf0] sm:$0xff]
      %v4577 = vld [vmem:[%s4545 + $0xf8] sm:$0xff]
      %v4578 = vld [vmem:[%s4545 + $0x100] sm:$0xff]
      %v4579 = vld [vmem:[%s4545 + $0x108] sm:$0xff]
      %v4580 = vld [vmem:[%s4545 + $0x110] sm:$0xff]
      %v4581 = vld [vmem:[%s4545 + $0x118] sm:$0xff]
      %v4582 = vld [vmem:[%s4545 + $0x120] sm:$0xff]
      %v4583 = vld [vmem:[%s4545 + $0x128] sm:$0xff]
      %v4584 = vld [vmem:[%s4545 + $0x130] sm:$0xff]
      %v4585 = vld [vmem:[%s4545 + $0x138] sm:$0xff]
      %v4586 = vld [vmem:[%s4545 + $0x140] sm:$0xff]
      %v4587 = vld [vmem:[%s4545 + $0x148] sm:$0xff]
      %v4588 = vld [vmem:[%s4545 + $0x150] sm:$0xff]
      %v4589 = vld [vmem:[%s4545 + $0x158] sm:$0xff]
      %v4590 = vld [vmem:[%s4545 + $0x160] sm:$0xff]
      %v4591 = vld [vmem:[%s4545 + $0x168] sm:$0xff]
      %v4592 = vld [vmem:[%s4545 + $0x170] sm:$0xff]
      %v4593 = vld [vmem:[%s4545 + $0x178] sm:$0xff]
      %v4594 = vld [vmem:[%s4545 + $0x180] sm:$0xff]
      %v4595 = vld [vmem:[%s4545 + $0x188] sm:$0xff]
      %v4596 = vld [vmem:[%s4545 + $0x190] sm:$0xff]
      %v4597 = vld [vmem:[%s4545 + $0x198] sm:$0xff]
      %v4598 = vld [vmem:[%s4545 + $0x1a0] sm:$0xff]
      %v4599 = vld [vmem:[%s4545 + $0x1a8] sm:$0xff]
      %v4600 = vld [vmem:[%s4545 + $0x1b0] sm:$0xff]
      %v4601 = vld [vmem:[%s4545 + $0x1b8] sm:$0xff]
      %v4602 = vld [vmem:[%s4545 + $0x1c0] sm:$0xff]
      %v4603 = vld [vmem:[%s4545 + $0x1c8] sm:$0xff]
      %v4604 = vld [vmem:[%s4545 + $0x1d0] sm:$0xff]
      %v4605 = vld [vmem:[%s4545 + $0x1d8] sm:$0xff]
      %v4606 = vld [vmem:[%s4545 + $0x1e0] sm:$0xff]
      %v4607 = vld [vmem:[%s4545 + $0x1e8] sm:$0xff]
      %v4608 = vld [vmem:[%s4545 + $0x1f0] sm:$0xff]
      %v4609 = vld [vmem:[%s4545 + $0x1f8] sm:$0xff]
      %v4610 = vld [vmem:[%s4545 + $0x200] sm:$0xff]
      %v4611 = vld [vmem:[%s4545 + $0x208] sm:$0xff]
      %v4612 = vld [vmem:[%s4545 + $0x210] sm:$0xff]
      %v4613 = vld [vmem:[%s4545 + $0x218] sm:$0xff]
      %v4614 = vld [vmem:[%s4545 + $0x220] sm:$0xff]
      %v4615 = vld [vmem:[%s4545 + $0x228] sm:$0xff]
      %v4616 = vld [vmem:[%s4545 + $0x230] sm:$0xff]
      %v4617 = vld [vmem:[%s4545 + $0x238] sm:$0xff]
      %v4618 = vld [vmem:[%s4545 + $0x240] sm:$0xff]
      %v4619 = vld [vmem:[%s4545 + $0x248] sm:$0xff]
      %v4620 = vld [vmem:[%s4545 + $0x250] sm:$0xff]
      %v4621 = vld [vmem:[%s4545 + $0x258] sm:$0xff]
      %v4622 = vld [vmem:[%s4545 + $0x260] sm:$0xff]
      %v4623 = vld [vmem:[%s4545 + $0x268] sm:$0xff]
      %v4624 = vld [vmem:[%s4545 + $0x270] sm:$0xff]
      %v4625 = vld [vmem:[%s4545 + $0x278] sm:$0xff]
      %v4626 = vld [vmem:[%s4545 + $0x280] sm:$0xff]
      %v4627 = vld [vmem:[%s4545 + $0x288] sm:$0xff]
      %v4628 = vld [vmem:[%s4545 + $0x290] sm:$0xff]
      %v4629 = vld [vmem:[%s4545 + $0x298] sm:$0xff]
      %v4630 = vld [vmem:[%s4545 + $0x2a0] sm:$0xff]
      %v4631 = vld [vmem:[%s4545 + $0x2a8] sm:$0xff]
      %v4632 = vld [vmem:[%s4545 + $0x2b0] sm:$0xff]
      %v4633 = vld [vmem:[%s4545 + $0x2b8] sm:$0xff]
      %v4634 = vld [vmem:[%s4545 + $0x2c0] sm:$0xff]
      %v4635 = vld [vmem:[%s4545 + $0x2c8] sm:$0xff]
      %v4636 = vld [vmem:[%s4545 + $0x2d0] sm:$0xff]
      %v4637 = vld [vmem:[%s4545 + $0x2d8] sm:$0xff]
      %v4638 = vld [vmem:[%s4545 + $0x2e0] sm:$0xff]
      %v4639 = vld [vmem:[%s4545 + $0x2e8] sm:$0xff]
      %v4640 = vld [vmem:[%s4545 + $0x2f0] sm:$0xff]
      %v4641 = vld [vmem:[%s4545 + $0x2f8] sm:$0xff]
      %v4642 = vld [vmem:[%s4545 + $0x300] sm:$0xff]
      %v4643 = vld [vmem:[%s4545 + $0x308] sm:$0xff]
      %v4644 = vld [vmem:[%s4545 + $0x310] sm:$0xff]
      %v4645 = vld [vmem:[%s4545 + $0x318] sm:$0xff]
      %v4646 = vld [vmem:[%s4545 + $0x320] sm:$0xff]
      %v4647 = vld [vmem:[%s4545 + $0x328] sm:$0xff]
      %v4648 = vld [vmem:[%s4545 + $0x330] sm:$0xff]
      %v4649 = vld [vmem:[%s4545 + $0x338] sm:$0xff]
      %v4650 = vld [vmem:[%s4545 + $0x340] sm:$0xff]
      %v4651 = vld [vmem:[%s4545 + $0x348] sm:$0xff]
      %v4652 = vld [vmem:[%s4545 + $0x350] sm:$0xff]
      %v4653 = vld [vmem:[%s4545 + $0x358] sm:$0xff]
      %v4654 = vld [vmem:[%s4545 + $0x360] sm:$0xff]
      %v4655 = vld [vmem:[%s4545 + $0x368] sm:$0xff]
      %v4656 = vld [vmem:[%s4545 + $0x370] sm:$0xff]
      %v4657 = vld [vmem:[%s4545 + $0x378] sm:$0xff]
      %v4658 = vld [vmem:[%s4545 + $0x380] sm:$0xff]
      %v4659 = vld [vmem:[%s4545 + $0x388] sm:$0xff]
      %v4660 = vld [vmem:[%s4545 + $0x390] sm:$0xff]
      %v4661 = vld [vmem:[%s4545 + $0x398] sm:$0xff]
      %v4662 = vld [vmem:[%s4545 + $0x3a0] sm:$0xff]
      %v4663 = vld [vmem:[%s4545 + $0x3a8] sm:$0xff]
      %v4664 = vld [vmem:[%s4545 + $0x3b0] sm:$0xff]
      %v4665 = vld [vmem:[%s4545 + $0x3b8] sm:$0xff]
      %v4666 = vld [vmem:[%s4545 + $0x3c0] sm:$0xff]
      %v4667 = vld [vmem:[%s4545 + $0x3c8] sm:$0xff]
      %v4668 = vld [vmem:[%s4545 + $0x3d0] sm:$0xff]
      %v4669 = vld [vmem:[%s4545 + $0x3d8] sm:$0xff]
      %v4670 = vld [vmem:[%s4545 + $0x3e0] sm:$0xff]
      %v4671 = vld [vmem:[%s4545 + $0x3e8] sm:$0xff]
      %v4672 = vld [vmem:[%s4545 + $0x3f0] sm:$0xff]
      %v4673 = vld [vmem:[%s4545 + $0x3f8] sm:$0xff]
      %v4674 = vld [vmem:[%s4545 + $0x400] sm:$0xff]
      %v4675 = vld [vmem:[%s4545 + $0x408] sm:$0xff]
      %v4676 = vld [vmem:[%s4545 + $0x410] sm:$0xff]
      %v4677 = vld [vmem:[%s4545 + $0x418] sm:$0xff]
      %v4678 = vld [vmem:[%s4545 + $0x420] sm:$0xff]
      %v4679 = vld [vmem:[%s4545 + $0x428] sm:$0xff]
      %v4680 = vld [vmem:[%s4545 + $0x430] sm:$0xff]
      %v4681 = vld [vmem:[%s4545 + $0x438] sm:$0xff]
      %v4682 = vld [vmem:[%s4545 + $0x440] sm:$0xff]
      %v4683 = vld [vmem:[%s4545 + $0x448] sm:$0xff]
      %v4684 = vld [vmem:[%s4545 + $0x450] sm:$0xff]
      %v4685 = vld [vmem:[%s4545 + $0x458] sm:$0xff]
      %v4686 = vld [vmem:[%s4545 + $0x460] sm:$0xff]
      %v4687 = vld [vmem:[%s4545 + $0x468] sm:$0xff]
      %v4688 = vld [vmem:[%s4545 + $0x470] sm:$0xff]
      %v4689 = vld [vmem:[%s4545 + $0x478] sm:$0xff]
      %v4690 = vld [vmem:[%s4545 + $0x480] sm:$0xff]
      %v4691 = vld [vmem:[%s4545 + $0x488] sm:$0xff]
      %v4692 = vld [vmem:[%s4545 + $0x490] sm:$0xff]
      %v4693 = vld [vmem:[%s4545 + $0x498] sm:$0xff]
      %v4694 = vld [vmem:[%s4545 + $0x4a0] sm:$0xff]
      %v4695 = vld [vmem:[%s4545 + $0x4a8] sm:$0xff]
      %v4696 = vld [vmem:[%s4545 + $0x4b0] sm:$0xff]
      %v4697 = vld [vmem:[%s4545 + $0x4b8] sm:$0xff]
      %v4698 = vld [vmem:[%s4545 + $0x4c0] sm:$0xff]
      %v4699 = vld [vmem:[%s4545 + $0x4c8] sm:$0xff]
      %v4700 = vld [vmem:[%s4545 + $0x4d0] sm:$0xff]
      %v4701 = vld [vmem:[%s4545 + $0x4d8] sm:$0xff]
      %v4702 = vld [vmem:[%s4545 + $0x4e0] sm:$0xff]
      %v4703 = vld [vmem:[%s4545 + $0x4e8] sm:$0xff]
      %v4704 = vld [vmem:[%s4545 + $0x4f0] sm:$0xff]
      %v4705 = vld [vmem:[%s4545 + $0x4f8] sm:$0xff]
      %v4706 = vld [vmem:[%s4545 + $0x500] sm:$0xff]
      %v4707 = vld [vmem:[%s4545 + $0x508] sm:$0xff]
      %v4708 = vld [vmem:[%s4545 + $0x510] sm:$0xff]
      %v4709 = vld [vmem:[%s4545 + $0x518] sm:$0xff]
      %v4710 = vld [vmem:[%s4545 + $0x520] sm:$0xff]
      %v4711 = vld [vmem:[%s4545 + $0x528] sm:$0xff]
      %v4712 = vld [vmem:[%s4545 + $0x530] sm:$0xff]
      %v4713 = vld [vmem:[%s4545 + $0x538] sm:$0xff]
      %v4714 = vld [vmem:[%s4545 + $0x540] sm:$0xff]
      %v4715 = vld [vmem:[%s4545 + $0x548] sm:$0xff]
      %v4716 = vld [vmem:[%s4545 + $0x550] sm:$0xff]
      %v4717 = vld [vmem:[%s4545 + $0x558] sm:$0xff]
      %v4718 = vld [vmem:[%s4545 + $0x560] sm:$0xff]
      %v4719 = vld [vmem:[%s4545 + $0x568] sm:$0xff]
      %v4720 = vld [vmem:[%s4545 + $0x570] sm:$0xff]
      %v4721 = vld [vmem:[%s4545 + $0x578] sm:$0xff]
      %v4722 = vld [vmem:[%s4545 + $0x580] sm:$0xff]
      %v4723 = vld [vmem:[%s4545 + $0x588] sm:$0xff]
      %v4724 = vld [vmem:[%s4545 + $0x590] sm:$0xff]
      %v4725 = vld [vmem:[%s4545 + $0x598] sm:$0xff]
      %v4726 = vld [vmem:[%s4545 + $0x5a0] sm:$0xff]
      %v4727 = vld [vmem:[%s4545 + $0x5a8] sm:$0xff]
      %v4728 = vld [vmem:[%s4545 + $0x5b0] sm:$0xff]
      %v4729 = vld [vmem:[%s4545 + $0x5b8] sm:$0xff]
      %v4730 = vld [vmem:[%s4545 + $0x5c0] sm:$0xff]
      %v4731 = vld [vmem:[%s4545 + $0x5c8] sm:$0xff]
      %v4732 = vld [vmem:[%s4545 + $0x5d0] sm:$0xff]
      %v4733 = vld [vmem:[%s4545 + $0x5d8] sm:$0xff]
      %v4734 = vld [vmem:[%s4545 + $0x5e0] sm:$0xff]
      %v4735 = vld [vmem:[%s4545 + $0x5e8] sm:$0xff]
      %v4736 = vld [vmem:[%s4545 + $0x5f0] sm:$0xff]
      %v4737 = vld [vmem:[%s4545 + $0x5f8] sm:$0xff]
      %v4738 = vld [vmem:[%s4545 + $0x600] sm:$0xff]
      %v4739 = vld [vmem:[%s4545 + $0x608] sm:$0xff]
      %v4740 = vld [vmem:[%s4545 + $0x610] sm:$0xff]
      %v4741 = vld [vmem:[%s4545 + $0x618] sm:$0xff]
      %v4742 = vld [vmem:[%s4545 + $0x620] sm:$0xff]
      %v4743 = vld [vmem:[%s4545 + $0x628] sm:$0xff]
      %v4744 = vld [vmem:[%s4545 + $0x630] sm:$0xff]
      %v4745 = vld [vmem:[%s4545 + $0x638] sm:$0xff]
      %v4746 = vld [vmem:[%s4545 + $0x640] sm:$0xff]
      %v4747 = vld [vmem:[%s4545 + $0x648] sm:$0xff]
      %v4748 = vld [vmem:[%s4545 + $0x650] sm:$0xff]
      %v4749 = vld [vmem:[%s4545 + $0x658] sm:$0xff]
      %v4750 = vld [vmem:[%s4545 + $0x660] sm:$0xff]
      %v4751 = vld [vmem:[%s4545 + $0x668] sm:$0xff]
      %v4752 = vld [vmem:[%s4545 + $0x670] sm:$0xff]
      %v4753 = vld [vmem:[%s4545 + $0x678] sm:$0xff]
      %v4754 = vld [vmem:[%s4545 + $0x680] sm:$0xff]
      %v4755 = vld [vmem:[%s4545 + $0x688] sm:$0xff]
      %v4756 = vld [vmem:[%s4545 + $0x690] sm:$0xff]
      %v4757 = vld [vmem:[%s4545 + $0x698] sm:$0xff]
      %v4758 = vld [vmem:[%s4545 + $0x6a0] sm:$0xff]
      %v4759 = vld [vmem:[%s4545 + $0x6a8] sm:$0xff]
      %v4760 = vld [vmem:[%s4545 + $0x6b0] sm:$0xff]
      %v4761 = vld [vmem:[%s4545 + $0x6b8] sm:$0xff]
      %v4762 = vld [vmem:[%s4545 + $0x6c0] sm:$0xff]
      %v4763 = vld [vmem:[%s4545 + $0x6c8] sm:$0xff]
      %v4764 = vld [vmem:[%s4545 + $0x6d0] sm:$0xff]
      %v4765 = vld [vmem:[%s4545 + $0x6d8] sm:$0xff]
      %v4766 = vld [vmem:[%s4545 + $0x6e0] sm:$0xff]
      %v4767 = vld [vmem:[%s4545 + $0x6e8] sm:$0xff]
      %v4768 = vld [vmem:[%s4545 + $0x6f0] sm:$0xff]
      %v4769 = vld [vmem:[%s4545 + $0x6f8] sm:$0xff]
      %v4770 = vld [vmem:[%s4545 + $0x700] sm:$0xff]
      %v4771 = vld [vmem:[%s4545 + $0x708] sm:$0xff]
      %v4772 = vld [vmem:[%s4545 + $0x710] sm:$0xff]
      %v4773 = vld [vmem:[%s4545 + $0x718] sm:$0xff]
      %v4774 = vld [vmem:[%s4545 + $0x720] sm:$0xff]
      %v4775 = vld [vmem:[%s4545 + $0x728] sm:$0xff]
      %v4776 = vld [vmem:[%s4545 + $0x730] sm:$0xff]
      %v4777 = vld [vmem:[%s4545 + $0x738] sm:$0xff]
      %v4778 = vld [vmem:[%s4545 + $0x740] sm:$0xff]
      %v4779 = vld [vmem:[%s4545 + $0x748] sm:$0xff]
      %v4780 = vld [vmem:[%s4545 + $0x750] sm:$0xff]
      %v4781 = vld [vmem:[%s4545 + $0x758] sm:$0xff]
      %v4782 = vld [vmem:[%s4545 + $0x760] sm:$0xff]
      %v4783 = vld [vmem:[%s4545 + $0x768] sm:$0xff]
      %v4784 = vld [vmem:[%s4545 + $0x770] sm:$0xff]
      %v4785 = vld [vmem:[%s4545 + $0x778] sm:$0xff]
      %v4786 = vld [vmem:[%s4545 + $0x780] sm:$0xff]
      %v4787 = vld [vmem:[%s4545 + $0x788] sm:$0xff]
      %v4788 = vld [vmem:[%s4545 + $0x790] sm:$0xff]
      %v4789 = vld [vmem:[%s4545 + $0x798] sm:$0xff]
      %v4790 = vld [vmem:[%s4545 + $0x7a0] sm:$0xff]
      %v4791 = vld [vmem:[%s4545 + $0x7a8] sm:$0xff]
      %v4792 = vld [vmem:[%s4545 + $0x7b0] sm:$0xff]
      %v4793 = vld [vmem:[%s4545 + $0x7b8] sm:$0xff]
      %v4794 = vld [vmem:[%s4545 + $0x7c0] sm:$0xff]
      %v4795 = vld [vmem:[%s4545 + $0x7c8] sm:$0xff]
      %v4796 = vld [vmem:[%s4545 + $0x7d0] sm:$0xff]
      %v4797 = vld [vmem:[%s4545 + $0x7d8] sm:$0xff]
      %v4798 = vld [vmem:[%s4545 + $0x7e0] sm:$0xff]
      %v4799 = vld [vmem:[%s4545 + $0x7e8] sm:$0xff]
      %v4800 = vld [vmem:[%s4545 + $0x7f0] sm:$0xff]
      %v4801 = vld [vmem:[%s4545 + $0x7f8] sm:$0xff]
      %v4802 = vld [vmem:[%s4545 + $0x800] sm:$0xff]
      %v4803 = vld [vmem:[%s4545 + $0x808] sm:$0xff]
      %v4804 = vld [vmem:[%s4545 + $0x810] sm:$0xff]
      %v4805 = vld [vmem:[%s4545 + $0x818] sm:$0xff]
      %v4806 = vld [vmem:[%s4545 + $0x820] sm:$0xff]
      %v4807 = vld [vmem:[%s4545 + $0x828] sm:$0xff]
      %v4808 = vld [vmem:[%s4545 + $0x830] sm:$0xff]
      %v4809 = vld [vmem:[%s4545 + $0x838] sm:$0xff]
      %v4810 = vld [vmem:[%s4545 + $0x840] sm:$0xff]
      %v4811 = vld [vmem:[%s4545 + $0x848] sm:$0xff]
      %v4812 = vld [vmem:[%s4545 + $0x850] sm:$0xff]
      %v4813 = vld [vmem:[%s4545 + $0x858] sm:$0xff]
      %v4814 = vld [vmem:[%s4545 + $0x860] sm:$0xff]
      %v4815 = vld [vmem:[%s4545 + $0x868] sm:$0xff]
      %v4816 = vld [vmem:[%s4545 + $0x870] sm:$0xff]
      %v4817 = vld [vmem:[%s4545 + $0x878] sm:$0xff]
      %v4818 = vld [vmem:[%s4545 + $0x880] sm:$0xff]
      %v4819 = vld [vmem:[%s4545 + $0x888] sm:$0xff]
      %v4820 = vld [vmem:[%s4545 + $0x890] sm:$0xff]
      %v4821 = vld [vmem:[%s4545 + $0x898] sm:$0xff]
      %v4822 = vld [vmem:[%s4545 + $0x8a0] sm:$0xff]
      %v4823 = vld [vmem:[%s4545 + $0x8a8] sm:$0xff]
      %v4824 = vld [vmem:[%s4545 + $0x8b0] sm:$0xff]
      %v4825 = vld [vmem:[%s4545 + $0x8b8] sm:$0xff]
      %v4826 = vld [vmem:[%s4545 + $0x8c0] sm:$0xff]
      %v4827 = vld [vmem:[%s4545 + $0x8c8] sm:$0xff]
      %v4828 = vld [vmem:[%s4545 + $0x8d0] sm:$0xff]
      %v4829 = vld [vmem:[%s4545 + $0x8d8] sm:$0xff]
      %v4830 = vld [vmem:[%s4545 + $0x8e0] sm:$0xff]
      %v4831 = vld [vmem:[%s4545 + $0x8e8] sm:$0xff]
      %v4832 = vld [vmem:[%s4545 + $0x8f0] sm:$0xff]
      %v4833 = vld [vmem:[%s4545 + $0x8f8] sm:$0xff]
      %v4839 = vrot.slane %v2201, 3
      %v4840 = vrot.slane %v2206, 3
      %v4841 = vsel %vm1076, %v4839, %v4840
      %v4842 = vrot.slane %v2202, 3
      %v4843 = vrot.slane %v2207, 3
      %v4844 = vsel %vm1076, %v4842, %v4843
      %v4845 = vrot.slane %v2203, 3
      %v4846 = vrot.slane %v2208, 3
      %v4847 = vsel %vm1076, %v4845, %v4846
      %v4848 = vrot.slane %v2204, 3
      %v4849 = vrot.slane %v2209, 3
      %v4850 = vsel %vm1076, %v4848, %v4849
      %v4851 = vrot.slane %v2205, 3
      %v4852 = vrot.slane %v2210, 3
      %v4853 = vsel %vm1076, %v4851, %v4852
      %v4854 = vrot.slane %v2211, 3
      %v4855 = vsel %vm1076, %v4840, %v4854
      %v4856 = vrot.slane %v2212, 3
      %v4857 = vsel %vm1076, %v4843, %v4856
      %v4858 = vrot.slane %v2213, 3
      %v4859 = vsel %vm1076, %v4846, %v4858
      %v4860 = vrot.slane %v2214, 3
      %v4861 = vsel %vm1076, %v4849, %v4860
      %v4862 = vrot.slane %v2215, 3
      %v4863 = vsel %vm1076, %v4852, %v4862
      %v4872 = vsel %vm2826, %v4853, 0
      %v4874 = vsel %vm2826, %v4863, 0
      %4876 = vmatprep.subr.mxu0 %v4607
      %4877 = vmatpush1.msra.mxu0 %v4606
      %4878 = vmatprep.subr.mxu0 %v4603
      %4879 = vmatpush1.msra.mxu0 %v4602
      %4880 = vmatprep.subr.mxu0 %v4599
      %4881 = vmatpush1.msra.mxu0 %v4598
      %4882 = vmatprep.subr.mxu0 %v4595
      %4883 = vmatpush1.msra.mxu0 %v4594
      %4884 = vmatprep.subr.mxu0 %v4591
      %4885 = vmatpush1.msra.mxu0 %v4590
      %4886 = vmatprep.subr.mxu0 %v4587
      %4887 = vmatpush1.msra.mxu0 %v4586
      %4888 = vmatprep.subr.mxu0 %v4583
      %4889 = vmatpush1.msra.mxu0 %v4582
      %4890 = vmatprep.subr.mxu0 %v4579
      %4891 = vmatpush1.msra.mxu0 %v4578
      %4892 = vmatprep.subr.mxu0 %v4575
      %4893 = vmatpush1.msra.mxu0 %v4574
      %4894 = vmatprep.subr.mxu0 %v4571
      %4895 = vmatpush1.msra.mxu0 %v4570
      %4896 = vmatprep.subr.mxu0 %v4567
      %4897 = vmatpush1.msra.mxu0 %v4566
      %4898 = vmatprep.subr.mxu0 %v4563
      %4899 = vmatpush1.msra.mxu0 %v4562
      %4900 = vmatprep.subr.mxu0 %v4559
      %4901 = vmatpush1.msra.mxu0 %v4558
      %4902 = vmatprep.subr.mxu0 %v4555
      %4903 = vmatpush1.msra.mxu0 %v4554
      %4904 = vmatprep.subr.mxu0 %v4551
      %4905 = vmatpush1.msra.mxu0 %v4550
      %4906 = vmatprep.subr.mxu0 %v4547
      %4907 = vmatpush1.msra.mxu0 %v4546
      %4908 = vmatprep.subr.mxu0 %v4671
      %4909 = vmatpush2.msra.mxu0 %v4670
      %4910 = vmatprep.subr.mxu0 %v4667
      %4911 = vmatpush2.msra.mxu0 %v4666
      %4912 = vmatprep.subr.mxu0 %v4663
      %4913 = vmatpush2.msra.mxu0 %v4662
      %4914 = vmatprep.subr.mxu0 %v4659
      %4915 = vmatpush2.msra.mxu0 %v4658
      %4916 = vmatprep.subr.mxu0 %v4655
      %4917 = vmatpush2.msra.mxu0 %v4654
      %4918 = vmatprep.subr.mxu0 %v4651
      %4919 = vmatpush2.msra.mxu0 %v4650
      %4920 = vmatprep.subr.mxu0 %v4647
      %4921 = vmatpush2.msra.mxu0 %v4646
      %4922 = vmatprep.subr.mxu0 %v4643
      %4923 = vmatpush2.msra.mxu0 %v4642
      %4924 = vmatprep.subr.mxu0 %v4639
      %4925 = vmatpush2.msra.mxu0 %v4638
      %4926 = vmatprep.subr.mxu0 %v4635
      %4927 = vmatpush2.msra.mxu0 %v4634
      %4928 = vmatprep.subr.mxu0 %v4631
      %4929 = vmatpush2.msra.mxu0 %v4630
      %4930 = vmatprep.subr.mxu0 %v4627
      %4931 = vmatpush2.msra.mxu0 %v4626
      %4932 = vmatprep.subr.mxu0 %v4623
      %4933 = vmatpush2.msra.mxu0 %v4622
      %4934 = vmatprep.subr.mxu0 %v4619
      %4935 = vmatpush2.msra.mxu0 %v4618
      %4936 = vmatprep.subr.mxu0 %v4615
      %4937 = vmatpush2.msra.mxu0 %v4614
      %4938 = vmatprep.subr.mxu0 %v4611
      %4939 = vmatpush2.msra.mxu0 %v4610
      %4940 = vmatprep.mubr.f32.mxu0 %v4844
      %4941 = vmatmul.mubr.f32.gmra.mxu0 %v4841
      %v4942 = vpop.f32.mrf.mxu0
      %v4943 = vadd.f32 0.0, %v4942
      %v4944 = vpop.f32.mrf.mxu0
      %v4945 = vadd.f32 0.0, %v4944
      %4946 = vmatprep.mubr.f32.mxu0 %v4857
      %4947 = vmatmul.mubr.f32.gmra.mxu0 %v4855
      %v4948 = vpop.f32.mrf.mxu0
      %v4949 = vadd.f32 0.0, %v4948
      %v4950 = vpop.f32.mrf.mxu0
      %v4951 = vadd.f32 0.0, %v4950
      %4952 = vdwg.mxu0
      %4953 = vmatprep.subr.mxu0 %v4735
      %4954 = vmatpush1.msra.mxu0 %v4734
      %4955 = vmatprep.subr.mxu0 %v4731
      %4956 = vmatpush1.msra.mxu0 %v4730
      %4957 = vmatprep.subr.mxu0 %v4727
      %4958 = vmatpush1.msra.mxu0 %v4726
      %4959 = vmatprep.subr.mxu0 %v4723
      %4960 = vmatpush1.msra.mxu0 %v4722
      %4961 = vmatprep.subr.mxu0 %v4719
      %4962 = vmatpush1.msra.mxu0 %v4718
      %4963 = vmatprep.subr.mxu0 %v4715
      %4964 = vmatpush1.msra.mxu0 %v4714
      %4965 = vmatprep.subr.mxu0 %v4711
      %4966 = vmatpush1.msra.mxu0 %v4710
      %4967 = vmatprep.subr.mxu0 %v4707
      %4968 = vmatpush1.msra.mxu0 %v4706
      %4969 = vmatprep.subr.mxu0 %v4703
      %4970 = vmatpush1.msra.mxu0 %v4702
      %4971 = vmatprep.subr.mxu0 %v4699
      %4972 = vmatpush1.msra.mxu0 %v4698
      %4973 = vmatprep.subr.mxu0 %v4695
      %4974 = vmatpush1.msra.mxu0 %v4694
      %4975 = vmatprep.subr.mxu0 %v4691
      %4976 = vmatpush1.msra.mxu0 %v4690
      %4977 = vmatprep.subr.mxu0 %v4687
      %4978 = vmatpush1.msra.mxu0 %v4686
      %4979 = vmatprep.subr.mxu0 %v4683
      %4980 = vmatpush1.msra.mxu0 %v4682
      %4981 = vmatprep.subr.mxu0 %v4679
      %4982 = vmatpush1.msra.mxu0 %v4678
      %4983 = vmatprep.subr.mxu0 %v4675
      %4984 = vmatpush1.msra.mxu0 %v4674
      %4985 = vmatprep.subr.mxu0 %v4799
      %4986 = vmatpush2.msra.mxu0 %v4798
      %4987 = vmatprep.subr.mxu0 %v4795
      %4988 = vmatpush2.msra.mxu0 %v4794
      %4989 = vmatprep.subr.mxu0 %v4791
      %4990 = vmatpush2.msra.mxu0 %v4790
      %4991 = vmatprep.subr.mxu0 %v4787
      %4992 = vmatpush2.msra.mxu0 %v4786
      %4993 = vmatprep.subr.mxu0 %v4783
      %4994 = vmatpush2.msra.mxu0 %v4782
      %4995 = vmatprep.subr.mxu0 %v4779
      %4996 = vmatpush2.msra.mxu0 %v4778
      %4997 = vmatprep.subr.mxu0 %v4775
      %4998 = vmatpush2.msra.mxu0 %v4774
      %4999 = vmatprep.subr.mxu0 %v4771
      %5000 = vmatpush2.msra.mxu0 %v4770
      %5001 = vmatprep.subr.mxu0 %v4767
      %5002 = vmatpush2.msra.mxu0 %v4766
      %5003 = vmatprep.subr.mxu0 %v4763
      %5004 = vmatpush2.msra.mxu0 %v4762
      %5005 = vmatprep.subr.mxu0 %v4759
      %5006 = vmatpush2.msra.mxu0 %v4758
      %5007 = vmatprep.subr.mxu0 %v4755
      %5008 = vmatpush2.msra.mxu0 %v4754
      %5009 = vmatprep.subr.mxu0 %v4751
      %5010 = vmatpush2.msra.mxu0 %v4750
      %5011 = vmatprep.subr.mxu0 %v4747
      %5012 = vmatpush2.msra.mxu0 %v4746
      %5013 = vmatprep.subr.mxu0 %v4743
      %5014 = vmatpush2.msra.mxu0 %v4742
      %5015 = vmatprep.subr.mxu0 %v4739
      %5016 = vmatpush2.msra.mxu0 %v4738
      %5017 = vmatprep.mubr.f32.mxu0 %v4850
      %5018 = vmatmul.mubr.f32.gmra.mxu0 %v4847
      %v5019 = vpop.f32.mrf.mxu0
      %v5020 = vadd.f32 %v4943, %v5019
      %v5021 = vpop.f32.mrf.mxu0
      %v5022 = vadd.f32 %v4945, %v5021
      %5023 = vmatprep.mubr.f32.mxu0 %v4861
      %5024 = vmatmul.mubr.f32.gmra.mxu0 %v4859
      %v5025 = vpop.f32.mrf.mxu0
      %v5026 = vadd.f32 %v4949, %v5025
      %v5027 = vpop.f32.mrf.mxu0
      %v5028 = vadd.f32 %v4951, %v5027
      %5029 = vdwg.mxu0
      %5030 = vmatprep.subr.mxu0 0.0
      %5031 = vmatpush1.msra.mxu0 0.0
      %5032 = vmatprep.subr.mxu0 0.0
      %5033 = vmatpush1.msra.mxu0 0.0
      %5034 = vmatprep.subr.mxu0 0.0
      %5035 = vmatpush1.msra.mxu0 0.0
      %5036 = vmatprep.subr.mxu0 0.0
      %5037 = vmatpush1.msra.mxu0 0.0
      %5038 = vmatprep.subr.mxu0 0.0
      %5039 = vmatpush1.msra.mxu0 0.0
      %5040 = vmatprep.subr.mxu0 0.0
      %5041 = vmatpush1.msra.mxu0 0.0
      %5042 = vmatprep.subr.mxu0 0.0
      %5043 = vmatpush1.msra.mxu0 0.0
      %5044 = vmatprep.subr.mxu0 0.0
      %5045 = vmatpush1.msra.mxu0 0.0
      %5046 = vmatprep.subr.mxu0 %v4831
      %5047 = vmatpush1.msra.mxu0 %v4830
      %5048 = vmatprep.subr.mxu0 %v4827
      %5049 = vmatpush1.msra.mxu0 %v4826
      %5050 = vmatprep.subr.mxu0 %v4823
      %5051 = vmatpush1.msra.mxu0 %v4822
      %5052 = vmatprep.subr.mxu0 %v4819
      %5053 = vmatpush1.msra.mxu0 %v4818
      %5054 = vmatprep.subr.mxu0 %v4815
      %5055 = vmatpush1.msra.mxu0 %v4814
      %5056 = vmatprep.subr.mxu0 %v4811
      %5057 = vmatpush1.msra.mxu0 %v4810
      %5058 = vmatprep.subr.mxu0 %v4807
      %5059 = vmatpush1.msra.mxu0 %v4806
      %5060 = vmatprep.subr.mxu0 %v4803
      %5061 = vmatpush1.msra.mxu0 %v4802
      %5062 = vmatprep.subr.mxu0 0.0
      %5063 = vmatpush2.msra.mxu0 0.0
      %5064 = vmatprep.subr.mxu0 0.0
      %5065 = vmatpush2.msra.mxu0 0.0
      %5066 = vmatprep.subr.mxu0 0.0
      %5067 = vmatpush2.msra.mxu0 0.0
      %5068 = vmatprep.subr.mxu0 0.0
      %5069 = vmatpush2.msra.mxu0 0.0
      %5070 = vmatprep.subr.mxu0 0.0
      %5071 = vmatpush2.msra.mxu0 0.0
      %5072 = vmatprep.subr.mxu0 0.0
      %5073 = vmatpush2.msra.mxu0 0.0
      %5074 = vmatprep.subr.mxu0 0.0
      %5075 = vmatpush2.msra.mxu0 0.0
      %5076 = vmatprep.subr.mxu0 0.0
      %5077 = vmatpush2.msra.mxu0 0.0
      %5078 = vmatprep.subr.mxu0 0.0
      %5079 = vmatpush2.msra.mxu0 0.0
      %5080 = vmatprep.subr.mxu0 0.0
      %5081 = vmatpush2.msra.mxu0 0.0
      %5082 = vmatprep.subr.mxu0 0.0
      %5083 = vmatpush2.msra.mxu0 0.0
      %5084 = vmatprep.subr.mxu0 0.0
      %5085 = vmatpush2.msra.mxu0 0.0
      %5086 = vmatprep.subr.mxu0 0.0
      %5087 = vmatpush2.msra.mxu0 0.0
      %5088 = vmatprep.subr.mxu0 0.0
      %5089 = vmatpush2.msra.mxu0 0.0
      %5090 = vmatprep.subr.mxu0 0.0
      %5091 = vmatpush2.msra.mxu0 0.0
      %5092 = vmatprep.subr.mxu0 0.0
      %5093 = vmatpush2.msra.mxu0 0.0
      %5094 = vmatprep.mubr.f32.mxu0 0.0
      %5095 = vmatmul.mubr.f32.gmra.mxu0 %v4872
      %v5096 = vpop.f32.mrf.mxu0
      %v5097 = vadd.f32 %v5020, %v5096
      %v5098 = vpop.f32.mrf.mxu0
      %v5099 = vadd.f32 %v5022, %v5098
      %5100 = vmatprep.mubr.f32.mxu0 0.0
      %5101 = vmatmul.mubr.f32.gmra.mxu0 %v4874
      %v5102 = vpop.f32.mrf.mxu0
      %v5103 = vadd.f32 %v5026, %v5102
      %v5104 = vpop.f32.mrf.mxu0
      %v5105 = vadd.f32 %v5028, %v5104
      %5106 = vdwg.mxu0
      %5107 = vmatprep.subr.mxu0 %v4609
      %5108 = vmatpush1.msra.mxu0 %v4608
      %5109 = vmatprep.subr.mxu0 %v4605
      %5110 = vmatpush1.msra.mxu0 %v4604
      %5111 = vmatprep.subr.mxu0 %v4601
      %5112 = vmatpush1.msra.mxu0 %v4600
      %5113 = vmatprep.subr.mxu0 %v4597
      %5114 = vmatpush1.msra.mxu0 %v4596
      %5115 = vmatprep.subr.mxu0 %v4593
      %5116 = vmatpush1.msra.mxu0 %v4592
      %5117 = vmatprep.subr.mxu0 %v4589
      %5118 = vmatpush1.msra.mxu0 %v4588
      %5119 = vmatprep.subr.mxu0 %v4585
      %5120 = vmatpush1.msra.mxu0 %v4584
      %5121 = vmatprep.subr.mxu0 %v4581
      %5122 = vmatpush1.msra.mxu0 %v4580
      %5123 = vmatprep.subr.mxu0 %v4577
      %5124 = vmatpush1.msra.mxu0 %v4576
      %5125 = vmatprep.subr.mxu0 %v4573
      %5126 = vmatpush1.msra.mxu0 %v4572
      %5127 = vmatprep.subr.mxu0 %v4569
      %5128 = vmatpush1.msra.mxu0 %v4568
      %5129 = vmatprep.subr.mxu0 %v4565
      %5130 = vmatpush1.msra.mxu0 %v4564
      %5131 = vmatprep.subr.mxu0 %v4561
      %5132 = vmatpush1.msra.mxu0 %v4560
      %5133 = vmatprep.subr.mxu0 %v4557
      %5134 = vmatpush1.msra.mxu0 %v4556
      %5135 = vmatprep.subr.mxu0 %v4553
      %5136 = vmatpush1.msra.mxu0 %v4552
      %5137 = vmatprep.subr.mxu0 %v4549
      %5138 = vmatpush1.msra.mxu0 %v4548
      %5139 = vmatprep.subr.mxu0 %v4673
      %5140 = vmatpush2.msra.mxu0 %v4672
      %5141 = vmatprep.subr.mxu0 %v4669
      %5142 = vmatpush2.msra.mxu0 %v4668
      %5143 = vmatprep.subr.mxu0 %v4665
      %5144 = vmatpush2.msra.mxu0 %v4664
      %5145 = vmatprep.subr.mxu0 %v4661
      %5146 = vmatpush2.msra.mxu0 %v4660
      %5147 = vmatprep.subr.mxu0 %v4657
      %5148 = vmatpush2.msra.mxu0 %v4656
      %5149 = vmatprep.subr.mxu0 %v4653
      %5150 = vmatpush2.msra.mxu0 %v4652
      %5151 = vmatprep.subr.mxu0 %v4649
      %5152 = vmatpush2.msra.mxu0 %v4648
      %5153 = vmatprep.subr.mxu0 %v4645
      %5154 = vmatpush2.msra.mxu0 %v4644
      %5155 = vmatprep.subr.mxu0 %v4641
      %5156 = vmatpush2.msra.mxu0 %v4640
      %5157 = vmatprep.subr.mxu0 %v4637
      %5158 = vmatpush2.msra.mxu0 %v4636
      %5159 = vmatprep.subr.mxu0 %v4633
      %5160 = vmatpush2.msra.mxu0 %v4632
      %5161 = vmatprep.subr.mxu0 %v4629
      %5162 = vmatpush2.msra.mxu0 %v4628
      %5163 = vmatprep.subr.mxu0 %v4625
      %5164 = vmatpush2.msra.mxu0 %v4624
      %5165 = vmatprep.subr.mxu0 %v4621
      %5166 = vmatpush2.msra.mxu0 %v4620
      %5167 = vmatprep.subr.mxu0 %v4617
      %5168 = vmatpush2.msra.mxu0 %v4616
      %5169 = vmatprep.subr.mxu0 %v4613
      %5170 = vmatpush2.msra.mxu0 %v4612
      %5171 = vmatprep.mubr.f32.mxu0 %v4844
      %5172 = vmatmul.mubr.f32.gmra.mxu0 %v4841
      %v5173 = vpop.f32.mrf.mxu0
      %v5174 = vadd.f32 0.0, %v5173
      %v5175 = vpop.f32.mrf.mxu0
      %v5176 = vadd.f32 0.0, %v5175
      %5177 = vmatprep.mubr.f32.mxu0 %v4857
      %5178 = vmatmul.mubr.f32.gmra.mxu0 %v4855
      %v5179 = vpop.f32.mrf.mxu0
      %v5180 = vadd.f32 0.0, %v5179
      %v5181 = vpop.f32.mrf.mxu0
      %v5182 = vadd.f32 0.0, %v5181
      %5183 = vdwg.mxu0
      %5184 = vmatprep.subr.mxu0 %v4737
      %5185 = vmatpush1.msra.mxu0 %v4736
      %5186 = vmatprep.subr.mxu0 %v4733
      %5187 = vmatpush1.msra.mxu0 %v4732
      %5188 = vmatprep.subr.mxu0 %v4729
      %5189 = vmatpush1.msra.mxu0 %v4728
      %5190 = vmatprep.subr.mxu0 %v4725
      %5191 = vmatpush1.msra.mxu0 %v4724
      %5192 = vmatprep.subr.mxu0 %v4721
      %5193 = vmatpush1.msra.mxu0 %v4720
      %5194 = vmatprep.subr.mxu0 %v4717
      %5195 = vmatpush1.msra.mxu0 %v4716
      %5196 = vmatprep.subr.mxu0 %v4713
      %5197 = vmatpush1.msra.mxu0 %v4712
      %5198 = vmatprep.subr.mxu0 %v4709
      %5199 = vmatpush1.msra.mxu0 %v4708
      %5200 = vmatprep.subr.mxu0 %v4705
      %5201 = vmatpush1.msra.mxu0 %v4704
      %5202 = vmatprep.subr.mxu0 %v4701
      %5203 = vmatpush1.msra.mxu0 %v4700
      %5204 = vmatprep.subr.mxu0 %v4697
      %5205 = vmatpush1.msra.mxu0 %v4696
      %5206 = vmatprep.subr.mxu0 %v4693
      %5207 = vmatpush1.msra.mxu0 %v4692
      %5208 = vmatprep.subr.mxu0 %v4689
      %5209 = vmatpush1.msra.mxu0 %v4688
      %5210 = vmatprep.subr.mxu0 %v4685
      %5211 = vmatpush1.msra.mxu0 %v4684
      %5212 = vmatprep.subr.mxu0 %v4681
      %5213 = vmatpush1.msra.mxu0 %v4680
      %5214 = vmatprep.subr.mxu0 %v4677
      %5215 = vmatpush1.msra.mxu0 %v4676
      %5216 = vmatprep.subr.mxu0 %v4801
      %5217 = vmatpush2.msra.mxu0 %v4800
      %5218 = vmatprep.subr.mxu0 %v4797
      %5219 = vmatpush2.msra.mxu0 %v4796
      %5220 = vmatprep.subr.mxu0 %v4793
      %5221 = vmatpush2.msra.mxu0 %v4792
      %5222 = vmatprep.subr.mxu0 %v4789
      %5223 = vmatpush2.msra.mxu0 %v4788
      %5224 = vmatprep.subr.mxu0 %v4785
      %5225 = vmatpush2.msra.mxu0 %v4784
      %5226 = vmatprep.subr.mxu0 %v4781
      %5227 = vmatpush2.msra.mxu0 %v4780
      %5228 = vmatprep.subr.mxu0 %v4777
      %5229 = vmatpush2.msra.mxu0 %v4776
      %5230 = vmatprep.subr.mxu0 %v4773
      %5231 = vmatpush2.msra.mxu0 %v4772
      %5232 = vmatprep.subr.mxu0 %v4769
      %5233 = vmatpush2.msra.mxu0 %v4768
      %5234 = vmatprep.subr.mxu0 %v4765
      %5235 = vmatpush2.msra.mxu0 %v4764
      %5236 = vmatprep.subr.mxu0 %v4761
      %5237 = vmatpush2.msra.mxu0 %v4760
      %5238 = vmatprep.subr.mxu0 %v4757
      %5239 = vmatpush2.msra.mxu0 %v4756
      %5240 = vmatprep.subr.mxu0 %v4753
      %5241 = vmatpush2.msra.mxu0 %v4752
      %5242 = vmatprep.subr.mxu0 %v4749
      %5243 = vmatpush2.msra.mxu0 %v4748
      %5244 = vmatprep.subr.mxu0 %v4745
      %5245 = vmatpush2.msra.mxu0 %v4744
      %5246 = vmatprep.subr.mxu0 %v4741
      %5247 = vmatpush2.msra.mxu0 %v4740
      %5248 = vmatprep.mubr.f32.mxu0 %v4850
      %5249 = vmatmul.mubr.f32.gmra.mxu0 %v4847
      %v5250 = vpop.f32.mrf.mxu0
      %v5251 = vadd.f32 %v5174, %v5250
      %v5252 = vpop.f32.mrf.mxu0
      %v5253 = vadd.f32 %v5176, %v5252
      %5254 = vmatprep.mubr.f32.mxu0 %v4861
      %5255 = vmatmul.mubr.f32.gmra.mxu0 %v4859
      %v5256 = vpop.f32.mrf.mxu0
      %v5257 = vadd.f32 %v5180, %v5256
      %v5258 = vpop.f32.mrf.mxu0
      %v5259 = vadd.f32 %v5182, %v5258
      %5260 = vdwg.mxu0
      %5261 = vmatprep.subr.mxu0 0.0
      %5262 = vmatpush1.msra.mxu0 0.0
      %5263 = vmatprep.subr.mxu0 0.0
      %5264 = vmatpush1.msra.mxu0 0.0
      %5265 = vmatprep.subr.mxu0 0.0
      %5266 = vmatpush1.msra.mxu0 0.0
      %5267 = vmatprep.subr.mxu0 0.0
      %5268 = vmatpush1.msra.mxu0 0.0
      %5269 = vmatprep.subr.mxu0 0.0
      %5270 = vmatpush1.msra.mxu0 0.0
      %5271 = vmatprep.subr.mxu0 0.0
      %5272 = vmatpush1.msra.mxu0 0.0
      %5273 = vmatprep.subr.mxu0 0.0
      %5274 = vmatpush1.msra.mxu0 0.0
      %5275 = vmatprep.subr.mxu0 0.0
      %5276 = vmatpush1.msra.mxu0 0.0
      %5277 = vmatprep.subr.mxu0 %v4833
      %5278 = vmatpush1.msra.mxu0 %v4832
      %5279 = vmatprep.subr.mxu0 %v4829
      %5280 = vmatpush1.msra.mxu0 %v4828
      %5281 = vmatprep.subr.mxu0 %v4825
      %5282 = vmatpush1.msra.mxu0 %v4824
      %5283 = vmatprep.subr.mxu0 %v4821
      %5284 = vmatpush1.msra.mxu0 %v4820
      %5285 = vmatprep.subr.mxu0 %v4817
      %5286 = vmatpush1.msra.mxu0 %v4816
      %5287 = vmatprep.subr.mxu0 %v4813
      %5288 = vmatpush1.msra.mxu0 %v4812
      %5289 = vmatprep.subr.mxu0 %v4809
      %5290 = vmatpush1.msra.mxu0 %v4808
      %5291 = vmatprep.subr.mxu0 %v4805
      %5292 = vmatpush1.msra.mxu0 %v4804
      %5293 = vmatprep.subr.mxu0 0.0
      %5294 = vmatpush2.msra.mxu0 0.0
      %5295 = vmatprep.subr.mxu0 0.0
      %5296 = vmatpush2.msra.mxu0 0.0
      %5297 = vmatprep.subr.mxu0 0.0
      %5298 = vmatpush2.msra.mxu0 0.0
      %5299 = vmatprep.subr.mxu0 0.0
      %5300 = vmatpush2.msra.mxu0 0.0
      %5301 = vmatprep.subr.mxu0 0.0
      %5302 = vmatpush2.msra.mxu0 0.0
      %5303 = vmatprep.subr.mxu0 0.0
      %5304 = vmatpush2.msra.mxu0 0.0
      %5305 = vmatprep.subr.mxu0 0.0
      %5306 = vmatpush2.msra.mxu0 0.0
      %5307 = vmatprep.subr.mxu0 0.0
      %5308 = vmatpush2.msra.mxu0 0.0
      %5309 = vmatprep.subr.mxu0 0.0
      %5310 = vmatpush2.msra.mxu0 0.0
      %5311 = vmatprep.subr.mxu0 0.0
      %5312 = vmatpush2.msra.mxu0 0.0
      %5313 = vmatprep.subr.mxu0 0.0
      %5314 = vmatpush2.msra.mxu0 0.0
      %5315 = vmatprep.subr.mxu0 0.0
      %5316 = vmatpush2.msra.mxu0 0.0
      %5317 = vmatprep.subr.mxu0 0.0
      %5318 = vmatpush2.msra.mxu0 0.0
      %5319 = vmatprep.subr.mxu0 0.0
      %5320 = vmatpush2.msra.mxu0 0.0
      %5321 = vmatprep.subr.mxu0 0.0
      %5322 = vmatpush2.msra.mxu0 0.0
      %5323 = vmatprep.subr.mxu0 0.0
      %5324 = vmatpush2.msra.mxu0 0.0
      %5325 = vmatprep.mubr.f32.mxu0 0.0
      %5326 = vmatmul.mubr.f32.gmra.mxu0 %v4872
      %v5327 = vpop.f32.mrf.mxu0
      %v5328 = vadd.f32 %v5251, %v5327
      %v5329 = vpop.f32.mrf.mxu0
      %v5330 = vadd.f32 %v5253, %v5329
      %5331 = vmatprep.mubr.f32.mxu0 0.0
      %5332 = vmatmul.mubr.f32.gmra.mxu0 %v4874
      %v5333 = vpop.f32.mrf.mxu0
      %v5334 = vadd.f32 %v5257, %v5333
      %v5335 = vpop.f32.mrf.mxu0
      %v5336 = vadd.f32 %v5259, %v5335
      %5337 = vdwg.mxu0
      %v5338 = vadd.f32 %v4537, %v5097
      %v5339 = vadd.f32 %v4538, %v5099
      %v5340 = vadd.f32 %v4539, %v5328
      %v5341 = vadd.f32 %v4540, %v5330
      %v5342 = vadd.f32 %v4541, %v5103
      %v5343 = vadd.f32 %v4542, %v5105
      %v5344 = vadd.f32 %v4543, %v5334
      %v5345 = vadd.f32 %v4544, %v5336
      %s5346 = scalar_lea.vmem %s2, 9216
      %v5347 = vld [vmem:[%s5346] sm:$0xff]
      %v5348 = vld [vmem:[%s5346 + $0x8] sm:$0xff]
      %v5349 = vld [vmem:[%s5346 + $0x10] sm:$0xff]
      %v5350 = vld [vmem:[%s5346 + $0x18] sm:$0xff]
      %v5351 = vld [vmem:[%s5346 + $0x20] sm:$0xff]
      %v5352 = vld [vmem:[%s5346 + $0x28] sm:$0xff]
      %v5353 = vld [vmem:[%s5346 + $0x30] sm:$0xff]
      %v5354 = vld [vmem:[%s5346 + $0x38] sm:$0xff]
      %v5355 = vld [vmem:[%s5346 + $0x40] sm:$0xff]
      %v5356 = vld [vmem:[%s5346 + $0x48] sm:$0xff]
      %v5357 = vld [vmem:[%s5346 + $0x50] sm:$0xff]
      %v5358 = vld [vmem:[%s5346 + $0x58] sm:$0xff]
      %v5359 = vld [vmem:[%s5346 + $0x60] sm:$0xff]
      %v5360 = vld [vmem:[%s5346 + $0x68] sm:$0xff]
      %v5361 = vld [vmem:[%s5346 + $0x70] sm:$0xff]
      %v5362 = vld [vmem:[%s5346 + $0x78] sm:$0xff]
      %v5363 = vld [vmem:[%s5346 + $0x80] sm:$0xff]
      %v5364 = vld [vmem:[%s5346 + $0x88] sm:$0xff]
      %v5365 = vld [vmem:[%s5346 + $0x90] sm:$0xff]
      %v5366 = vld [vmem:[%s5346 + $0x98] sm:$0xff]
      %v5367 = vld [vmem:[%s5346 + $0xa0] sm:$0xff]
      %v5368 = vld [vmem:[%s5346 + $0xa8] sm:$0xff]
      %v5369 = vld [vmem:[%s5346 + $0xb0] sm:$0xff]
      %v5370 = vld [vmem:[%s5346 + $0xb8] sm:$0xff]
      %v5371 = vld [vmem:[%s5346 + $0xc0] sm:$0xff]
      %v5372 = vld [vmem:[%s5346 + $0xc8] sm:$0xff]
      %v5373 = vld [vmem:[%s5346 + $0xd0] sm:$0xff]
      %v5374 = vld [vmem:[%s5346 + $0xd8] sm:$0xff]
      %v5375 = vld [vmem:[%s5346 + $0xe0] sm:$0xff]
      %v5376 = vld [vmem:[%s5346 + $0xe8] sm:$0xff]
      %v5377 = vld [vmem:[%s5346 + $0xf0] sm:$0xff]
      %v5378 = vld [vmem:[%s5346 + $0xf8] sm:$0xff]
      %v5379 = vld [vmem:[%s5346 + $0x100] sm:$0xff]
      %v5380 = vld [vmem:[%s5346 + $0x108] sm:$0xff]
      %v5381 = vld [vmem:[%s5346 + $0x110] sm:$0xff]
      %v5382 = vld [vmem:[%s5346 + $0x118] sm:$0xff]
      %v5383 = vld [vmem:[%s5346 + $0x120] sm:$0xff]
      %v5384 = vld [vmem:[%s5346 + $0x128] sm:$0xff]
      %v5385 = vld [vmem:[%s5346 + $0x130] sm:$0xff]
      %v5386 = vld [vmem:[%s5346 + $0x138] sm:$0xff]
      %v5387 = vld [vmem:[%s5346 + $0x140] sm:$0xff]
      %v5388 = vld [vmem:[%s5346 + $0x148] sm:$0xff]
      %v5389 = vld [vmem:[%s5346 + $0x150] sm:$0xff]
      %v5390 = vld [vmem:[%s5346 + $0x158] sm:$0xff]
      %v5391 = vld [vmem:[%s5346 + $0x160] sm:$0xff]
      %v5392 = vld [vmem:[%s5346 + $0x168] sm:$0xff]
      %v5393 = vld [vmem:[%s5346 + $0x170] sm:$0xff]
      %v5394 = vld [vmem:[%s5346 + $0x178] sm:$0xff]
      %v5395 = vld [vmem:[%s5346 + $0x180] sm:$0xff]
      %v5396 = vld [vmem:[%s5346 + $0x188] sm:$0xff]
      %v5397 = vld [vmem:[%s5346 + $0x190] sm:$0xff]
      %v5398 = vld [vmem:[%s5346 + $0x198] sm:$0xff]
      %v5399 = vld [vmem:[%s5346 + $0x1a0] sm:$0xff]
      %v5400 = vld [vmem:[%s5346 + $0x1a8] sm:$0xff]
      %v5401 = vld [vmem:[%s5346 + $0x1b0] sm:$0xff]
      %v5402 = vld [vmem:[%s5346 + $0x1b8] sm:$0xff]
      %v5403 = vld [vmem:[%s5346 + $0x1c0] sm:$0xff]
      %v5404 = vld [vmem:[%s5346 + $0x1c8] sm:$0xff]
      %v5405 = vld [vmem:[%s5346 + $0x1d0] sm:$0xff]
      %v5406 = vld [vmem:[%s5346 + $0x1d8] sm:$0xff]
      %v5407 = vld [vmem:[%s5346 + $0x1e0] sm:$0xff]
      %v5408 = vld [vmem:[%s5346 + $0x1e8] sm:$0xff]
      %v5409 = vld [vmem:[%s5346 + $0x1f0] sm:$0xff]
      %v5410 = vld [vmem:[%s5346 + $0x1f8] sm:$0xff]
      %v5411 = vld [vmem:[%s5346 + $0x200] sm:$0xff]
      %v5412 = vld [vmem:[%s5346 + $0x208] sm:$0xff]
      %v5413 = vld [vmem:[%s5346 + $0x210] sm:$0xff]
      %v5414 = vld [vmem:[%s5346 + $0x218] sm:$0xff]
      %v5415 = vld [vmem:[%s5346 + $0x220] sm:$0xff]
      %v5416 = vld [vmem:[%s5346 + $0x228] sm:$0xff]
      %v5417 = vld [vmem:[%s5346 + $0x230] sm:$0xff]
      %v5418 = vld [vmem:[%s5346 + $0x238] sm:$0xff]
      %v5419 = vld [vmem:[%s5346 + $0x240] sm:$0xff]
      %v5420 = vld [vmem:[%s5346 + $0x248] sm:$0xff]
      %v5421 = vld [vmem:[%s5346 + $0x250] sm:$0xff]
      %v5422 = vld [vmem:[%s5346 + $0x258] sm:$0xff]
      %v5423 = vld [vmem:[%s5346 + $0x260] sm:$0xff]
      %v5424 = vld [vmem:[%s5346 + $0x268] sm:$0xff]
      %v5425 = vld [vmem:[%s5346 + $0x270] sm:$0xff]
      %v5426 = vld [vmem:[%s5346 + $0x278] sm:$0xff]
      %v5427 = vld [vmem:[%s5346 + $0x280] sm:$0xff]
      %v5428 = vld [vmem:[%s5346 + $0x288] sm:$0xff]
      %v5429 = vld [vmem:[%s5346 + $0x290] sm:$0xff]
      %v5430 = vld [vmem:[%s5346 + $0x298] sm:$0xff]
      %v5431 = vld [vmem:[%s5346 + $0x2a0] sm:$0xff]
      %v5432 = vld [vmem:[%s5346 + $0x2a8] sm:$0xff]
      %v5433 = vld [vmem:[%s5346 + $0x2b0] sm:$0xff]
      %v5434 = vld [vmem:[%s5346 + $0x2b8] sm:$0xff]
      %v5435 = vld [vmem:[%s5346 + $0x2c0] sm:$0xff]
      %v5436 = vld [vmem:[%s5346 + $0x2c8] sm:$0xff]
      %v5437 = vld [vmem:[%s5346 + $0x2d0] sm:$0xff]
      %v5438 = vld [vmem:[%s5346 + $0x2d8] sm:$0xff]
      %v5439 = vld [vmem:[%s5346 + $0x2e0] sm:$0xff]
      %v5440 = vld [vmem:[%s5346 + $0x2e8] sm:$0xff]
      %v5441 = vld [vmem:[%s5346 + $0x2f0] sm:$0xff]
      %v5442 = vld [vmem:[%s5346 + $0x2f8] sm:$0xff]
      %v5443 = vld [vmem:[%s5346 + $0x300] sm:$0xff]
      %v5444 = vld [vmem:[%s5346 + $0x308] sm:$0xff]
      %v5445 = vld [vmem:[%s5346 + $0x310] sm:$0xff]
      %v5446 = vld [vmem:[%s5346 + $0x318] sm:$0xff]
      %v5447 = vld [vmem:[%s5346 + $0x320] sm:$0xff]
      %v5448 = vld [vmem:[%s5346 + $0x328] sm:$0xff]
      %v5449 = vld [vmem:[%s5346 + $0x330] sm:$0xff]
      %v5450 = vld [vmem:[%s5346 + $0x338] sm:$0xff]
      %v5451 = vld [vmem:[%s5346 + $0x340] sm:$0xff]
      %v5452 = vld [vmem:[%s5346 + $0x348] sm:$0xff]
      %v5453 = vld [vmem:[%s5346 + $0x350] sm:$0xff]
      %v5454 = vld [vmem:[%s5346 + $0x358] sm:$0xff]
      %v5455 = vld [vmem:[%s5346 + $0x360] sm:$0xff]
      %v5456 = vld [vmem:[%s5346 + $0x368] sm:$0xff]
      %v5457 = vld [vmem:[%s5346 + $0x370] sm:$0xff]
      %v5458 = vld [vmem:[%s5346 + $0x378] sm:$0xff]
      %v5459 = vld [vmem:[%s5346 + $0x380] sm:$0xff]
      %v5460 = vld [vmem:[%s5346 + $0x388] sm:$0xff]
      %v5461 = vld [vmem:[%s5346 + $0x390] sm:$0xff]
      %v5462 = vld [vmem:[%s5346 + $0x398] sm:$0xff]
      %v5463 = vld [vmem:[%s5346 + $0x3a0] sm:$0xff]
      %v5464 = vld [vmem:[%s5346 + $0x3a8] sm:$0xff]
      %v5465 = vld [vmem:[%s5346 + $0x3b0] sm:$0xff]
      %v5466 = vld [vmem:[%s5346 + $0x3b8] sm:$0xff]
      %v5467 = vld [vmem:[%s5346 + $0x3c0] sm:$0xff]
      %v5468 = vld [vmem:[%s5346 + $0x3c8] sm:$0xff]
      %v5469 = vld [vmem:[%s5346 + $0x3d0] sm:$0xff]
      %v5470 = vld [vmem:[%s5346 + $0x3d8] sm:$0xff]
      %v5471 = vld [vmem:[%s5346 + $0x3e0] sm:$0xff]
      %v5472 = vld [vmem:[%s5346 + $0x3e8] sm:$0xff]
      %v5473 = vld [vmem:[%s5346 + $0x3f0] sm:$0xff]
      %v5474 = vld [vmem:[%s5346 + $0x3f8] sm:$0xff]
      %v5475 = vld [vmem:[%s5346 + $0x400] sm:$0xff]
      %v5476 = vld [vmem:[%s5346 + $0x408] sm:$0xff]
      %v5477 = vld [vmem:[%s5346 + $0x410] sm:$0xff]
      %v5478 = vld [vmem:[%s5346 + $0x418] sm:$0xff]
      %v5479 = vld [vmem:[%s5346 + $0x420] sm:$0xff]
      %v5480 = vld [vmem:[%s5346 + $0x428] sm:$0xff]
      %v5481 = vld [vmem:[%s5346 + $0x430] sm:$0xff]
      %v5482 = vld [vmem:[%s5346 + $0x438] sm:$0xff]
      %v5483 = vld [vmem:[%s5346 + $0x440] sm:$0xff]
      %v5484 = vld [vmem:[%s5346 + $0x448] sm:$0xff]
      %v5485 = vld [vmem:[%s5346 + $0x450] sm:$0xff]
      %v5486 = vld [vmem:[%s5346 + $0x458] sm:$0xff]
      %v5487 = vld [vmem:[%s5346 + $0x460] sm:$0xff]
      %v5488 = vld [vmem:[%s5346 + $0x468] sm:$0xff]
      %v5489 = vld [vmem:[%s5346 + $0x470] sm:$0xff]
      %v5490 = vld [vmem:[%s5346 + $0x478] sm:$0xff]
      %v5491 = vld [vmem:[%s5346 + $0x480] sm:$0xff]
      %v5492 = vld [vmem:[%s5346 + $0x488] sm:$0xff]
      %v5493 = vld [vmem:[%s5346 + $0x490] sm:$0xff]
      %v5494 = vld [vmem:[%s5346 + $0x498] sm:$0xff]
      %v5495 = vld [vmem:[%s5346 + $0x4a0] sm:$0xff]
      %v5496 = vld [vmem:[%s5346 + $0x4a8] sm:$0xff]
      %v5497 = vld [vmem:[%s5346 + $0x4b0] sm:$0xff]
      %v5498 = vld [vmem:[%s5346 + $0x4b8] sm:$0xff]
      %v5499 = vld [vmem:[%s5346 + $0x4c0] sm:$0xff]
      %v5500 = vld [vmem:[%s5346 + $0x4c8] sm:$0xff]
      %v5501 = vld [vmem:[%s5346 + $0x4d0] sm:$0xff]
      %v5502 = vld [vmem:[%s5346 + $0x4d8] sm:$0xff]
      %v5503 = vld [vmem:[%s5346 + $0x4e0] sm:$0xff]
      %v5504 = vld [vmem:[%s5346 + $0x4e8] sm:$0xff]
      %v5505 = vld [vmem:[%s5346 + $0x4f0] sm:$0xff]
      %v5506 = vld [vmem:[%s5346 + $0x4f8] sm:$0xff]
      %v5507 = vld [vmem:[%s5346 + $0x500] sm:$0xff]
      %v5508 = vld [vmem:[%s5346 + $0x508] sm:$0xff]
      %v5509 = vld [vmem:[%s5346 + $0x510] sm:$0xff]
      %v5510 = vld [vmem:[%s5346 + $0x518] sm:$0xff]
      %v5511 = vld [vmem:[%s5346 + $0x520] sm:$0xff]
      %v5512 = vld [vmem:[%s5346 + $0x528] sm:$0xff]
      %v5513 = vld [vmem:[%s5346 + $0x530] sm:$0xff]
      %v5514 = vld [vmem:[%s5346 + $0x538] sm:$0xff]
      %v5515 = vld [vmem:[%s5346 + $0x540] sm:$0xff]
      %v5516 = vld [vmem:[%s5346 + $0x548] sm:$0xff]
      %v5517 = vld [vmem:[%s5346 + $0x550] sm:$0xff]
      %v5518 = vld [vmem:[%s5346 + $0x558] sm:$0xff]
      %v5519 = vld [vmem:[%s5346 + $0x560] sm:$0xff]
      %v5520 = vld [vmem:[%s5346 + $0x568] sm:$0xff]
      %v5521 = vld [vmem:[%s5346 + $0x570] sm:$0xff]
      %v5522 = vld [vmem:[%s5346 + $0x578] sm:$0xff]
      %v5523 = vld [vmem:[%s5346 + $0x580] sm:$0xff]
      %v5524 = vld [vmem:[%s5346 + $0x588] sm:$0xff]
      %v5525 = vld [vmem:[%s5346 + $0x590] sm:$0xff]
      %v5526 = vld [vmem:[%s5346 + $0x598] sm:$0xff]
      %v5527 = vld [vmem:[%s5346 + $0x5a0] sm:$0xff]
      %v5528 = vld [vmem:[%s5346 + $0x5a8] sm:$0xff]
      %v5529 = vld [vmem:[%s5346 + $0x5b0] sm:$0xff]
      %v5530 = vld [vmem:[%s5346 + $0x5b8] sm:$0xff]
      %v5531 = vld [vmem:[%s5346 + $0x5c0] sm:$0xff]
      %v5532 = vld [vmem:[%s5346 + $0x5c8] sm:$0xff]
      %v5533 = vld [vmem:[%s5346 + $0x5d0] sm:$0xff]
      %v5534 = vld [vmem:[%s5346 + $0x5d8] sm:$0xff]
      %v5535 = vld [vmem:[%s5346 + $0x5e0] sm:$0xff]
      %v5536 = vld [vmem:[%s5346 + $0x5e8] sm:$0xff]
      %v5537 = vld [vmem:[%s5346 + $0x5f0] sm:$0xff]
      %v5538 = vld [vmem:[%s5346 + $0x5f8] sm:$0xff]
      %v5539 = vld [vmem:[%s5346 + $0x600] sm:$0xff]
      %v5540 = vld [vmem:[%s5346 + $0x608] sm:$0xff]
      %v5541 = vld [vmem:[%s5346 + $0x610] sm:$0xff]
      %v5542 = vld [vmem:[%s5346 + $0x618] sm:$0xff]
      %v5543 = vld [vmem:[%s5346 + $0x620] sm:$0xff]
      %v5544 = vld [vmem:[%s5346 + $0x628] sm:$0xff]
      %v5545 = vld [vmem:[%s5346 + $0x630] sm:$0xff]
      %v5546 = vld [vmem:[%s5346 + $0x638] sm:$0xff]
      %v5547 = vld [vmem:[%s5346 + $0x640] sm:$0xff]
      %v5548 = vld [vmem:[%s5346 + $0x648] sm:$0xff]
      %v5549 = vld [vmem:[%s5346 + $0x650] sm:$0xff]
      %v5550 = vld [vmem:[%s5346 + $0x658] sm:$0xff]
      %v5551 = vld [vmem:[%s5346 + $0x660] sm:$0xff]
      %v5552 = vld [vmem:[%s5346 + $0x668] sm:$0xff]
      %v5553 = vld [vmem:[%s5346 + $0x670] sm:$0xff]
      %v5554 = vld [vmem:[%s5346 + $0x678] sm:$0xff]
      %v5555 = vld [vmem:[%s5346 + $0x680] sm:$0xff]
      %v5556 = vld [vmem:[%s5346 + $0x688] sm:$0xff]
      %v5557 = vld [vmem:[%s5346 + $0x690] sm:$0xff]
      %v5558 = vld [vmem:[%s5346 + $0x698] sm:$0xff]
      %v5559 = vld [vmem:[%s5346 + $0x6a0] sm:$0xff]
      %v5560 = vld [vmem:[%s5346 + $0x6a8] sm:$0xff]
      %v5561 = vld [vmem:[%s5346 + $0x6b0] sm:$0xff]
      %v5562 = vld [vmem:[%s5346 + $0x6b8] sm:$0xff]
      %v5563 = vld [vmem:[%s5346 + $0x6c0] sm:$0xff]
      %v5564 = vld [vmem:[%s5346 + $0x6c8] sm:$0xff]
      %v5565 = vld [vmem:[%s5346 + $0x6d0] sm:$0xff]
      %v5566 = vld [vmem:[%s5346 + $0x6d8] sm:$0xff]
      %v5567 = vld [vmem:[%s5346 + $0x6e0] sm:$0xff]
      %v5568 = vld [vmem:[%s5346 + $0x6e8] sm:$0xff]
      %v5569 = vld [vmem:[%s5346 + $0x6f0] sm:$0xff]
      %v5570 = vld [vmem:[%s5346 + $0x6f8] sm:$0xff]
      %v5571 = vld [vmem:[%s5346 + $0x700] sm:$0xff]
      %v5572 = vld [vmem:[%s5346 + $0x708] sm:$0xff]
      %v5573 = vld [vmem:[%s5346 + $0x710] sm:$0xff]
      %v5574 = vld [vmem:[%s5346 + $0x718] sm:$0xff]
      %v5575 = vld [vmem:[%s5346 + $0x720] sm:$0xff]
      %v5576 = vld [vmem:[%s5346 + $0x728] sm:$0xff]
      %v5577 = vld [vmem:[%s5346 + $0x730] sm:$0xff]
      %v5578 = vld [vmem:[%s5346 + $0x738] sm:$0xff]
      %v5579 = vld [vmem:[%s5346 + $0x740] sm:$0xff]
      %v5580 = vld [vmem:[%s5346 + $0x748] sm:$0xff]
      %v5581 = vld [vmem:[%s5346 + $0x750] sm:$0xff]
      %v5582 = vld [vmem:[%s5346 + $0x758] sm:$0xff]
      %v5583 = vld [vmem:[%s5346 + $0x760] sm:$0xff]
      %v5584 = vld [vmem:[%s5346 + $0x768] sm:$0xff]
      %v5585 = vld [vmem:[%s5346 + $0x770] sm:$0xff]
      %v5586 = vld [vmem:[%s5346 + $0x778] sm:$0xff]
      %v5587 = vld [vmem:[%s5346 + $0x780] sm:$0xff]
      %v5588 = vld [vmem:[%s5346 + $0x788] sm:$0xff]
      %v5589 = vld [vmem:[%s5346 + $0x790] sm:$0xff]
      %v5590 = vld [vmem:[%s5346 + $0x798] sm:$0xff]
      %v5591 = vld [vmem:[%s5346 + $0x7a0] sm:$0xff]
      %v5592 = vld [vmem:[%s5346 + $0x7a8] sm:$0xff]
      %v5593 = vld [vmem:[%s5346 + $0x7b0] sm:$0xff]
      %v5594 = vld [vmem:[%s5346 + $0x7b8] sm:$0xff]
      %v5595 = vld [vmem:[%s5346 + $0x7c0] sm:$0xff]
      %v5596 = vld [vmem:[%s5346 + $0x7c8] sm:$0xff]
      %v5597 = vld [vmem:[%s5346 + $0x7d0] sm:$0xff]
      %v5598 = vld [vmem:[%s5346 + $0x7d8] sm:$0xff]
      %v5599 = vld [vmem:[%s5346 + $0x7e0] sm:$0xff]
      %v5600 = vld [vmem:[%s5346 + $0x7e8] sm:$0xff]
      %v5601 = vld [vmem:[%s5346 + $0x7f0] sm:$0xff]
      %v5602 = vld [vmem:[%s5346 + $0x7f8] sm:$0xff]
      %v5603 = vld [vmem:[%s5346 + $0x800] sm:$0xff]
      %v5604 = vld [vmem:[%s5346 + $0x808] sm:$0xff]
      %v5605 = vld [vmem:[%s5346 + $0x810] sm:$0xff]
      %v5606 = vld [vmem:[%s5346 + $0x818] sm:$0xff]
      %v5607 = vld [vmem:[%s5346 + $0x820] sm:$0xff]
      %v5608 = vld [vmem:[%s5346 + $0x828] sm:$0xff]
      %v5609 = vld [vmem:[%s5346 + $0x830] sm:$0xff]
      %v5610 = vld [vmem:[%s5346 + $0x838] sm:$0xff]
      %v5611 = vld [vmem:[%s5346 + $0x840] sm:$0xff]
      %v5612 = vld [vmem:[%s5346 + $0x848] sm:$0xff]
      %v5613 = vld [vmem:[%s5346 + $0x850] sm:$0xff]
      %v5614 = vld [vmem:[%s5346 + $0x858] sm:$0xff]
      %v5615 = vld [vmem:[%s5346 + $0x860] sm:$0xff]
      %v5616 = vld [vmem:[%s5346 + $0x868] sm:$0xff]
      %v5617 = vld [vmem:[%s5346 + $0x870] sm:$0xff]
      %v5618 = vld [vmem:[%s5346 + $0x878] sm:$0xff]
      %v5619 = vld [vmem:[%s5346 + $0x880] sm:$0xff]
      %v5620 = vld [vmem:[%s5346 + $0x888] sm:$0xff]
      %v5621 = vld [vmem:[%s5346 + $0x890] sm:$0xff]
      %v5622 = vld [vmem:[%s5346 + $0x898] sm:$0xff]
      %v5623 = vld [vmem:[%s5346 + $0x8a0] sm:$0xff]
      %v5624 = vld [vmem:[%s5346 + $0x8a8] sm:$0xff]
      %v5625 = vld [vmem:[%s5346 + $0x8b0] sm:$0xff]
      %v5626 = vld [vmem:[%s5346 + $0x8b8] sm:$0xff]
      %v5627 = vld [vmem:[%s5346 + $0x8c0] sm:$0xff]
      %v5628 = vld [vmem:[%s5346 + $0x8c8] sm:$0xff]
      %v5629 = vld [vmem:[%s5346 + $0x8d0] sm:$0xff]
      %v5630 = vld [vmem:[%s5346 + $0x8d8] sm:$0xff]
      %v5631 = vld [vmem:[%s5346 + $0x8e0] sm:$0xff]
      %v5632 = vld [vmem:[%s5346 + $0x8e8] sm:$0xff]
      %v5633 = vld [vmem:[%s5346 + $0x8f0] sm:$0xff]
      %v5634 = vld [vmem:[%s5346 + $0x8f8] sm:$0xff]
      %v5635 = vrot.slane %v2201, 4
      %v5636 = vrot.slane %v2206, 4
      %v5637 = vsel %vm1365, %v5635, %v5636
      %v5638 = vrot.slane %v2202, 4
      %v5639 = vrot.slane %v2207, 4
      %v5640 = vsel %vm1365, %v5638, %v5639
      %v5641 = vrot.slane %v2203, 4
      %v5642 = vrot.slane %v2208, 4
      %v5643 = vsel %vm1365, %v5641, %v5642
      %v5644 = vrot.slane %v2204, 4
      %v5645 = vrot.slane %v2209, 4
      %v5646 = vsel %vm1365, %v5644, %v5645
      %v5647 = vrot.slane %v2205, 4
      %v5648 = vrot.slane %v2210, 4
      %v5649 = vsel %vm1365, %v5647, %v5648
      %v5650 = vrot.slane %v2211, 4
      %v5651 = vsel %vm1365, %v5636, %v5650
      %v5652 = vrot.slane %v2212, 4
      %v5653 = vsel %vm1365, %v5639, %v5652
      %v5654 = vrot.slane %v2213, 4
      %v5655 = vsel %vm1365, %v5642, %v5654
      %v5656 = vrot.slane %v2214, 4
      %v5657 = vsel %vm1365, %v5645, %v5656
      %v5658 = vrot.slane %v2215, 4
      %v5659 = vsel %vm1365, %v5648, %v5658
      %v5668 = vsel %vm2826, %v5649, 0
      %v5670 = vsel %vm2826, %v5659, 0
      %5672 = vmatprep.subr.mxu0 %v5408
      %5673 = vmatpush1.msra.mxu0 %v5407
      %5674 = vmatprep.subr.mxu0 %v5404
      %5675 = vmatpush1.msra.mxu0 %v5403
      %5676 = vmatprep.subr.mxu0 %v5400
      %5677 = vmatpush1.msra.mxu0 %v5399
      %5678 = vmatprep.subr.mxu0 %v5396
      %5679 = vmatpush1.msra.mxu0 %v5395
      %5680 = vmatprep.subr.mxu0 %v5392
      %5681 = vmatpush1.msra.mxu0 %v5391
      %5682 = vmatprep.subr.mxu0 %v5388
      %5683 = vmatpush1.msra.mxu0 %v5387
      %5684 = vmatprep.subr.mxu0 %v5384
      %5685 = vmatpush1.msra.mxu0 %v5383
      %5686 = vmatprep.subr.mxu0 %v5380
      %5687 = vmatpush1.msra.mxu0 %v5379
      %5688 = vmatprep.subr.mxu0 %v5376
      %5689 = vmatpush1.msra.mxu0 %v5375
      %5690 = vmatprep.subr.mxu0 %v5372
      %5691 = vmatpush1.msra.mxu0 %v5371
      %5692 = vmatprep.subr.mxu0 %v5368
      %5693 = vmatpush1.msra.mxu0 %v5367
      %5694 = vmatprep.subr.mxu0 %v5364
      %5695 = vmatpush1.msra.mxu0 %v5363
      %5696 = vmatprep.subr.mxu0 %v5360
      %5697 = vmatpush1.msra.mxu0 %v5359
      %5698 = vmatprep.subr.mxu0 %v5356
      %5699 = vmatpush1.msra.mxu0 %v5355
      %5700 = vmatprep.subr.mxu0 %v5352
      %5701 = vmatpush1.msra.mxu0 %v5351
      %5702 = vmatprep.subr.mxu0 %v5348
      %5703 = vmatpush1.msra.mxu0 %v5347
      %5704 = vmatprep.subr.mxu0 %v5472
      %5705 = vmatpush2.msra.mxu0 %v5471
      %5706 = vmatprep.subr.mxu0 %v5468
      %5707 = vmatpush2.msra.mxu0 %v5467
      %5708 = vmatprep.subr.mxu0 %v5464
      %5709 = vmatpush2.msra.mxu0 %v5463
      %5710 = vmatprep.subr.mxu0 %v5460
      %5711 = vmatpush2.msra.mxu0 %v5459
      %5712 = vmatprep.subr.mxu0 %v5456
      %5713 = vmatpush2.msra.mxu0 %v5455
      %5714 = vmatprep.subr.mxu0 %v5452
      %5715 = vmatpush2.msra.mxu0 %v5451
      %5716 = vmatprep.subr.mxu0 %v5448
      %5717 = vmatpush2.msra.mxu0 %v5447
      %5718 = vmatprep.subr.mxu0 %v5444
      %5719 = vmatpush2.msra.mxu0 %v5443
      %5720 = vmatprep.subr.mxu0 %v5440
      %5721 = vmatpush2.msra.mxu0 %v5439
      %5722 = vmatprep.subr.mxu0 %v5436
      %5723 = vmatpush2.msra.mxu0 %v5435
      %5724 = vmatprep.subr.mxu0 %v5432
      %5725 = vmatpush2.msra.mxu0 %v5431
      %5726 = vmatprep.subr.mxu0 %v5428
      %5727 = vmatpush2.msra.mxu0 %v5427
      %5728 = vmatprep.subr.mxu0 %v5424
      %5729 = vmatpush2.msra.mxu0 %v5423
      %5730 = vmatprep.subr.mxu0 %v5420
      %5731 = vmatpush2.msra.mxu0 %v5419
      %5732 = vmatprep.subr.mxu0 %v5416
      %5733 = vmatpush2.msra.mxu0 %v5415
      %5734 = vmatprep.subr.mxu0 %v5412
      %5735 = vmatpush2.msra.mxu0 %v5411
      %5736 = vmatprep.mubr.f32.mxu0 %v5640
      %5737 = vmatmul.mubr.f32.gmra.mxu0 %v5637
      %v5738 = vpop.f32.mrf.mxu0
      %v5739 = vadd.f32 0.0, %v5738
      %v5740 = vpop.f32.mrf.mxu0
      %v5741 = vadd.f32 0.0, %v5740
      %5742 = vmatprep.mubr.f32.mxu0 %v5653
      %5743 = vmatmul.mubr.f32.gmra.mxu0 %v5651
      %v5744 = vpop.f32.mrf.mxu0
      %v5745 = vadd.f32 0.0, %v5744
      %v5746 = vpop.f32.mrf.mxu0
      %v5747 = vadd.f32 0.0, %v5746
      %5748 = vdwg.mxu0
      %5749 = vmatprep.subr.mxu0 %v5536
      %5750 = vmatpush1.msra.mxu0 %v5535
      %5751 = vmatprep.subr.mxu0 %v5532
      %5752 = vmatpush1.msra.mxu0 %v5531
      %5753 = vmatprep.subr.mxu0 %v5528
      %5754 = vmatpush1.msra.mxu0 %v5527
      %5755 = vmatprep.subr.mxu0 %v5524
      %5756 = vmatpush1.msra.mxu0 %v5523
      %5757 = vmatprep.subr.mxu0 %v5520
      %5758 = vmatpush1.msra.mxu0 %v5519
      %5759 = vmatprep.subr.mxu0 %v5516
      %5760 = vmatpush1.msra.mxu0 %v5515
      %5761 = vmatprep.subr.mxu0 %v5512
      %5762 = vmatpush1.msra.mxu0 %v5511
      %5763 = vmatprep.subr.mxu0 %v5508
      %5764 = vmatpush1.msra.mxu0 %v5507
      %5765 = vmatprep.subr.mxu0 %v5504
      %5766 = vmatpush1.msra.mxu0 %v5503
      %5767 = vmatprep.subr.mxu0 %v5500
      %5768 = vmatpush1.msra.mxu0 %v5499
      %5769 = vmatprep.subr.mxu0 %v5496
      %5770 = vmatpush1.msra.mxu0 %v5495
      %5771 = vmatprep.subr.mxu0 %v5492
      %5772 = vmatpush1.msra.mxu0 %v5491
      %5773 = vmatprep.subr.mxu0 %v5488
      %5774 = vmatpush1.msra.mxu0 %v5487
      %5775 = vmatprep.subr.mxu0 %v5484
      %5776 = vmatpush1.msra.mxu0 %v5483
      %5777 = vmatprep.subr.mxu0 %v5480
      %5778 = vmatpush1.msra.mxu0 %v5479
      %5779 = vmatprep.subr.mxu0 %v5476
      %5780 = vmatpush1.msra.mxu0 %v5475
      %5781 = vmatprep.subr.mxu0 %v5600
      %5782 = vmatpush2.msra.mxu0 %v5599
      %5783 = vmatprep.subr.mxu0 %v5596
      %5784 = vmatpush2.msra.mxu0 %v5595
      %5785 = vmatprep.subr.mxu0 %v5592
      %5786 = vmatpush2.msra.mxu0 %v5591
      %5787 = vmatprep.subr.mxu0 %v5588
      %5788 = vmatpush2.msra.mxu0 %v5587
      %5789 = vmatprep.subr.mxu0 %v5584
      %5790 = vmatpush2.msra.mxu0 %v5583
      %5791 = vmatprep.subr.mxu0 %v5580
      %5792 = vmatpush2.msra.mxu0 %v5579
      %5793 = vmatprep.subr.mxu0 %v5576
      %5794 = vmatpush2.msra.mxu0 %v5575
      %5795 = vmatprep.subr.mxu0 %v5572
      %5796 = vmatpush2.msra.mxu0 %v5571
      %5797 = vmatprep.subr.mxu0 %v5568
      %5798 = vmatpush2.msra.mxu0 %v5567
      %5799 = vmatprep.subr.mxu0 %v5564
      %5800 = vmatpush2.msra.mxu0 %v5563
      %5801 = vmatprep.subr.mxu0 %v5560
      %5802 = vmatpush2.msra.mxu0 %v5559
      %5803 = vmatprep.subr.mxu0 %v5556
      %5804 = vmatpush2.msra.mxu0 %v5555
      %5805 = vmatprep.subr.mxu0 %v5552
      %5806 = vmatpush2.msra.mxu0 %v5551
      %5807 = vmatprep.subr.mxu0 %v5548
      %5808 = vmatpush2.msra.mxu0 %v5547
      %5809 = vmatprep.subr.mxu0 %v5544
      %5810 = vmatpush2.msra.mxu0 %v5543
      %5811 = vmatprep.subr.mxu0 %v5540
      %5812 = vmatpush2.msra.mxu0 %v5539
      %5813 = vmatprep.mubr.f32.mxu0 %v5646
      %5814 = vmatmul.mubr.f32.gmra.mxu0 %v5643
      %v5815 = vpop.f32.mrf.mxu0
      %v5816 = vadd.f32 %v5739, %v5815
      %v5817 = vpop.f32.mrf.mxu0
      %v5818 = vadd.f32 %v5741, %v5817
      %5819 = vmatprep.mubr.f32.mxu0 %v5657
      %5820 = vmatmul.mubr.f32.gmra.mxu0 %v5655
      %v5821 = vpop.f32.mrf.mxu0
      %v5822 = vadd.f32 %v5745, %v5821
      %v5823 = vpop.f32.mrf.mxu0
      %v5824 = vadd.f32 %v5747, %v5823
      %5825 = vdwg.mxu0
      %5826 = vmatprep.subr.mxu0 0.0
      %5827 = vmatpush1.msra.mxu0 0.0
      %5828 = vmatprep.subr.mxu0 0.0
      %5829 = vmatpush1.msra.mxu0 0.0
      %5830 = vmatprep.subr.mxu0 0.0
      %5831 = vmatpush1.msra.mxu0 0.0
      %5832 = vmatprep.subr.mxu0 0.0
      %5833 = vmatpush1.msra.mxu0 0.0
      %5834 = vmatprep.subr.mxu0 0.0
      %5835 = vmatpush1.msra.mxu0 0.0
      %5836 = vmatprep.subr.mxu0 0.0
      %5837 = vmatpush1.msra.mxu0 0.0
      %5838 = vmatprep.subr.mxu0 0.0
      %5839 = vmatpush1.msra.mxu0 0.0
      %5840 = vmatprep.subr.mxu0 0.0
      %5841 = vmatpush1.msra.mxu0 0.0
      %5842 = vmatprep.subr.mxu0 %v5632
      %5843 = vmatpush1.msra.mxu0 %v5631
      %5844 = vmatprep.subr.mxu0 %v5628
      %5845 = vmatpush1.msra.mxu0 %v5627
      %5846 = vmatprep.subr.mxu0 %v5624
      %5847 = vmatpush1.msra.mxu0 %v5623
      %5848 = vmatprep.subr.mxu0 %v5620
      %5849 = vmatpush1.msra.mxu0 %v5619
      %5850 = vmatprep.subr.mxu0 %v5616
      %5851 = vmatpush1.msra.mxu0 %v5615
      %5852 = vmatprep.subr.mxu0 %v5612
      %5853 = vmatpush1.msra.mxu0 %v5611
      %5854 = vmatprep.subr.mxu0 %v5608
      %5855 = vmatpush1.msra.mxu0 %v5607
      %5856 = vmatprep.subr.mxu0 %v5604
      %5857 = vmatpush1.msra.mxu0 %v5603
      %5858 = vmatprep.subr.mxu0 0.0
      %5859 = vmatpush2.msra.mxu0 0.0
      %5860 = vmatprep.subr.mxu0 0.0
      %5861 = vmatpush2.msra.mxu0 0.0
      %5862 = vmatprep.subr.mxu0 0.0
      %5863 = vmatpush2.msra.mxu0 0.0
      %5864 = vmatprep.subr.mxu0 0.0
      %5865 = vmatpush2.msra.mxu0 0.0
      %5866 = vmatprep.subr.mxu0 0.0
      %5867 = vmatpush2.msra.mxu0 0.0
      %5868 = vmatprep.subr.mxu0 0.0
      %5869 = vmatpush2.msra.mxu0 0.0
      %5870 = vmatprep.subr.mxu0 0.0
      %5871 = vmatpush2.msra.mxu0 0.0
      %5872 = vmatprep.subr.mxu0 0.0
      %5873 = vmatpush2.msra.mxu0 0.0
      %5874 = vmatprep.subr.mxu0 0.0
      %5875 = vmatpush2.msra.mxu0 0.0
      %5876 = vmatprep.subr.mxu0 0.0
      %5877 = vmatpush2.msra.mxu0 0.0
      %5878 = vmatprep.subr.mxu0 0.0
      %5879 = vmatpush2.msra.mxu0 0.0
      %5880 = vmatprep.subr.mxu0 0.0
      %5881 = vmatpush2.msra.mxu0 0.0
      %5882 = vmatprep.subr.mxu0 0.0
      %5883 = vmatpush2.msra.mxu0 0.0
      %5884 = vmatprep.subr.mxu0 0.0
      %5885 = vmatpush2.msra.mxu0 0.0
      %5886 = vmatprep.subr.mxu0 0.0
      %5887 = vmatpush2.msra.mxu0 0.0
      %5888 = vmatprep.subr.mxu0 0.0
      %5889 = vmatpush2.msra.mxu0 0.0
      %5890 = vmatprep.mubr.f32.mxu0 0.0
      %5891 = vmatmul.mubr.f32.gmra.mxu0 %v5668
      %v5892 = vpop.f32.mrf.mxu0
      %v5893 = vadd.f32 %v5816, %v5892
      %v5894 = vpop.f32.mrf.mxu0
      %v5895 = vadd.f32 %v5818, %v5894
      %5896 = vmatprep.mubr.f32.mxu0 0.0
      %5897 = vmatmul.mubr.f32.gmra.mxu0 %v5670
      %v5898 = vpop.f32.mrf.mxu0
      %v5899 = vadd.f32 %v5822, %v5898
      %v5900 = vpop.f32.mrf.mxu0
      %v5901 = vadd.f32 %v5824, %v5900
      %5902 = vdwg.mxu0
      %5903 = vmatprep.subr.mxu0 %v5410
      %5904 = vmatpush1.msra.mxu0 %v5409
      %5905 = vmatprep.subr.mxu0 %v5406
      %5906 = vmatpush1.msra.mxu0 %v5405
      %5907 = vmatprep.subr.mxu0 %v5402
      %5908 = vmatpush1.msra.mxu0 %v5401
      %5909 = vmatprep.subr.mxu0 %v5398
      %5910 = vmatpush1.msra.mxu0 %v5397
      %5911 = vmatprep.subr.mxu0 %v5394
      %5912 = vmatpush1.msra.mxu0 %v5393
      %5913 = vmatprep.subr.mxu0 %v5390
      %5914 = vmatpush1.msra.mxu0 %v5389
      %5915 = vmatprep.subr.mxu0 %v5386
      %5916 = vmatpush1.msra.mxu0 %v5385
      %5917 = vmatprep.subr.mxu0 %v5382
      %5918 = vmatpush1.msra.mxu0 %v5381
      %5919 = vmatprep.subr.mxu0 %v5378
      %5920 = vmatpush1.msra.mxu0 %v5377
      %5921 = vmatprep.subr.mxu0 %v5374
      %5922 = vmatpush1.msra.mxu0 %v5373
      %5923 = vmatprep.subr.mxu0 %v5370
      %5924 = vmatpush1.msra.mxu0 %v5369
      %5925 = vmatprep.subr.mxu0 %v5366
      %5926 = vmatpush1.msra.mxu0 %v5365
      %5927 = vmatprep.subr.mxu0 %v5362
      %5928 = vmatpush1.msra.mxu0 %v5361
      %5929 = vmatprep.subr.mxu0 %v5358
      %5930 = vmatpush1.msra.mxu0 %v5357
      %5931 = vmatprep.subr.mxu0 %v5354
      %5932 = vmatpush1.msra.mxu0 %v5353
      %5933 = vmatprep.subr.mxu0 %v5350
      %5934 = vmatpush1.msra.mxu0 %v5349
      %5935 = vmatprep.subr.mxu0 %v5474
      %5936 = vmatpush2.msra.mxu0 %v5473
      %5937 = vmatprep.subr.mxu0 %v5470
      %5938 = vmatpush2.msra.mxu0 %v5469
      %5939 = vmatprep.subr.mxu0 %v5466
      %5940 = vmatpush2.msra.mxu0 %v5465
      %5941 = vmatprep.subr.mxu0 %v5462
      %5942 = vmatpush2.msra.mxu0 %v5461
      %5943 = vmatprep.subr.mxu0 %v5458
      %5944 = vmatpush2.msra.mxu0 %v5457
      %5945 = vmatprep.subr.mxu0 %v5454
      %5946 = vmatpush2.msra.mxu0 %v5453
      %5947 = vmatprep.subr.mxu0 %v5450
      %5948 = vmatpush2.msra.mxu0 %v5449
      %5949 = vmatprep.subr.mxu0 %v5446
      %5950 = vmatpush2.msra.mxu0 %v5445
      %5951 = vmatprep.subr.mxu0 %v5442
      %5952 = vmatpush2.msra.mxu0 %v5441
      %5953 = vmatprep.subr.mxu0 %v5438
      %5954 = vmatpush2.msra.mxu0 %v5437
      %5955 = vmatprep.subr.mxu0 %v5434
      %5956 = vmatpush2.msra.mxu0 %v5433
      %5957 = vmatprep.subr.mxu0 %v5430
      %5958 = vmatpush2.msra.mxu0 %v5429
      %5959 = vmatprep.subr.mxu0 %v5426
      %5960 = vmatpush2.msra.mxu0 %v5425
      %5961 = vmatprep.subr.mxu0 %v5422
      %5962 = vmatpush2.msra.mxu0 %v5421
      %5963 = vmatprep.subr.mxu0 %v5418
      %5964 = vmatpush2.msra.mxu0 %v5417
      %5965 = vmatprep.subr.mxu0 %v5414
      %5966 = vmatpush2.msra.mxu0 %v5413
      %5967 = vmatprep.mubr.f32.mxu0 %v5640
      %5968 = vmatmul.mubr.f32.gmra.mxu0 %v5637
      %v5969 = vpop.f32.mrf.mxu0
      %v5970 = vadd.f32 0.0, %v5969
      %v5971 = vpop.f32.mrf.mxu0
      %v5972 = vadd.f32 0.0, %v5971
      %5973 = vmatprep.mubr.f32.mxu0 %v5653
      %5974 = vmatmul.mubr.f32.gmra.mxu0 %v5651
      %v5975 = vpop.f32.mrf.mxu0
      %v5976 = vadd.f32 0.0, %v5975
      %v5977 = vpop.f32.mrf.mxu0
      %v5978 = vadd.f32 0.0, %v5977
      %5979 = vdwg.mxu0
      %5980 = vmatprep.subr.mxu0 %v5538
      %5981 = vmatpush1.msra.mxu0 %v5537
      %5982 = vmatprep.subr.mxu0 %v5534
      %5983 = vmatpush1.msra.mxu0 %v5533
      %5984 = vmatprep.subr.mxu0 %v5530
      %5985 = vmatpush1.msra.mxu0 %v5529
      %5986 = vmatprep.subr.mxu0 %v5526
      %5987 = vmatpush1.msra.mxu0 %v5525
      %5988 = vmatprep.subr.mxu0 %v5522
      %5989 = vmatpush1.msra.mxu0 %v5521
      %5990 = vmatprep.subr.mxu0 %v5518
      %5991 = vmatpush1.msra.mxu0 %v5517
      %5992 = vmatprep.subr.mxu0 %v5514
      %5993 = vmatpush1.msra.mxu0 %v5513
      %5994 = vmatprep.subr.mxu0 %v5510
      %5995 = vmatpush1.msra.mxu0 %v5509
      %5996 = vmatprep.subr.mxu0 %v5506
      %5997 = vmatpush1.msra.mxu0 %v5505
      %5998 = vmatprep.subr.mxu0 %v5502
      %5999 = vmatpush1.msra.mxu0 %v5501
      %6000 = vmatprep.subr.mxu0 %v5498
      %6001 = vmatpush1.msra.mxu0 %v5497
      %6002 = vmatprep.subr.mxu0 %v5494
      %6003 = vmatpush1.msra.mxu0 %v5493
      %6004 = vmatprep.subr.mxu0 %v5490
      %6005 = vmatpush1.msra.mxu0 %v5489
      %6006 = vmatprep.subr.mxu0 %v5486
      %6007 = vmatpush1.msra.mxu0 %v5485
      %6008 = vmatprep.subr.mxu0 %v5482
      %6009 = vmatpush1.msra.mxu0 %v5481
      %6010 = vmatprep.subr.mxu0 %v5478
      %6011 = vmatpush1.msra.mxu0 %v5477
      %6012 = vmatprep.subr.mxu0 %v5602
      %6013 = vmatpush2.msra.mxu0 %v5601
      %6014 = vmatprep.subr.mxu0 %v5598
      %6015 = vmatpush2.msra.mxu0 %v5597
      %6016 = vmatprep.subr.mxu0 %v5594
      %6017 = vmatpush2.msra.mxu0 %v5593
      %6018 = vmatprep.subr.mxu0 %v5590
      %6019 = vmatpush2.msra.mxu0 %v5589
      %6020 = vmatprep.subr.mxu0 %v5586
      %6021 = vmatpush2.msra.mxu0 %v5585
      %6022 = vmatprep.subr.mxu0 %v5582
      %6023 = vmatpush2.msra.mxu0 %v5581
      %6024 = vmatprep.subr.mxu0 %v5578
      %6025 = vmatpush2.msra.mxu0 %v5577
      %6026 = vmatprep.subr.mxu0 %v5574
      %6027 = vmatpush2.msra.mxu0 %v5573
      %6028 = vmatprep.subr.mxu0 %v5570
      %6029 = vmatpush2.msra.mxu0 %v5569
      %6030 = vmatprep.subr.mxu0 %v5566
      %6031 = vmatpush2.msra.mxu0 %v5565
      %6032 = vmatprep.subr.mxu0 %v5562
      %6033 = vmatpush2.msra.mxu0 %v5561
      %6034 = vmatprep.subr.mxu0 %v5558
      %6035 = vmatpush2.msra.mxu0 %v5557
      %6036 = vmatprep.subr.mxu0 %v5554
      %6037 = vmatpush2.msra.mxu0 %v5553
      %6038 = vmatprep.subr.mxu0 %v5550
      %6039 = vmatpush2.msra.mxu0 %v5549
      %6040 = vmatprep.subr.mxu0 %v5546
      %6041 = vmatpush2.msra.mxu0 %v5545
      %6042 = vmatprep.subr.mxu0 %v5542
      %6043 = vmatpush2.msra.mxu0 %v5541
      %6044 = vmatprep.mubr.f32.mxu0 %v5646
      %6045 = vmatmul.mubr.f32.gmra.mxu0 %v5643
      %v6046 = vpop.f32.mrf.mxu0
      %v6047 = vadd.f32 %v5970, %v6046
      %v6048 = vpop.f32.mrf.mxu0
      %v6049 = vadd.f32 %v5972, %v6048
      %6050 = vmatprep.mubr.f32.mxu0 %v5657
      %6051 = vmatmul.mubr.f32.gmra.mxu0 %v5655
      %v6052 = vpop.f32.mrf.mxu0
      %v6053 = vadd.f32 %v5976, %v6052
      %v6054 = vpop.f32.mrf.mxu0
      %v6055 = vadd.f32 %v5978, %v6054
      %6056 = vdwg.mxu0
      %6057 = vmatprep.subr.mxu0 0.0
      %6058 = vmatpush1.msra.mxu0 0.0
      %6059 = vmatprep.subr.mxu0 0.0
      %6060 = vmatpush1.msra.mxu0 0.0
      %6061 = vmatprep.subr.mxu0 0.0
      %6062 = vmatpush1.msra.mxu0 0.0
      %6063 = vmatprep.subr.mxu0 0.0
      %6064 = vmatpush1.msra.mxu0 0.0
      %6065 = vmatprep.subr.mxu0 0.0
      %6066 = vmatpush1.msra.mxu0 0.0
      %6067 = vmatprep.subr.mxu0 0.0
      %6068 = vmatpush1.msra.mxu0 0.0
      %6069 = vmatprep.subr.mxu0 0.0
      %6070 = vmatpush1.msra.mxu0 0.0
      %6071 = vmatprep.subr.mxu0 0.0
      %6072 = vmatpush1.msra.mxu0 0.0
      %6073 = vmatprep.subr.mxu0 %v5634
      %6074 = vmatpush1.msra.mxu0 %v5633
      %6075 = vmatprep.subr.mxu0 %v5630
      %6076 = vmatpush1.msra.mxu0 %v5629
      %6077 = vmatprep.subr.mxu0 %v5626
      %6078 = vmatpush1.msra.mxu0 %v5625
      %6079 = vmatprep.subr.mxu0 %v5622
      %6080 = vmatpush1.msra.mxu0 %v5621
      %6081 = vmatprep.subr.mxu0 %v5618
      %6082 = vmatpush1.msra.mxu0 %v5617
      %6083 = vmatprep.subr.mxu0 %v5614
      %6084 = vmatpush1.msra.mxu0 %v5613
      %6085 = vmatprep.subr.mxu0 %v5610
      %6086 = vmatpush1.msra.mxu0 %v5609
      %6087 = vmatprep.subr.mxu0 %v5606
      %6088 = vmatpush1.msra.mxu0 %v5605
      %6089 = vmatprep.subr.mxu0 0.0
      %6090 = vmatpush2.msra.mxu0 0.0
      %6091 = vmatprep.subr.mxu0 0.0
      %6092 = vmatpush2.msra.mxu0 0.0
      %6093 = vmatprep.subr.mxu0 0.0
      %6094 = vmatpush2.msra.mxu0 0.0
      %6095 = vmatprep.subr.mxu0 0.0
      %6096 = vmatpush2.msra.mxu0 0.0
      %6097 = vmatprep.subr.mxu0 0.0
      %6098 = vmatpush2.msra.mxu0 0.0
      %6099 = vmatprep.subr.mxu0 0.0
      %6100 = vmatpush2.msra.mxu0 0.0
      %6101 = vmatprep.subr.mxu0 0.0
      %6102 = vmatpush2.msra.mxu0 0.0
      %6103 = vmatprep.subr.mxu0 0.0
      %6104 = vmatpush2.msra.mxu0 0.0
      %6105 = vmatprep.subr.mxu0 0.0
      %6106 = vmatpush2.msra.mxu0 0.0
      %6107 = vmatprep.subr.mxu0 0.0
      %6108 = vmatpush2.msra.mxu0 0.0
      %6109 = vmatprep.subr.mxu0 0.0
      %6110 = vmatpush2.msra.mxu0 0.0
      %6111 = vmatprep.subr.mxu0 0.0
      %6112 = vmatpush2.msra.mxu0 0.0
      %6113 = vmatprep.subr.mxu0 0.0
      %6114 = vmatpush2.msra.mxu0 0.0
      %6115 = vmatprep.subr.mxu0 0.0
      %6116 = vmatpush2.msra.mxu0 0.0
      %6117 = vmatprep.subr.mxu0 0.0
      %6118 = vmatpush2.msra.mxu0 0.0
      %6119 = vmatprep.subr.mxu0 0.0
      %6120 = vmatpush2.msra.mxu0 0.0
      %6121 = vmatprep.mubr.f32.mxu0 0.0
      %6122 = vmatmul.mubr.f32.gmra.mxu0 %v5668
      %v6123 = vpop.f32.mrf.mxu0
      %v6124 = vadd.f32 %v6047, %v6123
      %v6125 = vpop.f32.mrf.mxu0
      %v6126 = vadd.f32 %v6049, %v6125
      %6127 = vmatprep.mubr.f32.mxu0 0.0
      %6128 = vmatmul.mubr.f32.gmra.mxu0 %v5670
      %v6129 = vpop.f32.mrf.mxu0
      %v6130 = vadd.f32 %v6053, %v6129
      %v6131 = vpop.f32.mrf.mxu0
      %v6132 = vadd.f32 %v6055, %v6131
      %6133 = vdwg.mxu0
      %v6134 = vadd.f32 %v5338, %v5893
      %v6135 = vadd.f32 %v5339, %v5895
      %v6136 = vadd.f32 %v5340, %v6124
      %v6137 = vadd.f32 %v5341, %v6126
      %v6138 = vadd.f32 %v5342, %v5899
      %v6139 = vadd.f32 %v5343, %v5901
      %v6140 = vadd.f32 %v5344, %v6130
      %v6141 = vadd.f32 %v5345, %v6132
      %v6142 = vld [vmem:[%s3] sm:$0x3f]
      %vm6143 = vcmask 113664
      %v6145 = vsel %vm6143, %v6142, 0
      %v6148 = vsel %vm787, %v6138, 0
      %v6151 = vsel %vm787, %v6139, 0
      %v6154 = vsel %vm787, %v6140, 0
      %v6157 = vsel %vm787, %v6141, 0
      %6159 = vmatprep.subr.mxu0 0.0
      %6160 = vmatpush1.msra.mxu0 0.0
      %6161 = vmatprep.subr.mxu0 0.0
      %6162 = vmatpush1.msra.mxu0 0.0
      %6163 = vmatprep.subr.mxu0 0.0
      %6164 = vmatpush1.msra.mxu0 0.0
      %6165 = vmatprep.subr.mxu0 0.0
      %6166 = vmatpush1.msra.mxu0 0.0
      %6167 = vmatprep.subr.mxu0 0.0
      %6168 = vmatpush1.msra.mxu0 0.0
      %6169 = vmatprep.subr.mxu0 0.0
      %6170 = vmatpush1.msra.mxu0 0.0
      %6171 = vmatprep.subr.mxu0 0.0
      %6172 = vmatpush1.msra.mxu0 0.0
      %6173 = vmatprep.subr.mxu0 0.0
      %6174 = vmatpush1.msra.mxu0 0.0
      %6175 = vmatprep.subr.mxu0 0.0
      %6176 = vmatpush1.msra.mxu0 0.0
      %6177 = vmatprep.subr.mxu0 0.0
      %6178 = vmatpush1.msra.mxu0 0.0
      %6179 = vmatprep.subr.mxu0 0.0
      %6180 = vmatpush1.msra.mxu0 0.0
      %6181 = vmatprep.subr.mxu0 0.0
      %6182 = vmatpush1.msra.mxu0 0.0
      %6183 = vmatprep.subr.mxu0 0.0
      %6184 = vmatpush1.msra.mxu0 0.0
      %6185 = vmatprep.subr.mxu0 0.0
      %6186 = vmatpush1.msra.mxu0 0.0
      %6187 = vmatprep.subr.mxu0 %v6151
      %6188 = vmatpush1.msra.mxu0 %v6148
      %6189 = vmatprep.subr.mxu0 %v6135
      %6190 = vmatpush1.msra.mxu0 %v6134
      %6191 = vmatprep.subr.mxu0 0.0
      %6192 = vmatpush2.msra.mxu0 0.0
      %6193 = vmatprep.subr.mxu0 0.0
      %6194 = vmatpush2.msra.mxu0 0.0
      %6195 = vmatprep.subr.mxu0 0.0
      %6196 = vmatpush2.msra.mxu0 0.0
      %6197 = vmatprep.subr.mxu0 0.0
      %6198 = vmatpush2.msra.mxu0 0.0
      %6199 = vmatprep.subr.mxu0 0.0
      %6200 = vmatpush2.msra.mxu0 0.0
      %6201 = vmatprep.subr.mxu0 0.0
      %6202 = vmatpush2.msra.mxu0 0.0
      %6203 = vmatprep.subr.mxu0 0.0
      %6204 = vmatpush2.msra.mxu0 0.0
      %6205 = vmatprep.subr.mxu0 0.0
      %6206 = vmatpush2.msra.mxu0 0.0
      %6207 = vmatprep.subr.mxu0 0.0
      %6208 = vmatpush2.msra.mxu0 0.0
      %6209 = vmatprep.subr.mxu0 0.0
      %6210 = vmatpush2.msra.mxu0 0.0
      %6211 = vmatprep.subr.mxu0 0.0
      %6212 = vmatpush2.msra.mxu0 0.0
      %6213 = vmatprep.subr.mxu0 0.0
      %6214 = vmatpush2.msra.mxu0 0.0
      %6215 = vmatprep.subr.mxu0 0.0
      %6216 = vmatpush2.msra.mxu0 0.0
      %6217 = vmatprep.subr.mxu0 0.0
      %6218 = vmatpush2.msra.mxu0 0.0
      %6219 = vmatprep.subr.mxu0 0.0
      %6220 = vmatpush2.msra.mxu0 0.0
      %6221 = vmatprep.subr.mxu0 0.0
      %6222 = vmatpush2.msra.mxu0 0.0
      %6223 = vmatprep.mubr.f32.mxu0 0.0
      %6224 = vmatmul.mubr.f32.gmra.mxu0 %v6145
      %v6225 = vpop.f32.mrf.mxu0
      %v6226 = vadd.f32 0.0, %v6225
      %v6227 = vpop.f32.mrf.mxu0
      %v6228 = vadd.f32 0.0, %v6227
      %6229 = vdwg.mxu0
      %6230 = vmatprep.subr.mxu0 0.0
      %6231 = vmatpush1.msra.mxu0 0.0
      %6232 = vmatprep.subr.mxu0 0.0
      %6233 = vmatpush1.msra.mxu0 0.0
      %6234 = vmatprep.subr.mxu0 0.0
      %6235 = vmatpush1.msra.mxu0 0.0
      %6236 = vmatprep.subr.mxu0 0.0
      %6237 = vmatpush1.msra.mxu0 0.0
      %6238 = vmatprep.subr.mxu0 0.0
      %6239 = vmatpush1.msra.mxu0 0.0
      %6240 = vmatprep.subr.mxu0 0.0
      %6241 = vmatpush1.msra.mxu0 0.0
      %6242 = vmatprep.subr.mxu0 0.0
      %6243 = vmatpush1.msra.mxu0 0.0
      %6244 = vmatprep.subr.mxu0 0.0
      %6245 = vmatpush1.msra.mxu0 0.0
      %6246 = vmatprep.subr.mxu0 0.0
      %6247 = vmatpush1.msra.mxu0 0.0
      %6248 = vmatprep.subr.mxu0 0.0
      %6249 = vmatpush1.msra.mxu0 0.0
      %6250 = vmatprep.subr.mxu0 0.0
      %6251 = vmatpush1.msra.mxu0 0.0
      %6252 = vmatprep.subr.mxu0 0.0
      %6253 = vmatpush1.msra.mxu0 0.0
      %6254 = vmatprep.subr.mxu0 0.0
      %6255 = vmatpush1.msra.mxu0 0.0
      %6256 = vmatprep.subr.mxu0 0.0
      %6257 = vmatpush1.msra.mxu0 0.0
      %6258 = vmatprep.subr.mxu0 %v6157
      %6259 = vmatpush1.msra.mxu0 %v6154
      %6260 = vmatprep.subr.mxu0 %v6137
      %6261 = vmatpush1.msra.mxu0 %v6136
      %6262 = vmatprep.subr.mxu0 0.0
      %6263 = vmatpush2.msra.mxu0 0.0
      %6264 = vmatprep.subr.mxu0 0.0
      %6265 = vmatpush2.msra.mxu0 0.0
      %6266 = vmatprep.subr.mxu0 0.0
      %6267 = vmatpush2.msra.mxu0 0.0
      %6268 = vmatprep.subr.mxu0 0.0
      %6269 = vmatpush2.msra.mxu0 0.0
      %6270 = vmatprep.subr.mxu0 0.0
      %6271 = vmatpush2.msra.mxu0 0.0
      %6272 = vmatprep.subr.mxu0 0.0
      %6273 = vmatpush2.msra.mxu0 0.0
      %6274 = vmatprep.subr.mxu0 0.0
      %6275 = vmatpush2.msra.mxu0 0.0
      %6276 = vmatprep.subr.mxu0 0.0
      %6277 = vmatpush2.msra.mxu0 0.0
      %6278 = vmatprep.subr.mxu0 0.0
      %6279 = vmatpush2.msra.mxu0 0.0
      %6280 = vmatprep.subr.mxu0 0.0
      %6281 = vmatpush2.msra.mxu0 0.0
      %6282 = vmatprep.subr.mxu0 0.0
      %6283 = vmatpush2.msra.mxu0 0.0
      %6284 = vmatprep.subr.mxu0 0.0
      %6285 = vmatpush2.msra.mxu0 0.0
      %6286 = vmatprep.subr.mxu0 0.0
      %6287 = vmatpush2.msra.mxu0 0.0
      %6288 = vmatprep.subr.mxu0 0.0
      %6289 = vmatpush2.msra.mxu0 0.0
      %6290 = vmatprep.subr.mxu0 0.0
      %6291 = vmatpush2.msra.mxu0 0.0
      %6292 = vmatprep.subr.mxu0 0.0
      %6293 = vmatpush2.msra.mxu0 0.0
      %6294 = vmatprep.mubr.f32.mxu0 0.0
      %6295 = vmatmul.mubr.f32.gmra.mxu0 %v6145
      %v6296 = vpop.f32.mrf.mxu0
      %v6297 = vadd.f32 0.0, %v6296
      %v6298 = vpop.f32.mrf.mxu0
      %v6299 = vadd.f32 0.0, %v6298
      %6300 = vdwg.mxu0
      %v6301 = vld [vmem:[%s4] sm:$0xff]
      %v6302 = vld [vmem:[%s4 + $0x8] sm:$0xff]
      %v6303 = vld [vmem:[%s4 + $0x10] sm:$0xff]
      %v6304 = vld [vmem:[%s4 + $0x18] sm:$0xff]
      %v6305 = vld [vmem:[%s4 + $0x20] sm:$0xff]
      %v6306 = vld [vmem:[%s4 + $0x28] sm:$0xff]
      %v6307 = vld [vmem:[%s4 + $0x30] sm:$0xff]
      %v6308 = vld [vmem:[%s4 + $0x38] sm:$0xff]
      %v6309 = vld [vmem:[%s4 + $0x40] sm:$0xff]
      %v6310 = vld [vmem:[%s4 + $0x48] sm:$0xff]
      %v6311 = vld [vmem:[%s4 + $0x50] sm:$0xff]
      %v6312 = vld [vmem:[%s4 + $0x58] sm:$0xff]
      %v6313 = vld [vmem:[%s4 + $0x60] sm:$0xff]
      %v6314 = vld [vmem:[%s4 + $0x68] sm:$0xff]
      %v6315 = vld [vmem:[%s4 + $0x70] sm:$0xff]
      %v6316 = vld [vmem:[%s4 + $0x78] sm:$0xff]
      %v6317 = vld [vmem:[%s4 + $0x80] sm:$0xff]
      %v6318 = vld [vmem:[%s4 + $0x88] sm:$0xff]
      %v6319 = vld [vmem:[%s4 + $0x90] sm:$0xff]
      %v6320 = vld [vmem:[%s4 + $0x98] sm:$0xff]
      %v6321 = vld [vmem:[%s4 + $0xa0] sm:$0xff]
      %v6322 = vld [vmem:[%s4 + $0xa8] sm:$0xff]
      %v6323 = vld [vmem:[%s4 + $0xb0] sm:$0xff]
      %v6324 = vld [vmem:[%s4 + $0xb8] sm:$0xff]
      %v6325 = vld [vmem:[%s4 + $0xc0] sm:$0xff]
      %v6326 = vld [vmem:[%s4 + $0xc8] sm:$0xff]
      %v6327 = vld [vmem:[%s4 + $0xd0] sm:$0xff]
      %v6328 = vld [vmem:[%s4 + $0xd8] sm:$0xff]
      %v6329 = vld [vmem:[%s4 + $0xe0] sm:$0xff]
      %v6330 = vld [vmem:[%s4 + $0xe8] sm:$0xff]
      %v6331 = vld [vmem:[%s4 + $0xf0] sm:$0xff]
      %v6332 = vld [vmem:[%s4 + $0xf8] sm:$0xff]
      %v6333 = vld [vmem:[%s4 + $0x100] sm:$0xff]
      %v6334 = vld [vmem:[%s4 + $0x108] sm:$0xff]
      %v6335 = vld [vmem:[%s4 + $0x110] sm:$0xff]
      %v6336 = vld [vmem:[%s4 + $0x118] sm:$0xff]
      %v6337 = vld [vmem:[%s4 + $0x120] sm:$0xff]
      %v6338 = vld [vmem:[%s4 + $0x128] sm:$0xff]
      %v6339 = vld [vmem:[%s4 + $0x130] sm:$0xff]
      %v6340 = vld [vmem:[%s4 + $0x138] sm:$0xff]
      %v6341 = vld [vmem:[%s4 + $0x140] sm:$0xff]
      %v6342 = vld [vmem:[%s4 + $0x148] sm:$0xff]
      %v6343 = vld [vmem:[%s4 + $0x150] sm:$0xff]
      %v6344 = vld [vmem:[%s4 + $0x158] sm:$0xff]
      %v6345 = vld [vmem:[%s4 + $0x160] sm:$0xff]
      %v6346 = vld [vmem:[%s4 + $0x168] sm:$0xff]
      %v6347 = vld [vmem:[%s4 + $0x170] sm:$0xff]
      %v6348 = vld [vmem:[%s4 + $0x178] sm:$0xff]
      %v6349 = vld [vmem:[%s4 + $0x180] sm:$0xff]
      %v6350 = vld [vmem:[%s4 + $0x188] sm:$0xff]
      %v6351 = vld [vmem:[%s4 + $0x190] sm:$0xff]
      %v6352 = vld [vmem:[%s4 + $0x198] sm:$0xff]
      %v6353 = vld [vmem:[%s4 + $0x1a0] sm:$0xff]
      %v6354 = vld [vmem:[%s4 + $0x1a8] sm:$0xff]
      %v6355 = vld [vmem:[%s4 + $0x1b0] sm:$0xff]
      %v6356 = vld [vmem:[%s4 + $0x1b8] sm:$0xff]
      %s6357 = scalar_lea.vmem %s3, 8
      %v6358 = vld [vmem:[%s6357] sm:$0x3f]
      %v6360 = vsel %vm6143, %v6358, 0
      %6362 = vmatprep.subr.mxu0 0.0
      %6363 = vmatpush1.msra.mxu0 0.0
      %6364 = vmatprep.subr.mxu0 0.0
      %6365 = vmatpush1.msra.mxu0 0.0
      %6366 = vmatprep.subr.mxu0 0.0
      %6367 = vmatpush1.msra.mxu0 0.0
      %6368 = vmatprep.subr.mxu0 0.0
      %6369 = vmatpush1.msra.mxu0 0.0
      %6370 = vmatprep.subr.mxu0 0.0
      %6371 = vmatpush1.msra.mxu0 0.0
      %6372 = vmatprep.subr.mxu0 0.0
      %6373 = vmatpush1.msra.mxu0 0.0
      %6374 = vmatprep.subr.mxu0 0.0
      %6375 = vmatpush1.msra.mxu0 0.0
      %6376 = vmatprep.subr.mxu0 0.0
      %6377 = vmatpush1.msra.mxu0 0.0
      %6378 = vmatprep.subr.mxu0 0.0
      %6379 = vmatpush1.msra.mxu0 0.0
      %6380 = vmatprep.subr.mxu0 0.0
      %6381 = vmatpush1.msra.mxu0 0.0
      %6382 = vmatprep.subr.mxu0 0.0
      %6383 = vmatpush1.msra.mxu0 0.0
      %6384 = vmatprep.subr.mxu0 0.0
      %6385 = vmatpush1.msra.mxu0 0.0
      %6386 = vmatprep.subr.mxu0 0.0
      %6387 = vmatpush1.msra.mxu0 0.0
      %6388 = vmatprep.subr.mxu0 0.0
      %6389 = vmatpush1.msra.mxu0 0.0
      %6390 = vmatprep.subr.mxu0 %v6151
      %6391 = vmatpush1.msra.mxu0 %v6148
      %6392 = vmatprep.subr.mxu0 %v6135
      %6393 = vmatpush1.msra.mxu0 %v6134
      %6394 = vmatprep.subr.mxu0 0.0
      %6395 = vmatpush2.msra.mxu0 0.0
      %6396 = vmatprep.subr.mxu0 0.0
      %6397 = vmatpush2.msra.mxu0 0.0
      %6398 = vmatprep.subr.mxu0 0.0
      %6399 = vmatpush2.msra.mxu0 0.0
      %6400 = vmatprep.subr.mxu0 0.0
      %6401 = vmatpush2.msra.mxu0 0.0
      %6402 = vmatprep.subr.mxu0 0.0
      %6403 = vmatpush2.msra.mxu0 0.0
      %6404 = vmatprep.subr.mxu0 0.0
      %6405 = vmatpush2.msra.mxu0 0.0
      %6406 = vmatprep.subr.mxu0 0.0
      %6407 = vmatpush2.msra.mxu0 0.0
      %6408 = vmatprep.subr.mxu0 0.0
      %6409 = vmatpush2.msra.mxu0 0.0
      %6410 = vmatprep.subr.mxu0 0.0
      %6411 = vmatpush2.msra.mxu0 0.0
      %6412 = vmatprep.subr.mxu0 0.0
      %6413 = vmatpush2.msra.mxu0 0.0
      %6414 = vmatprep.subr.mxu0 0.0
      %6415 = vmatpush2.msra.mxu0 0.0
      %6416 = vmatprep.subr.mxu0 0.0
      %6417 = vmatpush2.msra.mxu0 0.0
      %6418 = vmatprep.subr.mxu0 0.0
      %6419 = vmatpush2.msra.mxu0 0.0
      %6420 = vmatprep.subr.mxu0 0.0
      %6421 = vmatpush2.msra.mxu0 0.0
      %6422 = vmatprep.subr.mxu0 0.0
      %6423 = vmatpush2.msra.mxu0 0.0
      %6424 = vmatprep.subr.mxu0 0.0
      %6425 = vmatpush2.msra.mxu0 0.0
      %6426 = vmatprep.mubr.f32.mxu0 0.0
      %6427 = vmatmul.mubr.f32.gmra.mxu0 %v6360
      %v6428 = vpop.f32.mrf.mxu0
      %v6429 = vadd.f32 0.0, %v6428
      %v6430 = vpop.f32.mrf.mxu0
      %v6431 = vadd.f32 0.0, %v6430
      %6432 = vdwg.mxu0
      %6433 = vmatprep.subr.mxu0 0.0
      %6434 = vmatpush1.msra.mxu0 0.0
      %6435 = vmatprep.subr.mxu0 0.0
      %6436 = vmatpush1.msra.mxu0 0.0
      %6437 = vmatprep.subr.mxu0 0.0
      %6438 = vmatpush1.msra.mxu0 0.0
      %6439 = vmatprep.subr.mxu0 0.0
      %6440 = vmatpush1.msra.mxu0 0.0
      %6441 = vmatprep.subr.mxu0 0.0
      %6442 = vmatpush1.msra.mxu0 0.0
      %6443 = vmatprep.subr.mxu0 0.0
      %6444 = vmatpush1.msra.mxu0 0.0
      %6445 = vmatprep.subr.mxu0 0.0
      %6446 = vmatpush1.msra.mxu0 0.0
      %6447 = vmatprep.subr.mxu0 0.0
      %6448 = vmatpush1.msra.mxu0 0.0
      %6449 = vmatprep.subr.mxu0 0.0
      %6450 = vmatpush1.msra.mxu0 0.0
      %6451 = vmatprep.subr.mxu0 0.0
      %6452 = vmatpush1.msra.mxu0 0.0
      %6453 = vmatprep.subr.mxu0 0.0
      %6454 = vmatpush1.msra.mxu0 0.0
      %6455 = vmatprep.subr.mxu0 0.0
      %6456 = vmatpush1.msra.mxu0 0.0
      %6457 = vmatprep.subr.mxu0 0.0
      %6458 = vmatpush1.msra.mxu0 0.0
      %6459 = vmatprep.subr.mxu0 0.0
      %6460 = vmatpush1.msra.mxu0 0.0
      %6461 = vmatprep.subr.mxu0 %v6157
      %6462 = vmatpush1.msra.mxu0 %v6154
      %6463 = vmatprep.subr.mxu0 %v6137
      %6464 = vmatpush1.msra.mxu0 %v6136
      %6465 = vmatprep.subr.mxu0 0.0
      %6466 = vmatpush2.msra.mxu0 0.0
      %6467 = vmatprep.subr.mxu0 0.0
      %6468 = vmatpush2.msra.mxu0 0.0
      %6469 = vmatprep.subr.mxu0 0.0
      %6470 = vmatpush2.msra.mxu0 0.0
      %6471 = vmatprep.subr.mxu0 0.0
      %6472 = vmatpush2.msra.mxu0 0.0
      %6473 = vmatprep.subr.mxu0 0.0
      %6474 = vmatpush2.msra.mxu0 0.0
      %6475 = vmatprep.subr.mxu0 0.0
      %6476 = vmatpush2.msra.mxu0 0.0
      %6477 = vmatprep.subr.mxu0 0.0
      %6478 = vmatpush2.msra.mxu0 0.0
      %6479 = vmatprep.subr.mxu0 0.0
      %6480 = vmatpush2.msra.mxu0 0.0
      %6481 = vmatprep.subr.mxu0 0.0
      %6482 = vmatpush2.msra.mxu0 0.0
      %6483 = vmatprep.subr.mxu0 0.0
      %6484 = vmatpush2.msra.mxu0 0.0
      %6485 = vmatprep.subr.mxu0 0.0
      %6486 = vmatpush2.msra.mxu0 0.0
      %6487 = vmatprep.subr.mxu0 0.0
      %6488 = vmatpush2.msra.mxu0 0.0
      %6489 = vmatprep.subr.mxu0 0.0
      %6490 = vmatpush2.msra.mxu0 0.0
      %6491 = vmatprep.subr.mxu0 0.0
      %6492 = vmatpush2.msra.mxu0 0.0
      %6493 = vmatprep.subr.mxu0 0.0
      %6494 = vmatpush2.msra.mxu0 0.0
      %6495 = vmatprep.subr.mxu0 0.0
      %6496 = vmatpush2.msra.mxu0 0.0
      %6497 = vmatprep.mubr.f32.mxu0 0.0
      %6498 = vmatmul.mubr.f32.gmra.mxu0 %v6360
      %v6499 = vpop.f32.mrf.mxu0
      %v6500 = vadd.f32 0.0, %v6499
      %v6501 = vpop.f32.mrf.mxu0
      %v6502 = vadd.f32 0.0, %v6501
      %6503 = vdwg.mxu0
      %s6504 = scalar_lea.vmem %s4, 448
      %v6505 = vld [vmem:[%s6504] sm:$0xff]
      %v6506 = vld [vmem:[%s6504 + $0x8] sm:$0xff]
      %v6507 = vld [vmem:[%s6504 + $0x10] sm:$0xff]
      %v6508 = vld [vmem:[%s6504 + $0x18] sm:$0xff]
      %v6509 = vld [vmem:[%s6504 + $0x20] sm:$0xff]
      %v6510 = vld [vmem:[%s6504 + $0x28] sm:$0xff]
      %v6511 = vld [vmem:[%s6504 + $0x30] sm:$0xff]
      %v6512 = vld [vmem:[%s6504 + $0x38] sm:$0xff]
      %v6513 = vld [vmem:[%s6504 + $0x40] sm:$0xff]
      %v6514 = vld [vmem:[%s6504 + $0x48] sm:$0xff]
      %v6515 = vld [vmem:[%s6504 + $0x50] sm:$0xff]
      %v6516 = vld [vmem:[%s6504 + $0x58] sm:$0xff]
      %v6517 = vld [vmem:[%s6504 + $0x60] sm:$0xff]
      %v6518 = vld [vmem:[%s6504 + $0x68] sm:$0xff]
      %v6519 = vld [vmem:[%s6504 + $0x70] sm:$0xff]
      %v6520 = vld [vmem:[%s6504 + $0x78] sm:$0xff]
      %v6521 = vld [vmem:[%s6504 + $0x80] sm:$0xff]
      %v6522 = vld [vmem:[%s6504 + $0x88] sm:$0xff]
      %v6523 = vld [vmem:[%s6504 + $0x90] sm:$0xff]
      %v6524 = vld [vmem:[%s6504 + $0x98] sm:$0xff]
      %v6525 = vld [vmem:[%s6504 + $0xa0] sm:$0xff]
      %v6526 = vld [vmem:[%s6504 + $0xa8] sm:$0xff]
      %v6527 = vld [vmem:[%s6504 + $0xb0] sm:$0xff]
      %v6528 = vld [vmem:[%s6504 + $0xb8] sm:$0xff]
      %v6529 = vld [vmem:[%s6504 + $0xc0] sm:$0xff]
      %v6530 = vld [vmem:[%s6504 + $0xc8] sm:$0xff]
      %v6531 = vld [vmem:[%s6504 + $0xd0] sm:$0xff]
      %v6532 = vld [vmem:[%s6504 + $0xd8] sm:$0xff]
      %v6533 = vld [vmem:[%s6504 + $0xe0] sm:$0xff]
      %v6534 = vld [vmem:[%s6504 + $0xe8] sm:$0xff]
      %v6535 = vld [vmem:[%s6504 + $0xf0] sm:$0xff]
      %v6536 = vld [vmem:[%s6504 + $0xf8] sm:$0xff]
      %v6537 = vld [vmem:[%s6504 + $0x100] sm:$0xff]
      %v6538 = vld [vmem:[%s6504 + $0x108] sm:$0xff]
      %v6539 = vld [vmem:[%s6504 + $0x110] sm:$0xff]
      %v6540 = vld [vmem:[%s6504 + $0x118] sm:$0xff]
      %v6541 = vld [vmem:[%s6504 + $0x120] sm:$0xff]
      %v6542 = vld [vmem:[%s6504 + $0x128] sm:$0xff]
      %v6543 = vld [vmem:[%s6504 + $0x130] sm:$0xff]
      %v6544 = vld [vmem:[%s6504 + $0x138] sm:$0xff]
      %v6545 = vld [vmem:[%s6504 + $0x140] sm:$0xff]
      %v6546 = vld [vmem:[%s6504 + $0x148] sm:$0xff]
      %v6547 = vld [vmem:[%s6504 + $0x150] sm:$0xff]
      %v6548 = vld [vmem:[%s6504 + $0x158] sm:$0xff]
      %v6549 = vld [vmem:[%s6504 + $0x160] sm:$0xff]
      %v6550 = vld [vmem:[%s6504 + $0x168] sm:$0xff]
      %v6551 = vld [vmem:[%s6504 + $0x170] sm:$0xff]
      %v6552 = vld [vmem:[%s6504 + $0x178] sm:$0xff]
      %v6553 = vld [vmem:[%s6504 + $0x180] sm:$0xff]
      %v6554 = vld [vmem:[%s6504 + $0x188] sm:$0xff]
      %v6555 = vld [vmem:[%s6504 + $0x190] sm:$0xff]
      %v6556 = vld [vmem:[%s6504 + $0x198] sm:$0xff]
      %v6557 = vld [vmem:[%s6504 + $0x1a0] sm:$0xff]
      %v6558 = vld [vmem:[%s6504 + $0x1a8] sm:$0xff]
      %v6559 = vld [vmem:[%s6504 + $0x1b0] sm:$0xff]
      %v6560 = vld [vmem:[%s6504 + $0x1b8] sm:$0xff]
      %v6562 = vsel %vm2826, %v6502, 0
      %6564 = vmatprep.subr.mxu0 0.0
      %6565 = vmatpush1.msra.mxu0 %v6520
      %6566 = vmatprep.subr.mxu0 0.0
      %6567 = vmatpush1.msra.mxu0 %v6519
      %6568 = vmatprep.subr.mxu0 0.0
      %6569 = vmatpush1.msra.mxu0 %v6518
      %6570 = vmatprep.subr.mxu0 0.0
      %6571 = vmatpush1.msra.mxu0 %v6517
      %6572 = vmatprep.subr.mxu0 0.0
      %6573 = vmatpush1.msra.mxu0 %v6516
      %6574 = vmatprep.subr.mxu0 0.0
      %6575 = vmatpush1.msra.mxu0 %v6515
      %6576 = vmatprep.subr.mxu0 0.0
      %6577 = vmatpush1.msra.mxu0 %v6514
      %6578 = vmatprep.subr.mxu0 0.0
      %6579 = vmatpush1.msra.mxu0 %v6513
      %6580 = vmatprep.subr.mxu0 0.0
      %6581 = vmatpush1.msra.mxu0 %v6512
      %6582 = vmatprep.subr.mxu0 0.0
      %6583 = vmatpush1.msra.mxu0 %v6511
      %6584 = vmatprep.subr.mxu0 0.0
      %6585 = vmatpush1.msra.mxu0 %v6510
      %6586 = vmatprep.subr.mxu0 0.0
      %6587 = vmatpush1.msra.mxu0 %v6509
      %6588 = vmatprep.subr.mxu0 0.0
      %6589 = vmatpush1.msra.mxu0 %v6508
      %6590 = vmatprep.subr.mxu0 0.0
      %6591 = vmatpush1.msra.mxu0 %v6507
      %6592 = vmatprep.subr.mxu0 0.0
      %6593 = vmatpush1.msra.mxu0 %v6506
      %6594 = vmatprep.subr.mxu0 0.0
      %6595 = vmatpush1.msra.mxu0 %v6505
      %6596 = vmatprep.subr.mxu0 0.0
      %6597 = vmatpush2.msra.mxu0 %v6536
      %6598 = vmatprep.subr.mxu0 0.0
      %6599 = vmatpush2.msra.mxu0 %v6535
      %6600 = vmatprep.subr.mxu0 0.0
      %6601 = vmatpush2.msra.mxu0 %v6534
      %6602 = vmatprep.subr.mxu0 0.0
      %6603 = vmatpush2.msra.mxu0 %v6533
      %6604 = vmatprep.subr.mxu0 0.0
      %6605 = vmatpush2.msra.mxu0 %v6532
      %6606 = vmatprep.subr.mxu0 0.0
      %6607 = vmatpush2.msra.mxu0 %v6531
      %6608 = vmatprep.subr.mxu0 0.0
      %6609 = vmatpush2.msra.mxu0 %v6530
      %6610 = vmatprep.subr.mxu0 0.0
      %6611 = vmatpush2.msra.mxu0 %v6529
      %6612 = vmatprep.subr.mxu0 0.0
      %6613 = vmatpush2.msra.mxu0 %v6528
      %6614 = vmatprep.subr.mxu0 0.0
      %6615 = vmatpush2.msra.mxu0 %v6527
      %6616 = vmatprep.subr.mxu0 0.0
      %6617 = vmatpush2.msra.mxu0 %v6526
      %6618 = vmatprep.subr.mxu0 0.0
      %6619 = vmatpush2.msra.mxu0 %v6525
      %6620 = vmatprep.subr.mxu0 0.0
      %6621 = vmatpush2.msra.mxu0 %v6524
      %6622 = vmatprep.subr.mxu0 0.0
      %6623 = vmatpush2.msra.mxu0 %v6523
      %6624 = vmatprep.subr.mxu0 0.0
      %6625 = vmatpush2.msra.mxu0 %v6522
      %6626 = vmatprep.subr.mxu0 0.0
      %6627 = vmatpush2.msra.mxu0 %v6521
      %6628 = vmatprep.mubr.f32.mxu0 %v6431
      %6629 = vmatmul.mubr.f32.gmra.mxu0 %v6429
      %v6630 = vpop.f32.mrf.mxu0
      %v6631 = vadd.f32 0.0, %v6630
      %v6632 = vpop.f32.mrf.mxu0
      %6633 = vdwg.mxu0
      %6634 = vmatprep.subr.mxu0 0.0
      %6635 = vmatpush1.msra.mxu0 %v6552
      %6636 = vmatprep.subr.mxu0 0.0
      %6637 = vmatpush1.msra.mxu0 %v6551
      %6638 = vmatprep.subr.mxu0 0.0
      %6639 = vmatpush1.msra.mxu0 %v6550
      %6640 = vmatprep.subr.mxu0 0.0
      %6641 = vmatpush1.msra.mxu0 %v6549
      %6642 = vmatprep.subr.mxu0 0.0
      %6643 = vmatpush1.msra.mxu0 %v6548
      %6644 = vmatprep.subr.mxu0 0.0
      %6645 = vmatpush1.msra.mxu0 %v6547
      %6646 = vmatprep.subr.mxu0 0.0
      %6647 = vmatpush1.msra.mxu0 %v6546
      %6648 = vmatprep.subr.mxu0 0.0
      %6649 = vmatpush1.msra.mxu0 %v6545
      %6650 = vmatprep.subr.mxu0 0.0
      %6651 = vmatpush1.msra.mxu0 %v6544
      %6652 = vmatprep.subr.mxu0 0.0
      %6653 = vmatpush1.msra.mxu0 %v6543
      %6654 = vmatprep.subr.mxu0 0.0
      %6655 = vmatpush1.msra.mxu0 %v6542
      %6656 = vmatprep.subr.mxu0 0.0
      %6657 = vmatpush1.msra.mxu0 %v6541
      %6658 = vmatprep.subr.mxu0 0.0
      %6659 = vmatpush1.msra.mxu0 %v6540
      %6660 = vmatprep.subr.mxu0 0.0
      %6661 = vmatpush1.msra.mxu0 %v6539
      %6662 = vmatprep.subr.mxu0 0.0
      %6663 = vmatpush1.msra.mxu0 %v6538
      %6664 = vmatprep.subr.mxu0 0.0
      %6665 = vmatpush1.msra.mxu0 %v6537
      %6666 = vmatprep.subr.mxu0 0.0
      %6667 = vmatpush2.msra.mxu0 0.0
      %6668 = vmatprep.subr.mxu0 0.0
      %6669 = vmatpush2.msra.mxu0 0.0
      %6670 = vmatprep.subr.mxu0 0.0
      %6671 = vmatpush2.msra.mxu0 0.0
      %6672 = vmatprep.subr.mxu0 0.0
      %6673 = vmatpush2.msra.mxu0 0.0
      %6674 = vmatprep.subr.mxu0 0.0
      %6675 = vmatpush2.msra.mxu0 0.0
      %6676 = vmatprep.subr.mxu0 0.0
      %6677 = vmatpush2.msra.mxu0 0.0
      %6678 = vmatprep.subr.mxu0 0.0
      %6679 = vmatpush2.msra.mxu0 0.0
      %6680 = vmatprep.subr.mxu0 0.0
      %6681 = vmatpush2.msra.mxu0 0.0
      %6682 = vmatprep.subr.mxu0 0.0
      %6683 = vmatpush2.msra.mxu0 %v6560
      %6684 = vmatprep.subr.mxu0 0.0
      %6685 = vmatpush2.msra.mxu0 %v6559
      %6686 = vmatprep.subr.mxu0 0.0
      %6687 = vmatpush2.msra.mxu0 %v6558
      %6688 = vmatprep.subr.mxu0 0.0
      %6689 = vmatpush2.msra.mxu0 %v6557
      %6690 = vmatprep.subr.mxu0 0.0
      %6691 = vmatpush2.msra.mxu0 %v6556
      %6692 = vmatprep.subr.mxu0 0.0
      %6693 = vmatpush2.msra.mxu0 %v6555
      %6694 = vmatprep.subr.mxu0 0.0
      %6695 = vmatpush2.msra.mxu0 %v6554
      %6696 = vmatprep.subr.mxu0 0.0
      %6697 = vmatpush2.msra.mxu0 %v6553
      %6698 = vmatprep.mubr.f32.mxu0 %v6562
      %6699 = vmatmul.mubr.f32.gmra.mxu0 %v6500
      %v6700 = vpop.f32.mrf.mxu0
      %v6701 = vadd.f32 %v6631, %v6700
      %v6702 = vpop.f32.mrf.mxu0
      %6703 = vdwg.mxu0
      %v6705 = vsel %vm2826, %v6299, 0
      %6707 = vmatprep.subr.mxu0 0.0
      %6708 = vmatpush1.msra.mxu0 %v6316
      %6709 = vmatprep.subr.mxu0 0.0
      %6710 = vmatpush1.msra.mxu0 %v6315
      %6711 = vmatprep.subr.mxu0 0.0
      %6712 = vmatpush1.msra.mxu0 %v6314
      %6713 = vmatprep.subr.mxu0 0.0
      %6714 = vmatpush1.msra.mxu0 %v6313
      %6715 = vmatprep.subr.mxu0 0.0
      %6716 = vmatpush1.msra.mxu0 %v6312
      %6717 = vmatprep.subr.mxu0 0.0
      %6718 = vmatpush1.msra.mxu0 %v6311
      %6719 = vmatprep.subr.mxu0 0.0
      %6720 = vmatpush1.msra.mxu0 %v6310
      %6721 = vmatprep.subr.mxu0 0.0
      %6722 = vmatpush1.msra.mxu0 %v6309
      %6723 = vmatprep.subr.mxu0 0.0
      %6724 = vmatpush1.msra.mxu0 %v6308
      %6725 = vmatprep.subr.mxu0 0.0
      %6726 = vmatpush1.msra.mxu0 %v6307
      %6727 = vmatprep.subr.mxu0 0.0
      %6728 = vmatpush1.msra.mxu0 %v6306
      %6729 = vmatprep.subr.mxu0 0.0
      %6730 = vmatpush1.msra.mxu0 %v6305
      %6731 = vmatprep.subr.mxu0 0.0
      %6732 = vmatpush1.msra.mxu0 %v6304
      %6733 = vmatprep.subr.mxu0 0.0
      %6734 = vmatpush1.msra.mxu0 %v6303
      %6735 = vmatprep.subr.mxu0 0.0
      %6736 = vmatpush1.msra.mxu0 %v6302
      %6737 = vmatprep.subr.mxu0 0.0
      %6738 = vmatpush1.msra.mxu0 %v6301
      %6739 = vmatprep.subr.mxu0 0.0
      %6740 = vmatpush2.msra.mxu0 %v6332
      %6741 = vmatprep.subr.mxu0 0.0
      %6742 = vmatpush2.msra.mxu0 %v6331
      %6743 = vmatprep.subr.mxu0 0.0
      %6744 = vmatpush2.msra.mxu0 %v6330
      %6745 = vmatprep.subr.mxu0 0.0
      %6746 = vmatpush2.msra.mxu0 %v6329
      %6747 = vmatprep.subr.mxu0 0.0
      %6748 = vmatpush2.msra.mxu0 %v6328
      %6749 = vmatprep.subr.mxu0 0.0
      %6750 = vmatpush2.msra.mxu0 %v6327
      %6751 = vmatprep.subr.mxu0 0.0
      %6752 = vmatpush2.msra.mxu0 %v6326
      %6753 = vmatprep.subr.mxu0 0.0
      %6754 = vmatpush2.msra.mxu0 %v6325
      %6755 = vmatprep.subr.mxu0 0.0
      %6756 = vmatpush2.msra.mxu0 %v6324
      %6757 = vmatprep.subr.mxu0 0.0
      %6758 = vmatpush2.msra.mxu0 %v6323
      %6759 = vmatprep.subr.mxu0 0.0
      %6760 = vmatpush2.msra.mxu0 %v6322
      %6761 = vmatprep.subr.mxu0 0.0
      %6762 = vmatpush2.msra.mxu0 %v6321
      %6763 = vmatprep.subr.mxu0 0.0
      %6764 = vmatpush2.msra.mxu0 %v6320
      %6765 = vmatprep.subr.mxu0 0.0
      %6766 = vmatpush2.msra.mxu0 %v6319
      %6767 = vmatprep.subr.mxu0 0.0
      %6768 = vmatpush2.msra.mxu0 %v6318
      %6769 = vmatprep.subr.mxu0 0.0
      %6770 = vmatpush2.msra.mxu0 %v6317
      %6771 = vmatprep.mubr.f32.mxu0 %v6228
      %6772 = vmatmul.mubr.f32.gmra.mxu0 %v6226
      %v6773 = vpop.f32.mrf.mxu0
      %v6774 = vadd.f32 %v6701, %v6773
      %v6775 = vpop.f32.mrf.mxu0
      %6776 = vdwg.mxu0
      %6777 = vmatprep.subr.mxu0 0.0
      %6778 = vmatpush1.msra.mxu0 %v6348
      %6779 = vmatprep.subr.mxu0 0.0
      %6780 = vmatpush1.msra.mxu0 %v6347
      %6781 = vmatprep.subr.mxu0 0.0
      %6782 = vmatpush1.msra.mxu0 %v6346
      %6783 = vmatprep.subr.mxu0 0.0
      %6784 = vmatpush1.msra.mxu0 %v6345
      %6785 = vmatprep.subr.mxu0 0.0
      %6786 = vmatpush1.msra.mxu0 %v6344
      %6787 = vmatprep.subr.mxu0 0.0
      %6788 = vmatpush1.msra.mxu0 %v6343
      %6789 = vmatprep.subr.mxu0 0.0
      %6790 = vmatpush1.msra.mxu0 %v6342
      %6791 = vmatprep.subr.mxu0 0.0
      %6792 = vmatpush1.msra.mxu0 %v6341
      %6793 = vmatprep.subr.mxu0 0.0
      %6794 = vmatpush1.msra.mxu0 %v6340
      %6795 = vmatprep.subr.mxu0 0.0
      %6796 = vmatpush1.msra.mxu0 %v6339
      %6797 = vmatprep.subr.mxu0 0.0
      %6798 = vmatpush1.msra.mxu0 %v6338
      %6799 = vmatprep.subr.mxu0 0.0
      %6800 = vmatpush1.msra.mxu0 %v6337
      %6801 = vmatprep.subr.mxu0 0.0
      %6802 = vmatpush1.msra.mxu0 %v6336
      %6803 = vmatprep.subr.mxu0 0.0
      %6804 = vmatpush1.msra.mxu0 %v6335
      %6805 = vmatprep.subr.mxu0 0.0
      %6806 = vmatpush1.msra.mxu0 %v6334
      %6807 = vmatprep.subr.mxu0 0.0
      %6808 = vmatpush1.msra.mxu0 %v6333
      %6809 = vmatprep.subr.mxu0 0.0
      %6810 = vmatpush2.msra.mxu0 0.0
      %6811 = vmatprep.subr.mxu0 0.0
      %6812 = vmatpush2.msra.mxu0 0.0
      %6813 = vmatprep.subr.mxu0 0.0
      %6814 = vmatpush2.msra.mxu0 0.0
      %6815 = vmatprep.subr.mxu0 0.0
      %6816 = vmatpush2.msra.mxu0 0.0
      %6817 = vmatprep.subr.mxu0 0.0
      %6818 = vmatpush2.msra.mxu0 0.0
      %6819 = vmatprep.subr.mxu0 0.0
      %6820 = vmatpush2.msra.mxu0 0.0
      %6821 = vmatprep.subr.mxu0 0.0
      %6822 = vmatpush2.msra.mxu0 0.0
      %6823 = vmatprep.subr.mxu0 0.0
      %6824 = vmatpush2.msra.mxu0 0.0
      %6825 = vmatprep.subr.mxu0 0.0
      %6826 = vmatpush2.msra.mxu0 %v6356
      %6827 = vmatprep.subr.mxu0 0.0
      %6828 = vmatpush2.msra.mxu0 %v6355
      %6829 = vmatprep.subr.mxu0 0.0
      %6830 = vmatpush2.msra.mxu0 %v6354
      %6831 = vmatprep.subr.mxu0 0.0
      %6832 = vmatpush2.msra.mxu0 %v6353
      %6833 = vmatprep.subr.mxu0 0.0
      %6834 = vmatpush2.msra.mxu0 %v6352
      %6835 = vmatprep.subr.mxu0 0.0
      %6836 = vmatpush2.msra.mxu0 %v6351
      %6837 = vmatprep.subr.mxu0 0.0
      %6838 = vmatpush2.msra.mxu0 %v6350
      %6839 = vmatprep.subr.mxu0 0.0
      %6840 = vmatpush2.msra.mxu0 %v6349
      %6841 = vmatprep.mubr.f32.mxu0 %v6705
      %6842 = vmatmul.mubr.f32.gmra.mxu0 %v6297
      %v6843 = vpop.f32.mrf.mxu0
      %v6844 = vadd.f32 %v6774, %v6843
      %v6845 = vpop.f32.mrf.mxu0
      %6846 = vdwg.mxu0
      %s6847 = scalar_lea.vmem %s3, 16
      %v6848 = vld [vmem:[%s6847] sm:$0x3f]
      %v6850 = vsel %vm6143, %v6848, 0
      %6852 = vmatprep.subr.mxu0 0.0
      %6853 = vmatpush1.msra.mxu0 0.0
      %6854 = vmatprep.subr.mxu0 0.0
      %6855 = vmatpush1.msra.mxu0 0.0
      %6856 = vmatprep.subr.mxu0 0.0
      %6857 = vmatpush1.msra.mxu0 0.0
      %6858 = vmatprep.subr.mxu0 0.0
      %6859 = vmatpush1.msra.mxu0 0.0
      %6860 = vmatprep.subr.mxu0 0.0
      %6861 = vmatpush1.msra.mxu0 0.0
      %6862 = vmatprep.subr.mxu0 0.0
      %6863 = vmatpush1.msra.mxu0 0.0
      %6864 = vmatprep.subr.mxu0 0.0
      %6865 = vmatpush1.msra.mxu0 0.0
      %6866 = vmatprep.subr.mxu0 0.0
      %6867 = vmatpush1.msra.mxu0 0.0
      %6868 = vmatprep.subr.mxu0 0.0
      %6869 = vmatpush1.msra.mxu0 0.0
      %6870 = vmatprep.subr.mxu0 0.0
      %6871 = vmatpush1.msra.mxu0 0.0
      %6872 = vmatprep.subr.mxu0 0.0
      %6873 = vmatpush1.msra.mxu0 0.0
      %6874 = vmatprep.subr.mxu0 0.0
      %6875 = vmatpush1.msra.mxu0 0.0
      %6876 = vmatprep.subr.mxu0 0.0
      %6877 = vmatpush1.msra.mxu0 0.0
      %6878 = vmatprep.subr.mxu0 0.0
      %6879 = vmatpush1.msra.mxu0 0.0
      %6880 = vmatprep.subr.mxu0 %v6151
      %6881 = vmatpush1.msra.mxu0 %v6148
      %6882 = vmatprep.subr.mxu0 %v6135
      %6883 = vmatpush1.msra.mxu0 %v6134
      %6884 = vmatprep.subr.mxu0 0.0
      %6885 = vmatpush2.msra.mxu0 0.0
      %6886 = vmatprep.subr.mxu0 0.0
      %6887 = vmatpush2.msra.mxu0 0.0
      %6888 = vmatprep.subr.mxu0 0.0
      %6889 = vmatpush2.msra.mxu0 0.0
      %6890 = vmatprep.subr.mxu0 0.0
      %6891 = vmatpush2.msra.mxu0 0.0
      %6892 = vmatprep.subr.mxu0 0.0
      %6893 = vmatpush2.msra.mxu0 0.0
      %6894 = vmatprep.subr.mxu0 0.0
      %6895 = vmatpush2.msra.mxu0 0.0
      %6896 = vmatprep.subr.mxu0 0.0
      %6897 = vmatpush2.msra.mxu0 0.0
      %6898 = vmatprep.subr.mxu0 0.0
      %6899 = vmatpush2.msra.mxu0 0.0
      %6900 = vmatprep.subr.mxu0 0.0
      %6901 = vmatpush2.msra.mxu0 0.0
      %6902 = vmatprep.subr.mxu0 0.0
      %6903 = vmatpush2.msra.mxu0 0.0
      %6904 = vmatprep.subr.mxu0 0.0
      %6905 = vmatpush2.msra.mxu0 0.0
      %6906 = vmatprep.subr.mxu0 0.0
      %6907 = vmatpush2.msra.mxu0 0.0
      %6908 = vmatprep.subr.mxu0 0.0
      %6909 = vmatpush2.msra.mxu0 0.0
      %6910 = vmatprep.subr.mxu0 0.0
      %6911 = vmatpush2.msra.mxu0 0.0
      %6912 = vmatprep.subr.mxu0 0.0
      %6913 = vmatpush2.msra.mxu0 0.0
      %6914 = vmatprep.subr.mxu0 0.0
      %6915 = vmatpush2.msra.mxu0 0.0
      %6916 = vmatprep.mubr.f32.mxu0 0.0
      %6917 = vmatmul.mubr.f32.gmra.mxu0 %v6850
      %v6918 = vpop.f32.mrf.mxu0
      %v6919 = vadd.f32 0.0, %v6918
      %v6920 = vpop.f32.mrf.mxu0
      %v6921 = vadd.f32 0.0, %v6920
      %6922 = vdwg.mxu0
      %6923 = vmatprep.subr.mxu0 0.0
      %6924 = vmatpush1.msra.mxu0 0.0
      %6925 = vmatprep.subr.mxu0 0.0
      %6926 = vmatpush1.msra.mxu0 0.0
      %6927 = vmatprep.subr.mxu0 0.0
      %6928 = vmatpush1.msra.mxu0 0.0
      %6929 = vmatprep.subr.mxu0 0.0
      %6930 = vmatpush1.msra.mxu0 0.0
      %6931 = vmatprep.subr.mxu0 0.0
      %6932 = vmatpush1.msra.mxu0 0.0
      %6933 = vmatprep.subr.mxu0 0.0
      %6934 = vmatpush1.msra.mxu0 0.0
      %6935 = vmatprep.subr.mxu0 0.0
      %6936 = vmatpush1.msra.mxu0 0.0
      %6937 = vmatprep.subr.mxu0 0.0
      %6938 = vmatpush1.msra.mxu0 0.0
      %6939 = vmatprep.subr.mxu0 0.0
      %6940 = vmatpush1.msra.mxu0 0.0
      %6941 = vmatprep.subr.mxu0 0.0
      %6942 = vmatpush1.msra.mxu0 0.0
      %6943 = vmatprep.subr.mxu0 0.0
      %6944 = vmatpush1.msra.mxu0 0.0
      %6945 = vmatprep.subr.mxu0 0.0
      %6946 = vmatpush1.msra.mxu0 0.0
      %6947 = vmatprep.subr.mxu0 0.0
      %6948 = vmatpush1.msra.mxu0 0.0
      %6949 = vmatprep.subr.mxu0 0.0
      %6950 = vmatpush1.msra.mxu0 0.0
      %6951 = vmatprep.subr.mxu0 %v6157
      %6952 = vmatpush1.msra.mxu0 %v6154
      %6953 = vmatprep.subr.mxu0 %v6137
      %6954 = vmatpush1.msra.mxu0 %v6136
      %6955 = vmatprep.subr.mxu0 0.0
      %6956 = vmatpush2.msra.mxu0 0.0
      %6957 = vmatprep.subr.mxu0 0.0
      %6958 = vmatpush2.msra.mxu0 0.0
      %6959 = vmatprep.subr.mxu0 0.0
      %6960 = vmatpush2.msra.mxu0 0.0
      %6961 = vmatprep.subr.mxu0 0.0
      %6962 = vmatpush2.msra.mxu0 0.0
      %6963 = vmatprep.subr.mxu0 0.0
      %6964 = vmatpush2.msra.mxu0 0.0
      %6965 = vmatprep.subr.mxu0 0.0
      %6966 = vmatpush2.msra.mxu0 0.0
      %6967 = vmatprep.subr.mxu0 0.0
      %6968 = vmatpush2.msra.mxu0 0.0
      %6969 = vmatprep.subr.mxu0 0.0
      %6970 = vmatpush2.msra.mxu0 0.0
      %6971 = vmatprep.subr.mxu0 0.0
      %6972 = vmatpush2.msra.mxu0 0.0
      %6973 = vmatprep.subr.mxu0 0.0
      %6974 = vmatpush2.msra.mxu0 0.0
      %6975 = vmatprep.subr.mxu0 0.0
      %6976 = vmatpush2.msra.mxu0 0.0
      %6977 = vmatprep.subr.mxu0 0.0
      %6978 = vmatpush2.msra.mxu0 0.0
      %6979 = vmatprep.subr.mxu0 0.0
      %6980 = vmatpush2.msra.mxu0 0.0
      %6981 = vmatprep.subr.mxu0 0.0
      %6982 = vmatpush2.msra.mxu0 0.0
      %6983 = vmatprep.subr.mxu0 0.0
      %6984 = vmatpush2.msra.mxu0 0.0
      %6985 = vmatprep.subr.mxu0 0.0
      %6986 = vmatpush2.msra.mxu0 0.0
      %6987 = vmatprep.mubr.f32.mxu0 0.0
      %6988 = vmatmul.mubr.f32.gmra.mxu0 %v6850
      %v6989 = vpop.f32.mrf.mxu0
      %v6990 = vadd.f32 0.0, %v6989
      %v6991 = vpop.f32.mrf.mxu0
      %v6992 = vadd.f32 0.0, %v6991
      %6993 = vdwg.mxu0
      %s6994 = scalar_lea.vmem %s4, 896
      %v6995 = vld [vmem:[%s6994] sm:$0xff]
      %v6996 = vld [vmem:[%s6994 + $0x8] sm:$0xff]
      %v6997 = vld [vmem:[%s6994 + $0x10] sm:$0xff]
      %v6998 = vld [vmem:[%s6994 + $0x18] sm:$0xff]
      %v6999 = vld [vmem:[%s6994 + $0x20] sm:$0xff]
      %v7000 = vld [vmem:[%s6994 + $0x28] sm:$0xff]
      %v7001 = vld [vmem:[%s6994 + $0x30] sm:$0xff]
      %v7002 = vld [vmem:[%s6994 + $0x38] sm:$0xff]
      %v7003 = vld [vmem:[%s6994 + $0x40] sm:$0xff]
      %v7004 = vld [vmem:[%s6994 + $0x48] sm:$0xff]
      %v7005 = vld [vmem:[%s6994 + $0x50] sm:$0xff]
      %v7006 = vld [vmem:[%s6994 + $0x58] sm:$0xff]
      %v7007 = vld [vmem:[%s6994 + $0x60] sm:$0xff]
      %v7008 = vld [vmem:[%s6994 + $0x68] sm:$0xff]
      %v7009 = vld [vmem:[%s6994 + $0x70] sm:$0xff]
      %v7010 = vld [vmem:[%s6994 + $0x78] sm:$0xff]
      %v7011 = vld [vmem:[%s6994 + $0x80] sm:$0xff]
      %v7012 = vld [vmem:[%s6994 + $0x88] sm:$0xff]
      %v7013 = vld [vmem:[%s6994 + $0x90] sm:$0xff]
      %v7014 = vld [vmem:[%s6994 + $0x98] sm:$0xff]
      %v7015 = vld [vmem:[%s6994 + $0xa0] sm:$0xff]
      %v7016 = vld [vmem:[%s6994 + $0xa8] sm:$0xff]
      %v7017 = vld [vmem:[%s6994 + $0xb0] sm:$0xff]
      %v7018 = vld [vmem:[%s6994 + $0xb8] sm:$0xff]
      %v7019 = vld [vmem:[%s6994 + $0xc0] sm:$0xff]
      %v7020 = vld [vmem:[%s6994 + $0xc8] sm:$0xff]
      %v7021 = vld [vmem:[%s6994 + $0xd0] sm:$0xff]
      %v7022 = vld [vmem:[%s6994 + $0xd8] sm:$0xff]
      %v7023 = vld [vmem:[%s6994 + $0xe0] sm:$0xff]
      %v7024 = vld [vmem:[%s6994 + $0xe8] sm:$0xff]
      %v7025 = vld [vmem:[%s6994 + $0xf0] sm:$0xff]
      %v7026 = vld [vmem:[%s6994 + $0xf8] sm:$0xff]
      %v7027 = vld [vmem:[%s6994 + $0x100] sm:$0xff]
      %v7028 = vld [vmem:[%s6994 + $0x108] sm:$0xff]
      %v7029 = vld [vmem:[%s6994 + $0x110] sm:$0xff]
      %v7030 = vld [vmem:[%s6994 + $0x118] sm:$0xff]
      %v7031 = vld [vmem:[%s6994 + $0x120] sm:$0xff]
      %v7032 = vld [vmem:[%s6994 + $0x128] sm:$0xff]
      %v7033 = vld [vmem:[%s6994 + $0x130] sm:$0xff]
      %v7034 = vld [vmem:[%s6994 + $0x138] sm:$0xff]
      %v7035 = vld [vmem:[%s6994 + $0x140] sm:$0xff]
      %v7036 = vld [vmem:[%s6994 + $0x148] sm:$0xff]
      %v7037 = vld [vmem:[%s6994 + $0x150] sm:$0xff]
      %v7038 = vld [vmem:[%s6994 + $0x158] sm:$0xff]
      %v7039 = vld [vmem:[%s6994 + $0x160] sm:$0xff]
      %v7040 = vld [vmem:[%s6994 + $0x168] sm:$0xff]
      %v7041 = vld [vmem:[%s6994 + $0x170] sm:$0xff]
      %v7042 = vld [vmem:[%s6994 + $0x178] sm:$0xff]
      %v7043 = vld [vmem:[%s6994 + $0x180] sm:$0xff]
      %v7044 = vld [vmem:[%s6994 + $0x188] sm:$0xff]
      %v7045 = vld [vmem:[%s6994 + $0x190] sm:$0xff]
      %v7046 = vld [vmem:[%s6994 + $0x198] sm:$0xff]
      %v7047 = vld [vmem:[%s6994 + $0x1a0] sm:$0xff]
      %v7048 = vld [vmem:[%s6994 + $0x1a8] sm:$0xff]
      %v7049 = vld [vmem:[%s6994 + $0x1b0] sm:$0xff]
      %v7050 = vld [vmem:[%s6994 + $0x1b8] sm:$0xff]
      %v7052 = vsel %vm2826, %v6992, 0
      %7054 = vmatprep.subr.mxu0 0.0
      %7055 = vmatpush1.msra.mxu0 %v7010
      %7056 = vmatprep.subr.mxu0 0.0
      %7057 = vmatpush1.msra.mxu0 %v7009
      %7058 = vmatprep.subr.mxu0 0.0
      %7059 = vmatpush1.msra.mxu0 %v7008
      %7060 = vmatprep.subr.mxu0 0.0
      %7061 = vmatpush1.msra.mxu0 %v7007
      %7062 = vmatprep.subr.mxu0 0.0
      %7063 = vmatpush1.msra.mxu0 %v7006
      %7064 = vmatprep.subr.mxu0 0.0
      %7065 = vmatpush1.msra.mxu0 %v7005
      %7066 = vmatprep.subr.mxu0 0.0
      %7067 = vmatpush1.msra.mxu0 %v7004
      %7068 = vmatprep.subr.mxu0 0.0
      %7069 = vmatpush1.msra.mxu0 %v7003
      %7070 = vmatprep.subr.mxu0 0.0
      %7071 = vmatpush1.msra.mxu0 %v7002
      %7072 = vmatprep.subr.mxu0 0.0
      %7073 = vmatpush1.msra.mxu0 %v7001
      %7074 = vmatprep.subr.mxu0 0.0
      %7075 = vmatpush1.msra.mxu0 %v7000
      %7076 = vmatprep.subr.mxu0 0.0
      %7077 = vmatpush1.msra.mxu0 %v6999
      %7078 = vmatprep.subr.mxu0 0.0
      %7079 = vmatpush1.msra.mxu0 %v6998
      %7080 = vmatprep.subr.mxu0 0.0
      %7081 = vmatpush1.msra.mxu0 %v6997
      %7082 = vmatprep.subr.mxu0 0.0
      %7083 = vmatpush1.msra.mxu0 %v6996
      %7084 = vmatprep.subr.mxu0 0.0
      %7085 = vmatpush1.msra.mxu0 %v6995
      %7086 = vmatprep.subr.mxu0 0.0
      %7087 = vmatpush2.msra.mxu0 %v7026
      %7088 = vmatprep.subr.mxu0 0.0
      %7089 = vmatpush2.msra.mxu0 %v7025
      %7090 = vmatprep.subr.mxu0 0.0
      %7091 = vmatpush2.msra.mxu0 %v7024
      %7092 = vmatprep.subr.mxu0 0.0
      %7093 = vmatpush2.msra.mxu0 %v7023
      %7094 = vmatprep.subr.mxu0 0.0
      %7095 = vmatpush2.msra.mxu0 %v7022
      %7096 = vmatprep.subr.mxu0 0.0
      %7097 = vmatpush2.msra.mxu0 %v7021
      %7098 = vmatprep.subr.mxu0 0.0
      %7099 = vmatpush2.msra.mxu0 %v7020
      %7100 = vmatprep.subr.mxu0 0.0
      %7101 = vmatpush2.msra.mxu0 %v7019
      %7102 = vmatprep.subr.mxu0 0.0
      %7103 = vmatpush2.msra.mxu0 %v7018
      %7104 = vmatprep.subr.mxu0 0.0
      %7105 = vmatpush2.msra.mxu0 %v7017
      %7106 = vmatprep.subr.mxu0 0.0
      %7107 = vmatpush2.msra.mxu0 %v7016
      %7108 = vmatprep.subr.mxu0 0.0
      %7109 = vmatpush2.msra.mxu0 %v7015
      %7110 = vmatprep.subr.mxu0 0.0
      %7111 = vmatpush2.msra.mxu0 %v7014
      %7112 = vmatprep.subr.mxu0 0.0
      %7113 = vmatpush2.msra.mxu0 %v7013
      %7114 = vmatprep.subr.mxu0 0.0
      %7115 = vmatpush2.msra.mxu0 %v7012
      %7116 = vmatprep.subr.mxu0 0.0
      %7117 = vmatpush2.msra.mxu0 %v7011
      %7118 = vmatprep.mubr.f32.mxu0 %v6921
      %7119 = vmatmul.mubr.f32.gmra.mxu0 %v6919
      %v7120 = vpop.f32.mrf.mxu0
      %v7121 = vadd.f32 0.0, %v7120
      %v7122 = vpop.f32.mrf.mxu0
      %7123 = vdwg.mxu0
      %7124 = vmatprep.subr.mxu0 0.0
      %7125 = vmatpush1.msra.mxu0 %v7042
      %7126 = vmatprep.subr.mxu0 0.0
      %7127 = vmatpush1.msra.mxu0 %v7041
      %7128 = vmatprep.subr.mxu0 0.0
      %7129 = vmatpush1.msra.mxu0 %v7040
      %7130 = vmatprep.subr.mxu0 0.0
      %7131 = vmatpush1.msra.mxu0 %v7039
      %7132 = vmatprep.subr.mxu0 0.0
      %7133 = vmatpush1.msra.mxu0 %v7038
      %7134 = vmatprep.subr.mxu0 0.0
      %7135 = vmatpush1.msra.mxu0 %v7037
      %7136 = vmatprep.subr.mxu0 0.0
      %7137 = vmatpush1.msra.mxu0 %v7036
      %7138 = vmatprep.subr.mxu0 0.0
      %7139 = vmatpush1.msra.mxu0 %v7035
      %7140 = vmatprep.subr.mxu0 0.0
      %7141 = vmatpush1.msra.mxu0 %v7034
      %7142 = vmatprep.subr.mxu0 0.0
      %7143 = vmatpush1.msra.mxu0 %v7033
      %7144 = vmatprep.subr.mxu0 0.0
      %7145 = vmatpush1.msra.mxu0 %v7032
      %7146 = vmatprep.subr.mxu0 0.0
      %7147 = vmatpush1.msra.mxu0 %v7031
      %7148 = vmatprep.subr.mxu0 0.0
      %7149 = vmatpush1.msra.mxu0 %v7030
      %7150 = vmatprep.subr.mxu0 0.0
      %7151 = vmatpush1.msra.mxu0 %v7029
      %7152 = vmatprep.subr.mxu0 0.0
      %7153 = vmatpush1.msra.mxu0 %v7028
      %7154 = vmatprep.subr.mxu0 0.0
      %7155 = vmatpush1.msra.mxu0 %v7027
      %7156 = vmatprep.subr.mxu0 0.0
      %7157 = vmatpush2.msra.mxu0 0.0
      %7158 = vmatprep.subr.mxu0 0.0
      %7159 = vmatpush2.msra.mxu0 0.0
      %7160 = vmatprep.subr.mxu0 0.0
      %7161 = vmatpush2.msra.mxu0 0.0
      %7162 = vmatprep.subr.mxu0 0.0
      %7163 = vmatpush2.msra.mxu0 0.0
      %7164 = vmatprep.subr.mxu0 0.0
      %7165 = vmatpush2.msra.mxu0 0.0
      %7166 = vmatprep.subr.mxu0 0.0
      %7167 = vmatpush2.msra.mxu0 0.0
      %7168 = vmatprep.subr.mxu0 0.0
      %7169 = vmatpush2.msra.mxu0 0.0
      %7170 = vmatprep.subr.mxu0 0.0
      %7171 = vmatpush2.msra.mxu0 0.0
      %7172 = vmatprep.subr.mxu0 0.0
      %7173 = vmatpush2.msra.mxu0 %v7050
      %7174 = vmatprep.subr.mxu0 0.0
      %7175 = vmatpush2.msra.mxu0 %v7049
      %7176 = vmatprep.subr.mxu0 0.0
      %7177 = vmatpush2.msra.mxu0 %v7048
      %7178 = vmatprep.subr.mxu0 0.0
      %7179 = vmatpush2.msra.mxu0 %v7047
      %7180 = vmatprep.subr.mxu0 0.0
      %7181 = vmatpush2.msra.mxu0 %v7046
      %7182 = vmatprep.subr.mxu0 0.0
      %7183 = vmatpush2.msra.mxu0 %v7045
      %7184 = vmatprep.subr.mxu0 0.0
      %7185 = vmatpush2.msra.mxu0 %v7044
      %7186 = vmatprep.subr.mxu0 0.0
      %7187 = vmatpush2.msra.mxu0 %v7043
      %7188 = vmatprep.mubr.f32.mxu0 %v7052
      %7189 = vmatmul.mubr.f32.gmra.mxu0 %v6990
      %v7190 = vpop.f32.mrf.mxu0
      %v7191 = vadd.f32 %v7121, %v7190
      %v7192 = vpop.f32.mrf.mxu0
      %7193 = vdwg.mxu0
      %v7194 = vadd.f32 %v6844, %v7191
      %vm7195 = vcmask 46080
      %7196 = vst.msk [vmem:[%s222] sm:$0x3f] %vm7195, %v7194
      %p7197 = scmp.lt.s32.totalorder %s16, 5
      %s7198 = scalar_select %p7197, %s16, 5
      %s7199 = smul.addr %s7198, 8
      %s7200 = scalar_lea.vmem %s5, %s7199
      // Predicated region
      $region41: #{down_simple_net.1} parent=39 // pred_check
        %p7201 = pneg %p144
      $region42: #{down_simple_net.1} parent=39 // pred_check_branch
        %7203 = sbr.rel (%p7201) target = $region44
      $region43: #{down_simple_net.1} parent=39 // pred_region
        _
      $region44: #{down_simple_net.1} parent=39 // pred_fallthru
        _
    $region40: #{down_simple_net.1} parent=5 // pred_fallthru
      _
    %p7204 = scmp.le.s32.totalorder 2, %s11
    // Predicated region
    $region45: #{down_simple_net.1} parent=5 // pred_check
      %p7205 = pneg %p7204
    $region46: #{down_simple_net.1} parent=5 // pred_check_branch
      %7207 = sbr.rel (%p7205) target = $region48
    $region47: #{down_simple_net.1} parent=5 // pred_region
      %s7208 = ssub.s32 %s11, 2
      // Predicated region
      $region49: #{down_simple_net.1} parent=47 // pred_check
        %p7209 = pneg %p150
      $region50: #{down_simple_net.1} parent=47 // pred_check_branch
        %7211 = sbr.rel (%p7209) target = $region52
      $region51: #{down_simple_net.1} parent=47 // pred_region
        %p7212 = scmp.lt.s32.totalorder %s17, 5
        %s7213 = scalar_select %p7212, %s17, 5
        %s7214 = smul.addr %s7213, 8
        %s7215 = scalar_lea.vmem %s5, %s7214
      $region52: #{down_simple_net.1} parent=47 // pred_fallthru
        _
    $region48: #{down_simple_net.1} parent=5 // pred_fallthru
      _
  $region6: #{down_simple_net.1} parent=0 // loop_footer
    %s15 = sadd.s32 1, %s11
  $region7: #{down_simple_net.1} parent=0 // loop_footer_branch
    %10 = sbr.rel target = $region3
  $region8: #{down_simple_net.1} parent=0 // loop_exit
    _

</llo_original>
